<compile_context>
chip_gen: v7x
topology: tpu7x:2x2x1
jax: 0.10.0
libtpu: 0.0.40
codegen_flags: <defaults>
</compile_context>

<pallas_src>
import jax
import jax.numpy as jnp
from jax import lax
from jax.experimental import pallas as pl
from jax.experimental.pallas import tpu as pltpu


# ----------------------------------------------------------------------------
# Fused bi-GRU + HAN attention (runs inside the Pallas kernel, all in VMEM)
# ----------------------------------------------------------------------------
def _bigru_attention(x2, T, Bp,
                     wih_f_ref, whh_f_ref, b_f_ref,
                     wih_b_ref, whh_b_ref, b_b_ref,
                     attw_ref, attb_ref, attu_ref,
                     hf0, hb0):
    """Bidirectional GRU over a length-T sequence + HAN attention pooling.

    x2      : (T*Bp, E) flattened inputs, row index = t*Bp + b
    wih_*   : (3, E, H) per-gate input weights (gate order r, z, n)
    whh_*   : (3, H, H) per-gate hidden weights
    b_*     : (4, H)    rows = [b_ir+b_hr, b_iz+b_hz, b_in, b_hn]
    attw/attb/attu : (2H,2H) / (1,2H) / (1,2H) HAN attention parameters
    hf0,hb0 : (Bp, H) initial hidden states (forward / backward)
    Returns (pooled (Bp,2H), f_flat (T*Bp,2H), hf_last, hb_last).
    """
    # ---- input projection hoisted out of the recurrence: 1 matmul per gate/dir ----
    def proj(wih_ref, b_ref):
        return [jnp.dot(x2, wih_ref[g], preferred_element_type=jnp.float32)
                + b_ref[g:g + 1, :] for g in range(3)]

    gi_f = proj(wih_f_ref, b_f_ref)                 # 3 x (T*Bp, H)
    gi_b = proj(wih_b_ref, b_b_ref)
    whh_f = [whh_f_ref[g] for g in range(3)]        # hoisted weight loads
    whh_b = [whh_b_ref[g] for g in range(3)]
    bhn_f = b_f_ref[3:4, :]
    bhn_b = b_b_ref[3:4, :]

    def gru_step(h, gi, row0, whh, bhn):
        gr = gi[0][row0:row0 + Bp, :]
        gz = gi[1][row0:row0 + Bp, :]
        gn = gi[2][row0:row0 + Bp, :]
        r = jax.nn.sigmoid(gr + jnp.dot(h, whh[0], preferred_element_type=jnp.float32))
        z = jax.nn.sigmoid(gz + jnp.dot(h, whh[1], preferred_element_type=jnp.float32))
        n = jnp.tanh(gn + r * (jnp.dot(h, whh[2],
                                       preferred_element_type=jnp.float32) + bhn))
        return (1.0 - z) * n + z * h

    # ---- fused fwd/bwd recurrence, fully unrolled (T is small & static) ----
    hf, hb = hf0, hb0
    hf_list = [None] * T
    hb_list = [None] * T
    for t in range(T):
        tb = T - 1 - t
        hf = gru_step(hf, gi_f, t * Bp, whh_f, bhn_f)
        hb = gru_step(hb, gi_b, tb * Bp, whh_b, bhn_b)
        hf_list[t] = hf
        hb_list[tb] = hb

    h_cat = [jnp.concatenate([hf_list[t], hb_list[t]], axis=-1) for t in range(T)]
    f_flat = jnp.concatenate(h_cat, axis=0)                      # (T*Bp, 2H)

    # ---- HAN attention: tanh(f W + b), tanh(. u), softmax over T, weighted sum ----
    hatt = jnp.tanh(jnp.dot(f_flat, attw_ref[...],
                            preferred_element_type=jnp.float32) + attb_ref[...])
    sc = jnp.tanh(jnp.sum(hatt * attu_ref[...], axis=-1, keepdims=True))   # (T*Bp, 1)
    s = jnp.concatenate([sc[t * Bp:(t + 1) * Bp, :] for t in range(T)], axis=1)  # (Bp,T)
    s = s - jnp.max(s, axis=-1, keepdims=True)
    e = jnp.exp(s)
    alpha = e / jnp.sum(e, axis=-1, keepdims=True)               # softmax over T

    pooled = h_cat[0] * alpha[:, 0:1]
    for t in range(1, T):
        pooled = pooled + h_cat[t] * alpha[:, t:t + 1]
    return pooled, f_flat, hf, hb


# ----------------------------------------------------------------------------
# Fully fused PostEnc kernel (word stage per grid step + sentence stage on last)
# ----------------------------------------------------------------------------
def _make_postenc_kernel(S, W, Bp, Hw, Hs):
    def kernel(x_ref,
               # word-level GRU / attention weights
               w_wih_f, w_whh_f, w_b_f, w_wih_b, w_whh_b, w_b_b,
               w_attw, w_attb, w_attu,
               # sentence-level GRU / attention weights
               s_wih_f, s_whh_f, s_b_f, s_wih_b, s_whh_b, s_b_b,
               s_attw, s_attb, s_attu,
               # outputs
               doc_ref, fout_ref,
               # scratch (persist across the sentence grid)
               hf_scr, hb_scr, pooled_scr):
        sidx = pl.program_id(0)

        @pl.when(sidx == 0)
        def _init():
            hf_scr[...] = jnp.zeros_like(hf_scr)
            hb_scr[...] = jnp.zeros_like(hb_scr)

        # ---- word stage: bi-GRU over W words of this sentence + attention ----
        pooled, _, hf, hb = _bigru_attention(
            x_ref[0], W, Bp,
            w_wih_f, w_whh_f, w_b_f,
            w_wih_b, w_whh_b, w_b_b,
            w_attw, w_attb, w_attu,
            hf_scr[...], hb_scr[...])
        hf_scr[...] = hf                     # hidden state carried across sentences
        hb_scr[...] = hb
        row0 = pl.multiple_of(sidx * Bp, Bp)
        pooled_scr[pl.ds(row0, Bp), :] = pooled      # accumulate pooled sentence vecs

        # ---- sentence stage (only on the last grid step, all inputs in VMEM) ----
        @pl.when(sidx == S - 1)
        def _finalize():
            h0 = jnp.zeros((Bp, Hs), jnp.float32)
            doc, f_flat, _, _ = _bigru_attention(
                pooled_scr[...], S, Bp,
                s_wih_f, s_whh_f, s_b_f,
                s_wih_b, s_whh_b, s_b_b,
                s_attw, s_attb, s_attu,
                h0, h0)
            doc_ref[...] = doc
            fout_ref[...] = f_flat

    return kernel


# ----------------------------------------------------------------------------
# Pallas wrapper
# ----------------------------------------------------------------------------
def _full_spec(arr):
    nd = arr.ndim
    return pl.BlockSpec(arr.shape, lambda *_: (0,) * nd)


def _pack_gru(p):
    """PyTorch-layout GRU params -> per-gate stacked layout + folded biases."""
    w_ih, w_hh = p['w_ih'], p['w_hh']             # (in, 3H), (H, 3H), gates r,z,n
    H = w_hh.shape[0]
    b_ih, b_hh = p['b_ih'][0], p['b_hh'][0]       # (3H,)
    wih = jnp.stack([w_ih[:, g * H:(g + 1) * H] for g in range(3)], axis=0)   # (3,E,H)
    whh = jnp.stack([w_hh[:, g * H:(g + 1) * H] for g in range(3)], axis=0)   # (3,H,H)
    bias = jnp.stack([b_ih[0 * H:1 * H] + b_hh[0 * H:1 * H],
                      b_ih[1 * H:2 * H] + b_hh[1 * H:2 * H],
                      b_ih[2 * H:3 * H],
                      b_hh[2 * H:3 * H]], axis=0)                             # (4, H)
    return wih, whh, bias


def _pack_stage(stage):
    wih_f, whh_f, b_f = _pack_gru(stage['gru_f'])
    wih_b, whh_b, b_b = _pack_gru(stage['gru_b'])
    return (wih_f, whh_f, b_f, wih_b, whh_b, b_b,
            stage['att_w'], stage['att_b'], stage['att_u'])


def postenc_forward_pallas(tokens, params):
    """tokens: (B, S, W) int32  ->  (doc (B, 2Hs), sentence states (B, S, 2Hs))."""
    B, S, W = tokens.shape
    emb = params['emb']
    E = emb.shape[1]
    Hw = params['word']['gru_f']['w_hh'].shape[0]
    Hs = params['sent']['gru_f']['w_hh'].shape[0]
    Dw, Ds = 2 * Hw, 2 * Hs
    Bp = max(8, ((B + 7) // 8) * 8)               # pad batch to a full sublane tile

    # single embedding gather for the whole post, time-major per sentence
    x = jnp.transpose(emb[tokens], (1, 2, 0, 3))                 # (S, W, B, E)
    x = jnp.pad(x, ((0, 0), (0, 0), (0, Bp - B), (0, 0)))        # (S, W, Bp, E)
    x = x.reshape(S, W * Bp, E).astype(jnp.float32)              # row = w*Bp + b

    weights = _pack_stage(params['word']) + _pack_stage(params['sent'])

    grid_spec = pltpu.PrefetchScalarGridSpec(
        num_scalar_prefetch=0,
        grid=(S,),
        in_specs=[pl.BlockSpec((1, W * Bp, E), lambda s: (s, 0, 0))]
                 + [_full_spec(w) for w in weights],
        out_specs=[pl.BlockSpec((Bp, Ds), lambda s: (0, 0)),
                   pl.BlockSpec((S * Bp, Ds), lambda s: (0, 0))],
        scratch_shapes=[pltpu.VMEM((Bp, Hw), jnp.float32),       # fwd word hidden
                        pltpu.VMEM((Bp, Hw), jnp.float32),       # bwd word hidden
                        pltpu.VMEM((S * Bp, Dw), jnp.float32)],  # pooled sentence vecs
    )
    doc_p, fout_p = pl.pallas_call(
        _make_postenc_kernel(S, W, Bp, Hw, Hs),
        out_shape=(jax.ShapeDtypeStruct((Bp, Ds), jnp.float32),
                   jax.ShapeDtypeStruct((S * Bp, Ds), jnp.float32)),
        grid_spec=grid_spec,
        compiler_params=pltpu.CompilerParams(
            dimension_semantics=("arbitrary",)),   # hidden state carried across sentences
    )(x, *weights)

    doc = doc_p[:B]
    sent_states = fout_p.reshape(S, Bp, Ds)[:, :B].transpose(1, 0, 2)  # (B, S, 2Hs)
    return doc, sent_states


# ----------------------------------------------------------------------------
# Pure-JAX reference (for correctness checking)
# ----------------------------------------------------------------------------
def _gru_dir_ref(x, h0, p):
    H = h0.shape[-1]

    def step(h, x_t):
        gi = x_t @ p['w_ih'] + p['b_ih']
        gh = h @ p['w_hh'] + p['b_hh']
        r = jax.nn.sigmoid(gi[:, :H] + gh[:, :H])
        z = jax.nn.sigmoid(gi[:, H:2 * H] + gh[:, H:2 * H])
        n = jnp.tanh(gi[:, 2 * H:] + r * gh[:, 2 * H:])
        h_new = (1.0 - z) * n + z * h
        return h_new, h_new

    h_last, outs = lax.scan(step, h0, x)
    return outs, h_last


def _bigru_ref(x, h0, p):
    out_f, h_f = _gru_dir_ref(x, h0[0], p['gru_f'])
    out_b_rev, h_b = _gru_dir_ref(x[::-1], h0[1], p['gru_b'])
    return (jnp.concatenate([out_f, out_b_rev[::-1]], axis=-1),
            jnp.stack([h_f, h_b], axis=0))


def _attn_ref(f, w, b, u):
    h = jnp.tanh(jnp.einsum('tbd,de->tbe', f, w) + b[None])
    s = jnp.tanh(jnp.sum(h * u[None], axis=-1))          # (T, B)
    alpha = jax.nn.softmax(s, axis=0)                    # softmax over T
    return jnp.sum(f * alpha[:, :, None], axis=0)        # (B, D)


def postenc_forward_ref(tokens, params):
    B, S, W = tokens.shape
    Hw = params['word']['gru_f']['w_hh'].shape[0]
    Hs = params['sent']['gru_f']['w_hh'].shape[0]
    emb = params['emb']

    word_hidden = jnp.zeros((2, B, Hw), jnp.float32)
    pooled_list = []
    for s in range(S):
        x = emb[tokens[:, s, :].T]                       # (W, B, E)
        f_out, word_hidden = _bigru_ref(x, word_hidden, params['word'])
        pooled = _attn_ref(f_out, params['word']['att_w'],
                           params['word']['att_b'], params['word']['att_u'])
        pooled_list.append(pooled[None])
    sent_in = jnp.concatenate(pooled_list, axis=0)       # (S, B, 2Hw)

    f_out_s, _ = _bigru_ref(sent_in, jnp.zeros((2, B, Hs), jnp.float32), params['sent'])
    doc = _attn_ref(f_out_s, params['sent']['att_w'],
                    params['sent']['att_b'], params['sent']['att_u'])
    return doc, jnp.transpose(f_out_s, (1, 0, 2))


# ----------------------------------------------------------------------------
# Deterministic parameter init (synthetic; mirrors the torch module's shapes)
# ----------------------------------------------------------------------------
def init_params(key, vocab, embed_dim, word_hidden, sent_hidden):
    ks = iter(jax.random.split(key, 32))

    def nrm(shape, std=0.05):
        return (jax.random.normal(next(ks), shape) * std).astype(jnp.float32)

    def gru_params(in_dim, H):
        s = 1.0 / (H ** 0.5)

        def uni(shape):
            return jax.random.uniform(next(ks), shape, jnp.float32, -s, s)

        return dict(w_ih=uni((in_dim, 3 * H)), w_hh=uni((H, 3 * H)),
                    b_ih=uni((1, 3 * H)), b_hh=uni((1, 3 * H)))

    Dw, Ds = 2 * word_hidden, 2 * sent_hidden
    return dict(
        emb=nrm((vocab, embed_dim), 0.1),
        word=dict(gru_f=gru_params(embed_dim, word_hidden),
                  gru_b=gru_params(embed_dim, word_hidden),
                  att_w=nrm((Dw, Dw)), att_b=nrm((1, Dw)), att_u=nrm((1, Dw))),
        sent=dict(gru_f=gru_params(Dw, sent_hidden),
                  gru_b=gru_params(Dw, sent_hidden),
                  att_w=nrm((Ds, Ds)), att_b=nrm((1, Ds)), att_u=nrm((1, Ds))),
    )


# ----------------------------------------------------------------------------
if __name__ == "__main__":
    VOCAB, EMBED = 32, 32
    WORD_H, SENT_H = 16, 16
    B, S, W = 2, 3, 6

    key = jax.random.PRNGKey(0)
    k_param, k_tok = jax.random.split(key)
    params = init_params(k_param, VOCAB, EMBED, WORD_H, SENT_H)
    tokens = jax.random.randint(k_tok, (B, S, W), 0, VOCAB, dtype=jnp.int32)

    fwd_pallas = jax.jit(postenc_forward_pallas)
    doc, sent_states = fwd_pallas(tokens, params)
    doc = jax.block_until_ready(doc)
    sent_states = jax.block_until_ready(sent_states)

    # pure-JAX reference check
    doc_ref, sent_ref = postenc_forward_ref(tokens, params)
    assert doc.shape == (B, 2 * SENT_H) and sent_states.shape == (B, S, 2 * SENT_H)
    assert jnp.allclose(doc, doc_ref, atol=1e-2, rtol=1e-2), \
        f"doc mismatch, max abs err = {jnp.max(jnp.abs(doc - doc_ref))}"
    assert jnp.allclose(sent_states, sent_ref, atol=1e-2, rtol=1e-2), \
        f"sent mismatch, max abs err = {jnp.max(jnp.abs(sent_states - sent_ref))}"

    print("KERNEL_OK")
</pallas_src>

<mosaic_0001>
module attributes {stable_mosaic.version = 11 : i64} {
  func.func @kernel(%arg0: i32, %arg1: memref<1x48x32xf32, #tpu.memory_space<vmem>>, %arg2: memref<3x32x16xf32, #tpu.memory_space<vmem>>, %arg3: memref<3x16x16xf32, #tpu.memory_space<vmem>>, %arg4: memref<4x16xf32, #tpu.memory_space<vmem>>, %arg5: memref<3x32x16xf32, #tpu.memory_space<vmem>>, %arg6: memref<3x16x16xf32, #tpu.memory_space<vmem>>, %arg7: memref<4x16xf32, #tpu.memory_space<vmem>>, %arg8: memref<32x32xf32, #tpu.memory_space<vmem>>, %arg9: memref<1x32xf32, #tpu.memory_space<vmem>>, %arg10: memref<1x32xf32, #tpu.memory_space<vmem>>, %arg11: memref<3x32x16xf32, #tpu.memory_space<vmem>>, %arg12: memref<3x16x16xf32, #tpu.memory_space<vmem>>, %arg13: memref<4x16xf32, #tpu.memory_space<vmem>>, %arg14: memref<3x32x16xf32, #tpu.memory_space<vmem>>, %arg15: memref<3x16x16xf32, #tpu.memory_space<vmem>>, %arg16: memref<4x16xf32, #tpu.memory_space<vmem>>, %arg17: memref<32x32xf32, #tpu.memory_space<vmem>>, %arg18: memref<1x32xf32, #tpu.memory_space<vmem>>, %arg19: memref<1x32xf32, #tpu.memory_space<vmem>>, %arg20: memref<8x32xf32, #tpu.memory_space<vmem>>, %arg21: memref<24x32xf32, #tpu.memory_space<vmem>>, %arg22: memref<8x16xf32, #tpu.memory_space<vmem>>, %arg23: memref<8x16xf32, #tpu.memory_space<vmem>>, %arg24: memref<24x32xf32, #tpu.memory_space<vmem>>) attributes {dimension_semantics = [#tpu.dimension_semantics<arbitrary>], iteration_bounds = array<i64: 3>, scalar_prefetch = 0 : i64, scratch_operands = 3 : i64, tpu.core_type = #tpu.core_type<tc>, window_params = [{transform_indices = @transform_0, window_bounds = array<i64: 1, 48, 32>}, {pipeline_mode = #tpu.pipeline_mode<synchronous>, transform_indices = @transform_1, window_bounds = array<i64: 3, 32, 16>}, {pipeline_mode = #tpu.pipeline_mode<synchronous>, transform_indices = @transform_2, window_bounds = array<i64: 3, 16, 16>}, {pipeline_mode = #tpu.pipeline_mode<synchronous>, transform_indices = @transform_3, window_bounds = array<i64: 4, 16>}, {pipeline_mode = #tpu.pipeline_mode<synchronous>, transform_indices = @transform_4, window_bounds = array<i64: 3, 32, 16>}, {pipeline_mode = #tpu.pipeline_mode<synchronous>, transform_indices = @transform_5, window_bounds = array<i64: 3, 16, 16>}, {pipeline_mode = #tpu.pipeline_mode<synchronous>, transform_indices = @transform_6, window_bounds = array<i64: 4, 16>}, {pipeline_mode = #tpu.pipeline_mode<synchronous>, transform_indices = @transform_7, window_bounds = array<i64: 32, 32>}, {pipeline_mode = #tpu.pipeline_mode<synchronous>, transform_indices = @transform_8, window_bounds = array<i64: 1, 32>}, {pipeline_mode = #tpu.pipeline_mode<synchronous>, transform_indices = @transform_9, window_bounds = array<i64: 1, 32>}, {pipeline_mode = #tpu.pipeline_mode<synchronous>, transform_indices = @transform_10, window_bounds = array<i64: 3, 32, 16>}, {pipeline_mode = #tpu.pipeline_mode<synchronous>, transform_indices = @transform_11, window_bounds = array<i64: 3, 16, 16>}, {pipeline_mode = #tpu.pipeline_mode<synchronous>, transform_indices = @transform_12, window_bounds = array<i64: 4, 16>}, {pipeline_mode = #tpu.pipeline_mode<synchronous>, transform_indices = @transform_13, window_bounds = array<i64: 3, 32, 16>}, {pipeline_mode = #tpu.pipeline_mode<synchronous>, transform_indices = @transform_14, window_bounds = array<i64: 3, 16, 16>}, {pipeline_mode = #tpu.pipeline_mode<synchronous>, transform_indices = @transform_15, window_bounds = array<i64: 4, 16>}, {pipeline_mode = #tpu.pipeline_mode<synchronous>, transform_indices = @transform_16, window_bounds = array<i64: 32, 32>}, {pipeline_mode = #tpu.pipeline_mode<synchronous>, transform_indices = @transform_17, window_bounds = array<i64: 1, 32>}, {pipeline_mode = #tpu.pipeline_mode<synchronous>, transform_indices = @transform_18, window_bounds = array<i64: 1, 32>}, {pipeline_mode = #tpu.pipeline_mode<synchronous>, transform_indices = @transform_19, window_bounds = array<i64: 8, 32>}, {pipeline_mode = #tpu.pipeline_mode<synchronous>, transform_indices = @transform_20, window_bounds = array<i64: 24, 32>}]} {
    %c0_i32 = arith.constant 0 : i32
    %0 = arith.cmpi eq, %arg0, %c0_i32 : i32
    %1 = arith.extui %0 : i1 to i32
    %c0_i32_0 = arith.constant 0 : i32
    %2 = arith.cmpi ne, %1, %c0_i32_0 : i32
    scf.if %2 {
      %cst_149 = arith.constant 0.000000e+00 : f32
      %460 = vector.broadcast %cst_149 : f32 to vector<8x16xf32>
      %c0_150 = arith.constant 0 : index
      %c0_151 = arith.constant 0 : index
      %461 = vector.load %arg22[%c0_150, %c0_151] : memref<8x16xf32, #tpu.memory_space<vmem>>, vector<8x16xf32>
      tpu.vector_store %arg22[%c0_150, %c0_151], %460 {strides = array<i32>} : memref<8x16xf32, #tpu.memory_space<vmem>>, vector<8x16xf32>,
      %cst_152 = arith.constant 0.000000e+00 : f32
      %462 = vector.broadcast %cst_152 : f32 to vector<8x16xf32>
      %c0_153 = arith.constant 0 : index
      %c0_154 = arith.constant 0 : index
      %463 = vector.load %arg23[%c0_153, %c0_154] : memref<8x16xf32, #tpu.memory_space<vmem>>, vector<8x16xf32>
      tpu.vector_store %arg23[%c0_153, %c0_154], %462 {strides = array<i32>} : memref<8x16xf32, #tpu.memory_space<vmem>>, vector<8x16xf32>,
    } else {
    }
    %c0 = arith.constant 0 : index
    %c0_1 = arith.constant 0 : index
    %c0_2 = arith.constant 0 : index
    %3 = vector.load %arg1[%c0, %c0_1, %c0_2] : memref<1x48x32xf32, #tpu.memory_space<vmem>>, vector<1x48x32xf32>
    %4 = vector.shape_cast %3 : vector<1x48x32xf32> to vector<48x32xf32>
    %c0_3 = arith.constant 0 : index
    %c0_4 = arith.constant 0 : index
    %5 = vector.load %arg22[%c0_3, %c0_4] : memref<8x16xf32, #tpu.memory_space<vmem>>, vector<8x16xf32>
    %c0_5 = arith.constant 0 : index
    %c0_6 = arith.constant 0 : index
    %6 = vector.load %arg23[%c0_5, %c0_6] : memref<8x16xf32, #tpu.memory_space<vmem>>, vector<8x16xf32>
    %c0_7 = arith.constant 0 : index
    %c0_8 = arith.constant 0 : index
    %c0_9 = arith.constant 0 : index
    %7 = vector.load %arg2[%c0_7, %c0_8, %c0_9] : memref<3x32x16xf32, #tpu.memory_space<vmem>>, vector<1x32x16xf32>
    %8 = vector.shape_cast %7 : vector<1x32x16xf32> to vector<32x16xf32>
    %cst = arith.constant dense<0.000000e+00> : vector<48x16xf32>
    %9 = tpu.matmul %4, %8, %cst {dimension_numbers = #tpu.dot_dimension_numbers<[1], [0], [0], [1], [0, 0, 1, 1], [], []>} : vector<48x32xf32>, vector<32x16xf32>, vector<48x16xf32> -> vector<48x16xf32>
    %c0_10 = arith.constant 0 : index
    %c0_11 = arith.constant 0 : index
    %10 = vector.load %arg4[%c0_10, %c0_11] : memref<4x16xf32, #tpu.memory_space<vmem>>, vector<1x16xf32>
    %11 = vector.broadcast %10 : vector<1x16xf32> to vector<48x16xf32>
    %12 = arith.addf %9, %11 : vector<48x16xf32>
    %c1 = arith.constant 1 : index
    %c0_12 = arith.constant 0 : index
    %c0_13 = arith.constant 0 : index
    %13 = vector.load %arg2[%c1, %c0_12, %c0_13] : memref<3x32x16xf32, #tpu.memory_space<vmem>>, vector<1x32x16xf32>
    %14 = vector.shape_cast %13 : vector<1x32x16xf32> to vector<32x16xf32>
    %cst_14 = arith.constant dense<0.000000e+00> : vector<48x16xf32>
    %15 = tpu.matmul %4, %14, %cst_14 {dimension_numbers = #tpu.dot_dimension_numbers<[1], [0], [0], [1], [0, 0, 1, 1], [], []>} : vector<48x32xf32>, vector<32x16xf32>, vector<48x16xf32> -> vector<48x16xf32>
    %c1_15 = arith.constant 1 : index
    %c0_16 = arith.constant 0 : index
    %16 = vector.load %arg4[%c1_15, %c0_16] : memref<4x16xf32, #tpu.memory_space<vmem>>, vector<1x16xf32>
    %17 = vector.broadcast %16 : vector<1x16xf32> to vector<48x16xf32>
    %18 = arith.addf %15, %17 : vector<48x16xf32>
    %c2 = arith.constant 2 : index
    %c0_17 = arith.constant 0 : index
    %c0_18 = arith.constant 0 : index
    %19 = vector.load %arg2[%c2, %c0_17, %c0_18] : memref<3x32x16xf32, #tpu.memory_space<vmem>>, vector<1x32x16xf32>
    %20 = vector.shape_cast %19 : vector<1x32x16xf32> to vector<32x16xf32>
    %cst_19 = arith.constant dense<0.000000e+00> : vector<48x16xf32>
    %21 = tpu.matmul %4, %20, %cst_19 {dimension_numbers = #tpu.dot_dimension_numbers<[1], [0], [0], [1], [0, 0, 1, 1], [], []>} : vector<48x32xf32>, vector<32x16xf32>, vector<48x16xf32> -> vector<48x16xf32>
    %c2_20 = arith.constant 2 : index
    %c0_21 = arith.constant 0 : index
    %22 = vector.load %arg4[%c2_20, %c0_21] : memref<4x16xf32, #tpu.memory_space<vmem>>, vector<1x16xf32>
    %23 = vector.broadcast %22 : vector<1x16xf32> to vector<48x16xf32>
    %24 = arith.addf %21, %23 : vector<48x16xf32>
    %c0_22 = arith.constant 0 : index
    %c0_23 = arith.constant 0 : index
    %c0_24 = arith.constant 0 : index
    %25 = vector.load %arg5[%c0_22, %c0_23, %c0_24] : memref<3x32x16xf32, #tpu.memory_space<vmem>>, vector<1x32x16xf32>
    %26 = vector.shape_cast %25 : vector<1x32x16xf32> to vector<32x16xf32>
    %cst_25 = arith.constant dense<0.000000e+00> : vector<48x16xf32>
    %27 = tpu.matmul %4, %26, %cst_25 {dimension_numbers = #tpu.dot_dimension_numbers<[1], [0], [0], [1], [0, 0, 1, 1], [], []>} : vector<48x32xf32>, vector<32x16xf32>, vector<48x16xf32> -> vector<48x16xf32>
    %c0_26 = arith.constant 0 : index
    %c0_27 = arith.constant 0 : index
    %28 = vector.load %arg7[%c0_26, %c0_27] : memref<4x16xf32, #tpu.memory_space<vmem>>, vector<1x16xf32>
    %29 = vector.broadcast %28 : vector<1x16xf32> to vector<48x16xf32>
    %30 = arith.addf %27, %29 : vector<48x16xf32>
    %c1_28 = arith.constant 1 : index
    %c0_29 = arith.constant 0 : index
    %c0_30 = arith.constant 0 : index
    %31 = vector.load %arg5[%c1_28, %c0_29, %c0_30] : memref<3x32x16xf32, #tpu.memory_space<vmem>>, vector<1x32x16xf32>
    %32 = vector.shape_cast %31 : vector<1x32x16xf32> to vector<32x16xf32>
    %cst_31 = arith.constant dense<0.000000e+00> : vector<48x16xf32>
    %33 = tpu.matmul %4, %32, %cst_31 {dimension_numbers = #tpu.dot_dimension_numbers<[1], [0], [0], [1], [0, 0, 1, 1], [], []>} : vector<48x32xf32>, vector<32x16xf32>, vector<48x16xf32> -> vector<48x16xf32>
    %c1_32 = arith.constant 1 : index
    %c0_33 = arith.constant 0 : index
    %34 = vector.load %arg7[%c1_32, %c0_33] : memref<4x16xf32, #tpu.memory_space<vmem>>, vector<1x16xf32>
    %35 = vector.broadcast %34 : vector<1x16xf32> to vector<48x16xf32>
    %36 = arith.addf %33, %35 : vector<48x16xf32>
    %c2_34 = arith.constant 2 : index
    %c0_35 = arith.constant 0 : index
    %c0_36 = arith.constant 0 : index
    %37 = vector.load %arg5[%c2_34, %c0_35, %c0_36] : memref<3x32x16xf32, #tpu.memory_space<vmem>>, vector<1x32x16xf32>
    %38 = vector.shape_cast %37 : vector<1x32x16xf32> to vector<32x16xf32>
    %cst_37 = arith.constant dense<0.000000e+00> : vector<48x16xf32>
    %39 = tpu.matmul %4, %38, %cst_37 {dimension_numbers = #tpu.dot_dimension_numbers<[1], [0], [0], [1], [0, 0, 1, 1], [], []>} : vector<48x32xf32>, vector<32x16xf32>, vector<48x16xf32> -> vector<48x16xf32>
    %c2_38 = arith.constant 2 : index
    %c0_39 = arith.constant 0 : index
    %40 = vector.load %arg7[%c2_38, %c0_39] : memref<4x16xf32, #tpu.memory_space<vmem>>, vector<1x16xf32>
    %41 = vector.broadcast %40 : vector<1x16xf32> to vector<48x16xf32>
    %42 = arith.addf %39, %41 : vector<48x16xf32>
    %c0_40 = arith.constant 0 : index
    %c0_41 = arith.constant 0 : index
    %c0_42 = arith.constant 0 : index
    %43 = vector.load %arg3[%c0_40, %c0_41, %c0_42] : memref<3x16x16xf32, #tpu.memory_space<vmem>>, vector<1x16x16xf32>
    %44 = vector.shape_cast %43 : vector<1x16x16xf32> to vector<16x16xf32>
    %c1_43 = arith.constant 1 : index
    %c0_44 = arith.constant 0 : index
    %c0_45 = arith.constant 0 : index
    %45 = vector.load %arg3[%c1_43, %c0_44, %c0_45] : memref<3x16x16xf32, #tpu.memory_space<vmem>>, vector<1x16x16xf32>
    %46 = vector.shape_cast %45 : vector<1x16x16xf32> to vector<16x16xf32>
    %c2_46 = arith.constant 2 : index
    %c0_47 = arith.constant 0 : index
    %c0_48 = arith.constant 0 : index
    %47 = vector.load %arg3[%c2_46, %c0_47, %c0_48] : memref<3x16x16xf32, #tpu.memory_space<vmem>>, vector<1x16x16xf32>
    %48 = vector.shape_cast %47 : vector<1x16x16xf32> to vector<16x16xf32>
    %c0_49 = arith.constant 0 : index
    %c0_50 = arith.constant 0 : index
    %c0_51 = arith.constant 0 : index
    %49 = vector.load %arg6[%c0_49, %c0_50, %c0_51] : memref<3x16x16xf32, #tpu.memory_space<vmem>>, vector<1x16x16xf32>
    %50 = vector.shape_cast %49 : vector<1x16x16xf32> to vector<16x16xf32>
    %c1_52 = arith.constant 1 : index
    %c0_53 = arith.constant 0 : index
    %c0_54 = arith.constant 0 : index
    %51 = vector.load %arg6[%c1_52, %c0_53, %c0_54] : memref<3x16x16xf32, #tpu.memory_space<vmem>>, vector<1x16x16xf32>
    %52 = vector.shape_cast %51 : vector<1x16x16xf32> to vector<16x16xf32>
    %c2_55 = arith.constant 2 : index
    %c0_56 = arith.constant 0 : index
    %c0_57 = arith.constant 0 : index
    %53 = vector.load %arg6[%c2_55, %c0_56, %c0_57] : memref<3x16x16xf32, #tpu.memory_space<vmem>>, vector<1x16x16xf32>
    %54 = vector.shape_cast %53 : vector<1x16x16xf32> to vector<16x16xf32>
    %c3 = arith.constant 3 : index
    %c0_58 = arith.constant 0 : index
    %55 = vector.load %arg4[%c3, %c0_58] : memref<4x16xf32, #tpu.memory_space<vmem>>, vector<1x16xf32>
    %c3_59 = arith.constant 3 : index
    %c0_60 = arith.constant 0 : index
    %56 = vector.load %arg7[%c3_59, %c0_60] : memref<4x16xf32, #tpu.memory_space<vmem>>, vector<1x16xf32>
    %57 = vector.extract_strided_slice %12 {offsets = [0, 0], sizes = [8, 16], strides = [1, 1]} : vector<48x16xf32> to vector<8x16xf32>
    %58 = vector.extract_strided_slice %18 {offsets = [0, 0], sizes = [8, 16], strides = [1, 1]} : vector<48x16xf32> to vector<8x16xf32>
    %59 = vector.extract_strided_slice %24 {offsets = [0, 0], sizes = [8, 16], strides = [1, 1]} : vector<48x16xf32> to vector<8x16xf32>
    %cst_61 = arith.constant dense<0.000000e+00> : vector<8x16xf32>
    %60 = tpu.matmul %5, %44, %cst_61 {dimension_numbers = #tpu.dot_dimension_numbers<[1], [0], [0], [1], [0, 0, 1, 1], [], []>} : vector<8x16xf32>, vector<16x16xf32>, vector<8x16xf32> -> vector<8x16xf32>
    %61 = arith.addf %57, %60 : vector<8x16xf32>
    %62 = arith.negf %61 : vector<8x16xf32>
    %63 = math.exp %62 : vector<8x16xf32>
    %cst_62 = arith.constant 1.000000e+00 : f32
    %64 = vector.broadcast %cst_62 : f32 to vector<8x16xf32>
    %65 = arith.addf %64, %63 : vector<8x16xf32>
    %66 = arith.divf %64, %65 : vector<8x16xf32>
    %cst_63 = arith.constant dense<0.000000e+00> : vector<8x16xf32>
    %67 = tpu.matmul %5, %46, %cst_63 {dimension_numbers = #tpu.dot_dimension_numbers<[1], [0], [0], [1], [0, 0, 1, 1], [], []>} : vector<8x16xf32>, vector<16x16xf32>, vector<8x16xf32> -> vector<8x16xf32>
    %68 = arith.addf %58, %67 : vector<8x16xf32>
    %69 = arith.negf %68 : vector<8x16xf32>
    %70 = math.exp %69 : vector<8x16xf32>
    %cst_64 = arith.constant 1.000000e+00 : f32
    %71 = vector.broadcast %cst_64 : f32 to vector<8x16xf32>
    %72 = arith.addf %71, %70 : vector<8x16xf32>
    %73 = arith.divf %71, %72 : vector<8x16xf32>
    %cst_65 = arith.constant dense<0.000000e+00> : vector<8x16xf32>
    %74 = tpu.matmul %5, %48, %cst_65 {dimension_numbers = #tpu.dot_dimension_numbers<[1], [0], [0], [1], [0, 0, 1, 1], [], []>} : vector<8x16xf32>, vector<16x16xf32>, vector<8x16xf32> -> vector<8x16xf32>
    %75 = vector.broadcast %55 : vector<1x16xf32> to vector<8x16xf32>
    %76 = arith.addf %74, %75 : vector<8x16xf32>
    %77 = arith.mulf %66, %76 : vector<8x16xf32>
    %78 = arith.addf %59, %77 : vector<8x16xf32>
    %79 = math.tanh %78 : vector<8x16xf32>
    %cst_66 = arith.constant 1.000000e+00 : f32
    %80 = vector.broadcast %cst_66 : f32 to vector<8x16xf32>
    %81 = arith.subf %80, %73 : vector<8x16xf32>
    %82 = arith.mulf %81, %79 : vector<8x16xf32>
    %83 = arith.mulf %73, %5 : vector<8x16xf32>
    %84 = arith.addf %82, %83 : vector<8x16xf32>
    %85 = vector.extract_strided_slice %30 {offsets = [40, 0], sizes = [8, 16], strides = [1, 1]} : vector<48x16xf32> to vector<8x16xf32>
    %86 = vector.extract_strided_slice %36 {offsets = [40, 0], sizes = [8, 16], strides = [1, 1]} : vector<48x16xf32> to vector<8x16xf32>
    %87 = vector.extract_strided_slice %42 {offsets = [40, 0], sizes = [8, 16], strides = [1, 1]} : vector<48x16xf32> to vector<8x16xf32>
    %cst_67 = arith.constant dense<0.000000e+00> : vector<8x16xf32>
    %88 = tpu.matmul %6, %50, %cst_67 {dimension_numbers = #tpu.dot_dimension_numbers<[1], [0], [0], [1], [0, 0, 1, 1], [], []>} : vector<8x16xf32>, vector<16x16xf32>, vector<8x16xf32> -> vector<8x16xf32>
    %89 = arith.addf %85, %88 : vector<8x16xf32>
    %90 = arith.negf %89 : vector<8x16xf32>
    %91 = math.exp %90 : vector<8x16xf32>
    %cst_68 = arith.constant 1.000000e+00 : f32
    %92 = vector.broadcast %cst_68 : f32 to vector<8x16xf32>
    %93 = arith.addf %92, %91 : vector<8x16xf32>
    %94 = arith.divf %92, %93 : vector<8x16xf32>
    %cst_69 = arith.constant dense<0.000000e+00> : vector<8x16xf32>
    %95 = tpu.matmul %6, %52, %cst_69 {dimension_numbers = #tpu.dot_dimension_numbers<[1], [0], [0], [1], [0, 0, 1, 1], [], []>} : vector<8x16xf32>, vector<16x16xf32>, vector<8x16xf32> -> vector<8x16xf32>
    %96 = arith.addf %86, %95 : vector<8x16xf32>
    %97 = arith.negf %96 : vector<8x16xf32>
    %98 = math.exp %97 : vector<8x16xf32>
    %cst_70 = arith.constant 1.000000e+00 : f32
    %99 = vector.broadcast %cst_70 : f32 to vector<8x16xf32>
    %100 = arith.addf %99, %98 : vector<8x16xf32>
    %101 = arith.divf %99, %100 : vector<8x16xf32>
    %cst_71 = arith.constant dense<0.000000e+00> : vector<8x16xf32>
    %102 = tpu.matmul %6, %54, %cst_71 {dimension_numbers = #tpu.dot_dimension_numbers<[1], [0], [0], [1], [0, 0, 1, 1], [], []>} : vector<8x16xf32>, vector<16x16xf32>, vector<8x16xf32> -> vector<8x16xf32>
    %103 = vector.broadcast %56 : vector<1x16xf32> to vector<8x16xf32>
    %104 = arith.addf %102, %103 : vector<8x16xf32>
    %105 = arith.mulf %94, %104 : vector<8x16xf32>
    %106 = arith.addf %87, %105 : vector<8x16xf32>
    %107 = math.tanh %106 : vector<8x16xf32>
    %cst_72 = arith.constant 1.000000e+00 : f32
    %108 = vector.broadcast %cst_72 : f32 to vector<8x16xf32>
    %109 = arith.subf %108, %101 : vector<8x16xf32>
    %110 = arith.mulf %109, %107 : vector<8x16xf32>
    %111 = arith.mulf %101, %6 : vector<8x16xf32>
    %112 = arith.addf %110, %111 : vector<8x16xf32>
    %113 = vector.extract_strided_slice %12 {offsets = [8, 0], sizes = [8, 16], strides = [1, 1]} : vector<48x16xf32> to vector<8x16xf32>
    %114 = vector.extract_strided_slice %18 {offsets = [8, 0], sizes = [8, 16], strides = [1, 1]} : vector<48x16xf32> to vector<8x16xf32>
    %115 = vector.extract_strided_slice %24 {offsets = [8, 0], sizes = [8, 16], strides = [1, 1]} : vector<48x16xf32> to vector<8x16xf32>
    %cst_73 = arith.constant dense<0.000000e+00> : vector<8x16xf32>
    %116 = tpu.matmul %84, %44, %cst_73 {dimension_numbers = #tpu.dot_dimension_numbers<[1], [0], [0], [1], [0, 0, 1, 1], [], []>} : vector<8x16xf32>, vector<16x16xf32>, vector<8x16xf32> -> vector<8x16xf32>
    %117 = arith.addf %113, %116 : vector<8x16xf32>
    %118 = arith.negf %117 : vector<8x16xf32>
    %119 = math.exp %118 : vector<8x16xf32>
    %cst_74 = arith.constant 1.000000e+00 : f32
    %120 = vector.broadcast %cst_74 : f32 to vector<8x16xf32>
    %121 = arith.addf %120, %119 : vector<8x16xf32>
    %122 = arith.divf %120, %121 : vector<8x16xf32>
    %cst_75 = arith.constant dense<0.000000e+00> : vector<8x16xf32>
    %123 = tpu.matmul %84, %46, %cst_75 {dimension_numbers = #tpu.dot_dimension_numbers<[1], [0], [0], [1], [0, 0, 1, 1], [], []>} : vector<8x16xf32>, vector<16x16xf32>, vector<8x16xf32> -> vector<8x16xf32>
    %124 = arith.addf %114, %123 : vector<8x16xf32>
    %125 = arith.negf %124 : vector<8x16xf32>
    %126 = math.exp %125 : vector<8x16xf32>
    %cst_76 = arith.constant 1.000000e+00 : f32
    %127 = vector.broadcast %cst_76 : f32 to vector<8x16xf32>
    %128 = arith.addf %127, %126 : vector<8x16xf32>
    %129 = arith.divf %127, %128 : vector<8x16xf32>
    %cst_77 = arith.constant dense<0.000000e+00> : vector<8x16xf32>
    %130 = tpu.matmul %84, %48, %cst_77 {dimension_numbers = #tpu.dot_dimension_numbers<[1], [0], [0], [1], [0, 0, 1, 1], [], []>} : vector<8x16xf32>, vector<16x16xf32>, vector<8x16xf32> -> vector<8x16xf32>
    %131 = vector.broadcast %55 : vector<1x16xf32> to vector<8x16xf32>
    %132 = arith.addf %130, %131 : vector<8x16xf32>
    %133 = arith.mulf %122, %132 : vector<8x16xf32>
    %134 = arith.addf %115, %133 : vector<8x16xf32>
    %135 = math.tanh %134 : vector<8x16xf32>
    %cst_78 = arith.constant 1.000000e+00 : f32
    %136 = vector.broadcast %cst_78 : f32 to vector<8x16xf32>
    %137 = arith.subf %136, %129 : vector<8x16xf32>
    %138 = arith.mulf %137, %135 : vector<8x16xf32>
    %139 = arith.mulf %129, %84 : vector<8x16xf32>
    %140 = arith.addf %138, %139 : vector<8x16xf32>
    %141 = vector.extract_strided_slice %30 {offsets = [32, 0], sizes = [8, 16], strides = [1, 1]} : vector<48x16xf32> to vector<8x16xf32>
    %142 = vector.extract_strided_slice %36 {offsets = [32, 0], sizes = [8, 16], strides = [1, 1]} : vector<48x16xf32> to vector<8x16xf32>
    %143 = vector.extract_strided_slice %42 {offsets = [32, 0], sizes = [8, 16], strides = [1, 1]} : vector<48x16xf32> to vector<8x16xf32>
    %cst_79 = arith.constant dense<0.000000e+00> : vector<8x16xf32>
    %144 = tpu.matmul %112, %50, %cst_79 {dimension_numbers = #tpu.dot_dimension_numbers<[1], [0], [0], [1], [0, 0, 1, 1], [], []>} : vector<8x16xf32>, vector<16x16xf32>, vector<8x16xf32> -> vector<8x16xf32>
    %145 = arith.addf %141, %144 : vector<8x16xf32>
    %146 = arith.negf %145 : vector<8x16xf32>
    %147 = math.exp %146 : vector<8x16xf32>
    %cst_80 = arith.constant 1.000000e+00 : f32
    %148 = vector.broadcast %cst_80 : f32 to vector<8x16xf32>
    %149 = arith.addf %148, %147 : vector<8x16xf32>
    %150 = arith.divf %148, %149 : vector<8x16xf32>
    %cst_81 = arith.constant dense<0.000000e+00> : vector<8x16xf32>
    %151 = tpu.matmul %112, %52, %cst_81 {dimension_numbers = #tpu.dot_dimension_numbers<[1], [0], [0], [1], [0, 0, 1, 1], [], []>} : vector<8x16xf32>, vector<16x16xf32>, vector<8x16xf32> -> vector<8x16xf32>
    %152 = arith.addf %142, %151 : vector<8x16xf32>
    %153 = arith.negf %152 : vector<8x16xf32>
    %154 = math.exp %153 : vector<8x16xf32>
    %cst_82 = arith.constant 1.000000e+00 : f32
    %155 = vector.broadcast %cst_82 : f32 to vector<8x16xf32>
    %156 = arith.addf %155, %154 : vector<8x16xf32>
    %157 = arith.divf %155, %156 : vector<8x16xf32>
    %cst_83 = arith.constant dense<0.000000e+00> : vector<8x16xf32>
    %158 = tpu.matmul %112, %54, %cst_83 {dimension_numbers = #tpu.dot_dimension_numbers<[1], [0], [0], [1], [0, 0, 1, 1], [], []>} : vector<8x16xf32>, vector<16x16xf32>, vector<8x16xf32> -> vector<8x16xf32>
    %159 = vector.broadcast %56 : vector<1x16xf32> to vector<8x16xf32>
    %160 = arith.addf %158, %159 : vector<8x16xf32>
    %161 = arith.mulf %150, %160 : vector<8x16xf32>
    %162 = arith.addf %143, %161 : vector<8x16xf32>
    %163 = math.tanh %162 : vector<8x16xf32>
    %cst_84 = arith.constant 1.000000e+00 : f32
    %164 = vector.broadcast %cst_84 : f32 to vector<8x16xf32>
    %165 = arith.subf %164, %157 : vector<8x16xf32>
    %166 = arith.mulf %165, %163 : vector<8x16xf32>
    %167 = arith.mulf %157, %112 : vector<8x16xf32>
    %168 = arith.addf %166, %167 : vector<8x16xf32>
    %169 = vector.extract_strided_slice %12 {offsets = [16, 0], sizes = [8, 16], strides = [1, 1]} : vector<48x16xf32> to vector<8x16xf32>
    %170 = vector.extract_strided_slice %18 {offsets = [16, 0], sizes = [8, 16], strides = [1, 1]} : vector<48x16xf32> to vector<8x16xf32>
    %171 = vector.extract_strided_slice %24 {offsets = [16, 0], sizes = [8, 16], strides = [1, 1]} : vector<48x16xf32> to vector<8x16xf32>
    %cst_85 = arith.constant dense<0.000000e+00> : vector<8x16xf32>
    %172 = tpu.matmul %140, %44, %cst_85 {dimension_numbers = #tpu.dot_dimension_numbers<[1], [0], [0], [1], [0, 0, 1, 1], [], []>} : vector<8x16xf32>, vector<16x16xf32>, vector<8x16xf32> -> vector<8x16xf32>
    %173 = arith.addf %169, %172 : vector<8x16xf32>
    %174 = arith.negf %173 : vector<8x16xf32>
    %175 = math.exp %174 : vector<8x16xf32>
    %cst_86 = arith.constant 1.000000e+00 : f32
    %176 = vector.broadcast %cst_86 : f32 to vector<8x16xf32>
    %177 = arith.addf %176, %175 : vector<8x16xf32>
    %178 = arith.divf %176, %177 : vector<8x16xf32>
    %cst_87 = arith.constant dense<0.000000e+00> : vector<8x16xf32>
    %179 = tpu.matmul %140, %46, %cst_87 {dimension_numbers = #tpu.dot_dimension_numbers<[1], [0], [0], [1], [0, 0, 1, 1], [], []>} : vector<8x16xf32>, vector<16x16xf32>, vector<8x16xf32> -> vector<8x16xf32>
    %180 = arith.addf %170, %179 : vector<8x16xf32>
    %181 = arith.negf %180 : vector<8x16xf32>
    %182 = math.exp %181 : vector<8x16xf32>
    %cst_88 = arith.constant 1.000000e+00 : f32
    %183 = vector.broadcast %cst_88 : f32 to vector<8x16xf32>
    %184 = arith.addf %183, %182 : vector<8x16xf32>
    %185 = arith.divf %183, %184 : vector<8x16xf32>
    %cst_89 = arith.constant dense<0.000000e+00> : vector<8x16xf32>
    %186 = tpu.matmul %140, %48, %cst_89 {dimension_numbers = #tpu.dot_dimension_numbers<[1], [0], [0], [1], [0, 0, 1, 1], [], []>} : vector<8x16xf32>, vector<16x16xf32>, vector<8x16xf32> -> vector<8x16xf32>
    %187 = vector.broadcast %55 : vector<1x16xf32> to vector<8x16xf32>
    %188 = arith.addf %186, %187 : vector<8x16xf32>
    %189 = arith.mulf %178, %188 : vector<8x16xf32>
    %190 = arith.addf %171, %189 : vector<8x16xf32>
    %191 = math.tanh %190 : vector<8x16xf32>
    %cst_90 = arith.constant 1.000000e+00 : f32
    %192 = vector.broadcast %cst_90 : f32 to vector<8x16xf32>
    %193 = arith.subf %192, %185 : vector<8x16xf32>
    %194 = arith.mulf %193, %191 : vector<8x16xf32>
    %195 = arith.mulf %185, %140 : vector<8x16xf32>
    %196 = arith.addf %194, %195 : vector<8x16xf32>
    %197 = vector.extract_strided_slice %30 {offsets = [24, 0], sizes = [8, 16], strides = [1, 1]} : vector<48x16xf32> to vector<8x16xf32>
    %198 = vector.extract_strided_slice %36 {offsets = [24, 0], sizes = [8, 16], strides = [1, 1]} : vector<48x16xf32> to vector<8x16xf32>
    %199 = vector.extract_strided_slice %42 {offsets = [24, 0], sizes = [8, 16], strides = [1, 1]} : vector<48x16xf32> to vector<8x16xf32>
    %cst_91 = arith.constant dense<0.000000e+00> : vector<8x16xf32>
    %200 = tpu.matmul %168, %50, %cst_91 {dimension_numbers = #tpu.dot_dimension_numbers<[1], [0], [0], [1], [0, 0, 1, 1], [], []>} : vector<8x16xf32>, vector<16x16xf32>, vector<8x16xf32> -> vector<8x16xf32>
    %201 = arith.addf %197, %200 : vector<8x16xf32>
    %202 = arith.negf %201 : vector<8x16xf32>
    %203 = math.exp %202 : vector<8x16xf32>
    %cst_92 = arith.constant 1.000000e+00 : f32
    %204 = vector.broadcast %cst_92 : f32 to vector<8x16xf32>
    %205 = arith.addf %204, %203 : vector<8x16xf32>
    %206 = arith.divf %204, %205 : vector<8x16xf32>
    %cst_93 = arith.constant dense<0.000000e+00> : vector<8x16xf32>
    %207 = tpu.matmul %168, %52, %cst_93 {dimension_numbers = #tpu.dot_dimension_numbers<[1], [0], [0], [1], [0, 0, 1, 1], [], []>} : vector<8x16xf32>, vector<16x16xf32>, vector<8x16xf32> -> vector<8x16xf32>
    %208 = arith.addf %198, %207 : vector<8x16xf32>
    %209 = arith.negf %208 : vector<8x16xf32>
    %210 = math.exp %209 : vector<8x16xf32>
    %cst_94 = arith.constant 1.000000e+00 : f32
    %211 = vector.broadcast %cst_94 : f32 to vector<8x16xf32>
    %212 = arith.addf %211, %210 : vector<8x16xf32>
    %213 = arith.divf %211, %212 : vector<8x16xf32>
    %cst_95 = arith.constant dense<0.000000e+00> : vector<8x16xf32>
    %214 = tpu.matmul %168, %54, %cst_95 {dimension_numbers = #tpu.dot_dimension_numbers<[1], [0], [0], [1], [0, 0, 1, 1], [], []>} : vector<8x16xf32>, vector<16x16xf32>, vector<8x16xf32> -> vector<8x16xf32>
    %215 = vector.broadcast %56 : vector<1x16xf32> to vector<8x16xf32>
    %216 = arith.addf %214, %215 : vector<8x16xf32>
    %217 = arith.mulf %206, %216 : vector<8x16xf32>
    %218 = arith.addf %199, %217 : vector<8x16xf32>
    %219 = math.tanh %218 : vector<8x16xf32>
    %cst_96 = arith.constant 1.000000e+00 : f32
    %220 = vector.broadcast %cst_96 : f32 to vector<8x16xf32>
    %221 = arith.subf %220, %213 : vector<8x16xf32>
    %222 = arith.mulf %221, %219 : vector<8x16xf32>
    %223 = arith.mulf %213, %168 : vector<8x16xf32>
    %224 = arith.addf %222, %223 : vector<8x16xf32>
    %225 = vector.extract_strided_slice %12 {offsets = [24, 0], sizes = [8, 16], strides = [1, 1]} : vector<48x16xf32> to vector<8x16xf32>
    %226 = vector.extract_strided_slice %18 {offsets = [24, 0], sizes = [8, 16], strides = [1, 1]} : vector<48x16xf32> to vector<8x16xf32>
    %227 = vector.extract_strided_slice %24 {offsets = [24, 0], sizes = [8, 16], strides = [1, 1]} : vector<48x16xf32> to vector<8x16xf32>
    %cst_97 = arith.constant dense<0.000000e+00> : vector<8x16xf32>
    %228 = tpu.matmul %196, %44, %cst_97 {dimension_numbers = #tpu.dot_dimension_numbers<[1], [0], [0], [1], [0, 0, 1, 1], [], []>} : vector<8x16xf32>, vector<16x16xf32>, vector<8x16xf32> -> vector<8x16xf32>
    %229 = arith.addf %225, %228 : vector<8x16xf32>
    %230 = arith.negf %229 : vector<8x16xf32>
    %231 = math.exp %230 : vector<8x16xf32>
    %cst_98 = arith.constant 1.000000e+00 : f32
    %232 = vector.broadcast %cst_98 : f32 to vector<8x16xf32>
    %233 = arith.addf %232, %231 : vector<8x16xf32>
    %234 = arith.divf %232, %233 : vector<8x16xf32>
    %cst_99 = arith.constant dense<0.000000e+00> : vector<8x16xf32>
    %235 = tpu.matmul %196, %46, %cst_99 {dimension_numbers = #tpu.dot_dimension_numbers<[1], [0], [0], [1], [0, 0, 1, 1], [], []>} : vector<8x16xf32>, vector<16x16xf32>, vector<8x16xf32> -> vector<8x16xf32>
    %236 = arith.addf %226, %235 : vector<8x16xf32>
    %237 = arith.negf %236 : vector<8x16xf32>
    %238 = math.exp %237 : vector<8x16xf32>
    %cst_100 = arith.constant 1.000000e+00 : f32
    %239 = vector.broadcast %cst_100 : f32 to vector<8x16xf32>
    %240 = arith.addf %239, %238 : vector<8x16xf32>
    %241 = arith.divf %239, %240 : vector<8x16xf32>
    %cst_101 = arith.constant dense<0.000000e+00> : vector<8x16xf32>
    %242 = tpu.matmul %196, %48, %cst_101 {dimension_numbers = #tpu.dot_dimension_numbers<[1], [0], [0], [1], [0, 0, 1, 1], [], []>} : vector<8x16xf32>, vector<16x16xf32>, vector<8x16xf32> -> vector<8x16xf32>
    %243 = vector.broadcast %55 : vector<1x16xf32> to vector<8x16xf32>
    %244 = arith.addf %242, %243 : vector<8x16xf32>
    %245 = arith.mulf %234, %244 : vector<8x16xf32>
    %246 = arith.addf %227, %245 : vector<8x16xf32>
    %247 = math.tanh %246 : vector<8x16xf32>
    %cst_102 = arith.constant 1.000000e+00 : f32
    %248 = vector.broadcast %cst_102 : f32 to vector<8x16xf32>
    %249 = arith.subf %248, %241 : vector<8x16xf32>
    %250 = arith.mulf %249, %247 : vector<8x16xf32>
    %251 = arith.mulf %241, %196 : vector<8x16xf32>
    %252 = arith.addf %250, %251 : vector<8x16xf32>
    %253 = vector.extract_strided_slice %30 {offsets = [16, 0], sizes = [8, 16], strides = [1, 1]} : vector<48x16xf32> to vector<8x16xf32>
    %254 = vector.extract_strided_slice %36 {offsets = [16, 0], sizes = [8, 16], strides = [1, 1]} : vector<48x16xf32> to vector<8x16xf32>
    %255 = vector.extract_strided_slice %42 {offsets = [16, 0], sizes = [8, 16], strides = [1, 1]} : vector<48x16xf32> to vector<8x16xf32>
    %cst_103 = arith.constant dense<0.000000e+00> : vector<8x16xf32>
    %256 = tpu.matmul %224, %50, %cst_103 {dimension_numbers = #tpu.dot_dimension_numbers<[1], [0], [0], [1], [0, 0, 1, 1], [], []>} : vector<8x16xf32>, vector<16x16xf32>, vector<8x16xf32> -> vector<8x16xf32>
    %257 = arith.addf %253, %256 : vector<8x16xf32>
    %258 = arith.negf %257 : vector<8x16xf32>
    %259 = math.exp %258 : vector<8x16xf32>
    %cst_104 = arith.constant 1.000000e+00 : f32
    %260 = vector.broadcast %cst_104 : f32 to vector<8x16xf32>
    %261 = arith.addf %260, %259 : vector<8x16xf32>
    %262 = arith.divf %260, %261 : vector<8x16xf32>
    %cst_105 = arith.constant dense<0.000000e+00> : vector<8x16xf32>
    %263 = tpu.matmul %224, %52, %cst_105 {dimension_numbers = #tpu.dot_dimension_numbers<[1], [0], [0], [1], [0, 0, 1, 1], [], []>} : vector<8x16xf32>, vector<16x16xf32>, vector<8x16xf32> -> vector<8x16xf32>
    %264 = arith.addf %254, %263 : vector<8x16xf32>
    %265 = arith.negf %264 : vector<8x16xf32>
    %266 = math.exp %265 : vector<8x16xf32>
    %cst_106 = arith.constant 1.000000e+00 : f32
    %267 = vector.broadcast %cst_106 : f32 to vector<8x16xf32>
    %268 = arith.addf %267, %266 : vector<8x16xf32>
    %269 = arith.divf %267, %268 : vector<8x16xf32>
    %cst_107 = arith.constant dense<0.000000e+00> : vector<8x16xf32>
    %270 = tpu.matmul %224, %54, %cst_107 {dimension_numbers = #tpu.dot_dimension_numbers<[1], [0], [0], [1], [0, 0, 1, 1], [], []>} : vector<8x16xf32>, vector<16x16xf32>, vector<8x16xf32> -> vector<8x16xf32>
    %271 = vector.broadcast %56 : vector<1x16xf32> to vector<8x16xf32>
    %272 = arith.addf %270, %271 : vector<8x16xf32>
    %273 = arith.mulf %262, %272 : vector<8x16xf32>
    %274 = arith.addf %255, %273 : vector<8x16xf32>
    %275 = math.tanh %274 : vector<8x16xf32>
    %cst_108 = arith.constant 1.000000e+00 : f32
    %276 = vector.broadcast %cst_108 : f32 to vector<8x16xf32>
    %277 = arith.subf %276, %269 : vector<8x16xf32>
    %278 = arith.mulf %277, %275 : vector<8x16xf32>
    %279 = arith.mulf %269, %224 : vector<8x16xf32>
    %280 = arith.addf %278, %279 : vector<8x16xf32>
    %281 = vector.extract_strided_slice %12 {offsets = [32, 0], sizes = [8, 16], strides = [1, 1]} : vector<48x16xf32> to vector<8x16xf32>
    %282 = vector.extract_strided_slice %18 {offsets = [32, 0], sizes = [8, 16], strides = [1, 1]} : vector<48x16xf32> to vector<8x16xf32>
    %283 = vector.extract_strided_slice %24 {offsets = [32, 0], sizes = [8, 16], strides = [1, 1]} : vector<48x16xf32> to vector<8x16xf32>
    %cst_109 = arith.constant dense<0.000000e+00> : vector<8x16xf32>
    %284 = tpu.matmul %252, %44, %cst_109 {dimension_numbers = #tpu.dot_dimension_numbers<[1], [0], [0], [1], [0, 0, 1, 1], [], []>} : vector<8x16xf32>, vector<16x16xf32>, vector<8x16xf32> -> vector<8x16xf32>
    %285 = arith.addf %281, %284 : vector<8x16xf32>
    %286 = arith.negf %285 : vector<8x16xf32>
    %287 = math.exp %286 : vector<8x16xf32>
    %cst_110 = arith.constant 1.000000e+00 : f32
    %288 = vector.broadcast %cst_110 : f32 to vector<8x16xf32>
    %289 = arith.addf %288, %287 : vector<8x16xf32>
    %290 = arith.divf %288, %289 : vector<8x16xf32>
    %cst_111 = arith.constant dense<0.000000e+00> : vector<8x16xf32>
    %291 = tpu.matmul %252, %46, %cst_111 {dimension_numbers = #tpu.dot_dimension_numbers<[1], [0], [0], [1], [0, 0, 1, 1], [], []>} : vector<8x16xf32>, vector<16x16xf32>, vector<8x16xf32> -> vector<8x16xf32>
    %292 = arith.addf %282, %291 : vector<8x16xf32>
    %293 = arith.negf %292 : vector<8x16xf32>
    %294 = math.exp %293 : vector<8x16xf32>
    %cst_112 = arith.constant 1.000000e+00 : f32
    %295 = vector.broadcast %cst_112 : f32 to vector<8x16xf32>
    %296 = arith.addf %295, %294 : vector<8x16xf32>
    %297 = arith.divf %295, %296 : vector<8x16xf32>
    %cst_113 = arith.constant dense<0.000000e+00> : vector<8x16xf32>
    %298 = tpu.matmul %252, %48, %cst_113 {dimension_numbers = #tpu.dot_dimension_numbers<[1], [0], [0], [1], [0, 0, 1, 1], [], []>} : vector<8x16xf32>, vector<16x16xf32>, vector<8x16xf32> -> vector<8x16xf32>
    %299 = vector.broadcast %55 : vector<1x16xf32> to vector<8x16xf32>
    %300 = arith.addf %298, %299 : vector<8x16xf32>
    %301 = arith.mulf %290, %300 : vector<8x16xf32>
    %302 = arith.addf %283, %301 : vector<8x16xf32>
    %303 = math.tanh %302 : vector<8x16xf32>
    %cst_114 = arith.constant 1.000000e+00 : f32
    %304 = vector.broadcast %cst_114 : f32 to vector<8x16xf32>
    %305 = arith.subf %304, %297 : vector<8x16xf32>
    %306 = arith.mulf %305, %303 : vector<8x16xf32>
    %307 = arith.mulf %297, %252 : vector<8x16xf32>
    %308 = arith.addf %306, %307 : vector<8x16xf32>
    %309 = vector.extract_strided_slice %30 {offsets = [8, 0], sizes = [8, 16], strides = [1, 1]} : vector<48x16xf32> to vector<8x16xf32>
    %310 = vector.extract_strided_slice %36 {offsets = [8, 0], sizes = [8, 16], strides = [1, 1]} : vector<48x16xf32> to vector<8x16xf32>
    %311 = vector.extract_strided_slice %42 {offsets = [8, 0], sizes = [8, 16], strides = [1, 1]} : vector<48x16xf32> to vector<8x16xf32>
    %cst_115 = arith.constant dense<0.000000e+00> : vector<8x16xf32>
    %312 = tpu.matmul %280, %50, %cst_115 {dimension_numbers = #tpu.dot_dimension_numbers<[1], [0], [0], [1], [0, 0, 1, 1], [], []>} : vector<8x16xf32>, vector<16x16xf32>, vector<8x16xf32> -> vector<8x16xf32>
    %313 = arith.addf %309, %312 : vector<8x16xf32>
    %314 = arith.negf %313 : vector<8x16xf32>
    %315 = math.exp %314 : vector<8x16xf32>
    %cst_116 = arith.constant 1.000000e+00 : f32
    %316 = vector.broadcast %cst_116 : f32 to vector<8x16xf32>
    %317 = arith.addf %316, %315 : vector<8x16xf32>
    %318 = arith.divf %316, %317 : vector<8x16xf32>
    %cst_117 = arith.constant dense<0.000000e+00> : vector<8x16xf32>
    %319 = tpu.matmul %280, %52, %cst_117 {dimension_numbers = #tpu.dot_dimension_numbers<[1], [0], [0], [1], [0, 0, 1, 1], [], []>} : vector<8x16xf32>, vector<16x16xf32>, vector<8x16xf32> -> vector<8x16xf32>
    %320 = arith.addf %310, %319 : vector<8x16xf32>
    %321 = arith.negf %320 : vector<8x16xf32>
    %322 = math.exp %321 : vector<8x16xf32>
    %cst_118 = arith.constant 1.000000e+00 : f32
    %323 = vector.broadcast %cst_118 : f32 to vector<8x16xf32>
    %324 = arith.addf %323, %322 : vector<8x16xf32>
    %325 = arith.divf %323, %324 : vector<8x16xf32>
    %cst_119 = arith.constant dense<0.000000e+00> : vector<8x16xf32>
    %326 = tpu.matmul %280, %54, %cst_119 {dimension_numbers = #tpu.dot_dimension_numbers<[1], [0], [0], [1], [0, 0, 1, 1], [], []>} : vector<8x16xf32>, vector<16x16xf32>, vector<8x16xf32> -> vector<8x16xf32>
    %327 = vector.broadcast %56 : vector<1x16xf32> to vector<8x16xf32>
    %328 = arith.addf %326, %327 : vector<8x16xf32>
    %329 = arith.mulf %318, %328 : vector<8x16xf32>
    %330 = arith.addf %311, %329 : vector<8x16xf32>
    %331 = math.tanh %330 : vector<8x16xf32>
    %cst_120 = arith.constant 1.000000e+00 : f32
    %332 = vector.broadcast %cst_120 : f32 to vector<8x16xf32>
    %333 = arith.subf %332, %325 : vector<8x16xf32>
    %334 = arith.mulf %333, %331 : vector<8x16xf32>
    %335 = arith.mulf %325, %280 : vector<8x16xf32>
    %336 = arith.addf %334, %335 : vector<8x16xf32>
    %337 = vector.extract_strided_slice %12 {offsets = [40, 0], sizes = [8, 16], strides = [1, 1]} : vector<48x16xf32> to vector<8x16xf32>
    %338 = vector.extract_strided_slice %18 {offsets = [40, 0], sizes = [8, 16], strides = [1, 1]} : vector<48x16xf32> to vector<8x16xf32>
    %339 = vector.extract_strided_slice %24 {offsets = [40, 0], sizes = [8, 16], strides = [1, 1]} : vector<48x16xf32> to vector<8x16xf32>
    %cst_121 = arith.constant dense<0.000000e+00> : vector<8x16xf32>
    %340 = tpu.matmul %308, %44, %cst_121 {dimension_numbers = #tpu.dot_dimension_numbers<[1], [0], [0], [1], [0, 0, 1, 1], [], []>} : vector<8x16xf32>, vector<16x16xf32>, vector<8x16xf32> -> vector<8x16xf32>
    %341 = arith.addf %337, %340 : vector<8x16xf32>
    %342 = arith.negf %341 : vector<8x16xf32>
    %343 = math.exp %342 : vector<8x16xf32>
    %cst_122 = arith.constant 1.000000e+00 : f32
    %344 = vector.broadcast %cst_122 : f32 to vector<8x16xf32>
    %345 = arith.addf %344, %343 : vector<8x16xf32>
    %346 = arith.divf %344, %345 : vector<8x16xf32>
    %cst_123 = arith.constant dense<0.000000e+00> : vector<8x16xf32>
    %347 = tpu.matmul %308, %46, %cst_123 {dimension_numbers = #tpu.dot_dimension_numbers<[1], [0], [0], [1], [0, 0, 1, 1], [], []>} : vector<8x16xf32>, vector<16x16xf32>, vector<8x16xf32> -> vector<8x16xf32>
    %348 = arith.addf %338, %347 : vector<8x16xf32>
    %349 = arith.negf %348 : vector<8x16xf32>
    %350 = math.exp %349 : vector<8x16xf32>
    %cst_124 = arith.constant 1.000000e+00 : f32
    %351 = vector.broadcast %cst_124 : f32 to vector<8x16xf32>
    %352 = arith.addf %351, %350 : vector<8x16xf32>
    %353 = arith.divf %351, %352 : vector<8x16xf32>
    %cst_125 = arith.constant dense<0.000000e+00> : vector<8x16xf32>
    %354 = tpu.matmul %308, %48, %cst_125 {dimension_numbers = #tpu.dot_dimension_numbers<[1], [0], [0], [1], [0, 0, 1, 1], [], []>} : vector<8x16xf32>, vector<16x16xf32>, vector<8x16xf32> -> vector<8x16xf32>
    %355 = vector.broadcast %55 : vector<1x16xf32> to vector<8x16xf32>
    %356 = arith.addf %354, %355 : vector<8x16xf32>
    %357 = arith.mulf %346, %356 : vector<8x16xf32>
    %358 = arith.addf %339, %357 : vector<8x16xf32>
    %359 = math.tanh %358 : vector<8x16xf32>
    %cst_126 = arith.constant 1.000000e+00 : f32
    %360 = vector.broadcast %cst_126 : f32 to vector<8x16xf32>
    %361 = arith.subf %360, %353 : vector<8x16xf32>
    %362 = arith.mulf %361, %359 : vector<8x16xf32>
    %363 = arith.mulf %353, %308 : vector<8x16xf32>
    %364 = arith.addf %362, %363 : vector<8x16xf32>
    %365 = vector.extract_strided_slice %30 {offsets = [0, 0], sizes = [8, 16], strides = [1, 1]} : vector<48x16xf32> to vector<8x16xf32>
    %366 = vector.extract_strided_slice %36 {offsets = [0, 0], sizes = [8, 16], strides = [1, 1]} : vector<48x16xf32> to vector<8x16xf32>
    %367 = vector.extract_strided_slice %42 {offsets = [0, 0], sizes = [8, 16], strides = [1, 1]} : vector<48x16xf32> to vector<8x16xf32>
    %cst_127 = arith.constant dense<0.000000e+00> : vector<8x16xf32>
    %368 = tpu.matmul %336, %50, %cst_127 {dimension_numbers = #tpu.dot_dimension_numbers<[1], [0], [0], [1], [0, 0, 1, 1], [], []>} : vector<8x16xf32>, vector<16x16xf32>, vector<8x16xf32> -> vector<8x16xf32>
    %369 = arith.addf %365, %368 : vector<8x16xf32>
    %370 = arith.negf %369 : vector<8x16xf32>
    %371 = math.exp %370 : vector<8x16xf32>
    %cst_128 = arith.constant 1.000000e+00 : f32
    %372 = vector.broadcast %cst_128 : f32 to vector<8x16xf32>
    %373 = arith.addf %372, %371 : vector<8x16xf32>
    %374 = arith.divf %372, %373 : vector<8x16xf32>
    %cst_129 = arith.constant dense<0.000000e+00> : vector<8x16xf32>
    %375 = tpu.matmul %336, %52, %cst_129 {dimension_numbers = #tpu.dot_dimension_numbers<[1], [0], [0], [1], [0, 0, 1, 1], [], []>} : vector<8x16xf32>, vector<16x16xf32>, vector<8x16xf32> -> vector<8x16xf32>
    %376 = arith.addf %366, %375 : vector<8x16xf32>
    %377 = arith.negf %376 : vector<8x16xf32>
    %378 = math.exp %377 : vector<8x16xf32>
    %cst_130 = arith.constant 1.000000e+00 : f32
    %379 = vector.broadcast %cst_130 : f32 to vector<8x16xf32>
    %380 = arith.addf %379, %378 : vector<8x16xf32>
    %381 = arith.divf %379, %380 : vector<8x16xf32>
    %cst_131 = arith.constant dense<0.000000e+00> : vector<8x16xf32>
    %382 = tpu.matmul %336, %54, %cst_131 {dimension_numbers = #tpu.dot_dimension_numbers<[1], [0], [0], [1], [0, 0, 1, 1], [], []>} : vector<8x16xf32>, vector<16x16xf32>, vector<8x16xf32> -> vector<8x16xf32>
    %383 = vector.broadcast %56 : vector<1x16xf32> to vector<8x16xf32>
    %384 = arith.addf %382, %383 : vector<8x16xf32>
    %385 = arith.mulf %374, %384 : vector<8x16xf32>
    %386 = arith.addf %367, %385 : vector<8x16xf32>
    %387 = math.tanh %386 : vector<8x16xf32>
    %cst_132 = arith.constant 1.000000e+00 : f32
    %388 = vector.broadcast %cst_132 : f32 to vector<8x16xf32>
    %389 = arith.subf %388, %381 : vector<8x16xf32>
    %390 = arith.mulf %389, %387 : vector<8x16xf32>
    %391 = arith.mulf %381, %336 : vector<8x16xf32>
    %392 = arith.addf %390, %391 : vector<8x16xf32>
    %393 = tpu.concatenate %84, %392 in 1 : vector<8x16xf32>, vector<8x16xf32> -> vector<8x32xf32>
    %394 = tpu.concatenate %140, %336 in 1 : vector<8x16xf32>, vector<8x16xf32> -> vector<8x32xf32>
    %395 = tpu.concatenate %196, %280 in 1 : vector<8x16xf32>, vector<8x16xf32> -> vector<8x32xf32>
    %396 = tpu.concatenate %252, %224 in 1 : vector<8x16xf32>, vector<8x16xf32> -> vector<8x32xf32>
    %397 = tpu.concatenate %308, %168 in 1 : vector<8x16xf32>, vector<8x16xf32> -> vector<8x32xf32>
    %398 = tpu.concatenate %364, %112 in 1 : vector<8x16xf32>, vector<8x16xf32> -> vector<8x32xf32>
    %399 = tpu.concatenate %393, %394, %395, %396, %397, %398 in 0 : vector<8x32xf32>, vector<8x32xf32>, vector<8x32xf32>, vector<8x32xf32>, vector<8x32xf32>, vector<8x32xf32> -> vector<48x32xf32>
    %c0_133 = arith.constant 0 : index
    %c0_134 = arith.constant 0 : index
    %400 = vector.load %arg8[%c0_133, %c0_134] : memref<32x32xf32, #tpu.memory_space<vmem>>, vector<32x32xf32>
    %cst_135 = arith.constant dense<0.000000e+00> : vector<48x32xf32>
    %401 = tpu.matmul %399, %400, %cst_135 {dimension_numbers = #tpu.dot_dimension_numbers<[1], [0], [0], [1], [0, 0, 1, 1], [], []>} : vector<48x32xf32>, vector<32x32xf32>, vector<48x32xf32> -> vector<48x32xf32>
    %c0_136 = arith.constant 0 : index
    %c0_137 = arith.constant 0 : index
    %402 = vector.load %arg9[%c0_136, %c0_137] : memref<1x32xf32, #tpu.memory_space<vmem>>, vector<1x32xf32>
    %403 = vector.broadcast %402 : vector<1x32xf32> to vector<48x32xf32>
    %404 = arith.addf %401, %403 : vector<48x32xf32>
    %405 = math.tanh %404 : vector<48x32xf32>
    %c0_138 = arith.constant 0 : index
    %c0_139 = arith.constant 0 : index
    %406 = vector.load %arg10[%c0_138, %c0_139] : memref<1x32xf32, #tpu.memory_space<vmem>>, vector<1x32xf32>
    %407 = vector.broadcast %406 : vector<1x32xf32> to vector<48x32xf32>
    %408 = arith.mulf %405, %407 : vector<48x32xf32>
    %cst_140 = arith.constant dense<0.000000e+00> : vector<48xf32>
    %409 = vector.multi_reduction <add>, %408, %cst_140 [1] : vector<48x32xf32> to vector<48xf32>
    %410 = vector.shape_cast %409 : vector<48xf32> to vector<48x1xf32>
    %411 = math.tanh %410 : vector<48x1xf32>
    %412 = vector.extract_strided_slice %411 {offsets = [0, 0], sizes = [8, 1], strides = [1, 1]} : vector<48x1xf32> to vector<8x1xf32>
    %413 = vector.extract_strided_slice %411 {offsets = [8, 0], sizes = [8, 1], strides = [1, 1]} : vector<48x1xf32> to vector<8x1xf32>
    %414 = vector.extract_strided_slice %411 {offsets = [16, 0], sizes = [8, 1], strides = [1, 1]} : vector<48x1xf32> to vector<8x1xf32>
    %415 = vector.extract_strided_slice %411 {offsets = [24, 0], sizes = [8, 1], strides = [1, 1]} : vector<48x1xf32> to vector<8x1xf32>
    %416 = vector.extract_strided_slice %411 {offsets = [32, 0], sizes = [8, 1], strides = [1, 1]} : vector<48x1xf32> to vector<8x1xf32>
    %417 = vector.extract_strided_slice %411 {offsets = [40, 0], sizes = [8, 1], strides = [1, 1]} : vector<48x1xf32> to vector<8x1xf32>
    %418 = tpu.concatenate %412, %413, %414, %415, %416, %417 in 1 : vector<8x1xf32>, vector<8x1xf32>, vector<8x1xf32>, vector<8x1xf32>, vector<8x1xf32>, vector<8x1xf32> -> vector<8x6xf32>
    %cst_141 = arith.constant dense<0xFF800000> : vector<8xf32>
    %419 = vector.multi_reduction <maximumf>, %418, %cst_141 [1] : vector<8x6xf32> to vector<8xf32>
    %420 = vector.shape_cast %419 : vector<8xf32> to vector<8x1xf32>
    %421 = vector.broadcast %420 : vector<8x1xf32> to vector<8x6xf32>
    %422 = arith.subf %418, %421 : vector<8x6xf32>
    %423 = math.exp %422 : vector<8x6xf32>
    %cst_142 = arith.constant dense<0.000000e+00> : vector<8xf32>
    %424 = vector.multi_reduction <add>, %423, %cst_142 [1] : vector<8x6xf32> to vector<8xf32>
    %425 = vector.shape_cast %424 : vector<8xf32> to vector<8x1xf32>
    %426 = vector.broadcast %425 : vector<8x1xf32> to vector<8x6xf32>
    %427 = arith.divf %423, %426 : vector<8x6xf32>
    %428 = vector.extract_strided_slice %427 {offsets = [0, 0], sizes = [8, 1], strides = [1, 1]} : vector<8x6xf32> to vector<8x1xf32>
    %429 = vector.broadcast %428 : vector<8x1xf32> to vector<8x32xf32>
    %430 = arith.mulf %393, %429 : vector<8x32xf32>
    %431 = vector.extract_strided_slice %427 {offsets = [0, 1], sizes = [8, 1], strides = [1, 1]} : vector<8x6xf32> to vector<8x1xf32>
    %432 = vector.broadcast %431 : vector<8x1xf32> to vector<8x32xf32>
    %433 = arith.mulf %394, %432 : vector<8x32xf32>
    %434 = arith.addf %430, %433 : vector<8x32xf32>
    %435 = vector.extract_strided_slice %427 {offsets = [0, 2], sizes = [8, 1], strides = [1, 1]} : vector<8x6xf32> to vector<8x1xf32>
    %436 = vector.broadcast %435 : vector<8x1xf32> to vector<8x32xf32>
    %437 = arith.mulf %395, %436 : vector<8x32xf32>
    %438 = arith.addf %434, %437 : vector<8x32xf32>
    %439 = vector.extract_strided_slice %427 {offsets = [0, 3], sizes = [8, 1], strides = [1, 1]} : vector<8x6xf32> to vector<8x1xf32>
    %440 = vector.broadcast %439 : vector<8x1xf32> to vector<8x32xf32>
    %441 = arith.mulf %396, %440 : vector<8x32xf32>
    %442 = arith.addf %438, %441 : vector<8x32xf32>
    %443 = vector.extract_strided_slice %427 {offsets = [0, 4], sizes = [8, 1], strides = [1, 1]} : vector<8x6xf32> to vector<8x1xf32>
    %444 = vector.broadcast %443 : vector<8x1xf32> to vector<8x32xf32>
    %445 = arith.mulf %397, %444 : vector<8x32xf32>
    %446 = arith.addf %442, %445 : vector<8x32xf32>
    %447 = vector.extract_strided_slice %427 {offsets = [0, 5], sizes = [8, 1], strides = [1, 1]} : vector<8x6xf32> to vector<8x1xf32>
    %448 = vector.broadcast %447 : vector<8x1xf32> to vector<8x32xf32>
    %449 = arith.mulf %398, %448 : vector<8x32xf32>
    %450 = arith.addf %446, %449 : vector<8x32xf32>
    %c0_143 = arith.constant 0 : index
    %c0_144 = arith.constant 0 : index
    %451 = vector.load %arg22[%c0_143, %c0_144] : memref<8x16xf32, #tpu.memory_space<vmem>>, vector<8x16xf32>
    tpu.vector_store %arg22[%c0_143, %c0_144], %364 {strides = array<i32>} : memref<8x16xf32, #tpu.memory_space<vmem>>, vector<8x16xf32>,
    %c0_145 = arith.constant 0 : index
    %c0_146 = arith.constant 0 : index
    %452 = vector.load %arg23[%c0_145, %c0_146] : memref<8x16xf32, #tpu.memory_space<vmem>>, vector<8x16xf32>
    tpu.vector_store %arg23[%c0_145, %c0_146], %392 {strides = array<i32>} : memref<8x16xf32, #tpu.memory_space<vmem>>, vector<8x16xf32>,
    %c8_i32 = arith.constant 8 : i32
    %453 = arith.muli %arg0, %c8_i32 : i32
    %454 = tpu.assume_multiple %453, 8 : i32
    %455 = arith.index_cast %454 : i32 to index
    %c0_147 = arith.constant 0 : index
    %456 = vector.load %arg24[%455, %c0_147] : memref<24x32xf32, #tpu.memory_space<vmem>>, vector<8x32xf32>
    tpu.vector_store %arg24[%455, %c0_147], %450 {strides = array<i32>} : memref<24x32xf32, #tpu.memory_space<vmem>>, vector<8x32xf32>,
    %c2_i32 = arith.constant 2 : i32
    %457 = arith.cmpi eq, %arg0, %c2_i32 : i32
    %458 = arith.extui %457 : i1 to i32
    %c0_i32_148 = arith.constant 0 : i32
    %459 = arith.cmpi ne, %458, %c0_i32_148 : i32
    scf.if %459 {
      %cst_149 = arith.constant 0.000000e+00 : f32
      %460 = vector.broadcast %cst_149 : f32 to vector<8x16xf32>
      %c0_150 = arith.constant 0 : index
      %c0_151 = arith.constant 0 : index
      %461 = vector.load %arg24[%c0_150, %c0_151] : memref<24x32xf32, #tpu.memory_space<vmem>>, vector<24x32xf32>
      %c0_152 = arith.constant 0 : index
      %c0_153 = arith.constant 0 : index
      %c0_154 = arith.constant 0 : index
      %462 = vector.load %arg11[%c0_152, %c0_153, %c0_154] : memref<3x32x16xf32, #tpu.memory_space<vmem>>, vector<1x32x16xf32>
      %463 = vector.shape_cast %462 : vector<1x32x16xf32> to vector<32x16xf32>
      %cst_155 = arith.constant dense<0.000000e+00> : vector<24x16xf32>
      %464 = tpu.matmul %461, %463, %cst_155 {dimension_numbers = #tpu.dot_dimension_numbers<[1], [0], [0], [1], [0, 0, 1, 1], [], []>} : vector<24x32xf32>, vector<32x16xf32>, vector<24x16xf32> -> vector<24x16xf32>
      %c0_156 = arith.constant 0 : index
      %c0_157 = arith.constant 0 : index
      %465 = vector.load %arg13[%c0_156, %c0_157] : memref<4x16xf32, #tpu.memory_space<vmem>>, vector<1x16xf32>
      %466 = vector.broadcast %465 : vector<1x16xf32> to vector<24x16xf32>
      %467 = arith.addf %464, %466 : vector<24x16xf32>
      %c1_158 = arith.constant 1 : index
      %c0_159 = arith.constant 0 : index
      %c0_160 = arith.constant 0 : index
      %468 = vector.load %arg11[%c1_158, %c0_159, %c0_160] : memref<3x32x16xf32, #tpu.memory_space<vmem>>, vector<1x32x16xf32>
      %469 = vector.shape_cast %468 : vector<1x32x16xf32> to vector<32x16xf32>
      %cst_161 = arith.constant dense<0.000000e+00> : vector<24x16xf32>
      %470 = tpu.matmul %461, %469, %cst_161 {dimension_numbers = #tpu.dot_dimension_numbers<[1], [0], [0], [1], [0, 0, 1, 1], [], []>} : vector<24x32xf32>, vector<32x16xf32>, vector<24x16xf32> -> vector<24x16xf32>
      %c1_162 = arith.constant 1 : index
      %c0_163 = arith.constant 0 : index
      %471 = vector.load %arg13[%c1_162, %c0_163] : memref<4x16xf32, #tpu.memory_space<vmem>>, vector<1x16xf32>
      %472 = vector.broadcast %471 : vector<1x16xf32> to vector<24x16xf32>
      %473 = arith.addf %470, %472 : vector<24x16xf32>
      %c2_164 = arith.constant 2 : index
      %c0_165 = arith.constant 0 : index
      %c0_166 = arith.constant 0 : index
      %474 = vector.load %arg11[%c2_164, %c0_165, %c0_166] : memref<3x32x16xf32, #tpu.memory_space<vmem>>, vector<1x32x16xf32>
      %475 = vector.shape_cast %474 : vector<1x32x16xf32> to vector<32x16xf32>
      %cst_167 = arith.constant dense<0.000000e+00> : vector<24x16xf32>
      %476 = tpu.matmul %461, %475, %cst_167 {dimension_numbers = #tpu.dot_dimension_numbers<[1], [0], [0], [1], [0, 0, 1, 1], [], []>} : vector<24x32xf32>, vector<32x16xf32>, vector<24x16xf32> -> vector<24x16xf32>
      %c2_168 = arith.constant 2 : index
      %c0_169 = arith.constant 0 : index
      %477 = vector.load %arg13[%c2_168, %c0_169] : memref<4x16xf32, #tpu.memory_space<vmem>>, vector<1x16xf32>
      %478 = vector.broadcast %477 : vector<1x16xf32> to vector<24x16xf32>
      %479 = arith.addf %476, %478 : vector<24x16xf32>
      %c0_170 = arith.constant 0 : index
      %c0_171 = arith.constant 0 : index
      %c0_172 = arith.constant 0 : index
      %480 = vector.load %arg14[%c0_170, %c0_171, %c0_172] : memref<3x32x16xf32, #tpu.memory_space<vmem>>, vector<1x32x16xf32>
      %481 = vector.shape_cast %480 : vector<1x32x16xf32> to vector<32x16xf32>
      %cst_173 = arith.constant dense<0.000000e+00> : vector<24x16xf32>
      %482 = tpu.matmul %461, %481, %cst_173 {dimension_numbers = #tpu.dot_dimension_numbers<[1], [0], [0], [1], [0, 0, 1, 1], [], []>} : vector<24x32xf32>, vector<32x16xf32>, vector<24x16xf32> -> vector<24x16xf32>
      %c0_174 = arith.constant 0 : index
      %c0_175 = arith.constant 0 : index
      %483 = vector.load %arg16[%c0_174, %c0_175] : memref<4x16xf32, #tpu.memory_space<vmem>>, vector<1x16xf32>
      %484 = vector.broadcast %483 : vector<1x16xf32> to vector<24x16xf32>
      %485 = arith.addf %482, %484 : vector<24x16xf32>
      %c1_176 = arith.constant 1 : index
      %c0_177 = arith.constant 0 : index
      %c0_178 = arith.constant 0 : index
      %486 = vector.load %arg14[%c1_176, %c0_177, %c0_178] : memref<3x32x16xf32, #tpu.memory_space<vmem>>, vector<1x32x16xf32>
      %487 = vector.shape_cast %486 : vector<1x32x16xf32> to vector<32x16xf32>
      %cst_179 = arith.constant dense<0.000000e+00> : vector<24x16xf32>
      %488 = tpu.matmul %461, %487, %cst_179 {dimension_numbers = #tpu.dot_dimension_numbers<[1], [0], [0], [1], [0, 0, 1, 1], [], []>} : vector<24x32xf32>, vector<32x16xf32>, vector<24x16xf32> -> vector<24x16xf32>
      %c1_180 = arith.constant 1 : index
      %c0_181 = arith.constant 0 : index
      %489 = vector.load %arg16[%c1_180, %c0_181] : memref<4x16xf32, #tpu.memory_space<vmem>>, vector<1x16xf32>
      %490 = vector.broadcast %489 : vector<1x16xf32> to vector<24x16xf32>
      %491 = arith.addf %488, %490 : vector<24x16xf32>
      %c2_182 = arith.constant 2 : index
      %c0_183 = arith.constant 0 : index
      %c0_184 = arith.constant 0 : index
      %492 = vector.load %arg14[%c2_182, %c0_183, %c0_184] : memref<3x32x16xf32, #tpu.memory_space<vmem>>, vector<1x32x16xf32>
      %493 = vector.shape_cast %492 : vector<1x32x16xf32> to vector<32x16xf32>
      %cst_185 = arith.constant dense<0.000000e+00> : vector<24x16xf32>
      %494 = tpu.matmul %461, %493, %cst_185 {dimension_numbers = #tpu.dot_dimension_numbers<[1], [0], [0], [1], [0, 0, 1, 1], [], []>} : vector<24x32xf32>, vector<32x16xf32>, vector<24x16xf32> -> vector<24x16xf32>
      %c2_186 = arith.constant 2 : index
      %c0_187 = arith.constant 0 : index
      %495 = vector.load %arg16[%c2_186, %c0_187] : memref<4x16xf32, #tpu.memory_space<vmem>>, vector<1x16xf32>
      %496 = vector.broadcast %495 : vector<1x16xf32> to vector<24x16xf32>
      %497 = arith.addf %494, %496 : vector<24x16xf32>
      %c0_188 = arith.constant 0 : index
      %c0_189 = arith.constant 0 : index
      %c0_190 = arith.constant 0 : index
      %498 = vector.load %arg12[%c0_188, %c0_189, %c0_190] : memref<3x16x16xf32, #tpu.memory_space<vmem>>, vector<1x16x16xf32>
      %499 = vector.shape_cast %498 : vector<1x16x16xf32> to vector<16x16xf32>
      %c1_191 = arith.constant 1 : index
      %c0_192 = arith.constant 0 : index
      %c0_193 = arith.constant 0 : index
      %500 = vector.load %arg12[%c1_191, %c0_192, %c0_193] : memref<3x16x16xf32, #tpu.memory_space<vmem>>, vector<1x16x16xf32>
      %501 = vector.shape_cast %500 : vector<1x16x16xf32> to vector<16x16xf32>
      %c2_194 = arith.constant 2 : index
      %c0_195 = arith.constant 0 : index
      %c0_196 = arith.constant 0 : index
      %502 = vector.load %arg12[%c2_194, %c0_195, %c0_196] : memref<3x16x16xf32, #tpu.memory_space<vmem>>, vector<1x16x16xf32>
      %503 = vector.shape_cast %502 : vector<1x16x16xf32> to vector<16x16xf32>
      %c0_197 = arith.constant 0 : index
      %c0_198 = arith.constant 0 : index
      %c0_199 = arith.constant 0 : index
      %504 = vector.load %arg15[%c0_197, %c0_198, %c0_199] : memref<3x16x16xf32, #tpu.memory_space<vmem>>, vector<1x16x16xf32>
      %505 = vector.shape_cast %504 : vector<1x16x16xf32> to vector<16x16xf32>
      %c1_200 = arith.constant 1 : index
      %c0_201 = arith.constant 0 : index
      %c0_202 = arith.constant 0 : index
      %506 = vector.load %arg15[%c1_200, %c0_201, %c0_202] : memref<3x16x16xf32, #tpu.memory_space<vmem>>, vector<1x16x16xf32>
      %507 = vector.shape_cast %506 : vector<1x16x16xf32> to vector<16x16xf32>
      %c2_203 = arith.constant 2 : index
      %c0_204 = arith.constant 0 : index
      %c0_205 = arith.constant 0 : index
      %508 = vector.load %arg15[%c2_203, %c0_204, %c0_205] : memref<3x16x16xf32, #tpu.memory_space<vmem>>, vector<1x16x16xf32>
      %509 = vector.shape_cast %508 : vector<1x16x16xf32> to vector<16x16xf32>
      %c3_206 = arith.constant 3 : index
      %c0_207 = arith.constant 0 : index
      %510 = vector.load %arg13[%c3_206, %c0_207] : memref<4x16xf32, #tpu.memory_space<vmem>>, vector<1x16xf32>
      %c3_208 = arith.constant 3 : index
      %c0_209 = arith.constant 0 : index
      %511 = vector.load %arg16[%c3_208, %c0_209] : memref<4x16xf32, #tpu.memory_space<vmem>>, vector<1x16xf32>
      %512 = vector.extract_strided_slice %467 {offsets = [0, 0], sizes = [8, 16], strides = [1, 1]} : vector<24x16xf32> to vector<8x16xf32>
      %513 = vector.extract_strided_slice %473 {offsets = [0, 0], sizes = [8, 16], strides = [1, 1]} : vector<24x16xf32> to vector<8x16xf32>
      %514 = vector.extract_strided_slice %479 {offsets = [0, 0], sizes = [8, 16], strides = [1, 1]} : vector<24x16xf32> to vector<8x16xf32>
      %cst_210 = arith.constant dense<0.000000e+00> : vector<8x16xf32>
      %515 = tpu.matmul %460, %499, %cst_210 {dimension_numbers = #tpu.dot_dimension_numbers<[1], [0], [0], [1], [0, 0, 1, 1], [], []>} : vector<8x16xf32>, vector<16x16xf32>, vector<8x16xf32> -> vector<8x16xf32>
      %516 = arith.addf %512, %515 : vector<8x16xf32>
      %517 = arith.negf %516 : vector<8x16xf32>
      %518 = math.exp %517 : vector<8x16xf32>
      %cst_211 = arith.constant 1.000000e+00 : f32
      %519 = vector.broadcast %cst_211 : f32 to vector<8x16xf32>
      %520 = arith.addf %519, %518 : vector<8x16xf32>
      %521 = arith.divf %519, %520 : vector<8x16xf32>
      %cst_212 = arith.constant dense<0.000000e+00> : vector<8x16xf32>
      %522 = tpu.matmul %460, %501, %cst_212 {dimension_numbers = #tpu.dot_dimension_numbers<[1], [0], [0], [1], [0, 0, 1, 1], [], []>} : vector<8x16xf32>, vector<16x16xf32>, vector<8x16xf32> -> vector<8x16xf32>
      %523 = arith.addf %513, %522 : vector<8x16xf32>
      %524 = arith.negf %523 : vector<8x16xf32>
      %525 = math.exp %524 : vector<8x16xf32>
      %cst_213 = arith.constant 1.000000e+00 : f32
      %526 = vector.broadcast %cst_213 : f32 to vector<8x16xf32>
      %527 = arith.addf %526, %525 : vector<8x16xf32>
      %528 = arith.divf %526, %527 : vector<8x16xf32>
      %cst_214 = arith.constant dense<0.000000e+00> : vector<8x16xf32>
      %529 = tpu.matmul %460, %503, %cst_214 {dimension_numbers = #tpu.dot_dimension_numbers<[1], [0], [0], [1], [0, 0, 1, 1], [], []>} : vector<8x16xf32>, vector<16x16xf32>, vector<8x16xf32> -> vector<8x16xf32>
      %530 = vector.broadcast %510 : vector<1x16xf32> to vector<8x16xf32>
      %531 = arith.addf %529, %530 : vector<8x16xf32>
      %532 = arith.mulf %521, %531 : vector<8x16xf32>
      %533 = arith.addf %514, %532 : vector<8x16xf32>
      %534 = math.tanh %533 : vector<8x16xf32>
      %cst_215 = arith.constant 1.000000e+00 : f32
      %535 = vector.broadcast %cst_215 : f32 to vector<8x16xf32>
      %536 = arith.subf %535, %528 : vector<8x16xf32>
      %537 = arith.mulf %536, %534 : vector<8x16xf32>
      %538 = arith.mulf %528, %460 : vector<8x16xf32>
      %539 = arith.addf %537, %538 : vector<8x16xf32>
      %540 = vector.extract_strided_slice %485 {offsets = [16, 0], sizes = [8, 16], strides = [1, 1]} : vector<24x16xf32> to vector<8x16xf32>
      %541 = vector.extract_strided_slice %491 {offsets = [16, 0], sizes = [8, 16], strides = [1, 1]} : vector<24x16xf32> to vector<8x16xf32>
      %542 = vector.extract_strided_slice %497 {offsets = [16, 0], sizes = [8, 16], strides = [1, 1]} : vector<24x16xf32> to vector<8x16xf32>
      %cst_216 = arith.constant dense<0.000000e+00> : vector<8x16xf32>
      %543 = tpu.matmul %460, %505, %cst_216 {dimension_numbers = #tpu.dot_dimension_numbers<[1], [0], [0], [1], [0, 0, 1, 1], [], []>} : vector<8x16xf32>, vector<16x16xf32>, vector<8x16xf32> -> vector<8x16xf32>
      %544 = arith.addf %540, %543 : vector<8x16xf32>
      %545 = arith.negf %544 : vector<8x16xf32>
      %546 = math.exp %545 : vector<8x16xf32>
      %cst_217 = arith.constant 1.000000e+00 : f32
      %547 = vector.broadcast %cst_217 : f32 to vector<8x16xf32>
      %548 = arith.addf %547, %546 : vector<8x16xf32>
      %549 = arith.divf %547, %548 : vector<8x16xf32>
      %cst_218 = arith.constant dense<0.000000e+00> : vector<8x16xf32>
      %550 = tpu.matmul %460, %507, %cst_218 {dimension_numbers = #tpu.dot_dimension_numbers<[1], [0], [0], [1], [0, 0, 1, 1], [], []>} : vector<8x16xf32>, vector<16x16xf32>, vector<8x16xf32> -> vector<8x16xf32>
      %551 = arith.addf %541, %550 : vector<8x16xf32>
      %552 = arith.negf %551 : vector<8x16xf32>
      %553 = math.exp %552 : vector<8x16xf32>
      %cst_219 = arith.constant 1.000000e+00 : f32
      %554 = vector.broadcast %cst_219 : f32 to vector<8x16xf32>
      %555 = arith.addf %554, %553 : vector<8x16xf32>
      %556 = arith.divf %554, %555 : vector<8x16xf32>
      %cst_220 = arith.constant dense<0.000000e+00> : vector<8x16xf32>
      %557 = tpu.matmul %460, %509, %cst_220 {dimension_numbers = #tpu.dot_dimension_numbers<[1], [0], [0], [1], [0, 0, 1, 1], [], []>} : vector<8x16xf32>, vector<16x16xf32>, vector<8x16xf32> -> vector<8x16xf32>
      %558 = vector.broadcast %511 : vector<1x16xf32> to vector<8x16xf32>
      %559 = arith.addf %557, %558 : vector<8x16xf32>
      %560 = arith.mulf %549, %559 : vector<8x16xf32>
      %561 = arith.addf %542, %560 : vector<8x16xf32>
      %562 = math.tanh %561 : vector<8x16xf32>
      %cst_221 = arith.constant 1.000000e+00 : f32
      %563 = vector.broadcast %cst_221 : f32 to vector<8x16xf32>
      %564 = arith.subf %563, %556 : vector<8x16xf32>
      %565 = arith.mulf %564, %562 : vector<8x16xf32>
      %566 = arith.mulf %556, %460 : vector<8x16xf32>
      %567 = arith.addf %565, %566 : vector<8x16xf32>
      %568 = vector.extract_strided_slice %467 {offsets = [8, 0], sizes = [8, 16], strides = [1, 1]} : vector<24x16xf32> to vector<8x16xf32>
      %569 = vector.extract_strided_slice %473 {offsets = [8, 0], sizes = [8, 16], strides = [1, 1]} : vector<24x16xf32> to vector<8x16xf32>
      %570 = vector.extract_strided_slice %479 {offsets = [8, 0], sizes = [8, 16], strides = [1, 1]} : vector<24x16xf32> to vector<8x16xf32>
      %cst_222 = arith.constant dense<0.000000e+00> : vector<8x16xf32>
      %571 = tpu.matmul %539, %499, %cst_222 {dimension_numbers = #tpu.dot_dimension_numbers<[1], [0], [0], [1], [0, 0, 1, 1], [], []>} : vector<8x16xf32>, vector<16x16xf32>, vector<8x16xf32> -> vector<8x16xf32>
      %572 = arith.addf %568, %571 : vector<8x16xf32>
      %573 = arith.negf %572 : vector<8x16xf32>
      %574 = math.exp %573 : vector<8x16xf32>
      %cst_223 = arith.constant 1.000000e+00 : f32
      %575 = vector.broadcast %cst_223 : f32 to vector<8x16xf32>
      %576 = arith.addf %575, %574 : vector<8x16xf32>
      %577 = arith.divf %575, %576 : vector<8x16xf32>
      %cst_224 = arith.constant dense<0.000000e+00> : vector<8x16xf32>
      %578 = tpu.matmul %539, %501, %cst_224 {dimension_numbers = #tpu.dot_dimension_numbers<[1], [0], [0], [1], [0, 0, 1, 1], [], []>} : vector<8x16xf32>, vector<16x16xf32>, vector<8x16xf32> -> vector<8x16xf32>
      %579 = arith.addf %569, %578 : vector<8x16xf32>
      %580 = arith.negf %579 : vector<8x16xf32>
      %581 = math.exp %580 : vector<8x16xf32>
      %cst_225 = arith.constant 1.000000e+00 : f32
      %582 = vector.broadcast %cst_225 : f32 to vector<8x16xf32>
      %583 = arith.addf %582, %581 : vector<8x16xf32>
      %584 = arith.divf %582, %583 : vector<8x16xf32>
      %cst_226 = arith.constant dense<0.000000e+00> : vector<8x16xf32>
      %585 = tpu.matmul %539, %503, %cst_226 {dimension_numbers = #tpu.dot_dimension_numbers<[1], [0], [0], [1], [0, 0, 1, 1], [], []>} : vector<8x16xf32>, vector<16x16xf32>, vector<8x16xf32> -> vector<8x16xf32>
      %586 = vector.broadcast %510 : vector<1x16xf32> to vector<8x16xf32>
      %587 = arith.addf %585, %586 : vector<8x16xf32>
      %588 = arith.mulf %577, %587 : vector<8x16xf32>
      %589 = arith.addf %570, %588 : vector<8x16xf32>
      %590 = math.tanh %589 : vector<8x16xf32>
      %cst_227 = arith.constant 1.000000e+00 : f32
      %591 = vector.broadcast %cst_227 : f32 to vector<8x16xf32>
      %592 = arith.subf %591, %584 : vector<8x16xf32>
      %593 = arith.mulf %592, %590 : vector<8x16xf32>
      %594 = arith.mulf %584, %539 : vector<8x16xf32>
      %595 = arith.addf %593, %594 : vector<8x16xf32>
      %596 = vector.extract_strided_slice %485 {offsets = [8, 0], sizes = [8, 16], strides = [1, 1]} : vector<24x16xf32> to vector<8x16xf32>
      %597 = vector.extract_strided_slice %491 {offsets = [8, 0], sizes = [8, 16], strides = [1, 1]} : vector<24x16xf32> to vector<8x16xf32>
      %598 = vector.extract_strided_slice %497 {offsets = [8, 0], sizes = [8, 16], strides = [1, 1]} : vector<24x16xf32> to vector<8x16xf32>
      %cst_228 = arith.constant dense<0.000000e+00> : vector<8x16xf32>
      %599 = tpu.matmul %567, %505, %cst_228 {dimension_numbers = #tpu.dot_dimension_numbers<[1], [0], [0], [1], [0, 0, 1, 1], [], []>} : vector<8x16xf32>, vector<16x16xf32>, vector<8x16xf32> -> vector<8x16xf32>
      %600 = arith.addf %596, %599 : vector<8x16xf32>
      %601 = arith.negf %600 : vector<8x16xf32>
      %602 = math.exp %601 : vector<8x16xf32>
      %cst_229 = arith.constant 1.000000e+00 : f32
      %603 = vector.broadcast %cst_229 : f32 to vector<8x16xf32>
      %604 = arith.addf %603, %602 : vector<8x16xf32>
      %605 = arith.divf %603, %604 : vector<8x16xf32>
      %cst_230 = arith.constant dense<0.000000e+00> : vector<8x16xf32>
      %606 = tpu.matmul %567, %507, %cst_230 {dimension_numbers = #tpu.dot_dimension_numbers<[1], [0], [0], [1], [0, 0, 1, 1], [], []>} : vector<8x16xf32>, vector<16x16xf32>, vector<8x16xf32> -> vector<8x16xf32>
      %607 = arith.addf %597, %606 : vector<8x16xf32>
      %608 = arith.negf %607 : vector<8x16xf32>
      %609 = math.exp %608 : vector<8x16xf32>
      %cst_231 = arith.constant 1.000000e+00 : f32
      %610 = vector.broadcast %cst_231 : f32 to vector<8x16xf32>
      %611 = arith.addf %610, %609 : vector<8x16xf32>
      %612 = arith.divf %610, %611 : vector<8x16xf32>
      %cst_232 = arith.constant dense<0.000000e+00> : vector<8x16xf32>
      %613 = tpu.matmul %567, %509, %cst_232 {dimension_numbers = #tpu.dot_dimension_numbers<[1], [0], [0], [1], [0, 0, 1, 1], [], []>} : vector<8x16xf32>, vector<16x16xf32>, vector<8x16xf32> -> vector<8x16xf32>
      %614 = vector.broadcast %511 : vector<1x16xf32> to vector<8x16xf32>
      %615 = arith.addf %613, %614 : vector<8x16xf32>
      %616 = arith.mulf %605, %615 : vector<8x16xf32>
      %617 = arith.addf %598, %616 : vector<8x16xf32>
      %618 = math.tanh %617 : vector<8x16xf32>
      %cst_233 = arith.constant 1.000000e+00 : f32
      %619 = vector.broadcast %cst_233 : f32 to vector<8x16xf32>
      %620 = arith.subf %619, %612 : vector<8x16xf32>
      %621 = arith.mulf %620, %618 : vector<8x16xf32>
      %622 = arith.mulf %612, %567 : vector<8x16xf32>
      %623 = arith.addf %621, %622 : vector<8x16xf32>
      %624 = vector.extract_strided_slice %467 {offsets = [16, 0], sizes = [8, 16], strides = [1, 1]} : vector<24x16xf32> to vector<8x16xf32>
      %625 = vector.extract_strided_slice %473 {offsets = [16, 0], sizes = [8, 16], strides = [1, 1]} : vector<24x16xf32> to vector<8x16xf32>
      %626 = vector.extract_strided_slice %479 {offsets = [16, 0], sizes = [8, 16], strides = [1, 1]} : vector<24x16xf32> to vector<8x16xf32>
      %cst_234 = arith.constant dense<0.000000e+00> : vector<8x16xf32>
      %627 = tpu.matmul %595, %499, %cst_234 {dimension_numbers = #tpu.dot_dimension_numbers<[1], [0], [0], [1], [0, 0, 1, 1], [], []>} : vector<8x16xf32>, vector<16x16xf32>, vector<8x16xf32> -> vector<8x16xf32>
      %628 = arith.addf %624, %627 : vector<8x16xf32>
      %629 = arith.negf %628 : vector<8x16xf32>
      %630 = math.exp %629 : vector<8x16xf32>
      %cst_235 = arith.constant 1.000000e+00 : f32
      %631 = vector.broadcast %cst_235 : f32 to vector<8x16xf32>
      %632 = arith.addf %631, %630 : vector<8x16xf32>
      %633 = arith.divf %631, %632 : vector<8x16xf32>
      %cst_236 = arith.constant dense<0.000000e+00> : vector<8x16xf32>
      %634 = tpu.matmul %595, %501, %cst_236 {dimension_numbers = #tpu.dot_dimension_numbers<[1], [0], [0], [1], [0, 0, 1, 1], [], []>} : vector<8x16xf32>, vector<16x16xf32>, vector<8x16xf32> -> vector<8x16xf32>
      %635 = arith.addf %625, %634 : vector<8x16xf32>
      %636 = arith.negf %635 : vector<8x16xf32>
      %637 = math.exp %636 : vector<8x16xf32>
      %cst_237 = arith.constant 1.000000e+00 : f32
      %638 = vector.broadcast %cst_237 : f32 to vector<8x16xf32>
      %639 = arith.addf %638, %637 : vector<8x16xf32>
      %640 = arith.divf %638, %639 : vector<8x16xf32>
      %cst_238 = arith.constant dense<0.000000e+00> : vector<8x16xf32>
      %641 = tpu.matmul %595, %503, %cst_238 {dimension_numbers = #tpu.dot_dimension_numbers<[1], [0], [0], [1], [0, 0, 1, 1], [], []>} : vector<8x16xf32>, vector<16x16xf32>, vector<8x16xf32> -> vector<8x16xf32>
      %642 = vector.broadcast %510 : vector<1x16xf32> to vector<8x16xf32>
      %643 = arith.addf %641, %642 : vector<8x16xf32>
      %644 = arith.mulf %633, %643 : vector<8x16xf32>
      %645 = arith.addf %626, %644 : vector<8x16xf32>
      %646 = math.tanh %645 : vector<8x16xf32>
      %cst_239 = arith.constant 1.000000e+00 : f32
      %647 = vector.broadcast %cst_239 : f32 to vector<8x16xf32>
      %648 = arith.subf %647, %640 : vector<8x16xf32>
      %649 = arith.mulf %648, %646 : vector<8x16xf32>
      %650 = arith.mulf %640, %595 : vector<8x16xf32>
      %651 = arith.addf %649, %650 : vector<8x16xf32>
      %652 = vector.extract_strided_slice %485 {offsets = [0, 0], sizes = [8, 16], strides = [1, 1]} : vector<24x16xf32> to vector<8x16xf32>
      %653 = vector.extract_strided_slice %491 {offsets = [0, 0], sizes = [8, 16], strides = [1, 1]} : vector<24x16xf32> to vector<8x16xf32>
      %654 = vector.extract_strided_slice %497 {offsets = [0, 0], sizes = [8, 16], strides = [1, 1]} : vector<24x16xf32> to vector<8x16xf32>
      %cst_240 = arith.constant dense<0.000000e+00> : vector<8x16xf32>
      %655 = tpu.matmul %623, %505, %cst_240 {dimension_numbers = #tpu.dot_dimension_numbers<[1], [0], [0], [1], [0, 0, 1, 1], [], []>} : vector<8x16xf32>, vector<16x16xf32>, vector<8x16xf32> -> vector<8x16xf32>
      %656 = arith.addf %652, %655 : vector<8x16xf32>
      %657 = arith.negf %656 : vector<8x16xf32>
      %658 = math.exp %657 : vector<8x16xf32>
      %cst_241 = arith.constant 1.000000e+00 : f32
      %659 = vector.broadcast %cst_241 : f32 to vector<8x16xf32>
      %660 = arith.addf %659, %658 : vector<8x16xf32>
      %661 = arith.divf %659, %660 : vector<8x16xf32>
      %cst_242 = arith.constant dense<0.000000e+00> : vector<8x16xf32>
      %662 = tpu.matmul %623, %507, %cst_242 {dimension_numbers = #tpu.dot_dimension_numbers<[1], [0], [0], [1], [0, 0, 1, 1], [], []>} : vector<8x16xf32>, vector<16x16xf32>, vector<8x16xf32> -> vector<8x16xf32>
      %663 = arith.addf %653, %662 : vector<8x16xf32>
      %664 = arith.negf %663 : vector<8x16xf32>
      %665 = math.exp %664 : vector<8x16xf32>
      %cst_243 = arith.constant 1.000000e+00 : f32
      %666 = vector.broadcast %cst_243 : f32 to vector<8x16xf32>
      %667 = arith.addf %666, %665 : vector<8x16xf32>
      %668 = arith.divf %666, %667 : vector<8x16xf32>
      %cst_244 = arith.constant dense<0.000000e+00> : vector<8x16xf32>
      %669 = tpu.matmul %623, %509, %cst_244 {dimension_numbers = #tpu.dot_dimension_numbers<[1], [0], [0], [1], [0, 0, 1, 1], [], []>} : vector<8x16xf32>, vector<16x16xf32>, vector<8x16xf32> -> vector<8x16xf32>
      %670 = vector.broadcast %511 : vector<1x16xf32> to vector<8x16xf32>
      %671 = arith.addf %669, %670 : vector<8x16xf32>
      %672 = arith.mulf %661, %671 : vector<8x16xf32>
      %673 = arith.addf %654, %672 : vector<8x16xf32>
      %674 = math.tanh %673 : vector<8x16xf32>
      %cst_245 = arith.constant 1.000000e+00 : f32
      %675 = vector.broadcast %cst_245 : f32 to vector<8x16xf32>
      %676 = arith.subf %675, %668 : vector<8x16xf32>
      %677 = arith.mulf %676, %674 : vector<8x16xf32>
      %678 = arith.mulf %668, %623 : vector<8x16xf32>
      %679 = arith.addf %677, %678 : vector<8x16xf32>
      %680 = tpu.concatenate %539, %679 in 1 : vector<8x16xf32>, vector<8x16xf32> -> vector<8x32xf32>
      %681 = tpu.concatenate %595, %623 in 1 : vector<8x16xf32>, vector<8x16xf32> -> vector<8x32xf32>
      %682 = tpu.concatenate %651, %567 in 1 : vector<8x16xf32>, vector<8x16xf32> -> vector<8x32xf32>
      %683 = tpu.concatenate %680, %681, %682 in 0 : vector<8x32xf32>, vector<8x32xf32>, vector<8x32xf32> -> vector<24x32xf32>
      %c0_246 = arith.constant 0 : index
      %c0_247 = arith.constant 0 : index
      %684 = vector.load %arg17[%c0_246, %c0_247] : memref<32x32xf32, #tpu.memory_space<vmem>>, vector<32x32xf32>
      %cst_248 = arith.constant dense<0.000000e+00> : vector<24x32xf32>
      %685 = tpu.matmul %683, %684, %cst_248 {dimension_numbers = #tpu.dot_dimension_numbers<[1], [0], [0], [1], [0, 0, 1, 1], [], []>} : vector<24x32xf32>, vector<32x32xf32>, vector<24x32xf32> -> vector<24x32xf32>
      %c0_249 = arith.constant 0 : index
      %c0_250 = arith.constant 0 : index
      %686 = vector.load %arg18[%c0_249, %c0_250] : memref<1x32xf32, #tpu.memory_space<vmem>>, vector<1x32xf32>
      %687 = vector.broadcast %686 : vector<1x32xf32> to vector<24x32xf32>
      %688 = arith.addf %685, %687 : vector<24x32xf32>
      %689 = math.tanh %688 : vector<24x32xf32>
      %c0_251 = arith.constant 0 : index
      %c0_252 = arith.constant 0 : index
      %690 = vector.load %arg19[%c0_251, %c0_252] : memref<1x32xf32, #tpu.memory_space<vmem>>, vector<1x32xf32>
      %691 = vector.broadcast %690 : vector<1x32xf32> to vector<24x32xf32>
      %692 = arith.mulf %689, %691 : vector<24x32xf32>
      %cst_253 = arith.constant dense<0.000000e+00> : vector<24xf32>
      %693 = vector.multi_reduction <add>, %692, %cst_253 [1] : vector<24x32xf32> to vector<24xf32>
      %694 = vector.shape_cast %693 : vector<24xf32> to vector<24x1xf32>
      %695 = math.tanh %694 : vector<24x1xf32>
      %696 = vector.extract_strided_slice %695 {offsets = [0, 0], sizes = [8, 1], strides = [1, 1]} : vector<24x1xf32> to vector<8x1xf32>
      %697 = vector.extract_strided_slice %695 {offsets = [8, 0], sizes = [8, 1], strides = [1, 1]} : vector<24x1xf32> to vector<8x1xf32>
      %698 = vector.extract_strided_slice %695 {offsets = [16, 0], sizes = [8, 1], strides = [1, 1]} : vector<24x1xf32> to vector<8x1xf32>
      %699 = tpu.concatenate %696, %697, %698 in 1 : vector<8x1xf32>, vector<8x1xf32>, vector<8x1xf32> -> vector<8x3xf32>
      %cst_254 = arith.constant dense<0xFF800000> : vector<8xf32>
      %700 = vector.multi_reduction <maximumf>, %699, %cst_254 [1] : vector<8x3xf32> to vector<8xf32>
      %701 = vector.shape_cast %700 : vector<8xf32> to vector<8x1xf32>
      %702 = vector.broadcast %701 : vector<8x1xf32> to vector<8x3xf32>
      %703 = arith.subf %699, %702 : vector<8x3xf32>
      %704 = math.exp %703 : vector<8x3xf32>
      %cst_255 = arith.constant dense<0.000000e+00> : vector<8xf32>
      %705 = vector.multi_reduction <add>, %704, %cst_255 [1] : vector<8x3xf32> to vector<8xf32>
      %706 = vector.shape_cast %705 : vector<8xf32> to vector<8x1xf32>
      %707 = vector.broadcast %706 : vector<8x1xf32> to vector<8x3xf32>
      %708 = arith.divf %704, %707 : vector<8x3xf32>
      %709 = vector.extract_strided_slice %708 {offsets = [0, 0], sizes = [8, 1], strides = [1, 1]} : vector<8x3xf32> to vector<8x1xf32>
      %710 = vector.broadcast %709 : vector<8x1xf32> to vector<8x32xf32>
      %711 = arith.mulf %680, %710 : vector<8x32xf32>
      %712 = vector.extract_strided_slice %708 {offsets = [0, 1], sizes = [8, 1], strides = [1, 1]} : vector<8x3xf32> to vector<8x1xf32>
      %713 = vector.broadcast %712 : vector<8x1xf32> to vector<8x32xf32>
      %714 = arith.mulf %681, %713 : vector<8x32xf32>
      %715 = arith.addf %711, %714 : vector<8x32xf32>
      %716 = vector.extract_strided_slice %708 {offsets = [0, 2], sizes = [8, 1], strides = [1, 1]} : vector<8x3xf32> to vector<8x1xf32>
      %717 = vector.broadcast %716 : vector<8x1xf32> to vector<8x32xf32>
      %718 = arith.mulf %682, %717 : vector<8x32xf32>
      %719 = arith.addf %715, %718 : vector<8x32xf32>
      %c0_256 = arith.constant 0 : index
      %c0_257 = arith.constant 0 : index
      %720 = vector.load %arg20[%c0_256, %c0_257] : memref<8x32xf32, #tpu.memory_space<vmem>>, vector<8x32xf32>
      tpu.vector_store %arg20[%c0_256, %c0_257], %719 {strides = array<i32>} : memref<8x32xf32, #tpu.memory_space<vmem>>, vector<8x32xf32>,
      %c0_258 = arith.constant 0 : index
      %c0_259 = arith.constant 0 : index
      %721 = vector.load %arg21[%c0_258, %c0_259] : memref<24x32xf32, #tpu.memory_space<vmem>>, vector<24x32xf32>
      tpu.vector_store %arg21[%c0_258, %c0_259], %683 {strides = array<i32>} : memref<24x32xf32, #tpu.memory_space<vmem>>, vector<24x32xf32>,
    } else {
    }
    return
  }
  func.func @transform_0(%arg0: i32) -> (i32, i32, i32) {
    %c0_i32 = arith.constant 0 : i32
    %c0_i32_0 = arith.constant 0 : i32
    %c0_i32_1 = arith.constant 0 : i32
    return %arg0, %c0_i32, %c0_i32_0 : i32, i32, i32
  }
  func.func @transform_1(%arg0: i32) -> (i32, i32, i32) {
    %c0_i32 = arith.constant 0 : i32
    %c0_i32_0 = arith.constant 0 : i32
    %c0_i32_1 = arith.constant 0 : i32
    %c0_i32_2 = arith.constant 0 : i32
    return %c0_i32, %c0_i32_0, %c0_i32_1 : i32, i32, i32
  }
  func.func @transform_2(%arg0: i32) -> (i32, i32, i32) {
    %c0_i32 = arith.constant 0 : i32
    %c0_i32_0 = arith.constant 0 : i32
    %c0_i32_1 = arith.constant 0 : i32
    %c0_i32_2 = arith.constant 0 : i32
    return %c0_i32, %c0_i32_0, %c0_i32_1 : i32, i32, i32
  }
  func.func @transform_3(%arg0: i32) -> (i32, i32) {
    %c0_i32 = arith.constant 0 : i32
    %c0_i32_0 = arith.constant 0 : i32
    %c0_i32_1 = arith.constant 0 : i32
    return %c0_i32, %c0_i32_0 : i32, i32
  }
  func.func @transform_4(%arg0: i32) -> (i32, i32, i32) {
    %c0_i32 = arith.constant 0 : i32
    %c0_i32_0 = arith.constant 0 : i32
    %c0_i32_1 = arith.constant 0 : i32
    %c0_i32_2 = arith.constant 0 : i32
    return %c0_i32, %c0_i32_0, %c0_i32_1 : i32, i32, i32
  }
  func.func @transform_5(%arg0: i32) -> (i32, i32, i32) {
    %c0_i32 = arith.constant 0 : i32
    %c0_i32_0 = arith.constant 0 : i32
    %c0_i32_1 = arith.constant 0 : i32
    %c0_i32_2 = arith.constant 0 : i32
    return %c0_i32, %c0_i32_0, %c0_i32_1 : i32, i32, i32
  }
  func.func @transform_6(%arg0: i32) -> (i32, i32) {
    %c0_i32 = arith.constant 0 : i32
    %c0_i32_0 = arith.constant 0 : i32
    %c0_i32_1 = arith.constant 0 : i32
    return %c0_i32, %c0_i32_0 : i32, i32
  }
  func.func @transform_7(%arg0: i32) -> (i32, i32) {
    %c0_i32 = arith.constant 0 : i32
    %c0_i32_0 = arith.constant 0 : i32
    %c0_i32_1 = arith.constant 0 : i32
    return %c0_i32, %c0_i32_0 : i32, i32
  }
  func.func @transform_8(%arg0: i32) -> (i32, i32) {
    %c0_i32 = arith.constant 0 : i32
    %c0_i32_0 = arith.constant 0 : i32
    %c0_i32_1 = arith.constant 0 : i32
    return %c0_i32, %c0_i32_0 : i32, i32
  }
  func.func @transform_9(%arg0: i32) -> (i32, i32) {
    %c0_i32 = arith.constant 0 : i32
    %c0_i32_0 = arith.constant 0 : i32
    %c0_i32_1 = arith.constant 0 : i32
    return %c0_i32, %c0_i32_0 : i32, i32
  }
  func.func @transform_10(%arg0: i32) -> (i32, i32, i32) {
    %c0_i32 = arith.constant 0 : i32
    %c0_i32_0 = arith.constant 0 : i32
    %c0_i32_1 = arith.constant 0 : i32
    %c0_i32_2 = arith.constant 0 : i32
    return %c0_i32, %c0_i32_0, %c0_i32_1 : i32, i32, i32
  }
  func.func @transform_11(%arg0: i32) -> (i32, i32, i32) {
    %c0_i32 = arith.constant 0 : i32
    %c0_i32_0 = arith.constant 0 : i32
    %c0_i32_1 = arith.constant 0 : i32
    %c0_i32_2 = arith.constant 0 : i32
    return %c0_i32, %c0_i32_0, %c0_i32_1 : i32, i32, i32
  }
  func.func @transform_12(%arg0: i32) -> (i32, i32) {
    %c0_i32 = arith.constant 0 : i32
    %c0_i32_0 = arith.constant 0 : i32
    %c0_i32_1 = arith.constant 0 : i32
    return %c0_i32, %c0_i32_0 : i32, i32
  }
  func.func @transform_13(%arg0: i32) -> (i32, i32, i32) {
    %c0_i32 = arith.constant 0 : i32
    %c0_i32_0 = arith.constant 0 : i32
    %c0_i32_1 = arith.constant 0 : i32
    %c0_i32_2 = arith.constant 0 : i32
    return %c0_i32, %c0_i32_0, %c0_i32_1 : i32, i32, i32
  }
  func.func @transform_14(%arg0: i32) -> (i32, i32, i32) {
    %c0_i32 = arith.constant 0 : i32
    %c0_i32_0 = arith.constant 0 : i32
    %c0_i32_1 = arith.constant 0 : i32
    %c0_i32_2 = arith.constant 0 : i32
    return %c0_i32, %c0_i32_0, %c0_i32_1 : i32, i32, i32
  }
  func.func @transform_15(%arg0: i32) -> (i32, i32) {
    %c0_i32 = arith.constant 0 : i32
    %c0_i32_0 = arith.constant 0 : i32
    %c0_i32_1 = arith.constant 0 : i32
    return %c0_i32, %c0_i32_0 : i32, i32
  }
  func.func @transform_16(%arg0: i32) -> (i32, i32) {
    %c0_i32 = arith.constant 0 : i32
    %c0_i32_0 = arith.constant 0 : i32
    %c0_i32_1 = arith.constant 0 : i32
    return %c0_i32, %c0_i32_0 : i32, i32
  }
  func.func @transform_17(%arg0: i32) -> (i32, i32) {
    %c0_i32 = arith.constant 0 : i32
    %c0_i32_0 = arith.constant 0 : i32
    %c0_i32_1 = arith.constant 0 : i32
    return %c0_i32, %c0_i32_0 : i32, i32
  }
  func.func @transform_18(%arg0: i32) -> (i32, i32) {
    %c0_i32 = arith.constant 0 : i32
    %c0_i32_0 = arith.constant 0 : i32
    %c0_i32_1 = arith.constant 0 : i32
    return %c0_i32, %c0_i32_0 : i32, i32
  }
  func.func @transform_19(%arg0: i32) -> (i32, i32) {
    %c0_i32 = arith.constant 0 : i32
    %c0_i32_0 = arith.constant 0 : i32
    %c0_i32_1 = arith.constant 0 : i32
    return %c0_i32, %c0_i32_0 : i32, i32
  }
  func.func @transform_20(%arg0: i32) -> (i32, i32) {
    %c0_i32 = arith.constant 0 : i32
    %c0_i32_0 = arith.constant 0 : i32
    %c0_i32_1 = arith.constant 0 : i32
    return %c0_i32, %c0_i32_0 : i32, i32
  }
}

</mosaic_0001>

<llo_original>
// kernel: postenc_forward_pallas.1
$region0: #{postenc_forward_pallas.1}
  #allocation0 [shape = 'u32[]', space=smem, size = 0x4, offset = 0x4, fixed_abs, tag = 'smem constant byte address 0x4 - core index']
  #allocation1 [shape = 'u32[144,128]{1,0:T(1,128)}', space=vmem, size = 0x12000, scoped, tag = 'internal scratch']
  #allocation2 [shape = 'f32[8,16]{1,0:T(8,128)}', space=vmem, size = 0x1000, scoped, tag = 'scratch operand']
  #allocation3 [shape = 'f32[8,16]{1,0:T(8,128)}', space=vmem, size = 0x1000, scoped, tag = 'scratch operand']
  #allocation4 [shape = 'f32[24,32]{1,0:T(8,128)}', space=vmem, size = 0x3000, scoped, tag = 'scratch operand']
  %s0 = inlined_call_operand.vmem [shape: f32[3,48,32], index: 0, kind: input, shape index: {}]
  %s1 = inlined_call_operand.vmem [shape: f32[3,32,16], index: 1, kind: input, shape index: {}]
  %s2 = inlined_call_operand.vmem [shape: f32[3,16,16], index: 2, kind: input, shape index: {}]
  %s3 = inlined_call_operand.vmem [shape: f32[4,16], index: 3, kind: input, shape index: {}]
  %s4 = inlined_call_operand.vmem [shape: f32[3,32,16], index: 4, kind: input, shape index: {}]
  %s5 = inlined_call_operand.vmem [shape: f32[3,16,16], index: 5, kind: input, shape index: {}]
  %s6 = inlined_call_operand.vmem [shape: f32[4,16], index: 6, kind: input, shape index: {}]
  %s7 = inlined_call_operand.vmem [shape: f32[32,32], index: 7, kind: input, shape index: {}]
  %s8 = inlined_call_operand.vmem [shape: f32[1,32], index: 8, kind: input, shape index: {}]
  %s9 = inlined_call_operand.vmem [shape: f32[1,32], index: 9, kind: input, shape index: {}]
  %s10 = inlined_call_operand.vmem [shape: f32[3,32,16], index: 10, kind: input, shape index: {}]
  %s11 = inlined_call_operand.vmem [shape: f32[3,16,16], index: 11, kind: input, shape index: {}]
  %s12 = inlined_call_operand.vmem [shape: f32[4,16], index: 12, kind: input, shape index: {}]
  %s13 = inlined_call_operand.vmem [shape: f32[3,32,16], index: 13, kind: input, shape index: {}]
  %s14 = inlined_call_operand.vmem [shape: f32[3,16,16], index: 14, kind: input, shape index: {}]
  %s15 = inlined_call_operand.vmem [shape: f32[4,16], index: 15, kind: input, shape index: {}]
  %s16 = inlined_call_operand.vmem [shape: f32[32,32], index: 16, kind: input, shape index: {}]
  %s17 = inlined_call_operand.vmem [shape: f32[1,32], index: 17, kind: input, shape index: {}]
  %s18 = inlined_call_operand.vmem [shape: f32[1,32], index: 18, kind: input, shape index: {}]
  %s19 = inlined_call_operand.vmem [shape: f32[8,32], index: 19, kind: output, shape index: {0}]
  %s20 = inlined_call_operand.vmem [shape: f32[24,32], index: 20, kind: output, shape index: {1}]
  %21 = xla_tuple %s19, %s20
  %s22 = sld [smem:[#allocation0]]
  $region125: #{postenc_forward_pallas.1} parent=0
    _
  %s24 = ssub.s32 1, %s22
  %s25 = scalar_select 0, %s24, %s22
  loop: start=0, step=1, limit=5
  $region2: #{postenc_forward_pallas.1} parent=0 // loop_pre_header
    _
  $region3: #{postenc_forward_pallas.1} parent=0 // loop_header
    %s27 = sphi 0, %s31
    %p28 = scmp.ge.s32.totalorder %s27, 5
    %s37 = sphi 0, %s39
    %s40 = sphi 0, %s37
    %s41 = sphi 0, %s40
    %s57 = sphi 0, %s41
    %s61 = sphi 0, %s61
    %s63 = sphi 0, %s61
    %s64 = sphi 0, %s63
    %s78 = sphi 0, %s64
    %s82 = sphi 0, %s82
    %s84 = sphi 0, %s82
    %s85 = sphi 0, %s84
    %s99 = sphi 0, %s85
    %s103 = sphi 0, %s103
    %s105 = sphi 0, %s103
    %s106 = sphi 0, %s105
    %s120 = sphi 0, %s106
    %s124 = sphi 0, %s124
    %s126 = sphi 0, %s124
    %s127 = sphi 0, %s126
    %s141 = sphi 0, %s127
    %s145 = sphi 0, %s145
    %s147 = sphi 0, %s145
    %s148 = sphi 0, %s147
    %s162 = sphi 0, %s148
    %s166 = sphi 0, %s166
    %s168 = sphi 0, %s166
    %s169 = sphi 0, %s168
    %s183 = sphi 0, %s169
    %s187 = sphi 0, %s187
    %s189 = sphi 0, %s187
    %s190 = sphi 0, %s189
    %s204 = sphi 0, %s190
    %s208 = sphi 0, %s208
    %s210 = sphi 0, %s208
    %s211 = sphi 0, %s210
    %s225 = sphi 0, %s211
    %s229 = sphi 0, %s229
    %s231 = sphi 0, %s229
    %s232 = sphi 0, %s231
    %s246 = sphi 0, %s232
    %s250 = sphi 0, %s250
    %s252 = sphi 0, %s250
    %s253 = sphi 0, %s252
    %s267 = sphi 0, %s253
    %s271 = sphi 0, %s271
    %s273 = sphi 0, %s271
    %s274 = sphi 0, %s273
    %s288 = sphi 0, %s274
    %s292 = sphi 0, %s292
    %s294 = sphi 0, %s292
    %s295 = sphi 0, %s294
    %s309 = sphi 0, %s295
    %s313 = sphi 0, %s313
    %s315 = sphi 0, %s313
    %s316 = sphi 0, %s315
    %s330 = sphi 0, %s316
    %s334 = sphi 0, %s334
    %s336 = sphi 0, %s334
    %s337 = sphi 0, %s336
    %s351 = sphi 0, %s337
    %s355 = sphi 0, %s355
    %s357 = sphi 0, %s355
    %s358 = sphi 0, %s357
    %s372 = sphi 0, %s358
    %s376 = sphi 0, %s376
    %s378 = sphi 0, %s376
    %s379 = sphi 0, %s378
    %s393 = sphi 0, %s379
    %s397 = sphi 0, %s397
    %s399 = sphi 0, %s397
    %s400 = sphi 0, %s399
    %s414 = sphi 0, %s400
    %s418 = sphi 0, %s418
    %s420 = sphi 0, %s418
    %s421 = sphi 0, %s420
    %s435 = sphi 0, %s421
    %s439 = sphi 0, %s439
    %s441 = sphi 0, %s439
    %s442 = sphi 0, %s441
    %s456 = sphi 0, %s442
    %s460 = sphi 0, %s460
    %s462 = sphi 0, %s460
    %s463 = sphi 0, %s462
    %s477 = sphi 0, %s463
  $region4: #{postenc_forward_pallas.1} parent=0 // loop_header_branch
    %30 = sbr.rel (%p28) target = $region8
  $region5: #{postenc_forward_pallas.1} parent=0 // loop_body
    %s32 = ssub.s32 %s27, 1
    %s33 = ssub.s32 %s27, 2
    %s34 = sadd.s32 %s27, 1
    %s35 = ssub.s32 %s27, %s34
    %p36 = scmp.eq.s32.totalorder %s35, 0
    %s38 = sadd.s32 %s37, 1
    %s39 = scalar_select %p36, %s37, %s38
    %p42 = pneg %p36
    %p43 = scmp.eq.s32.totalorder %s27, 2
    %p44 = por %p42, %p43
    %p45 = scmp.ne.s32.totalorder %s37, %s40
    %p46 = scmp.eq.s32.totalorder %s27, 0
    %p47 = por %p45, %p46
    %p48 = scmp.ne.s32.totalorder %s37, %s40
    %p49 = scmp.eq.s32.totalorder %s32, 2
    %p50 = por %p48, %p49
    %p51 = scmp.ne.s32.totalorder %s40, %s41
    %p52 = scmp.eq.s32.totalorder %s32, 0
    %p53 = por %p51, %p52
    %p54 = scmp.ne.s32.totalorder %s40, %s41
    %p55 = scmp.eq.s32.totalorder %s33, 2
    %p56 = por %p54, %p55
    %p58 = scmp.ne.s32.totalorder %s41, %s57
    %p59 = scmp.eq.s32.totalorder %s33, 0
    %p60 = por %p58, %p59
    %s62 = sadd.s32 %s61, 1
    %p65 = scmp.eq.s32.totalorder %s27, 2
    %p66 = scmp.ne.s32.totalorder %s61, %s63
    %p67 = scmp.eq.s32.totalorder %s27, 0
    %p68 = por %p66, %p67
    %p69 = scmp.ne.s32.totalorder %s61, %s63
    %p70 = scmp.eq.s32.totalorder %s32, 2
    %p71 = por %p69, %p70
    %p72 = scmp.ne.s32.totalorder %s63, %s64
    %p73 = scmp.eq.s32.totalorder %s32, 0
    %p74 = por %p72, %p73
    %p75 = scmp.ne.s32.totalorder %s63, %s64
    %p76 = scmp.eq.s32.totalorder %s33, 2
    %p77 = por %p75, %p76
    %p79 = scmp.ne.s32.totalorder %s64, %s78
    %p80 = scmp.eq.s32.totalorder %s33, 0
    %p81 = por %p79, %p80
    %s83 = sadd.s32 %s82, 1
    %p86 = scmp.eq.s32.totalorder %s27, 2
    %p87 = scmp.ne.s32.totalorder %s82, %s84
    %p88 = scmp.eq.s32.totalorder %s27, 0
    %p89 = por %p87, %p88
    %p90 = scmp.ne.s32.totalorder %s82, %s84
    %p91 = scmp.eq.s32.totalorder %s32, 2
    %p92 = por %p90, %p91
    %p93 = scmp.ne.s32.totalorder %s84, %s85
    %p94 = scmp.eq.s32.totalorder %s32, 0
    %p95 = por %p93, %p94
    %p96 = scmp.ne.s32.totalorder %s84, %s85
    %p97 = scmp.eq.s32.totalorder %s33, 2
    %p98 = por %p96, %p97
    %p100 = scmp.ne.s32.totalorder %s85, %s99
    %p101 = scmp.eq.s32.totalorder %s33, 0
    %p102 = por %p100, %p101
    %s104 = sadd.s32 %s103, 1
    %p107 = scmp.eq.s32.totalorder %s27, 2
    %p108 = scmp.ne.s32.totalorder %s103, %s105
    %p109 = scmp.eq.s32.totalorder %s27, 0
    %p110 = por %p108, %p109
    %p111 = scmp.ne.s32.totalorder %s103, %s105
    %p112 = scmp.eq.s32.totalorder %s32, 2
    %p113 = por %p111, %p112
    %p114 = scmp.ne.s32.totalorder %s105, %s106
    %p115 = scmp.eq.s32.totalorder %s32, 0
    %p116 = por %p114, %p115
    %p117 = scmp.ne.s32.totalorder %s105, %s106
    %p118 = scmp.eq.s32.totalorder %s33, 2
    %p119 = por %p117, %p118
    %p121 = scmp.ne.s32.totalorder %s106, %s120
    %p122 = scmp.eq.s32.totalorder %s33, 0
    %p123 = por %p121, %p122
    %s125 = sadd.s32 %s124, 1
    %p128 = scmp.eq.s32.totalorder %s27, 2
    %p129 = scmp.ne.s32.totalorder %s124, %s126
    %p130 = scmp.eq.s32.totalorder %s27, 0
    %p131 = por %p129, %p130
    %p132 = scmp.ne.s32.totalorder %s124, %s126
    %p133 = scmp.eq.s32.totalorder %s32, 2
    %p134 = por %p132, %p133
    %p135 = scmp.ne.s32.totalorder %s126, %s127
    %p136 = scmp.eq.s32.totalorder %s32, 0
    %p137 = por %p135, %p136
    %p138 = scmp.ne.s32.totalorder %s126, %s127
    %p139 = scmp.eq.s32.totalorder %s33, 2
    %p140 = por %p138, %p139
    %p142 = scmp.ne.s32.totalorder %s127, %s141
    %p143 = scmp.eq.s32.totalorder %s33, 0
    %p144 = por %p142, %p143
    %s146 = sadd.s32 %s145, 1
    %p149 = scmp.eq.s32.totalorder %s27, 2
    %p150 = scmp.ne.s32.totalorder %s145, %s147
    %p151 = scmp.eq.s32.totalorder %s27, 0
    %p152 = por %p150, %p151
    %p153 = scmp.ne.s32.totalorder %s145, %s147
    %p154 = scmp.eq.s32.totalorder %s32, 2
    %p155 = por %p153, %p154
    %p156 = scmp.ne.s32.totalorder %s147, %s148
    %p157 = scmp.eq.s32.totalorder %s32, 0
    %p158 = por %p156, %p157
    %p159 = scmp.ne.s32.totalorder %s147, %s148
    %p160 = scmp.eq.s32.totalorder %s33, 2
    %p161 = por %p159, %p160
    %p163 = scmp.ne.s32.totalorder %s148, %s162
    %p164 = scmp.eq.s32.totalorder %s33, 0
    %p165 = por %p163, %p164
    %s167 = sadd.s32 %s166, 1
    %p170 = scmp.eq.s32.totalorder %s27, 2
    %p171 = scmp.ne.s32.totalorder %s166, %s168
    %p172 = scmp.eq.s32.totalorder %s27, 0
    %p173 = por %p171, %p172
    %p174 = scmp.ne.s32.totalorder %s166, %s168
    %p175 = scmp.eq.s32.totalorder %s32, 2
    %p176 = por %p174, %p175
    %p177 = scmp.ne.s32.totalorder %s168, %s169
    %p178 = scmp.eq.s32.totalorder %s32, 0
    %p179 = por %p177, %p178
    %p180 = scmp.ne.s32.totalorder %s168, %s169
    %p181 = scmp.eq.s32.totalorder %s33, 2
    %p182 = por %p180, %p181
    %p184 = scmp.ne.s32.totalorder %s169, %s183
    %p185 = scmp.eq.s32.totalorder %s33, 0
    %p186 = por %p184, %p185
    %s188 = sadd.s32 %s187, 1
    %p191 = scmp.eq.s32.totalorder %s27, 2
    %p192 = scmp.ne.s32.totalorder %s187, %s189
    %p193 = scmp.eq.s32.totalorder %s27, 0
    %p194 = por %p192, %p193
    %p195 = scmp.ne.s32.totalorder %s187, %s189
    %p196 = scmp.eq.s32.totalorder %s32, 2
    %p197 = por %p195, %p196
    %p198 = scmp.ne.s32.totalorder %s189, %s190
    %p199 = scmp.eq.s32.totalorder %s32, 0
    %p200 = por %p198, %p199
    %p201 = scmp.ne.s32.totalorder %s189, %s190
    %p202 = scmp.eq.s32.totalorder %s33, 2
    %p203 = por %p201, %p202
    %p205 = scmp.ne.s32.totalorder %s190, %s204
    %p206 = scmp.eq.s32.totalorder %s33, 0
    %p207 = por %p205, %p206
    %s209 = sadd.s32 %s208, 1
    %p212 = scmp.eq.s32.totalorder %s27, 2
    %p213 = scmp.ne.s32.totalorder %s208, %s210
    %p214 = scmp.eq.s32.totalorder %s27, 0
    %p215 = por %p213, %p214
    %p216 = scmp.ne.s32.totalorder %s208, %s210
    %p217 = scmp.eq.s32.totalorder %s32, 2
    %p218 = por %p216, %p217
    %p219 = scmp.ne.s32.totalorder %s210, %s211
    %p220 = scmp.eq.s32.totalorder %s32, 0
    %p221 = por %p219, %p220
    %p222 = scmp.ne.s32.totalorder %s210, %s211
    %p223 = scmp.eq.s32.totalorder %s33, 2
    %p224 = por %p222, %p223
    %p226 = scmp.ne.s32.totalorder %s211, %s225
    %p227 = scmp.eq.s32.totalorder %s33, 0
    %p228 = por %p226, %p227
    %s230 = sadd.s32 %s229, 1
    %p233 = scmp.eq.s32.totalorder %s27, 2
    %p234 = scmp.ne.s32.totalorder %s229, %s231
    %p235 = scmp.eq.s32.totalorder %s27, 0
    %p236 = por %p234, %p235
    %p237 = scmp.ne.s32.totalorder %s229, %s231
    %p238 = scmp.eq.s32.totalorder %s32, 2
    %p239 = por %p237, %p238
    %p240 = scmp.ne.s32.totalorder %s231, %s232
    %p241 = scmp.eq.s32.totalorder %s32, 0
    %p242 = por %p240, %p241
    %p243 = scmp.ne.s32.totalorder %s231, %s232
    %p244 = scmp.eq.s32.totalorder %s33, 2
    %p245 = por %p243, %p244
    %p247 = scmp.ne.s32.totalorder %s232, %s246
    %p248 = scmp.eq.s32.totalorder %s33, 0
    %p249 = por %p247, %p248
    %s251 = sadd.s32 %s250, 1
    %p254 = scmp.eq.s32.totalorder %s27, 2
    %p255 = scmp.ne.s32.totalorder %s250, %s252
    %p256 = scmp.eq.s32.totalorder %s27, 0
    %p257 = por %p255, %p256
    %p258 = scmp.ne.s32.totalorder %s250, %s252
    %p259 = scmp.eq.s32.totalorder %s32, 2
    %p260 = por %p258, %p259
    %p261 = scmp.ne.s32.totalorder %s252, %s253
    %p262 = scmp.eq.s32.totalorder %s32, 0
    %p263 = por %p261, %p262
    %p264 = scmp.ne.s32.totalorder %s252, %s253
    %p265 = scmp.eq.s32.totalorder %s33, 2
    %p266 = por %p264, %p265
    %p268 = scmp.ne.s32.totalorder %s253, %s267
    %p269 = scmp.eq.s32.totalorder %s33, 0
    %p270 = por %p268, %p269
    %s272 = sadd.s32 %s271, 1
    %p275 = scmp.eq.s32.totalorder %s27, 2
    %p276 = scmp.ne.s32.totalorder %s271, %s273
    %p277 = scmp.eq.s32.totalorder %s27, 0
    %p278 = por %p276, %p277
    %p279 = scmp.ne.s32.totalorder %s271, %s273
    %p280 = scmp.eq.s32.totalorder %s32, 2
    %p281 = por %p279, %p280
    %p282 = scmp.ne.s32.totalorder %s273, %s274
    %p283 = scmp.eq.s32.totalorder %s32, 0
    %p284 = por %p282, %p283
    %p285 = scmp.ne.s32.totalorder %s273, %s274
    %p286 = scmp.eq.s32.totalorder %s33, 2
    %p287 = por %p285, %p286
    %p289 = scmp.ne.s32.totalorder %s274, %s288
    %p290 = scmp.eq.s32.totalorder %s33, 0
    %p291 = por %p289, %p290
    %s293 = sadd.s32 %s292, 1
    %p296 = scmp.eq.s32.totalorder %s27, 2
    %p297 = scmp.ne.s32.totalorder %s292, %s294
    %p298 = scmp.eq.s32.totalorder %s27, 0
    %p299 = por %p297, %p298
    %p300 = scmp.ne.s32.totalorder %s292, %s294
    %p301 = scmp.eq.s32.totalorder %s32, 2
    %p302 = por %p300, %p301
    %p303 = scmp.ne.s32.totalorder %s294, %s295
    %p304 = scmp.eq.s32.totalorder %s32, 0
    %p305 = por %p303, %p304
    %p306 = scmp.ne.s32.totalorder %s294, %s295
    %p307 = scmp.eq.s32.totalorder %s33, 2
    %p308 = por %p306, %p307
    %p310 = scmp.ne.s32.totalorder %s295, %s309
    %p311 = scmp.eq.s32.totalorder %s33, 0
    %p312 = por %p310, %p311
    %s314 = sadd.s32 %s313, 1
    %p317 = scmp.eq.s32.totalorder %s27, 2
    %p318 = scmp.ne.s32.totalorder %s313, %s315
    %p319 = scmp.eq.s32.totalorder %s27, 0
    %p320 = por %p318, %p319
    %p321 = scmp.ne.s32.totalorder %s313, %s315
    %p322 = scmp.eq.s32.totalorder %s32, 2
    %p323 = por %p321, %p322
    %p324 = scmp.ne.s32.totalorder %s315, %s316
    %p325 = scmp.eq.s32.totalorder %s32, 0
    %p326 = por %p324, %p325
    %p327 = scmp.ne.s32.totalorder %s315, %s316
    %p328 = scmp.eq.s32.totalorder %s33, 2
    %p329 = por %p327, %p328
    %p331 = scmp.ne.s32.totalorder %s316, %s330
    %p332 = scmp.eq.s32.totalorder %s33, 0
    %p333 = por %p331, %p332
    %s335 = sadd.s32 %s334, 1
    %p338 = scmp.eq.s32.totalorder %s27, 2
    %p339 = scmp.ne.s32.totalorder %s334, %s336
    %p340 = scmp.eq.s32.totalorder %s27, 0
    %p341 = por %p339, %p340
    %p342 = scmp.ne.s32.totalorder %s334, %s336
    %p343 = scmp.eq.s32.totalorder %s32, 2
    %p344 = por %p342, %p343
    %p345 = scmp.ne.s32.totalorder %s336, %s337
    %p346 = scmp.eq.s32.totalorder %s32, 0
    %p347 = por %p345, %p346
    %p348 = scmp.ne.s32.totalorder %s336, %s337
    %p349 = scmp.eq.s32.totalorder %s33, 2
    %p350 = por %p348, %p349
    %p352 = scmp.ne.s32.totalorder %s337, %s351
    %p353 = scmp.eq.s32.totalorder %s33, 0
    %p354 = por %p352, %p353
    %s356 = sadd.s32 %s355, 1
    %p359 = scmp.eq.s32.totalorder %s27, 2
    %p360 = scmp.ne.s32.totalorder %s355, %s357
    %p361 = scmp.eq.s32.totalorder %s27, 0
    %p362 = por %p360, %p361
    %p363 = scmp.ne.s32.totalorder %s355, %s357
    %p364 = scmp.eq.s32.totalorder %s32, 2
    %p365 = por %p363, %p364
    %p366 = scmp.ne.s32.totalorder %s357, %s358
    %p367 = scmp.eq.s32.totalorder %s32, 0
    %p368 = por %p366, %p367
    %p369 = scmp.ne.s32.totalorder %s357, %s358
    %p370 = scmp.eq.s32.totalorder %s33, 2
    %p371 = por %p369, %p370
    %p373 = scmp.ne.s32.totalorder %s358, %s372
    %p374 = scmp.eq.s32.totalorder %s33, 0
    %p375 = por %p373, %p374
    %s377 = sadd.s32 %s376, 1
    %p380 = scmp.eq.s32.totalorder %s27, 2
    %p381 = scmp.ne.s32.totalorder %s376, %s378
    %p382 = scmp.eq.s32.totalorder %s27, 0
    %p383 = por %p381, %p382
    %p384 = scmp.ne.s32.totalorder %s376, %s378
    %p385 = scmp.eq.s32.totalorder %s32, 2
    %p386 = por %p384, %p385
    %p387 = scmp.ne.s32.totalorder %s378, %s379
    %p388 = scmp.eq.s32.totalorder %s32, 0
    %p389 = por %p387, %p388
    %p390 = scmp.ne.s32.totalorder %s378, %s379
    %p391 = scmp.eq.s32.totalorder %s33, 2
    %p392 = por %p390, %p391
    %p394 = scmp.ne.s32.totalorder %s379, %s393
    %p395 = scmp.eq.s32.totalorder %s33, 0
    %p396 = por %p394, %p395
    %s398 = sadd.s32 %s397, 1
    %p401 = scmp.eq.s32.totalorder %s27, 2
    %p402 = scmp.ne.s32.totalorder %s397, %s399
    %p403 = scmp.eq.s32.totalorder %s27, 0
    %p404 = por %p402, %p403
    %p405 = scmp.ne.s32.totalorder %s397, %s399
    %p406 = scmp.eq.s32.totalorder %s32, 2
    %p407 = por %p405, %p406
    %p408 = scmp.ne.s32.totalorder %s399, %s400
    %p409 = scmp.eq.s32.totalorder %s32, 0
    %p410 = por %p408, %p409
    %p411 = scmp.ne.s32.totalorder %s399, %s400
    %p412 = scmp.eq.s32.totalorder %s33, 2
    %p413 = por %p411, %p412
    %p415 = scmp.ne.s32.totalorder %s400, %s414
    %p416 = scmp.eq.s32.totalorder %s33, 0
    %p417 = por %p415, %p416
    %s419 = sadd.s32 %s418, 1
    %p422 = scmp.eq.s32.totalorder %s27, 2
    %p423 = scmp.ne.s32.totalorder %s418, %s420
    %p424 = scmp.eq.s32.totalorder %s27, 0
    %p425 = por %p423, %p424
    %p426 = scmp.ne.s32.totalorder %s418, %s420
    %p427 = scmp.eq.s32.totalorder %s32, 2
    %p428 = por %p426, %p427
    %p429 = scmp.ne.s32.totalorder %s420, %s421
    %p430 = scmp.eq.s32.totalorder %s32, 0
    %p431 = por %p429, %p430
    %p432 = scmp.ne.s32.totalorder %s420, %s421
    %p433 = scmp.eq.s32.totalorder %s33, 2
    %p434 = por %p432, %p433
    %p436 = scmp.ne.s32.totalorder %s421, %s435
    %p437 = scmp.eq.s32.totalorder %s33, 0
    %p438 = por %p436, %p437
    %s440 = sadd.s32 %s439, 1
    %p443 = scmp.eq.s32.totalorder %s27, 2
    %p444 = scmp.ne.s32.totalorder %s439, %s441
    %p445 = scmp.eq.s32.totalorder %s27, 0
    %p446 = por %p444, %p445
    %p447 = scmp.ne.s32.totalorder %s439, %s441
    %p448 = scmp.eq.s32.totalorder %s32, 2
    %p449 = por %p447, %p448
    %p450 = scmp.ne.s32.totalorder %s441, %s442
    %p451 = scmp.eq.s32.totalorder %s32, 0
    %p452 = por %p450, %p451
    %p453 = scmp.ne.s32.totalorder %s441, %s442
    %p454 = scmp.eq.s32.totalorder %s33, 2
    %p455 = por %p453, %p454
    %p457 = scmp.ne.s32.totalorder %s442, %s456
    %p458 = scmp.eq.s32.totalorder %s33, 0
    %p459 = por %p457, %p458
    %s461 = sadd.s32 %s460, 1
    %p464 = scmp.eq.s32.totalorder %s27, 2
    %p465 = scmp.ne.s32.totalorder %s460, %s462
    %p466 = scmp.eq.s32.totalorder %s27, 0
    %p467 = por %p465, %p466
    %p468 = scmp.ne.s32.totalorder %s460, %s462
    %p469 = scmp.eq.s32.totalorder %s32, 2
    %p470 = por %p468, %p469
    %p471 = scmp.ne.s32.totalorder %s462, %s463
    %p472 = scmp.eq.s32.totalorder %s32, 0
    %p473 = por %p471, %p472
    %p474 = scmp.ne.s32.totalorder %s462, %s463
    %p475 = scmp.eq.s32.totalorder %s33, 2
    %p476 = por %p474, %p475
    %p478 = scmp.ne.s32.totalorder %s463, %s477
    %p479 = scmp.eq.s32.totalorder %s33, 0
    %p480 = por %p478, %p479
    %p481 = scmp.le.s32.totalorder 1, %s27
    %p482 = scmp.lt.s32.totalorder %s27, 4
    %p483 = pnand %p481, %p482
    %p484 = pneg %p483
    // Predicated region
    $region9: #{postenc_forward_pallas.1} parent=5 // pred_check
      _
    $region10: #{postenc_forward_pallas.1} parent=5 // pred_check_branch
      %486 = sbr.rel (%p483) target = $region12
    $region11: #{postenc_forward_pallas.1} parent=5 // pred_region
      %s487 = ssub.s32 %s27, 1
      // Predicated region
      $region13: #{postenc_forward_pallas.1} parent=11 // pred_check
        %p488 = pneg %p74
      $region14: #{postenc_forward_pallas.1} parent=11 // pred_check_branch
        %490 = sbr.rel (%p488) target = $region16
      $region15: #{postenc_forward_pallas.1} parent=11 // pred_region
        _
      $region16: #{postenc_forward_pallas.1} parent=11 // pred_fallthru
        _
      // Predicated region
      $region17: #{postenc_forward_pallas.1} parent=11 // pred_check
        %p491 = pneg %p95
      $region18: #{postenc_forward_pallas.1} parent=11 // pred_check_branch
        %493 = sbr.rel (%p491) target = $region20
      $region19: #{postenc_forward_pallas.1} parent=11 // pred_region
        _
      $region20: #{postenc_forward_pallas.1} parent=11 // pred_fallthru
        _
      // Predicated region
      $region21: #{postenc_forward_pallas.1} parent=11 // pred_check
        %p494 = pneg %p116
      $region22: #{postenc_forward_pallas.1} parent=11 // pred_check_branch
        %496 = sbr.rel (%p494) target = $region24
      $region23: #{postenc_forward_pallas.1} parent=11 // pred_region
        _
      $region24: #{postenc_forward_pallas.1} parent=11 // pred_fallthru
        _
      // Predicated region
      $region25: #{postenc_forward_pallas.1} parent=11 // pred_check
        %p497 = pneg %p137
      $region26: #{postenc_forward_pallas.1} parent=11 // pred_check_branch
        %499 = sbr.rel (%p497) target = $region28
      $region27: #{postenc_forward_pallas.1} parent=11 // pred_region
        _
      $region28: #{postenc_forward_pallas.1} parent=11 // pred_fallthru
        _
      // Predicated region
      $region29: #{postenc_forward_pallas.1} parent=11 // pred_check
        %p500 = pneg %p158
      $region30: #{postenc_forward_pallas.1} parent=11 // pred_check_branch
        %502 = sbr.rel (%p500) target = $region32
      $region31: #{postenc_forward_pallas.1} parent=11 // pred_region
        _
      $region32: #{postenc_forward_pallas.1} parent=11 // pred_fallthru
        _
      // Predicated region
      $region33: #{postenc_forward_pallas.1} parent=11 // pred_check
        %p503 = pneg %p179
      $region34: #{postenc_forward_pallas.1} parent=11 // pred_check_branch
        %505 = sbr.rel (%p503) target = $region36
      $region35: #{postenc_forward_pallas.1} parent=11 // pred_region
        _
      $region36: #{postenc_forward_pallas.1} parent=11 // pred_fallthru
        _
      // Predicated region
      $region37: #{postenc_forward_pallas.1} parent=11 // pred_check
        %p506 = pneg %p200
      $region38: #{postenc_forward_pallas.1} parent=11 // pred_check_branch
        %508 = sbr.rel (%p506) target = $region40
      $region39: #{postenc_forward_pallas.1} parent=11 // pred_region
        _
      $region40: #{postenc_forward_pallas.1} parent=11 // pred_fallthru
        _
      // Predicated region
      $region41: #{postenc_forward_pallas.1} parent=11 // pred_check
        %p509 = pneg %p221
      $region42: #{postenc_forward_pallas.1} parent=11 // pred_check_branch
        %511 = sbr.rel (%p509) target = $region44
      $region43: #{postenc_forward_pallas.1} parent=11 // pred_region
        _
      $region44: #{postenc_forward_pallas.1} parent=11 // pred_fallthru
        _
      // Predicated region
      $region45: #{postenc_forward_pallas.1} parent=11 // pred_check
        %p512 = pneg %p242
      $region46: #{postenc_forward_pallas.1} parent=11 // pred_check_branch
        %514 = sbr.rel (%p512) target = $region48
      $region47: #{postenc_forward_pallas.1} parent=11 // pred_region
        _
      $region48: #{postenc_forward_pallas.1} parent=11 // pred_fallthru
        _
      // Predicated region
      $region49: #{postenc_forward_pallas.1} parent=11 // pred_check
        %p515 = pneg %p263
      $region50: #{postenc_forward_pallas.1} parent=11 // pred_check_branch
        %517 = sbr.rel (%p515) target = $region52
      $region51: #{postenc_forward_pallas.1} parent=11 // pred_region
        _
      $region52: #{postenc_forward_pallas.1} parent=11 // pred_fallthru
        _
      // Predicated region
      $region53: #{postenc_forward_pallas.1} parent=11 // pred_check
        %p518 = pneg %p284
      $region54: #{postenc_forward_pallas.1} parent=11 // pred_check_branch
        %520 = sbr.rel (%p518) target = $region56
      $region55: #{postenc_forward_pallas.1} parent=11 // pred_region
        _
      $region56: #{postenc_forward_pallas.1} parent=11 // pred_fallthru
        _
      // Predicated region
      $region57: #{postenc_forward_pallas.1} parent=11 // pred_check
        %p521 = pneg %p305
      $region58: #{postenc_forward_pallas.1} parent=11 // pred_check_branch
        %523 = sbr.rel (%p521) target = $region60
      $region59: #{postenc_forward_pallas.1} parent=11 // pred_region
        _
      $region60: #{postenc_forward_pallas.1} parent=11 // pred_fallthru
        _
      // Predicated region
      $region61: #{postenc_forward_pallas.1} parent=11 // pred_check
        %p524 = pneg %p326
      $region62: #{postenc_forward_pallas.1} parent=11 // pred_check_branch
        %526 = sbr.rel (%p524) target = $region64
      $region63: #{postenc_forward_pallas.1} parent=11 // pred_region
        _
      $region64: #{postenc_forward_pallas.1} parent=11 // pred_fallthru
        _
      // Predicated region
      $region65: #{postenc_forward_pallas.1} parent=11 // pred_check
        %p527 = pneg %p347
      $region66: #{postenc_forward_pallas.1} parent=11 // pred_check_branch
        %529 = sbr.rel (%p527) target = $region68
      $region67: #{postenc_forward_pallas.1} parent=11 // pred_region
        _
      $region68: #{postenc_forward_pallas.1} parent=11 // pred_fallthru
        _
      // Predicated region
      $region69: #{postenc_forward_pallas.1} parent=11 // pred_check
        %p530 = pneg %p368
      $region70: #{postenc_forward_pallas.1} parent=11 // pred_check_branch
        %532 = sbr.rel (%p530) target = $region72
      $region71: #{postenc_forward_pallas.1} parent=11 // pred_region
        _
      $region72: #{postenc_forward_pallas.1} parent=11 // pred_fallthru
        _
      // Predicated region
      $region73: #{postenc_forward_pallas.1} parent=11 // pred_check
        %p533 = pneg %p389
      $region74: #{postenc_forward_pallas.1} parent=11 // pred_check_branch
        %535 = sbr.rel (%p533) target = $region76
      $region75: #{postenc_forward_pallas.1} parent=11 // pred_region
        _
      $region76: #{postenc_forward_pallas.1} parent=11 // pred_fallthru
        _
      // Predicated region
      $region77: #{postenc_forward_pallas.1} parent=11 // pred_check
        %p536 = pneg %p410
      $region78: #{postenc_forward_pallas.1} parent=11 // pred_check_branch
        %538 = sbr.rel (%p536) target = $region80
      $region79: #{postenc_forward_pallas.1} parent=11 // pred_region
        _
      $region80: #{postenc_forward_pallas.1} parent=11 // pred_fallthru
        _
      // Predicated region
      $region81: #{postenc_forward_pallas.1} parent=11 // pred_check
        %p539 = pneg %p431
      $region82: #{postenc_forward_pallas.1} parent=11 // pred_check_branch
        %541 = sbr.rel (%p539) target = $region84
      $region83: #{postenc_forward_pallas.1} parent=11 // pred_region
        _
      $region84: #{postenc_forward_pallas.1} parent=11 // pred_fallthru
        _
    $region12: #{postenc_forward_pallas.1} parent=5 // pred_fallthru
      _
    %p542 = scmp.lt.s32.totalorder %s27, 3
    // Predicated region
    $region85: #{postenc_forward_pallas.1} parent=5 // pred_check
      %p543 = pneg %p542
    $region86: #{postenc_forward_pallas.1} parent=5 // pred_check_branch
      %545 = sbr.rel (%p543) target = $region88
    $region87: #{postenc_forward_pallas.1} parent=5 // pred_region
      // Predicated region
      $region89: #{postenc_forward_pallas.1} parent=87 // pred_check
        %p546 = pneg %p47
      $region90: #{postenc_forward_pallas.1} parent=87 // pred_check_branch
        %548 = sbr.rel (%p546) target = $region92
      $region91: #{postenc_forward_pallas.1} parent=87 // pred_region
        %p549 = scmp.lt.s32.totalorder %s27, 2
        %s550 = scalar_select %p549, %s27, 2
        %s551 = smul.addr %s550, 6
        %s552 = smul.addr %s551, 8
        %s553 = scalar_lea.vmem %s0, %s552
      $region92: #{postenc_forward_pallas.1} parent=87 // pred_fallthru
        _
    $region88: #{postenc_forward_pallas.1} parent=5 // pred_fallthru
      _
    %p554 = scmp.le.s32.totalorder 1, %s27
    %p555 = scmp.lt.s32.totalorder %s27, 4
    %p556 = pnand %p554, %p555
    %p557 = pneg %p556
    // Predicated region
    $region93: #{postenc_forward_pallas.1} parent=5 // pred_check
      _
    $region94: #{postenc_forward_pallas.1} parent=5 // pred_check_branch
      %559 = sbr.rel (%p556) target = $region96
    $region95: #{postenc_forward_pallas.1} parent=5 // pred_region
      %s560 = ssub.s32 %s27, 1
      %p561 = scmp.lt.s32.totalorder %s32, 2
      %s562 = scalar_select %p561, %s32, 2
      %s563 = smul.addr %s562, 6
      %s564 = smul.addr %s563, 8
      %s565 = scalar_lea.vmem %s0, %s564
      %p566 = pneg %p53
      %p567 = pneg %p50
      %p568 = pneg %p74
      %p569 = pneg %p71
      %p570 = pneg %p95
      %p571 = pneg %p92
      %p572 = pneg %p116
      %p573 = pneg %p113
      %p574 = pneg %p137
      %p575 = pneg %p134
      %p576 = pneg %p158
      %p577 = pneg %p155
      %p578 = pneg %p179
      %p579 = pneg %p176
      %p580 = pneg %p200
      %p581 = pneg %p197
      %p582 = pneg %p221
      %p583 = pneg %p218
      %p584 = pneg %p242
      %p585 = pneg %p239
      %p586 = pneg %p263
      %p587 = pneg %p260
      %p588 = pneg %p284
      %p589 = pneg %p281
      %p590 = pneg %p305
      %p591 = pneg %p302
      %p592 = pneg %p326
      %p593 = pneg %p323
      %p594 = pneg %p347
      %p595 = pneg %p344
      %p596 = pneg %p368
      %p597 = pneg %p365
      %p598 = pneg %p389
      %p599 = pneg %p386
      %p600 = pneg %p410
      %p601 = pneg %p407
      %p602 = pneg %p431
      %p603 = pneg %p428
      %p604 = pneg %p452
      %p605 = pneg %p449
      %p606 = pneg %p473
      %p607 = pneg %p470
      %p608 = scmp.lt.s32.totalorder %s32, 2
      %s609 = scalar_select %p608, %s32, 2
      %s610 = smul.addr %s609, 6
      %s611 = smul.addr %s610, 8
      %s612 = scalar_lea.vmem %s0, %s611
      %p613 = scmp.eq.s32.totalorder %s32, 0
      // Predicated region
      $region97: #{postenc_forward_pallas.1} parent=95 // pred_check
        %p614 = pneg %p613
      $region98: #{postenc_forward_pallas.1} parent=95 // pred_check_branch
        %616 = sbr.rel (%p614) target = $region100
      $region99: #{postenc_forward_pallas.1} parent=95 // pred_region
        %vm617 = vcmask 130048
        %618 = vst.msk [vmem:[#allocation2] sm:$0xff] %vm617, 0.0
        %619 = vst.msk [vmem:[#allocation3] sm:$0xff] %vm617, 0.0
      $region100: #{postenc_forward_pallas.1} parent=95 // pred_fallthru
        _
      %v620 = vld [vmem:[%s612] sm:$0xff]
      %v621 = vld [vmem:[%s612 + $0x8] sm:$0xff]
      %v622 = vld [vmem:[%s612 + $0x10] sm:$0xff]
      %v623 = vld [vmem:[%s612 + $0x18] sm:$0xff]
      %v624 = vld [vmem:[%s612 + $0x20] sm:$0xff]
      %v625 = vld [vmem:[%s612 + $0x28] sm:$0xff]
      %v626 = vld [vmem:[#allocation2] sm:$0xff]
      %v627 = vld [vmem:[#allocation3] sm:$0xff]
      %v628 = vld [vmem:[%s1] sm:$0xff]
      %v629 = vld [vmem:[%s1 + $0x8] sm:$0xff]
      %v630 = vld [vmem:[%s1 + $0x10] sm:$0xff]
      %v631 = vld [vmem:[%s1 + $0x18] sm:$0xff]
      %v632 = vld [vmem:[%s3] sm:$0x1]
      %v633 = vlaneseq
      %v634 = vshrl.u32 %v633, 7
      %v635 = vsub.s32 0, %v634
      %v636 = vrot.slane %v632, %v635
      %vm637 = vcmask 261120
      %v639 = vsel %vm637, %v620, 0
      %v642 = vsel %vm637, %v621, 0
      %v645 = vsel %vm637, %v622, 0
      %v648 = vsel %vm637, %v623, 0
      %v651 = vsel %vm637, %v624, 0
      %v654 = vsel %vm637, %v625, 0
      %656 = vmatprep.subr.mxu0 0.0
      %657 = vmatpush1.msra.mxu0 %v628
      %658 = vmatprep.subr.mxu0 0.0
      %659 = vmatpush1.msra.mxu0 %v629
      %660 = vmatprep.subr.mxu0 0.0
      %661 = vmatpush1.msra.mxu0 %v630
      %662 = vmatprep.subr.mxu0 0.0
      %663 = vmatpush1.msra.mxu0 %v631
      %664 = vmatprep.subr.mxu0 0.0
      %665 = vmatpush1.msra.mxu0 0.0
      %666 = vmatprep.subr.mxu0 0.0
      %667 = vmatpush1.msra.mxu0 0.0
      %668 = vmatprep.subr.mxu0 0.0
      %669 = vmatpush1.msra.mxu0 0.0
      %670 = vmatprep.subr.mxu0 0.0
      %671 = vmatpush1.msra.mxu0 0.0
      %672 = vmatprep.subr.mxu0 0.0
      %673 = vmatpush1.msra.mxu0 0.0
      %674 = vmatprep.subr.mxu0 0.0
      %675 = vmatpush1.msra.mxu0 0.0
      %676 = vmatprep.subr.mxu0 0.0
      %677 = vmatpush1.msra.mxu0 0.0
      %678 = vmatprep.subr.mxu0 0.0
      %679 = vmatpush1.msra.mxu0 0.0
      %680 = vmatprep.subr.mxu0 0.0
      %681 = vmatpush1.msra.mxu0 0.0
      %682 = vmatprep.subr.mxu0 0.0
      %683 = vmatpush1.msra.mxu0 0.0
      %684 = vmatprep.subr.mxu0 0.0
      %685 = vmatpush1.msra.mxu0 0.0
      %686 = vmatprep.subr.mxu0 0.0
      %687 = vmatpush1.msra.mxu0 0.0
      %688 = vmatprep.subr.mxu0 0.0
      %689 = vmatpush1.msra.mxu0 0.0
      %690 = vmatprep.subr.mxu0 0.0
      %691 = vmatpush1.msra.mxu0 0.0
      %692 = vmatprep.subr.mxu0 0.0
      %693 = vmatpush1.msra.mxu0 0.0
      %694 = vmatprep.subr.mxu0 0.0
      %695 = vmatpush1.msra.mxu0 0.0
      %696 = vmatprep.subr.mxu0 0.0
      %697 = vmatpush1.msra.mxu0 0.0
      %698 = vmatprep.subr.mxu0 0.0
      %699 = vmatpush1.msra.mxu0 0.0
      %700 = vmatprep.subr.mxu0 0.0
      %701 = vmatpush1.msra.mxu0 0.0
      %702 = vmatprep.subr.mxu0 0.0
      %703 = vmatpush1.msra.mxu0 0.0
      %704 = vmatprep.subr.mxu0 0.0
      %705 = vmatpush1.msra.mxu0 0.0
      %706 = vmatprep.subr.mxu0 0.0
      %707 = vmatpush1.msra.mxu0 0.0
      %708 = vmatprep.subr.mxu0 0.0
      %709 = vmatpush1.msra.mxu0 0.0
      %710 = vmatprep.subr.mxu0 0.0
      %711 = vmatpush1.msra.mxu0 0.0
      %712 = vmatprep.subr.mxu0 0.0
      %713 = vmatpush1.msra.mxu0 0.0
      %714 = vmatprep.subr.mxu0 0.0
      %715 = vmatpush1.msra.mxu0 0.0
      %716 = vmatprep.subr.mxu0 0.0
      %717 = vmatpush1.msra.mxu0 0.0
      %718 = vmatprep.subr.mxu0 0.0
      %719 = vmatpush1.msra.mxu0 0.0
      %720 = vmatprep.mubr.f32.mxu0 0.0
      %721 = vmatmul.mubr.f32.gmra.mrb[0].mxu0 %v639
      %v722 = vpop.f32.mrb[0].mxu0
      %v723 = vadd.f32 %v636, %v722
      %v724 = vpop.f32.mrb[0].mxu0
      %725 = vmatprep.mubr.f32.mxu0 0.0
      %726 = vmatmul.mubr.f32.gmra.mrb[0].mxu0 %v642
      %v727 = vpop.f32.mrb[0].mxu0
      %v728 = vadd.f32 %v636, %v727
      %v729 = vpop.f32.mrb[0].mxu0
      %730 = vmatprep.mubr.f32.mxu0 0.0
      %731 = vmatmul.mubr.f32.gmra.mrb[0].mxu0 %v645
      %v732 = vpop.f32.mrb[0].mxu0
      %v733 = vadd.f32 %v636, %v732
      %v734 = vpop.f32.mrb[0].mxu0
      %735 = vmatprep.mubr.f32.mxu0 0.0
      %736 = vmatmul.mubr.f32.gmra.mrb[0].mxu0 %v648
      %v737 = vpop.f32.mrb[0].mxu0
      %v738 = vadd.f32 %v636, %v737
      %v739 = vpop.f32.mrb[0].mxu0
      %740 = vmatprep.mubr.f32.mxu0 0.0
      %741 = vmatmul.mubr.f32.gmra.mrb[0].mxu0 %v651
      %v742 = vpop.f32.mrb[0].mxu0
      %v743 = vadd.f32 %v636, %v742
      %v744 = vpop.f32.mrb[0].mxu0
      %745 = vmatprep.mubr.f32.mxu0 0.0
      %746 = vmatmul.mubr.f32.gmra.mrb[0].mxu0 %v654
      %v747 = vpop.f32.mrb[0].mxu0
      %v748 = vadd.f32 %v636, %v747
      %v749 = vpop.f32.mrb[0].mxu0
      %750 = vdwg.mxu0
      %s751 = scalar_lea.vmem %s1, 32
      %v752 = vld [vmem:[%s751] sm:$0xff]
      %v753 = vld [vmem:[%s751 + $0x8] sm:$0xff]
      %v754 = vld [vmem:[%s751 + $0x10] sm:$0xff]
      %v755 = vld [vmem:[%s751 + $0x18] sm:$0xff]
      %v756 = vld [vmem:[%s3 + $0x1] sm:$0x1]
      %v757 = vlaneseq
      %v758 = vshrl.u32 %v757, 7
      %v759 = vsub.s32 0, %v758
      %v760 = vrot.slane %v756, %v759
      %761 = vmatprep.subr.mxu0 0.0
      %762 = vmatpush1.msra.mxu0 %v752
      %763 = vmatprep.subr.mxu0 0.0
      %764 = vmatpush1.msra.mxu0 %v753
      %765 = vmatprep.subr.mxu0 0.0
      %766 = vmatpush1.msra.mxu0 %v754
      %767 = vmatprep.subr.mxu0 0.0
      %768 = vmatpush1.msra.mxu0 %v755
      %769 = vmatprep.subr.mxu0 0.0
      %770 = vmatpush1.msra.mxu0 0.0
      %771 = vmatprep.subr.mxu0 0.0
      %772 = vmatpush1.msra.mxu0 0.0
      %773 = vmatprep.subr.mxu0 0.0
      %774 = vmatpush1.msra.mxu0 0.0
      %775 = vmatprep.subr.mxu0 0.0
      %776 = vmatpush1.msra.mxu0 0.0
      %777 = vmatprep.subr.mxu0 0.0
      %778 = vmatpush1.msra.mxu0 0.0
      %779 = vmatprep.subr.mxu0 0.0
      %780 = vmatpush1.msra.mxu0 0.0
      %781 = vmatprep.subr.mxu0 0.0
      %782 = vmatpush1.msra.mxu0 0.0
      %783 = vmatprep.subr.mxu0 0.0
      %784 = vmatpush1.msra.mxu0 0.0
      %785 = vmatprep.subr.mxu0 0.0
      %786 = vmatpush1.msra.mxu0 0.0
      %787 = vmatprep.subr.mxu0 0.0
      %788 = vmatpush1.msra.mxu0 0.0
      %789 = vmatprep.subr.mxu0 0.0
      %790 = vmatpush1.msra.mxu0 0.0
      %791 = vmatprep.subr.mxu0 0.0
      %792 = vmatpush1.msra.mxu0 0.0
      %793 = vmatprep.subr.mxu0 0.0
      %794 = vmatpush1.msra.mxu0 0.0
      %795 = vmatprep.subr.mxu0 0.0
      %796 = vmatpush1.msra.mxu0 0.0
      %797 = vmatprep.subr.mxu0 0.0
      %798 = vmatpush1.msra.mxu0 0.0
      %799 = vmatprep.subr.mxu0 0.0
      %800 = vmatpush1.msra.mxu0 0.0
      %801 = vmatprep.subr.mxu0 0.0
      %802 = vmatpush1.msra.mxu0 0.0
      %803 = vmatprep.subr.mxu0 0.0
      %804 = vmatpush1.msra.mxu0 0.0
      %805 = vmatprep.subr.mxu0 0.0
      %806 = vmatpush1.msra.mxu0 0.0
      %807 = vmatprep.subr.mxu0 0.0
      %808 = vmatpush1.msra.mxu0 0.0
      %809 = vmatprep.subr.mxu0 0.0
      %810 = vmatpush1.msra.mxu0 0.0
      %811 = vmatprep.subr.mxu0 0.0
      %812 = vmatpush1.msra.mxu0 0.0
      %813 = vmatprep.subr.mxu0 0.0
      %814 = vmatpush1.msra.mxu0 0.0
      %815 = vmatprep.subr.mxu0 0.0
      %816 = vmatpush1.msra.mxu0 0.0
      %817 = vmatprep.subr.mxu0 0.0
      %818 = vmatpush1.msra.mxu0 0.0
      %819 = vmatprep.subr.mxu0 0.0
      %820 = vmatpush1.msra.mxu0 0.0
      %821 = vmatprep.subr.mxu0 0.0
      %822 = vmatpush1.msra.mxu0 0.0
      %823 = vmatprep.subr.mxu0 0.0
      %824 = vmatpush1.msra.mxu0 0.0
      %825 = vmatprep.mubr.f32.mxu0 0.0
      %826 = vmatmul.mubr.f32.gmra.mrb[0].mxu0 %v639
      %v827 = vpop.f32.mrb[0].mxu0
      %v828 = vadd.f32 %v760, %v827
      %v829 = vpop.f32.mrb[0].mxu0
      %830 = vmatprep.mubr.f32.mxu0 0.0
      %831 = vmatmul.mubr.f32.gmra.mrb[0].mxu0 %v642
      %v832 = vpop.f32.mrb[0].mxu0
      %v833 = vadd.f32 %v760, %v832
      %v834 = vpop.f32.mrb[0].mxu0
      %835 = vmatprep.mubr.f32.mxu0 0.0
      %836 = vmatmul.mubr.f32.gmra.mrb[0].mxu0 %v645
      %v837 = vpop.f32.mrb[0].mxu0
      %v838 = vadd.f32 %v760, %v837
      %v839 = vpop.f32.mrb[0].mxu0
      %840 = vmatprep.mubr.f32.mxu0 0.0
      %841 = vmatmul.mubr.f32.gmra.mrb[0].mxu0 %v648
      %v842 = vpop.f32.mrb[0].mxu0
      %v843 = vadd.f32 %v760, %v842
      %v844 = vpop.f32.mrb[0].mxu0
      %845 = vmatprep.mubr.f32.mxu0 0.0
      %846 = vmatmul.mubr.f32.gmra.mrb[0].mxu0 %v651
      %v847 = vpop.f32.mrb[0].mxu0
      %v848 = vadd.f32 %v760, %v847
      %v849 = vpop.f32.mrb[0].mxu0
      %850 = vmatprep.mubr.f32.mxu0 0.0
      %851 = vmatmul.mubr.f32.gmra.mrb[0].mxu0 %v654
      %v852 = vpop.f32.mrb[0].mxu0
      %v853 = vadd.f32 %v760, %v852
      %v854 = vpop.f32.mrb[0].mxu0
      %855 = vdwg.mxu0
      %s856 = scalar_lea.vmem %s1, 64
      %v857 = vld [vmem:[%s856] sm:$0xff]
      %v858 = vld [vmem:[%s856 + $0x8] sm:$0xff]
      %v859 = vld [vmem:[%s856 + $0x10] sm:$0xff]
      %v860 = vld [vmem:[%s856 + $0x18] sm:$0xff]
      %v861 = vld [vmem:[%s3 + $0x2] sm:$0x1]
      %v862 = vlaneseq
      %v863 = vshrl.u32 %v862, 7
      %v864 = vsub.s32 0, %v863
      %v865 = vrot.slane %v861, %v864
      %866 = vmatprep.subr.mxu0 0.0
      %867 = vmatpush1.msra.mxu0 %v857
      %868 = vmatprep.subr.mxu0 0.0
      %869 = vmatpush1.msra.mxu0 %v858
      %870 = vmatprep.subr.mxu0 0.0
      %871 = vmatpush1.msra.mxu0 %v859
      %872 = vmatprep.subr.mxu0 0.0
      %873 = vmatpush1.msra.mxu0 %v860
      %874 = vmatprep.subr.mxu0 0.0
      %875 = vmatpush1.msra.mxu0 0.0
      %876 = vmatprep.subr.mxu0 0.0
      %877 = vmatpush1.msra.mxu0 0.0
      %878 = vmatprep.subr.mxu0 0.0
      %879 = vmatpush1.msra.mxu0 0.0
      %880 = vmatprep.subr.mxu0 0.0
      %881 = vmatpush1.msra.mxu0 0.0
      %882 = vmatprep.subr.mxu0 0.0
      %883 = vmatpush1.msra.mxu0 0.0
      %884 = vmatprep.subr.mxu0 0.0
      %885 = vmatpush1.msra.mxu0 0.0
      %886 = vmatprep.subr.mxu0 0.0
      %887 = vmatpush1.msra.mxu0 0.0
      %888 = vmatprep.subr.mxu0 0.0
      %889 = vmatpush1.msra.mxu0 0.0
      %890 = vmatprep.subr.mxu0 0.0
      %891 = vmatpush1.msra.mxu0 0.0
      %892 = vmatprep.subr.mxu0 0.0
      %893 = vmatpush1.msra.mxu0 0.0
      %894 = vmatprep.subr.mxu0 0.0
      %895 = vmatpush1.msra.mxu0 0.0
      %896 = vmatprep.subr.mxu0 0.0
      %897 = vmatpush1.msra.mxu0 0.0
      %898 = vmatprep.subr.mxu0 0.0
      %899 = vmatpush1.msra.mxu0 0.0
      %900 = vmatprep.subr.mxu0 0.0
      %901 = vmatpush1.msra.mxu0 0.0
      %902 = vmatprep.subr.mxu0 0.0
      %903 = vmatpush1.msra.mxu0 0.0
      %904 = vmatprep.subr.mxu0 0.0
      %905 = vmatpush1.msra.mxu0 0.0
      %906 = vmatprep.subr.mxu0 0.0
      %907 = vmatpush1.msra.mxu0 0.0
      %908 = vmatprep.subr.mxu0 0.0
      %909 = vmatpush1.msra.mxu0 0.0
      %910 = vmatprep.subr.mxu0 0.0
      %911 = vmatpush1.msra.mxu0 0.0
      %912 = vmatprep.subr.mxu0 0.0
      %913 = vmatpush1.msra.mxu0 0.0
      %914 = vmatprep.subr.mxu0 0.0
      %915 = vmatpush1.msra.mxu0 0.0
      %916 = vmatprep.subr.mxu0 0.0
      %917 = vmatpush1.msra.mxu0 0.0
      %918 = vmatprep.subr.mxu0 0.0
      %919 = vmatpush1.msra.mxu0 0.0
      %920 = vmatprep.subr.mxu0 0.0
      %921 = vmatpush1.msra.mxu0 0.0
      %922 = vmatprep.subr.mxu0 0.0
      %923 = vmatpush1.msra.mxu0 0.0
      %924 = vmatprep.subr.mxu0 0.0
      %925 = vmatpush1.msra.mxu0 0.0
      %926 = vmatprep.subr.mxu0 0.0
      %927 = vmatpush1.msra.mxu0 0.0
      %928 = vmatprep.subr.mxu0 0.0
      %929 = vmatpush1.msra.mxu0 0.0
      %930 = vmatprep.mubr.f32.mxu0 0.0
      %931 = vmatmul.mubr.f32.gmra.mrb[0].mxu0 %v639
      %v932 = vpop.f32.mrb[0].mxu0
      %v933 = vadd.f32 %v865, %v932
      %v934 = vpop.f32.mrb[0].mxu0
      %935 = vmatprep.mubr.f32.mxu0 0.0
      %936 = vmatmul.mubr.f32.gmra.mrb[0].mxu0 %v642
      %v937 = vpop.f32.mrb[0].mxu0
      %v938 = vadd.f32 %v865, %v937
      %v939 = vpop.f32.mrb[0].mxu0
      %940 = vmatprep.mubr.f32.mxu0 0.0
      %941 = vmatmul.mubr.f32.gmra.mrb[0].mxu0 %v645
      %v942 = vpop.f32.mrb[0].mxu0
      %v943 = vadd.f32 %v865, %v942
      %v944 = vpop.f32.mrb[0].mxu0
      %945 = vmatprep.mubr.f32.mxu0 0.0
      %946 = vmatmul.mubr.f32.gmra.mrb[0].mxu0 %v648
      %v947 = vpop.f32.mrb[0].mxu0
      %v948 = vadd.f32 %v865, %v947
      %v949 = vpop.f32.mrb[0].mxu0
      %950 = vmatprep.mubr.f32.mxu0 0.0
      %951 = vmatmul.mubr.f32.gmra.mrb[0].mxu0 %v651
      %v952 = vpop.f32.mrb[0].mxu0
      %v953 = vadd.f32 %v865, %v952
      %v954 = vpop.f32.mrb[0].mxu0
      %955 = vmatprep.mubr.f32.mxu0 0.0
      %956 = vmatmul.mubr.f32.gmra.mrb[0].mxu0 %v654
      %v957 = vpop.f32.mrb[0].mxu0
      %v958 = vadd.f32 %v865, %v957
      %v959 = vpop.f32.mrb[0].mxu0
      %960 = vdwg.mxu0
      %v961 = vld [vmem:[%s4] sm:$0xff]
      %v962 = vld [vmem:[%s4 + $0x8] sm:$0xff]
      %v963 = vld [vmem:[%s4 + $0x10] sm:$0xff]
      %v964 = vld [vmem:[%s4 + $0x18] sm:$0xff]
      %v965 = vld [vmem:[%s6] sm:$0x1]
      %v966 = vlaneseq
      %v967 = vshrl.u32 %v966, 7
      %v968 = vsub.s32 0, %v967
      %v969 = vrot.slane %v965, %v968
      %970 = vmatprep.subr.mxu0 0.0
      %971 = vmatpush1.msra.mxu0 %v961
      %972 = vmatprep.subr.mxu0 0.0
      %973 = vmatpush1.msra.mxu0 %v962
      %974 = vmatprep.subr.mxu0 0.0
      %975 = vmatpush1.msra.mxu0 %v963
      %976 = vmatprep.subr.mxu0 0.0
      %977 = vmatpush1.msra.mxu0 %v964
      %978 = vmatprep.subr.mxu0 0.0
      %979 = vmatpush1.msra.mxu0 0.0
      %980 = vmatprep.subr.mxu0 0.0
      %981 = vmatpush1.msra.mxu0 0.0
      %982 = vmatprep.subr.mxu0 0.0
      %983 = vmatpush1.msra.mxu0 0.0
      %984 = vmatprep.subr.mxu0 0.0
      %985 = vmatpush1.msra.mxu0 0.0
      %986 = vmatprep.subr.mxu0 0.0
      %987 = vmatpush1.msra.mxu0 0.0
      %988 = vmatprep.subr.mxu0 0.0
      %989 = vmatpush1.msra.mxu0 0.0
      %990 = vmatprep.subr.mxu0 0.0
      %991 = vmatpush1.msra.mxu0 0.0
      %992 = vmatprep.subr.mxu0 0.0
      %993 = vmatpush1.msra.mxu0 0.0
      %994 = vmatprep.subr.mxu0 0.0
      %995 = vmatpush1.msra.mxu0 0.0
      %996 = vmatprep.subr.mxu0 0.0
      %997 = vmatpush1.msra.mxu0 0.0
      %998 = vmatprep.subr.mxu0 0.0
      %999 = vmatpush1.msra.mxu0 0.0
      %1000 = vmatprep.subr.mxu0 0.0
      %1001 = vmatpush1.msra.mxu0 0.0
      %1002 = vmatprep.subr.mxu0 0.0
      %1003 = vmatpush1.msra.mxu0 0.0
      %1004 = vmatprep.subr.mxu0 0.0
      %1005 = vmatpush1.msra.mxu0 0.0
      %1006 = vmatprep.subr.mxu0 0.0
      %1007 = vmatpush1.msra.mxu0 0.0
      %1008 = vmatprep.subr.mxu0 0.0
      %1009 = vmatpush1.msra.mxu0 0.0
      %1010 = vmatprep.subr.mxu0 0.0
      %1011 = vmatpush1.msra.mxu0 0.0
      %1012 = vmatprep.subr.mxu0 0.0
      %1013 = vmatpush1.msra.mxu0 0.0
      %1014 = vmatprep.subr.mxu0 0.0
      %1015 = vmatpush1.msra.mxu0 0.0
      %1016 = vmatprep.subr.mxu0 0.0
      %1017 = vmatpush1.msra.mxu0 0.0
      %1018 = vmatprep.subr.mxu0 0.0
      %1019 = vmatpush1.msra.mxu0 0.0
      %1020 = vmatprep.subr.mxu0 0.0
      %1021 = vmatpush1.msra.mxu0 0.0
      %1022 = vmatprep.subr.mxu0 0.0
      %1023 = vmatpush1.msra.mxu0 0.0
      %1024 = vmatprep.subr.mxu0 0.0
      %1025 = vmatpush1.msra.mxu0 0.0
      %1026 = vmatprep.subr.mxu0 0.0
      %1027 = vmatpush1.msra.mxu0 0.0
      %1028 = vmatprep.subr.mxu0 0.0
      %1029 = vmatpush1.msra.mxu0 0.0
      %1030 = vmatprep.subr.mxu0 0.0
      %1031 = vmatpush1.msra.mxu0 0.0
      %1032 = vmatprep.subr.mxu0 0.0
      %1033 = vmatpush1.msra.mxu0 0.0
      %1034 = vmatprep.mubr.f32.mxu0 0.0
      %1035 = vmatmul.mubr.f32.gmra.mrb[0].mxu0 %v639
      %v1036 = vpop.f32.mrb[0].mxu0
      %v1037 = vadd.f32 %v969, %v1036
      %v1038 = vpop.f32.mrb[0].mxu0
      %1039 = vmatprep.mubr.f32.mxu0 0.0
      %1040 = vmatmul.mubr.f32.gmra.mrb[0].mxu0 %v642
      %v1041 = vpop.f32.mrb[0].mxu0
      %v1042 = vadd.f32 %v969, %v1041
      %v1043 = vpop.f32.mrb[0].mxu0
      %1044 = vmatprep.mubr.f32.mxu0 0.0
      %1045 = vmatmul.mubr.f32.gmra.mrb[0].mxu0 %v645
      %v1046 = vpop.f32.mrb[0].mxu0
      %v1047 = vadd.f32 %v969, %v1046
      %v1048 = vpop.f32.mrb[0].mxu0
      %1049 = vmatprep.mubr.f32.mxu0 0.0
      %1050 = vmatmul.mubr.f32.gmra.mrb[0].mxu0 %v648
      %v1051 = vpop.f32.mrb[0].mxu0
      %v1052 = vadd.f32 %v969, %v1051
      %v1053 = vpop.f32.mrb[0].mxu0
      %1054 = vmatprep.mubr.f32.mxu0 0.0
      %1055 = vmatmul.mubr.f32.gmra.mrb[0].mxu0 %v651
      %v1056 = vpop.f32.mrb[0].mxu0
      %v1057 = vadd.f32 %v969, %v1056
      %v1058 = vpop.f32.mrb[0].mxu0
      %1059 = vmatprep.mubr.f32.mxu0 0.0
      %1060 = vmatmul.mubr.f32.gmra.mrb[0].mxu0 %v654
      %v1061 = vpop.f32.mrb[0].mxu0
      %v1062 = vadd.f32 %v969, %v1061
      %v1063 = vpop.f32.mrb[0].mxu0
      %1064 = vdwg.mxu0
      %s1065 = scalar_lea.vmem %s4, 32
      %v1066 = vld [vmem:[%s1065] sm:$0xff]
      %v1067 = vld [vmem:[%s1065 + $0x8] sm:$0xff]
      %v1068 = vld [vmem:[%s1065 + $0x10] sm:$0xff]
      %v1069 = vld [vmem:[%s1065 + $0x18] sm:$0xff]
      %v1070 = vld [vmem:[%s6 + $0x1] sm:$0x1]
      %v1071 = vlaneseq
      %v1072 = vshrl.u32 %v1071, 7
      %v1073 = vsub.s32 0, %v1072
      %v1074 = vrot.slane %v1070, %v1073
      %1075 = vmatprep.subr.mxu0 0.0
      %1076 = vmatpush1.msra.mxu0 %v1066
      %1077 = vmatprep.subr.mxu0 0.0
      %1078 = vmatpush1.msra.mxu0 %v1067
      %1079 = vmatprep.subr.mxu0 0.0
      %1080 = vmatpush1.msra.mxu0 %v1068
      %1081 = vmatprep.subr.mxu0 0.0
      %1082 = vmatpush1.msra.mxu0 %v1069
      %1083 = vmatprep.subr.mxu0 0.0
      %1084 = vmatpush1.msra.mxu0 0.0
      %1085 = vmatprep.subr.mxu0 0.0
      %1086 = vmatpush1.msra.mxu0 0.0
      %1087 = vmatprep.subr.mxu0 0.0
      %1088 = vmatpush1.msra.mxu0 0.0
      %1089 = vmatprep.subr.mxu0 0.0
      %1090 = vmatpush1.msra.mxu0 0.0
      %1091 = vmatprep.subr.mxu0 0.0
      %1092 = vmatpush1.msra.mxu0 0.0
      %1093 = vmatprep.subr.mxu0 0.0
      %1094 = vmatpush1.msra.mxu0 0.0
      %1095 = vmatprep.subr.mxu0 0.0
      %1096 = vmatpush1.msra.mxu0 0.0
      %1097 = vmatprep.subr.mxu0 0.0
      %1098 = vmatpush1.msra.mxu0 0.0
      %1099 = vmatprep.subr.mxu0 0.0
      %1100 = vmatpush1.msra.mxu0 0.0
      %1101 = vmatprep.subr.mxu0 0.0
      %1102 = vmatpush1.msra.mxu0 0.0
      %1103 = vmatprep.subr.mxu0 0.0
      %1104 = vmatpush1.msra.mxu0 0.0
      %1105 = vmatprep.subr.mxu0 0.0
      %1106 = vmatpush1.msra.mxu0 0.0
      %1107 = vmatprep.subr.mxu0 0.0
      %1108 = vmatpush1.msra.mxu0 0.0
      %1109 = vmatprep.subr.mxu0 0.0
      %1110 = vmatpush1.msra.mxu0 0.0
      %1111 = vmatprep.subr.mxu0 0.0
      %1112 = vmatpush1.msra.mxu0 0.0
      %1113 = vmatprep.subr.mxu0 0.0
      %1114 = vmatpush1.msra.mxu0 0.0
      %1115 = vmatprep.subr.mxu0 0.0
      %1116 = vmatpush1.msra.mxu0 0.0
      %1117 = vmatprep.subr.mxu0 0.0
      %1118 = vmatpush1.msra.mxu0 0.0
      %1119 = vmatprep.subr.mxu0 0.0
      %1120 = vmatpush1.msra.mxu0 0.0
      %1121 = vmatprep.subr.mxu0 0.0
      %1122 = vmatpush1.msra.mxu0 0.0
      %1123 = vmatprep.subr.mxu0 0.0
      %1124 = vmatpush1.msra.mxu0 0.0
      %1125 = vmatprep.subr.mxu0 0.0
      %1126 = vmatpush1.msra.mxu0 0.0
      %1127 = vmatprep.subr.mxu0 0.0
      %1128 = vmatpush1.msra.mxu0 0.0
      %1129 = vmatprep.subr.mxu0 0.0
      %1130 = vmatpush1.msra.mxu0 0.0
      %1131 = vmatprep.subr.mxu0 0.0
      %1132 = vmatpush1.msra.mxu0 0.0
      %1133 = vmatprep.subr.mxu0 0.0
      %1134 = vmatpush1.msra.mxu0 0.0
      %1135 = vmatprep.subr.mxu0 0.0
      %1136 = vmatpush1.msra.mxu0 0.0
      %1137 = vmatprep.subr.mxu0 0.0
      %1138 = vmatpush1.msra.mxu0 0.0
      %1139 = vmatprep.mubr.f32.mxu0 0.0
      %1140 = vmatmul.mubr.f32.gmra.mrb[0].mxu0 %v639
      %v1141 = vpop.f32.mrb[0].mxu0
      %v1142 = vadd.f32 %v1074, %v1141
      %v1143 = vpop.f32.mrb[0].mxu0
      %1144 = vmatprep.mubr.f32.mxu0 0.0
      %1145 = vmatmul.mubr.f32.gmra.mrb[0].mxu0 %v642
      %v1146 = vpop.f32.mrb[0].mxu0
      %v1147 = vadd.f32 %v1074, %v1146
      %v1148 = vpop.f32.mrb[0].mxu0
      %1149 = vmatprep.mubr.f32.mxu0 0.0
      %1150 = vmatmul.mubr.f32.gmra.mrb[0].mxu0 %v645
      %v1151 = vpop.f32.mrb[0].mxu0
      %v1152 = vadd.f32 %v1074, %v1151
      %v1153 = vpop.f32.mrb[0].mxu0
      %1154 = vmatprep.mubr.f32.mxu0 0.0
      %1155 = vmatmul.mubr.f32.gmra.mrb[0].mxu0 %v648
      %v1156 = vpop.f32.mrb[0].mxu0
      %v1157 = vadd.f32 %v1074, %v1156
      %v1158 = vpop.f32.mrb[0].mxu0
      %1159 = vmatprep.mubr.f32.mxu0 0.0
      %1160 = vmatmul.mubr.f32.gmra.mrb[0].mxu0 %v651
      %v1161 = vpop.f32.mrb[0].mxu0
      %v1162 = vadd.f32 %v1074, %v1161
      %v1163 = vpop.f32.mrb[0].mxu0
      %1164 = vmatprep.mubr.f32.mxu0 0.0
      %1165 = vmatmul.mubr.f32.gmra.mrb[0].mxu0 %v654
      %v1166 = vpop.f32.mrb[0].mxu0
      %v1167 = vadd.f32 %v1074, %v1166
      %v1168 = vpop.f32.mrb[0].mxu0
      %1169 = vdwg.mxu0
      %s1170 = scalar_lea.vmem %s4, 64
      %v1171 = vld [vmem:[%s1170] sm:$0xff]
      %v1172 = vld [vmem:[%s1170 + $0x8] sm:$0xff]
      %v1173 = vld [vmem:[%s1170 + $0x10] sm:$0xff]
      %v1174 = vld [vmem:[%s1170 + $0x18] sm:$0xff]
      %v1175 = vld [vmem:[%s6 + $0x2] sm:$0x1]
      %v1176 = vlaneseq
      %v1177 = vshrl.u32 %v1176, 7
      %v1178 = vsub.s32 0, %v1177
      %v1179 = vrot.slane %v1175, %v1178
      %1180 = vmatprep.subr.mxu0 0.0
      %1181 = vmatpush1.msra.mxu0 %v1171
      %1182 = vmatprep.subr.mxu0 0.0
      %1183 = vmatpush1.msra.mxu0 %v1172
      %1184 = vmatprep.subr.mxu0 0.0
      %1185 = vmatpush1.msra.mxu0 %v1173
      %1186 = vmatprep.subr.mxu0 0.0
      %1187 = vmatpush1.msra.mxu0 %v1174
      %1188 = vmatprep.subr.mxu0 0.0
      %1189 = vmatpush1.msra.mxu0 0.0
      %1190 = vmatprep.subr.mxu0 0.0
      %1191 = vmatpush1.msra.mxu0 0.0
      %1192 = vmatprep.subr.mxu0 0.0
      %1193 = vmatpush1.msra.mxu0 0.0
      %1194 = vmatprep.subr.mxu0 0.0
      %1195 = vmatpush1.msra.mxu0 0.0
      %1196 = vmatprep.subr.mxu0 0.0
      %1197 = vmatpush1.msra.mxu0 0.0
      %1198 = vmatprep.subr.mxu0 0.0
      %1199 = vmatpush1.msra.mxu0 0.0
      %1200 = vmatprep.subr.mxu0 0.0
      %1201 = vmatpush1.msra.mxu0 0.0
      %1202 = vmatprep.subr.mxu0 0.0
      %1203 = vmatpush1.msra.mxu0 0.0
      %1204 = vmatprep.subr.mxu0 0.0
      %1205 = vmatpush1.msra.mxu0 0.0
      %1206 = vmatprep.subr.mxu0 0.0
      %1207 = vmatpush1.msra.mxu0 0.0
      %1208 = vmatprep.subr.mxu0 0.0
      %1209 = vmatpush1.msra.mxu0 0.0
      %1210 = vmatprep.subr.mxu0 0.0
      %1211 = vmatpush1.msra.mxu0 0.0
      %1212 = vmatprep.subr.mxu0 0.0
      %1213 = vmatpush1.msra.mxu0 0.0
      %1214 = vmatprep.subr.mxu0 0.0
      %1215 = vmatpush1.msra.mxu0 0.0
      %1216 = vmatprep.subr.mxu0 0.0
      %1217 = vmatpush1.msra.mxu0 0.0
      %1218 = vmatprep.subr.mxu0 0.0
      %1219 = vmatpush1.msra.mxu0 0.0
      %1220 = vmatprep.subr.mxu0 0.0
      %1221 = vmatpush1.msra.mxu0 0.0
      %1222 = vmatprep.subr.mxu0 0.0
      %1223 = vmatpush1.msra.mxu0 0.0
      %1224 = vmatprep.subr.mxu0 0.0
      %1225 = vmatpush1.msra.mxu0 0.0
      %1226 = vmatprep.subr.mxu0 0.0
      %1227 = vmatpush1.msra.mxu0 0.0
      %1228 = vmatprep.subr.mxu0 0.0
      %1229 = vmatpush1.msra.mxu0 0.0
      %1230 = vmatprep.subr.mxu0 0.0
      %1231 = vmatpush1.msra.mxu0 0.0
      %1232 = vmatprep.subr.mxu0 0.0
      %1233 = vmatpush1.msra.mxu0 0.0
      %1234 = vmatprep.subr.mxu0 0.0
      %1235 = vmatpush1.msra.mxu0 0.0
      %1236 = vmatprep.subr.mxu0 0.0
      %1237 = vmatpush1.msra.mxu0 0.0
      %1238 = vmatprep.subr.mxu0 0.0
      %1239 = vmatpush1.msra.mxu0 0.0
      %1240 = vmatprep.subr.mxu0 0.0
      %1241 = vmatpush1.msra.mxu0 0.0
      %1242 = vmatprep.subr.mxu0 0.0
      %1243 = vmatpush1.msra.mxu0 0.0
      %1244 = vmatprep.mubr.f32.mxu0 0.0
      %1245 = vmatmul.mubr.f32.gmra.mrb[0].mxu0 %v639
      %v1246 = vpop.f32.mrb[0].mxu0
      %v1247 = vadd.f32 %v1179, %v1246
      %v1248 = vpop.f32.mrb[0].mxu0
      %1249 = vmatprep.mubr.f32.mxu0 0.0
      %1250 = vmatmul.mubr.f32.gmra.mrb[0].mxu0 %v642
      %v1251 = vpop.f32.mrb[0].mxu0
      %v1252 = vadd.f32 %v1179, %v1251
      %v1253 = vpop.f32.mrb[0].mxu0
      %1254 = vmatprep.mubr.f32.mxu0 0.0
      %1255 = vmatmul.mubr.f32.gmra.mrb[0].mxu0 %v645
      %v1256 = vpop.f32.mrb[0].mxu0
      %v1257 = vadd.f32 %v1179, %v1256
      %v1258 = vpop.f32.mrb[0].mxu0
      %1259 = vmatprep.mubr.f32.mxu0 0.0
      %1260 = vmatmul.mubr.f32.gmra.mrb[0].mxu0 %v648
      %v1261 = vpop.f32.mrb[0].mxu0
      %v1262 = vadd.f32 %v1179, %v1261
      %v1263 = vpop.f32.mrb[0].mxu0
      %1264 = vmatprep.mubr.f32.mxu0 0.0
      %1265 = vmatmul.mubr.f32.gmra.mrb[0].mxu0 %v651
      %v1266 = vpop.f32.mrb[0].mxu0
      %v1267 = vadd.f32 %v1179, %v1266
      %v1268 = vpop.f32.mrb[0].mxu0
      %1269 = vmatprep.mubr.f32.mxu0 0.0
      %1270 = vmatmul.mubr.f32.gmra.mrb[0].mxu0 %v654
      %v1271 = vpop.f32.mrb[0].mxu0
      %v1272 = vadd.f32 %v1179, %v1271
      %v1273 = vpop.f32.mrb[0].mxu0
      %1274 = vdwg.mxu0
      %v1275 = vld [vmem:[%s2] sm:$0xff]
      %v1276 = vld [vmem:[%s2 + $0x8] sm:$0xff]
      %s1277 = scalar_lea.vmem %s2, 16
      %v1278 = vld [vmem:[%s1277] sm:$0xff]
      %v1279 = vld [vmem:[%s1277 + $0x8] sm:$0xff]
      %s1280 = scalar_lea.vmem %s2, 32
      %v1281 = vld [vmem:[%s1280] sm:$0xff]
      %v1282 = vld [vmem:[%s1280 + $0x8] sm:$0xff]
      %v1283 = vld [vmem:[%s5] sm:$0xff]
      %v1284 = vld [vmem:[%s5 + $0x8] sm:$0xff]
      %s1285 = scalar_lea.vmem %s5, 16
      %v1286 = vld [vmem:[%s1285] sm:$0xff]
      %v1287 = vld [vmem:[%s1285 + $0x8] sm:$0xff]
      %s1288 = scalar_lea.vmem %s5, 32
      %v1289 = vld [vmem:[%s1288] sm:$0xff]
      %v1290 = vld [vmem:[%s1288 + $0x8] sm:$0xff]
      %v1291 = vld [vmem:[%s3 + $0x3] sm:$0x1]
      %v1292 = vld [vmem:[%s6 + $0x3] sm:$0x1]
      %vm1293 = vcmask 130048
      %v1295 = vsel %vm1293, %v626, 0
      %1297 = vmatprep.subr.mxu0 0.0
      %1298 = vmatpush1.msra.mxu0 %v1275
      %1299 = vmatprep.subr.mxu0 0.0
      %1300 = vmatpush1.msra.mxu0 %v1276
      %1301 = vmatprep.subr.mxu0 0.0
      %1302 = vmatpush1.msra.mxu0 0.0
      %1303 = vmatprep.subr.mxu0 0.0
      %1304 = vmatpush1.msra.mxu0 0.0
      %1305 = vmatprep.subr.mxu0 0.0
      %1306 = vmatpush1.msra.mxu0 0.0
      %1307 = vmatprep.subr.mxu0 0.0
      %1308 = vmatpush1.msra.mxu0 0.0
      %1309 = vmatprep.subr.mxu0 0.0
      %1310 = vmatpush1.msra.mxu0 0.0
      %1311 = vmatprep.subr.mxu0 0.0
      %1312 = vmatpush1.msra.mxu0 0.0
      %1313 = vmatprep.subr.mxu0 0.0
      %1314 = vmatpush1.msra.mxu0 0.0
      %1315 = vmatprep.subr.mxu0 0.0
      %1316 = vmatpush1.msra.mxu0 0.0
      %1317 = vmatprep.subr.mxu0 0.0
      %1318 = vmatpush1.msra.mxu0 0.0
      %1319 = vmatprep.subr.mxu0 0.0
      %1320 = vmatpush1.msra.mxu0 0.0
      %1321 = vmatprep.subr.mxu0 0.0
      %1322 = vmatpush1.msra.mxu0 0.0
      %1323 = vmatprep.subr.mxu0 0.0
      %1324 = vmatpush1.msra.mxu0 0.0
      %1325 = vmatprep.subr.mxu0 0.0
      %1326 = vmatpush1.msra.mxu0 0.0
      %1327 = vmatprep.subr.mxu0 0.0
      %1328 = vmatpush1.msra.mxu0 0.0
      %1329 = vmatprep.subr.mxu0 0.0
      %1330 = vmatpush1.msra.mxu0 0.0
      %1331 = vmatprep.subr.mxu0 0.0
      %1332 = vmatpush1.msra.mxu0 0.0
      %1333 = vmatprep.subr.mxu0 0.0
      %1334 = vmatpush1.msra.mxu0 0.0
      %1335 = vmatprep.subr.mxu0 0.0
      %1336 = vmatpush1.msra.mxu0 0.0
      %1337 = vmatprep.subr.mxu0 0.0
      %1338 = vmatpush1.msra.mxu0 0.0
      %1339 = vmatprep.subr.mxu0 0.0
      %1340 = vmatpush1.msra.mxu0 0.0
      %1341 = vmatprep.subr.mxu0 0.0
      %1342 = vmatpush1.msra.mxu0 0.0
      %1343 = vmatprep.subr.mxu0 0.0
      %1344 = vmatpush1.msra.mxu0 0.0
      %1345 = vmatprep.subr.mxu0 0.0
      %1346 = vmatpush1.msra.mxu0 0.0
      %1347 = vmatprep.subr.mxu0 0.0
      %1348 = vmatpush1.msra.mxu0 0.0
      %1349 = vmatprep.subr.mxu0 0.0
      %1350 = vmatpush1.msra.mxu0 0.0
      %1351 = vmatprep.subr.mxu0 0.0
      %1352 = vmatpush1.msra.mxu0 0.0
      %1353 = vmatprep.subr.mxu0 0.0
      %1354 = vmatpush1.msra.mxu0 0.0
      %1355 = vmatprep.subr.mxu0 0.0
      %1356 = vmatpush1.msra.mxu0 0.0
      %1357 = vmatprep.subr.mxu0 0.0
      %1358 = vmatpush1.msra.mxu0 0.0
      %1359 = vmatprep.subr.mxu0 0.0
      %1360 = vmatpush1.msra.mxu0 0.0
      %1361 = vmatprep.mubr.f32.mxu0 0.0
      %1362 = vmatmul.mubr.f32.gmra.mrb[0].mxu0 %v1295
      %v1363 = vpop.f32.mrb[0].mxu0
      %v1364 = vadd.f32 0.0, %v1363
      %v1365 = vpop.f32.mrb[0].mxu0
      %1366 = vdwg.mxu0
      %v1367 = vadd.f32 %v723, %v1364
      %v1368 = vxor.u32 %v1367, 2147483648
      %v1369 = vmul.f32 %v1368, 1.442695
      %v1370 = vpow.pop %v1369
      %v1371 = vadd.f32 %v1370, 1.0
      %v1372 = vrcp.pop %v1371
      %v1373 = vmul.f32 1.0, %v1372
      %1374 = vmatprep.subr.mxu0 0.0
      %1375 = vmatpush1.msra.mxu0 %v1278
      %1376 = vmatprep.subr.mxu0 0.0
      %1377 = vmatpush1.msra.mxu0 %v1279
      %1378 = vmatprep.subr.mxu0 0.0
      %1379 = vmatpush1.msra.mxu0 0.0
      %1380 = vmatprep.subr.mxu0 0.0
      %1381 = vmatpush1.msra.mxu0 0.0
      %1382 = vmatprep.subr.mxu0 0.0
      %1383 = vmatpush1.msra.mxu0 0.0
      %1384 = vmatprep.subr.mxu0 0.0
      %1385 = vmatpush1.msra.mxu0 0.0
      %1386 = vmatprep.subr.mxu0 0.0
      %1387 = vmatpush1.msra.mxu0 0.0
      %1388 = vmatprep.subr.mxu0 0.0
      %1389 = vmatpush1.msra.mxu0 0.0
      %1390 = vmatprep.subr.mxu0 0.0
      %1391 = vmatpush1.msra.mxu0 0.0
      %1392 = vmatprep.subr.mxu0 0.0
      %1393 = vmatpush1.msra.mxu0 0.0
      %1394 = vmatprep.subr.mxu0 0.0
      %1395 = vmatpush1.msra.mxu0 0.0
      %1396 = vmatprep.subr.mxu0 0.0
      %1397 = vmatpush1.msra.mxu0 0.0
      %1398 = vmatprep.subr.mxu0 0.0
      %1399 = vmatpush1.msra.mxu0 0.0
      %1400 = vmatprep.subr.mxu0 0.0
      %1401 = vmatpush1.msra.mxu0 0.0
      %1402 = vmatprep.subr.mxu0 0.0
      %1403 = vmatpush1.msra.mxu0 0.0
      %1404 = vmatprep.subr.mxu0 0.0
      %1405 = vmatpush1.msra.mxu0 0.0
      %1406 = vmatprep.subr.mxu0 0.0
      %1407 = vmatpush1.msra.mxu0 0.0
      %1408 = vmatprep.subr.mxu0 0.0
      %1409 = vmatpush1.msra.mxu0 0.0
      %1410 = vmatprep.subr.mxu0 0.0
      %1411 = vmatpush1.msra.mxu0 0.0
      %1412 = vmatprep.subr.mxu0 0.0
      %1413 = vmatpush1.msra.mxu0 0.0
      %1414 = vmatprep.subr.mxu0 0.0
      %1415 = vmatpush1.msra.mxu0 0.0
      %1416 = vmatprep.subr.mxu0 0.0
      %1417 = vmatpush1.msra.mxu0 0.0
      %1418 = vmatprep.subr.mxu0 0.0
      %1419 = vmatpush1.msra.mxu0 0.0
      %1420 = vmatprep.subr.mxu0 0.0
      %1421 = vmatpush1.msra.mxu0 0.0
      %1422 = vmatprep.subr.mxu0 0.0
      %1423 = vmatpush1.msra.mxu0 0.0
      %1424 = vmatprep.subr.mxu0 0.0
      %1425 = vmatpush1.msra.mxu0 0.0
      %1426 = vmatprep.subr.mxu0 0.0
      %1427 = vmatpush1.msra.mxu0 0.0
      %1428 = vmatprep.subr.mxu0 0.0
      %1429 = vmatpush1.msra.mxu0 0.0
      %1430 = vmatprep.subr.mxu0 0.0
      %1431 = vmatpush1.msra.mxu0 0.0
      %1432 = vmatprep.subr.mxu0 0.0
      %1433 = vmatpush1.msra.mxu0 0.0
      %1434 = vmatprep.subr.mxu0 0.0
      %1435 = vmatpush1.msra.mxu0 0.0
      %1436 = vmatprep.subr.mxu0 0.0
      %1437 = vmatpush1.msra.mxu0 0.0
      %1438 = vmatprep.mubr.f32.mxu0 0.0
      %1439 = vmatmul.mubr.f32.gmra.mrb[0].mxu0 %v1295
      %v1440 = vpop.f32.mrb[0].mxu0
      %v1441 = vadd.f32 0.0, %v1440
      %v1442 = vpop.f32.mrb[0].mxu0
      %1443 = vdwg.mxu0
      %v1444 = vadd.f32 %v828, %v1441
      %v1445 = vxor.u32 %v1444, 2147483648
      %v1446 = vmul.f32 %v1445, 1.442695
      %v1447 = vpow.pop %v1446
      %v1448 = vadd.f32 %v1447, 1.0
      %v1449 = vrcp.pop %v1448
      %v1450 = vmul.f32 1.0, %v1449
      %v1451 = vlaneseq
      %v1452 = vshrl.u32 %v1451, 7
      %v1453 = vsub.s32 0, %v1452
      %v1454 = vrot.slane %v1291, %v1453
      %1455 = vmatprep.subr.mxu0 0.0
      %1456 = vmatpush1.msra.mxu0 %v1281
      %1457 = vmatprep.subr.mxu0 0.0
      %1458 = vmatpush1.msra.mxu0 %v1282
      %1459 = vmatprep.subr.mxu0 0.0
      %1460 = vmatpush1.msra.mxu0 0.0
      %1461 = vmatprep.subr.mxu0 0.0
      %1462 = vmatpush1.msra.mxu0 0.0
      %1463 = vmatprep.subr.mxu0 0.0
      %1464 = vmatpush1.msra.mxu0 0.0
      %1465 = vmatprep.subr.mxu0 0.0
      %1466 = vmatpush1.msra.mxu0 0.0
      %1467 = vmatprep.subr.mxu0 0.0
      %1468 = vmatpush1.msra.mxu0 0.0
      %1469 = vmatprep.subr.mxu0 0.0
      %1470 = vmatpush1.msra.mxu0 0.0
      %1471 = vmatprep.subr.mxu0 0.0
      %1472 = vmatpush1.msra.mxu0 0.0
      %1473 = vmatprep.subr.mxu0 0.0
      %1474 = vmatpush1.msra.mxu0 0.0
      %1475 = vmatprep.subr.mxu0 0.0
      %1476 = vmatpush1.msra.mxu0 0.0
      %1477 = vmatprep.subr.mxu0 0.0
      %1478 = vmatpush1.msra.mxu0 0.0
      %1479 = vmatprep.subr.mxu0 0.0
      %1480 = vmatpush1.msra.mxu0 0.0
      %1481 = vmatprep.subr.mxu0 0.0
      %1482 = vmatpush1.msra.mxu0 0.0
      %1483 = vmatprep.subr.mxu0 0.0
      %1484 = vmatpush1.msra.mxu0 0.0
      %1485 = vmatprep.subr.mxu0 0.0
      %1486 = vmatpush1.msra.mxu0 0.0
      %1487 = vmatprep.subr.mxu0 0.0
      %1488 = vmatpush1.msra.mxu0 0.0
      %1489 = vmatprep.subr.mxu0 0.0
      %1490 = vmatpush1.msra.mxu0 0.0
      %1491 = vmatprep.subr.mxu0 0.0
      %1492 = vmatpush1.msra.mxu0 0.0
      %1493 = vmatprep.subr.mxu0 0.0
      %1494 = vmatpush1.msra.mxu0 0.0
      %1495 = vmatprep.subr.mxu0 0.0
      %1496 = vmatpush1.msra.mxu0 0.0
      %1497 = vmatprep.subr.mxu0 0.0
      %1498 = vmatpush1.msra.mxu0 0.0
      %1499 = vmatprep.subr.mxu0 0.0
      %1500 = vmatpush1.msra.mxu0 0.0
      %1501 = vmatprep.subr.mxu0 0.0
      %1502 = vmatpush1.msra.mxu0 0.0
      %1503 = vmatprep.subr.mxu0 0.0
      %1504 = vmatpush1.msra.mxu0 0.0
      %1505 = vmatprep.subr.mxu0 0.0
      %1506 = vmatpush1.msra.mxu0 0.0
      %1507 = vmatprep.subr.mxu0 0.0
      %1508 = vmatpush1.msra.mxu0 0.0
      %1509 = vmatprep.subr.mxu0 0.0
      %1510 = vmatpush1.msra.mxu0 0.0
      %1511 = vmatprep.subr.mxu0 0.0
      %1512 = vmatpush1.msra.mxu0 0.0
      %1513 = vmatprep.subr.mxu0 0.0
      %1514 = vmatpush1.msra.mxu0 0.0
      %1515 = vmatprep.subr.mxu0 0.0
      %1516 = vmatpush1.msra.mxu0 0.0
      %1517 = vmatprep.subr.mxu0 0.0
      %1518 = vmatpush1.msra.mxu0 0.0
      %1519 = vmatprep.mubr.f32.mxu0 0.0
      %1520 = vmatmul.mubr.f32.gmra.mrb[0].mxu0 %v1295
      %v1521 = vpop.f32.mrb[0].mxu0
      %v1522 = vadd.f32 %v1454, %v1521
      %v1523 = vpop.f32.mrb[0].mxu0
      %1524 = vdwg.mxu0
      %v1525 = vmul.f32 %v1373, %v1522
      %v1526 = vadd.f32 %v933, %v1525
      %v1527 = vtanh.pop %v1526
      %v1528 = vsub.f32 1.0, %v1450
      %v1529 = vmul.f32 %v1528, %v1527
      %v1530 = vmul.f32 %v1450, %v626
      %v1531 = vadd.f32 %v1529, %v1530
      %v1533 = vsel %vm1293, %v627, 0
      %1535 = vmatprep.subr.mxu0 0.0
      %1536 = vmatpush1.msra.mxu0 %v1283
      %1537 = vmatprep.subr.mxu0 0.0
      %1538 = vmatpush1.msra.mxu0 %v1284
      %1539 = vmatprep.subr.mxu0 0.0
      %1540 = vmatpush1.msra.mxu0 0.0
      %1541 = vmatprep.subr.mxu0 0.0
      %1542 = vmatpush1.msra.mxu0 0.0
      %1543 = vmatprep.subr.mxu0 0.0
      %1544 = vmatpush1.msra.mxu0 0.0
      %1545 = vmatprep.subr.mxu0 0.0
      %1546 = vmatpush1.msra.mxu0 0.0
      %1547 = vmatprep.subr.mxu0 0.0
      %1548 = vmatpush1.msra.mxu0 0.0
      %1549 = vmatprep.subr.mxu0 0.0
      %1550 = vmatpush1.msra.mxu0 0.0
      %1551 = vmatprep.subr.mxu0 0.0
      %1552 = vmatpush1.msra.mxu0 0.0
      %1553 = vmatprep.subr.mxu0 0.0
      %1554 = vmatpush1.msra.mxu0 0.0
      %1555 = vmatprep.subr.mxu0 0.0
      %1556 = vmatpush1.msra.mxu0 0.0
      %1557 = vmatprep.subr.mxu0 0.0
      %1558 = vmatpush1.msra.mxu0 0.0
      %1559 = vmatprep.subr.mxu0 0.0
      %1560 = vmatpush1.msra.mxu0 0.0
      %1561 = vmatprep.subr.mxu0 0.0
      %1562 = vmatpush1.msra.mxu0 0.0
      %1563 = vmatprep.subr.mxu0 0.0
      %1564 = vmatpush1.msra.mxu0 0.0
      %1565 = vmatprep.subr.mxu0 0.0
      %1566 = vmatpush1.msra.mxu0 0.0
      %1567 = vmatprep.subr.mxu0 0.0
      %1568 = vmatpush1.msra.mxu0 0.0
      %1569 = vmatprep.subr.mxu0 0.0
      %1570 = vmatpush1.msra.mxu0 0.0
      %1571 = vmatprep.subr.mxu0 0.0
      %1572 = vmatpush1.msra.mxu0 0.0
      %1573 = vmatprep.subr.mxu0 0.0
      %1574 = vmatpush1.msra.mxu0 0.0
      %1575 = vmatprep.subr.mxu0 0.0
      %1576 = vmatpush1.msra.mxu0 0.0
      %1577 = vmatprep.subr.mxu0 0.0
      %1578 = vmatpush1.msra.mxu0 0.0
      %1579 = vmatprep.subr.mxu0 0.0
      %1580 = vmatpush1.msra.mxu0 0.0
      %1581 = vmatprep.subr.mxu0 0.0
      %1582 = vmatpush1.msra.mxu0 0.0
      %1583 = vmatprep.subr.mxu0 0.0
      %1584 = vmatpush1.msra.mxu0 0.0
      %1585 = vmatprep.subr.mxu0 0.0
      %1586 = vmatpush1.msra.mxu0 0.0
      %1587 = vmatprep.subr.mxu0 0.0
      %1588 = vmatpush1.msra.mxu0 0.0
      %1589 = vmatprep.subr.mxu0 0.0
      %1590 = vmatpush1.msra.mxu0 0.0
      %1591 = vmatprep.subr.mxu0 0.0
      %1592 = vmatpush1.msra.mxu0 0.0
      %1593 = vmatprep.subr.mxu0 0.0
      %1594 = vmatpush1.msra.mxu0 0.0
      %1595 = vmatprep.subr.mxu0 0.0
      %1596 = vmatpush1.msra.mxu0 0.0
      %1597 = vmatprep.subr.mxu0 0.0
      %1598 = vmatpush1.msra.mxu0 0.0
      %1599 = vmatprep.mubr.f32.mxu0 0.0
      %1600 = vmatmul.mubr.f32.gmra.mrb[0].mxu0 %v1533
      %v1601 = vpop.f32.mrb[0].mxu0
      %v1602 = vadd.f32 0.0, %v1601
      %v1603 = vpop.f32.mrb[0].mxu0
      %1604 = vdwg.mxu0
      %v1605 = vadd.f32 %v1062, %v1602
      %v1606 = vxor.u32 %v1605, 2147483648
      %v1607 = vmul.f32 %v1606, 1.442695
      %v1608 = vpow.pop %v1607
      %v1609 = vadd.f32 %v1608, 1.0
      %v1610 = vrcp.pop %v1609
      %v1611 = vmul.f32 1.0, %v1610
      %1612 = vmatprep.subr.mxu0 0.0
      %1613 = vmatpush1.msra.mxu0 %v1286
      %1614 = vmatprep.subr.mxu0 0.0
      %1615 = vmatpush1.msra.mxu0 %v1287
      %1616 = vmatprep.subr.mxu0 0.0
      %1617 = vmatpush1.msra.mxu0 0.0
      %1618 = vmatprep.subr.mxu0 0.0
      %1619 = vmatpush1.msra.mxu0 0.0
      %1620 = vmatprep.subr.mxu0 0.0
      %1621 = vmatpush1.msra.mxu0 0.0
      %1622 = vmatprep.subr.mxu0 0.0
      %1623 = vmatpush1.msra.mxu0 0.0
      %1624 = vmatprep.subr.mxu0 0.0
      %1625 = vmatpush1.msra.mxu0 0.0
      %1626 = vmatprep.subr.mxu0 0.0
      %1627 = vmatpush1.msra.mxu0 0.0
      %1628 = vmatprep.subr.mxu0 0.0
      %1629 = vmatpush1.msra.mxu0 0.0
      %1630 = vmatprep.subr.mxu0 0.0
      %1631 = vmatpush1.msra.mxu0 0.0
      %1632 = vmatprep.subr.mxu0 0.0
      %1633 = vmatpush1.msra.mxu0 0.0
      %1634 = vmatprep.subr.mxu0 0.0
      %1635 = vmatpush1.msra.mxu0 0.0
      %1636 = vmatprep.subr.mxu0 0.0
      %1637 = vmatpush1.msra.mxu0 0.0
      %1638 = vmatprep.subr.mxu0 0.0
      %1639 = vmatpush1.msra.mxu0 0.0
      %1640 = vmatprep.subr.mxu0 0.0
      %1641 = vmatpush1.msra.mxu0 0.0
      %1642 = vmatprep.subr.mxu0 0.0
      %1643 = vmatpush1.msra.mxu0 0.0
      %1644 = vmatprep.subr.mxu0 0.0
      %1645 = vmatpush1.msra.mxu0 0.0
      %1646 = vmatprep.subr.mxu0 0.0
      %1647 = vmatpush1.msra.mxu0 0.0
      %1648 = vmatprep.subr.mxu0 0.0
      %1649 = vmatpush1.msra.mxu0 0.0
      %1650 = vmatprep.subr.mxu0 0.0
      %1651 = vmatpush1.msra.mxu0 0.0
      %1652 = vmatprep.subr.mxu0 0.0
      %1653 = vmatpush1.msra.mxu0 0.0
      %1654 = vmatprep.subr.mxu0 0.0
      %1655 = vmatpush1.msra.mxu0 0.0
      %1656 = vmatprep.subr.mxu0 0.0
      %1657 = vmatpush1.msra.mxu0 0.0
      %1658 = vmatprep.subr.mxu0 0.0
      %1659 = vmatpush1.msra.mxu0 0.0
      %1660 = vmatprep.subr.mxu0 0.0
      %1661 = vmatpush1.msra.mxu0 0.0
      %1662 = vmatprep.subr.mxu0 0.0
      %1663 = vmatpush1.msra.mxu0 0.0
      %1664 = vmatprep.subr.mxu0 0.0
      %1665 = vmatpush1.msra.mxu0 0.0
      %1666 = vmatprep.subr.mxu0 0.0
      %1667 = vmatpush1.msra.mxu0 0.0
      %1668 = vmatprep.subr.mxu0 0.0
      %1669 = vmatpush1.msra.mxu0 0.0
      %1670 = vmatprep.subr.mxu0 0.0
      %1671 = vmatpush1.msra.mxu0 0.0
      %1672 = vmatprep.subr.mxu0 0.0
      %1673 = vmatpush1.msra.mxu0 0.0
      %1674 = vmatprep.subr.mxu0 0.0
      %1675 = vmatpush1.msra.mxu0 0.0
      %1676 = vmatprep.mubr.f32.mxu0 0.0
      %1677 = vmatmul.mubr.f32.gmra.mrb[0].mxu0 %v1533
      %v1678 = vpop.f32.mrb[0].mxu0
      %v1679 = vadd.f32 0.0, %v1678
      %v1680 = vpop.f32.mrb[0].mxu0
      %1681 = vdwg.mxu0
      %v1682 = vadd.f32 %v1167, %v1679
      %v1683 = vxor.u32 %v1682, 2147483648
      %v1684 = vmul.f32 %v1683, 1.442695
      %v1685 = vpow.pop %v1684
      %v1686 = vadd.f32 %v1685, 1.0
      %v1687 = vrcp.pop %v1686
      %v1688 = vmul.f32 1.0, %v1687
      %v1689 = vlaneseq
      %v1690 = vshrl.u32 %v1689, 7
      %v1691 = vsub.s32 0, %v1690
      %v1692 = vrot.slane %v1292, %v1691
      %1693 = vmatprep.subr.mxu0 0.0
      %1694 = vmatpush1.msra.mxu0 %v1289
      %1695 = vmatprep.subr.mxu0 0.0
      %1696 = vmatpush1.msra.mxu0 %v1290
      %1697 = vmatprep.subr.mxu0 0.0
      %1698 = vmatpush1.msra.mxu0 0.0
      %1699 = vmatprep.subr.mxu0 0.0
      %1700 = vmatpush1.msra.mxu0 0.0
      %1701 = vmatprep.subr.mxu0 0.0
      %1702 = vmatpush1.msra.mxu0 0.0
      %1703 = vmatprep.subr.mxu0 0.0
      %1704 = vmatpush1.msra.mxu0 0.0
      %1705 = vmatprep.subr.mxu0 0.0
      %1706 = vmatpush1.msra.mxu0 0.0
      %1707 = vmatprep.subr.mxu0 0.0
      %1708 = vmatpush1.msra.mxu0 0.0
      %1709 = vmatprep.subr.mxu0 0.0
      %1710 = vmatpush1.msra.mxu0 0.0
      %1711 = vmatprep.subr.mxu0 0.0
      %1712 = vmatpush1.msra.mxu0 0.0
      %1713 = vmatprep.subr.mxu0 0.0
      %1714 = vmatpush1.msra.mxu0 0.0
      %1715 = vmatprep.subr.mxu0 0.0
      %1716 = vmatpush1.msra.mxu0 0.0
      %1717 = vmatprep.subr.mxu0 0.0
      %1718 = vmatpush1.msra.mxu0 0.0
      %1719 = vmatprep.subr.mxu0 0.0
      %1720 = vmatpush1.msra.mxu0 0.0
      %1721 = vmatprep.subr.mxu0 0.0
      %1722 = vmatpush1.msra.mxu0 0.0
      %1723 = vmatprep.subr.mxu0 0.0
      %1724 = vmatpush1.msra.mxu0 0.0
      %1725 = vmatprep.subr.mxu0 0.0
      %1726 = vmatpush1.msra.mxu0 0.0
      %1727 = vmatprep.subr.mxu0 0.0
      %1728 = vmatpush1.msra.mxu0 0.0
      %1729 = vmatprep.subr.mxu0 0.0
      %1730 = vmatpush1.msra.mxu0 0.0
      %1731 = vmatprep.subr.mxu0 0.0
      %1732 = vmatpush1.msra.mxu0 0.0
      %1733 = vmatprep.subr.mxu0 0.0
      %1734 = vmatpush1.msra.mxu0 0.0
      %1735 = vmatprep.subr.mxu0 0.0
      %1736 = vmatpush1.msra.mxu0 0.0
      %1737 = vmatprep.subr.mxu0 0.0
      %1738 = vmatpush1.msra.mxu0 0.0
      %1739 = vmatprep.subr.mxu0 0.0
      %1740 = vmatpush1.msra.mxu0 0.0
      %1741 = vmatprep.subr.mxu0 0.0
      %1742 = vmatpush1.msra.mxu0 0.0
      %1743 = vmatprep.subr.mxu0 0.0
      %1744 = vmatpush1.msra.mxu0 0.0
      %1745 = vmatprep.subr.mxu0 0.0
      %1746 = vmatpush1.msra.mxu0 0.0
      %1747 = vmatprep.subr.mxu0 0.0
      %1748 = vmatpush1.msra.mxu0 0.0
      %1749 = vmatprep.subr.mxu0 0.0
      %1750 = vmatpush1.msra.mxu0 0.0
      %1751 = vmatprep.subr.mxu0 0.0
      %1752 = vmatpush1.msra.mxu0 0.0
      %1753 = vmatprep.subr.mxu0 0.0
      %1754 = vmatpush1.msra.mxu0 0.0
      %1755 = vmatprep.subr.mxu0 0.0
      %1756 = vmatpush1.msra.mxu0 0.0
      %1757 = vmatprep.mubr.f32.mxu0 0.0
      %1758 = vmatmul.mubr.f32.gmra.mrb[0].mxu0 %v1533
      %v1759 = vpop.f32.mrb[0].mxu0
      %v1760 = vadd.f32 %v1692, %v1759
      %v1761 = vpop.f32.mrb[0].mxu0
      %1762 = vdwg.mxu0
      %v1763 = vmul.f32 %v1611, %v1760
      %v1764 = vadd.f32 %v1272, %v1763
      %v1765 = vtanh.pop %v1764
      %v1766 = vsub.f32 1.0, %v1688
      %v1767 = vmul.f32 %v1766, %v1765
      %v1768 = vmul.f32 %v1688, %v627
      %v1769 = vadd.f32 %v1767, %v1768
      %v1771 = vsel %vm1293, %v1531, 0
      %1773 = vmatprep.subr.mxu0 0.0
      %1774 = vmatpush1.msra.mxu0 %v1275
      %1775 = vmatprep.subr.mxu0 0.0
      %1776 = vmatpush1.msra.mxu0 %v1276
      %1777 = vmatprep.subr.mxu0 0.0
      %1778 = vmatpush1.msra.mxu0 0.0
      %1779 = vmatprep.subr.mxu0 0.0
      %1780 = vmatpush1.msra.mxu0 0.0
      %1781 = vmatprep.subr.mxu0 0.0
      %1782 = vmatpush1.msra.mxu0 0.0
      %1783 = vmatprep.subr.mxu0 0.0
      %1784 = vmatpush1.msra.mxu0 0.0
      %1785 = vmatprep.subr.mxu0 0.0
      %1786 = vmatpush1.msra.mxu0 0.0
      %1787 = vmatprep.subr.mxu0 0.0
      %1788 = vmatpush1.msra.mxu0 0.0
      %1789 = vmatprep.subr.mxu0 0.0
      %1790 = vmatpush1.msra.mxu0 0.0
      %1791 = vmatprep.subr.mxu0 0.0
      %1792 = vmatpush1.msra.mxu0 0.0
      %1793 = vmatprep.subr.mxu0 0.0
      %1794 = vmatpush1.msra.mxu0 0.0
      %1795 = vmatprep.subr.mxu0 0.0
      %1796 = vmatpush1.msra.mxu0 0.0
      %1797 = vmatprep.subr.mxu0 0.0
      %1798 = vmatpush1.msra.mxu0 0.0
      %1799 = vmatprep.subr.mxu0 0.0
      %1800 = vmatpush1.msra.mxu0 0.0
      %1801 = vmatprep.subr.mxu0 0.0
      %1802 = vmatpush1.msra.mxu0 0.0
      %1803 = vmatprep.subr.mxu0 0.0
      %1804 = vmatpush1.msra.mxu0 0.0
      %1805 = vmatprep.subr.mxu0 0.0
      %1806 = vmatpush1.msra.mxu0 0.0
      %1807 = vmatprep.subr.mxu0 0.0
      %1808 = vmatpush1.msra.mxu0 0.0
      %1809 = vmatprep.subr.mxu0 0.0
      %1810 = vmatpush1.msra.mxu0 0.0
      %1811 = vmatprep.subr.mxu0 0.0
      %1812 = vmatpush1.msra.mxu0 0.0
      %1813 = vmatprep.subr.mxu0 0.0
      %1814 = vmatpush1.msra.mxu0 0.0
      %1815 = vmatprep.subr.mxu0 0.0
      %1816 = vmatpush1.msra.mxu0 0.0
      %1817 = vmatprep.subr.mxu0 0.0
      %1818 = vmatpush1.msra.mxu0 0.0
      %1819 = vmatprep.subr.mxu0 0.0
      %1820 = vmatpush1.msra.mxu0 0.0
      %1821 = vmatprep.subr.mxu0 0.0
      %1822 = vmatpush1.msra.mxu0 0.0
      %1823 = vmatprep.subr.mxu0 0.0
      %1824 = vmatpush1.msra.mxu0 0.0
      %1825 = vmatprep.subr.mxu0 0.0
      %1826 = vmatpush1.msra.mxu0 0.0
      %1827 = vmatprep.subr.mxu0 0.0
      %1828 = vmatpush1.msra.mxu0 0.0
      %1829 = vmatprep.subr.mxu0 0.0
      %1830 = vmatpush1.msra.mxu0 0.0
      %1831 = vmatprep.subr.mxu0 0.0
      %1832 = vmatpush1.msra.mxu0 0.0
      %1833 = vmatprep.subr.mxu0 0.0
      %1834 = vmatpush1.msra.mxu0 0.0
      %1835 = vmatprep.subr.mxu0 0.0
      %1836 = vmatpush1.msra.mxu0 0.0
      %1837 = vmatprep.mubr.f32.mxu0 0.0
      %1838 = vmatmul.mubr.f32.gmra.mrb[0].mxu0 %v1771
      %v1839 = vpop.f32.mrb[0].mxu0
      %v1840 = vadd.f32 0.0, %v1839
      %v1841 = vpop.f32.mrb[0].mxu0
      %1842 = vdwg.mxu0
      %v1843 = vadd.f32 %v728, %v1840
      %v1844 = vxor.u32 %v1843, 2147483648
      %v1845 = vmul.f32 %v1844, 1.442695
      %v1846 = vpow.pop %v1845
      %v1847 = vadd.f32 %v1846, 1.0
      %v1848 = vrcp.pop %v1847
      %v1849 = vmul.f32 1.0, %v1848
      %1850 = vmatprep.subr.mxu0 0.0
      %1851 = vmatpush1.msra.mxu0 %v1278
      %1852 = vmatprep.subr.mxu0 0.0
      %1853 = vmatpush1.msra.mxu0 %v1279
      %1854 = vmatprep.subr.mxu0 0.0
      %1855 = vmatpush1.msra.mxu0 0.0
      %1856 = vmatprep.subr.mxu0 0.0
      %1857 = vmatpush1.msra.mxu0 0.0
      %1858 = vmatprep.subr.mxu0 0.0
      %1859 = vmatpush1.msra.mxu0 0.0
      %1860 = vmatprep.subr.mxu0 0.0
      %1861 = vmatpush1.msra.mxu0 0.0
      %1862 = vmatprep.subr.mxu0 0.0
      %1863 = vmatpush1.msra.mxu0 0.0
      %1864 = vmatprep.subr.mxu0 0.0
      %1865 = vmatpush1.msra.mxu0 0.0
      %1866 = vmatprep.subr.mxu0 0.0
      %1867 = vmatpush1.msra.mxu0 0.0
      %1868 = vmatprep.subr.mxu0 0.0
      %1869 = vmatpush1.msra.mxu0 0.0
      %1870 = vmatprep.subr.mxu0 0.0
      %1871 = vmatpush1.msra.mxu0 0.0
      %1872 = vmatprep.subr.mxu0 0.0
      %1873 = vmatpush1.msra.mxu0 0.0
      %1874 = vmatprep.subr.mxu0 0.0
      %1875 = vmatpush1.msra.mxu0 0.0
      %1876 = vmatprep.subr.mxu0 0.0
      %1877 = vmatpush1.msra.mxu0 0.0
      %1878 = vmatprep.subr.mxu0 0.0
      %1879 = vmatpush1.msra.mxu0 0.0
      %1880 = vmatprep.subr.mxu0 0.0
      %1881 = vmatpush1.msra.mxu0 0.0
      %1882 = vmatprep.subr.mxu0 0.0
      %1883 = vmatpush1.msra.mxu0 0.0
      %1884 = vmatprep.subr.mxu0 0.0
      %1885 = vmatpush1.msra.mxu0 0.0
      %1886 = vmatprep.subr.mxu0 0.0
      %1887 = vmatpush1.msra.mxu0 0.0
      %1888 = vmatprep.subr.mxu0 0.0
      %1889 = vmatpush1.msra.mxu0 0.0
      %1890 = vmatprep.subr.mxu0 0.0
      %1891 = vmatpush1.msra.mxu0 0.0
      %1892 = vmatprep.subr.mxu0 0.0
      %1893 = vmatpush1.msra.mxu0 0.0
      %1894 = vmatprep.subr.mxu0 0.0
      %1895 = vmatpush1.msra.mxu0 0.0
      %1896 = vmatprep.subr.mxu0 0.0
      %1897 = vmatpush1.msra.mxu0 0.0
      %1898 = vmatprep.subr.mxu0 0.0
      %1899 = vmatpush1.msra.mxu0 0.0
      %1900 = vmatprep.subr.mxu0 0.0
      %1901 = vmatpush1.msra.mxu0 0.0
      %1902 = vmatprep.subr.mxu0 0.0
      %1903 = vmatpush1.msra.mxu0 0.0
      %1904 = vmatprep.subr.mxu0 0.0
      %1905 = vmatpush1.msra.mxu0 0.0
      %1906 = vmatprep.subr.mxu0 0.0
      %1907 = vmatpush1.msra.mxu0 0.0
      %1908 = vmatprep.subr.mxu0 0.0
      %1909 = vmatpush1.msra.mxu0 0.0
      %1910 = vmatprep.subr.mxu0 0.0
      %1911 = vmatpush1.msra.mxu0 0.0
      %1912 = vmatprep.subr.mxu0 0.0
      %1913 = vmatpush1.msra.mxu0 0.0
      %1914 = vmatprep.mubr.f32.mxu0 0.0
      %1915 = vmatmul.mubr.f32.gmra.mrb[0].mxu0 %v1771
      %v1916 = vpop.f32.mrb[0].mxu0
      %v1917 = vadd.f32 0.0, %v1916
      %v1918 = vpop.f32.mrb[0].mxu0
      %1919 = vdwg.mxu0
      %v1920 = vadd.f32 %v833, %v1917
      %v1921 = vxor.u32 %v1920, 2147483648
      %v1922 = vmul.f32 %v1921, 1.442695
      %v1923 = vpow.pop %v1922
      %v1924 = vadd.f32 %v1923, 1.0
      %v1925 = vrcp.pop %v1924
      %v1926 = vmul.f32 1.0, %v1925
      %1927 = vmatprep.subr.mxu0 0.0
      %1928 = vmatpush1.msra.mxu0 %v1281
      %1929 = vmatprep.subr.mxu0 0.0
      %1930 = vmatpush1.msra.mxu0 %v1282
      %1931 = vmatprep.subr.mxu0 0.0
      %1932 = vmatpush1.msra.mxu0 0.0
      %1933 = vmatprep.subr.mxu0 0.0
      %1934 = vmatpush1.msra.mxu0 0.0
      %1935 = vmatprep.subr.mxu0 0.0
      %1936 = vmatpush1.msra.mxu0 0.0
      %1937 = vmatprep.subr.mxu0 0.0
      %1938 = vmatpush1.msra.mxu0 0.0
      %1939 = vmatprep.subr.mxu0 0.0
      %1940 = vmatpush1.msra.mxu0 0.0
      %1941 = vmatprep.subr.mxu0 0.0
      %1942 = vmatpush1.msra.mxu0 0.0
      %1943 = vmatprep.subr.mxu0 0.0
      %1944 = vmatpush1.msra.mxu0 0.0
      %1945 = vmatprep.subr.mxu0 0.0
      %1946 = vmatpush1.msra.mxu0 0.0
      %1947 = vmatprep.subr.mxu0 0.0
      %1948 = vmatpush1.msra.mxu0 0.0
      %1949 = vmatprep.subr.mxu0 0.0
      %1950 = vmatpush1.msra.mxu0 0.0
      %1951 = vmatprep.subr.mxu0 0.0
      %1952 = vmatpush1.msra.mxu0 0.0
      %1953 = vmatprep.subr.mxu0 0.0
      %1954 = vmatpush1.msra.mxu0 0.0
      %1955 = vmatprep.subr.mxu0 0.0
      %1956 = vmatpush1.msra.mxu0 0.0
      %1957 = vmatprep.subr.mxu0 0.0
      %1958 = vmatpush1.msra.mxu0 0.0
      %1959 = vmatprep.subr.mxu0 0.0
      %1960 = vmatpush1.msra.mxu0 0.0
      %1961 = vmatprep.subr.mxu0 0.0
      %1962 = vmatpush1.msra.mxu0 0.0
      %1963 = vmatprep.subr.mxu0 0.0
      %1964 = vmatpush1.msra.mxu0 0.0
      %1965 = vmatprep.subr.mxu0 0.0
      %1966 = vmatpush1.msra.mxu0 0.0
      %1967 = vmatprep.subr.mxu0 0.0
      %1968 = vmatpush1.msra.mxu0 0.0
      %1969 = vmatprep.subr.mxu0 0.0
      %1970 = vmatpush1.msra.mxu0 0.0
      %1971 = vmatprep.subr.mxu0 0.0
      %1972 = vmatpush1.msra.mxu0 0.0
      %1973 = vmatprep.subr.mxu0 0.0
      %1974 = vmatpush1.msra.mxu0 0.0
      %1975 = vmatprep.subr.mxu0 0.0
      %1976 = vmatpush1.msra.mxu0 0.0
      %1977 = vmatprep.subr.mxu0 0.0
      %1978 = vmatpush1.msra.mxu0 0.0
      %1979 = vmatprep.subr.mxu0 0.0
      %1980 = vmatpush1.msra.mxu0 0.0
      %1981 = vmatprep.subr.mxu0 0.0
      %1982 = vmatpush1.msra.mxu0 0.0
      %1983 = vmatprep.subr.mxu0 0.0
      %1984 = vmatpush1.msra.mxu0 0.0
      %1985 = vmatprep.subr.mxu0 0.0
      %1986 = vmatpush1.msra.mxu0 0.0
      %1987 = vmatprep.subr.mxu0 0.0
      %1988 = vmatpush1.msra.mxu0 0.0
      %1989 = vmatprep.subr.mxu0 0.0
      %1990 = vmatpush1.msra.mxu0 0.0
      %1991 = vmatprep.mubr.f32.mxu0 0.0
      %1992 = vmatmul.mubr.f32.gmra.mrb[0].mxu0 %v1771
      %v1993 = vpop.f32.mrb[0].mxu0
      %v1994 = vadd.f32 %v1454, %v1993
      %v1995 = vpop.f32.mrb[0].mxu0
      %1996 = vdwg.mxu0
      %v1997 = vmul.f32 %v1849, %v1994
      %v1998 = vadd.f32 %v938, %v1997
      %v1999 = vtanh.pop %v1998
      %v2000 = vsub.f32 1.0, %v1926
      %v2001 = vmul.f32 %v2000, %v1999
      %v2002 = vmul.f32 %v1926, %v1531
      %v2003 = vadd.f32 %v2001, %v2002
      %v2005 = vsel %vm1293, %v1769, 0
      %2007 = vmatprep.subr.mxu0 0.0
      %2008 = vmatpush1.msra.mxu0 %v1283
      %2009 = vmatprep.subr.mxu0 0.0
      %2010 = vmatpush1.msra.mxu0 %v1284
      %2011 = vmatprep.subr.mxu0 0.0
      %2012 = vmatpush1.msra.mxu0 0.0
      %2013 = vmatprep.subr.mxu0 0.0
      %2014 = vmatpush1.msra.mxu0 0.0
      %2015 = vmatprep.subr.mxu0 0.0
      %2016 = vmatpush1.msra.mxu0 0.0
      %2017 = vmatprep.subr.mxu0 0.0
      %2018 = vmatpush1.msra.mxu0 0.0
      %2019 = vmatprep.subr.mxu0 0.0
      %2020 = vmatpush1.msra.mxu0 0.0
      %2021 = vmatprep.subr.mxu0 0.0
      %2022 = vmatpush1.msra.mxu0 0.0
      %2023 = vmatprep.subr.mxu0 0.0
      %2024 = vmatpush1.msra.mxu0 0.0
      %2025 = vmatprep.subr.mxu0 0.0
      %2026 = vmatpush1.msra.mxu0 0.0
      %2027 = vmatprep.subr.mxu0 0.0
      %2028 = vmatpush1.msra.mxu0 0.0
      %2029 = vmatprep.subr.mxu0 0.0
      %2030 = vmatpush1.msra.mxu0 0.0
      %2031 = vmatprep.subr.mxu0 0.0
      %2032 = vmatpush1.msra.mxu0 0.0
      %2033 = vmatprep.subr.mxu0 0.0
      %2034 = vmatpush1.msra.mxu0 0.0
      %2035 = vmatprep.subr.mxu0 0.0
      %2036 = vmatpush1.msra.mxu0 0.0
      %2037 = vmatprep.subr.mxu0 0.0
      %2038 = vmatpush1.msra.mxu0 0.0
      %2039 = vmatprep.subr.mxu0 0.0
      %2040 = vmatpush1.msra.mxu0 0.0
      %2041 = vmatprep.subr.mxu0 0.0
      %2042 = vmatpush1.msra.mxu0 0.0
      %2043 = vmatprep.subr.mxu0 0.0
      %2044 = vmatpush1.msra.mxu0 0.0
      %2045 = vmatprep.subr.mxu0 0.0
      %2046 = vmatpush1.msra.mxu0 0.0
      %2047 = vmatprep.subr.mxu0 0.0
      %2048 = vmatpush1.msra.mxu0 0.0
      %2049 = vmatprep.subr.mxu0 0.0
      %2050 = vmatpush1.msra.mxu0 0.0
      %2051 = vmatprep.subr.mxu0 0.0
      %2052 = vmatpush1.msra.mxu0 0.0
      %2053 = vmatprep.subr.mxu0 0.0
      %2054 = vmatpush1.msra.mxu0 0.0
      %2055 = vmatprep.subr.mxu0 0.0
      %2056 = vmatpush1.msra.mxu0 0.0
      %2057 = vmatprep.subr.mxu0 0.0
      %2058 = vmatpush1.msra.mxu0 0.0
      %2059 = vmatprep.subr.mxu0 0.0
      %2060 = vmatpush1.msra.mxu0 0.0
      %2061 = vmatprep.subr.mxu0 0.0
      %2062 = vmatpush1.msra.mxu0 0.0
      %2063 = vmatprep.subr.mxu0 0.0
      %2064 = vmatpush1.msra.mxu0 0.0
      %2065 = vmatprep.subr.mxu0 0.0
      %2066 = vmatpush1.msra.mxu0 0.0
      %2067 = vmatprep.subr.mxu0 0.0
      %2068 = vmatpush1.msra.mxu0 0.0
      %2069 = vmatprep.subr.mxu0 0.0
      %2070 = vmatpush1.msra.mxu0 0.0
      %2071 = vmatprep.mubr.f32.mxu0 0.0
      %2072 = vmatmul.mubr.f32.gmra.mrb[0].mxu0 %v2005
      %v2073 = vpop.f32.mrb[0].mxu0
      %v2074 = vadd.f32 0.0, %v2073
      %v2075 = vpop.f32.mrb[0].mxu0
      %2076 = vdwg.mxu0
      %v2077 = vadd.f32 %v1057, %v2074
      %v2078 = vxor.u32 %v2077, 2147483648
      %v2079 = vmul.f32 %v2078, 1.442695
      %v2080 = vpow.pop %v2079
      %v2081 = vadd.f32 %v2080, 1.0
      %v2082 = vrcp.pop %v2081
      %v2083 = vmul.f32 1.0, %v2082
      %2084 = vmatprep.subr.mxu0 0.0
      %2085 = vmatpush1.msra.mxu0 %v1286
      %2086 = vmatprep.subr.mxu0 0.0
      %2087 = vmatpush1.msra.mxu0 %v1287
      %2088 = vmatprep.subr.mxu0 0.0
      %2089 = vmatpush1.msra.mxu0 0.0
      %2090 = vmatprep.subr.mxu0 0.0
      %2091 = vmatpush1.msra.mxu0 0.0
      %2092 = vmatprep.subr.mxu0 0.0
      %2093 = vmatpush1.msra.mxu0 0.0
      %2094 = vmatprep.subr.mxu0 0.0
      %2095 = vmatpush1.msra.mxu0 0.0
      %2096 = vmatprep.subr.mxu0 0.0
      %2097 = vmatpush1.msra.mxu0 0.0
      %2098 = vmatprep.subr.mxu0 0.0
      %2099 = vmatpush1.msra.mxu0 0.0
      %2100 = vmatprep.subr.mxu0 0.0
      %2101 = vmatpush1.msra.mxu0 0.0
      %2102 = vmatprep.subr.mxu0 0.0
      %2103 = vmatpush1.msra.mxu0 0.0
      %2104 = vmatprep.subr.mxu0 0.0
      %2105 = vmatpush1.msra.mxu0 0.0
      %2106 = vmatprep.subr.mxu0 0.0
      %2107 = vmatpush1.msra.mxu0 0.0
      %2108 = vmatprep.subr.mxu0 0.0
      %2109 = vmatpush1.msra.mxu0 0.0
      %2110 = vmatprep.subr.mxu0 0.0
      %2111 = vmatpush1.msra.mxu0 0.0
      %2112 = vmatprep.subr.mxu0 0.0
      %2113 = vmatpush1.msra.mxu0 0.0
      %2114 = vmatprep.subr.mxu0 0.0
      %2115 = vmatpush1.msra.mxu0 0.0
      %2116 = vmatprep.subr.mxu0 0.0
      %2117 = vmatpush1.msra.mxu0 0.0
      %2118 = vmatprep.subr.mxu0 0.0
      %2119 = vmatpush1.msra.mxu0 0.0
      %2120 = vmatprep.subr.mxu0 0.0
      %2121 = vmatpush1.msra.mxu0 0.0
      %2122 = vmatprep.subr.mxu0 0.0
      %2123 = vmatpush1.msra.mxu0 0.0
      %2124 = vmatprep.subr.mxu0 0.0
      %2125 = vmatpush1.msra.mxu0 0.0
      %2126 = vmatprep.subr.mxu0 0.0
      %2127 = vmatpush1.msra.mxu0 0.0
      %2128 = vmatprep.subr.mxu0 0.0
      %2129 = vmatpush1.msra.mxu0 0.0
      %2130 = vmatprep.subr.mxu0 0.0
      %2131 = vmatpush1.msra.mxu0 0.0
      %2132 = vmatprep.subr.mxu0 0.0
      %2133 = vmatpush1.msra.mxu0 0.0
      %2134 = vmatprep.subr.mxu0 0.0
      %2135 = vmatpush1.msra.mxu0 0.0
      %2136 = vmatprep.subr.mxu0 0.0
      %2137 = vmatpush1.msra.mxu0 0.0
      %2138 = vmatprep.subr.mxu0 0.0
      %2139 = vmatpush1.msra.mxu0 0.0
      %2140 = vmatprep.subr.mxu0 0.0
      %2141 = vmatpush1.msra.mxu0 0.0
      %2142 = vmatprep.subr.mxu0 0.0
      %2143 = vmatpush1.msra.mxu0 0.0
      %2144 = vmatprep.subr.mxu0 0.0
      %2145 = vmatpush1.msra.mxu0 0.0
      %2146 = vmatprep.subr.mxu0 0.0
      %2147 = vmatpush1.msra.mxu0 0.0
      %2148 = vmatprep.mubr.f32.mxu0 0.0
      %2149 = vmatmul.mubr.f32.gmra.mrb[0].mxu0 %v2005
      %v2150 = vpop.f32.mrb[0].mxu0
      %v2151 = vadd.f32 0.0, %v2150
      %v2152 = vpop.f32.mrb[0].mxu0
      %2153 = vdwg.mxu0
      %v2154 = vadd.f32 %v1162, %v2151
      %v2155 = vxor.u32 %v2154, 2147483648
      %v2156 = vmul.f32 %v2155, 1.442695
      %v2157 = vpow.pop %v2156
      %v2158 = vadd.f32 %v2157, 1.0
      %v2159 = vrcp.pop %v2158
      %v2160 = vmul.f32 1.0, %v2159
      %2161 = vmatprep.subr.mxu0 0.0
      %2162 = vmatpush1.msra.mxu0 %v1289
      %2163 = vmatprep.subr.mxu0 0.0
      %2164 = vmatpush1.msra.mxu0 %v1290
      %2165 = vmatprep.subr.mxu0 0.0
      %2166 = vmatpush1.msra.mxu0 0.0
      %2167 = vmatprep.subr.mxu0 0.0
      %2168 = vmatpush1.msra.mxu0 0.0
      %2169 = vmatprep.subr.mxu0 0.0
      %2170 = vmatpush1.msra.mxu0 0.0
      %2171 = vmatprep.subr.mxu0 0.0
      %2172 = vmatpush1.msra.mxu0 0.0
      %2173 = vmatprep.subr.mxu0 0.0
      %2174 = vmatpush1.msra.mxu0 0.0
      %2175 = vmatprep.subr.mxu0 0.0
      %2176 = vmatpush1.msra.mxu0 0.0
      %2177 = vmatprep.subr.mxu0 0.0
      %2178 = vmatpush1.msra.mxu0 0.0
      %2179 = vmatprep.subr.mxu0 0.0
      %2180 = vmatpush1.msra.mxu0 0.0
      %2181 = vmatprep.subr.mxu0 0.0
      %2182 = vmatpush1.msra.mxu0 0.0
      %2183 = vmatprep.subr.mxu0 0.0
      %2184 = vmatpush1.msra.mxu0 0.0
      %2185 = vmatprep.subr.mxu0 0.0
      %2186 = vmatpush1.msra.mxu0 0.0
      %2187 = vmatprep.subr.mxu0 0.0
      %2188 = vmatpush1.msra.mxu0 0.0
      %2189 = vmatprep.subr.mxu0 0.0
      %2190 = vmatpush1.msra.mxu0 0.0
      %2191 = vmatprep.subr.mxu0 0.0
      %2192 = vmatpush1.msra.mxu0 0.0
      %2193 = vmatprep.subr.mxu0 0.0
      %2194 = vmatpush1.msra.mxu0 0.0
      %2195 = vmatprep.subr.mxu0 0.0
      %2196 = vmatpush1.msra.mxu0 0.0
      %2197 = vmatprep.subr.mxu0 0.0
      %2198 = vmatpush1.msra.mxu0 0.0
      %2199 = vmatprep.subr.mxu0 0.0
      %2200 = vmatpush1.msra.mxu0 0.0
      %2201 = vmatprep.subr.mxu0 0.0
      %2202 = vmatpush1.msra.mxu0 0.0
      %2203 = vmatprep.subr.mxu0 0.0
      %2204 = vmatpush1.msra.mxu0 0.0
      %2205 = vmatprep.subr.mxu0 0.0
      %2206 = vmatpush1.msra.mxu0 0.0
      %2207 = vmatprep.subr.mxu0 0.0
      %2208 = vmatpush1.msra.mxu0 0.0
      %2209 = vmatprep.subr.mxu0 0.0
      %2210 = vmatpush1.msra.mxu0 0.0
      %2211 = vmatprep.subr.mxu0 0.0
      %2212 = vmatpush1.msra.mxu0 0.0
      %2213 = vmatprep.subr.mxu0 0.0
      %2214 = vmatpush1.msra.mxu0 0.0
      %2215 = vmatprep.subr.mxu0 0.0
      %2216 = vmatpush1.msra.mxu0 0.0
      %2217 = vmatprep.subr.mxu0 0.0
      %2218 = vmatpush1.msra.mxu0 0.0
      %2219 = vmatprep.subr.mxu0 0.0
      %2220 = vmatpush1.msra.mxu0 0.0
      %2221 = vmatprep.subr.mxu0 0.0
      %2222 = vmatpush1.msra.mxu0 0.0
      %2223 = vmatprep.subr.mxu0 0.0
      %2224 = vmatpush1.msra.mxu0 0.0
      %2225 = vmatprep.mubr.f32.mxu0 0.0
      %2226 = vmatmul.mubr.f32.gmra.mrb[0].mxu0 %v2005
      %v2227 = vpop.f32.mrb[0].mxu0
      %v2228 = vadd.f32 %v1692, %v2227
      %v2229 = vpop.f32.mrb[0].mxu0
      %2230 = vdwg.mxu0
      %v2231 = vmul.f32 %v2083, %v2228
      %v2232 = vadd.f32 %v1267, %v2231
      %v2233 = vtanh.pop %v2232
      %v2234 = vsub.f32 1.0, %v2160
      %v2235 = vmul.f32 %v2234, %v2233
      %v2236 = vmul.f32 %v2160, %v1769
      %v2237 = vadd.f32 %v2235, %v2236
      %v2239 = vsel %vm1293, %v2003, 0
      %2241 = vmatprep.subr.mxu0 0.0
      %2242 = vmatpush1.msra.mxu0 %v1275
      %2243 = vmatprep.subr.mxu0 0.0
      %2244 = vmatpush1.msra.mxu0 %v1276
      %2245 = vmatprep.subr.mxu0 0.0
      %2246 = vmatpush1.msra.mxu0 0.0
      %2247 = vmatprep.subr.mxu0 0.0
      %2248 = vmatpush1.msra.mxu0 0.0
      %2249 = vmatprep.subr.mxu0 0.0
      %2250 = vmatpush1.msra.mxu0 0.0
      %2251 = vmatprep.subr.mxu0 0.0
      %2252 = vmatpush1.msra.mxu0 0.0
      %2253 = vmatprep.subr.mxu0 0.0
      %2254 = vmatpush1.msra.mxu0 0.0
      %2255 = vmatprep.subr.mxu0 0.0
      %2256 = vmatpush1.msra.mxu0 0.0
      %2257 = vmatprep.subr.mxu0 0.0
      %2258 = vmatpush1.msra.mxu0 0.0
      %2259 = vmatprep.subr.mxu0 0.0
      %2260 = vmatpush1.msra.mxu0 0.0
      %2261 = vmatprep.subr.mxu0 0.0
      %2262 = vmatpush1.msra.mxu0 0.0
      %2263 = vmatprep.subr.mxu0 0.0
      %2264 = vmatpush1.msra.mxu0 0.0
      %2265 = vmatprep.subr.mxu0 0.0
      %2266 = vmatpush1.msra.mxu0 0.0
      %2267 = vmatprep.subr.mxu0 0.0
      %2268 = vmatpush1.msra.mxu0 0.0
      %2269 = vmatprep.subr.mxu0 0.0
      %2270 = vmatpush1.msra.mxu0 0.0
      %2271 = vmatprep.subr.mxu0 0.0
      %2272 = vmatpush1.msra.mxu0 0.0
      %2273 = vmatprep.subr.mxu0 0.0
      %2274 = vmatpush1.msra.mxu0 0.0
      %2275 = vmatprep.subr.mxu0 0.0
      %2276 = vmatpush1.msra.mxu0 0.0
      %2277 = vmatprep.subr.mxu0 0.0
      %2278 = vmatpush1.msra.mxu0 0.0
      %2279 = vmatprep.subr.mxu0 0.0
      %2280 = vmatpush1.msra.mxu0 0.0
      %2281 = vmatprep.subr.mxu0 0.0
      %2282 = vmatpush1.msra.mxu0 0.0
      %2283 = vmatprep.subr.mxu0 0.0
      %2284 = vmatpush1.msra.mxu0 0.0
      %2285 = vmatprep.subr.mxu0 0.0
      %2286 = vmatpush1.msra.mxu0 0.0
      %2287 = vmatprep.subr.mxu0 0.0
      %2288 = vmatpush1.msra.mxu0 0.0
      %2289 = vmatprep.subr.mxu0 0.0
      %2290 = vmatpush1.msra.mxu0 0.0
      %2291 = vmatprep.subr.mxu0 0.0
      %2292 = vmatpush1.msra.mxu0 0.0
      %2293 = vmatprep.subr.mxu0 0.0
      %2294 = vmatpush1.msra.mxu0 0.0
      %2295 = vmatprep.subr.mxu0 0.0
      %2296 = vmatpush1.msra.mxu0 0.0
      %2297 = vmatprep.subr.mxu0 0.0
      %2298 = vmatpush1.msra.mxu0 0.0
      %2299 = vmatprep.subr.mxu0 0.0
      %2300 = vmatpush1.msra.mxu0 0.0
      %2301 = vmatprep.subr.mxu0 0.0
      %2302 = vmatpush1.msra.mxu0 0.0
      %2303 = vmatprep.subr.mxu0 0.0
      %2304 = vmatpush1.msra.mxu0 0.0
      %2305 = vmatprep.mubr.f32.mxu0 0.0
      %2306 = vmatmul.mubr.f32.gmra.mrb[0].mxu0 %v2239
      %v2307 = vpop.f32.mrb[0].mxu0
      %v2308 = vadd.f32 0.0, %v2307
      %v2309 = vpop.f32.mrb[0].mxu0
      %2310 = vdwg.mxu0
      %v2311 = vadd.f32 %v733, %v2308
      %v2312 = vxor.u32 %v2311, 2147483648
      %v2313 = vmul.f32 %v2312, 1.442695
      %v2314 = vpow.pop %v2313
      %v2315 = vadd.f32 %v2314, 1.0
      %v2316 = vrcp.pop %v2315
      %v2317 = vmul.f32 1.0, %v2316
      %2318 = vmatprep.subr.mxu0 0.0
      %2319 = vmatpush1.msra.mxu0 %v1278
      %2320 = vmatprep.subr.mxu0 0.0
      %2321 = vmatpush1.msra.mxu0 %v1279
      %2322 = vmatprep.subr.mxu0 0.0
      %2323 = vmatpush1.msra.mxu0 0.0
      %2324 = vmatprep.subr.mxu0 0.0
      %2325 = vmatpush1.msra.mxu0 0.0
      %2326 = vmatprep.subr.mxu0 0.0
      %2327 = vmatpush1.msra.mxu0 0.0
      %2328 = vmatprep.subr.mxu0 0.0
      %2329 = vmatpush1.msra.mxu0 0.0
      %2330 = vmatprep.subr.mxu0 0.0
      %2331 = vmatpush1.msra.mxu0 0.0
      %2332 = vmatprep.subr.mxu0 0.0
      %2333 = vmatpush1.msra.mxu0 0.0
      %2334 = vmatprep.subr.mxu0 0.0
      %2335 = vmatpush1.msra.mxu0 0.0
      %2336 = vmatprep.subr.mxu0 0.0
      %2337 = vmatpush1.msra.mxu0 0.0
      %2338 = vmatprep.subr.mxu0 0.0
      %2339 = vmatpush1.msra.mxu0 0.0
      %2340 = vmatprep.subr.mxu0 0.0
      %2341 = vmatpush1.msra.mxu0 0.0
      %2342 = vmatprep.subr.mxu0 0.0
      %2343 = vmatpush1.msra.mxu0 0.0
      %2344 = vmatprep.subr.mxu0 0.0
      %2345 = vmatpush1.msra.mxu0 0.0
      %2346 = vmatprep.subr.mxu0 0.0
      %2347 = vmatpush1.msra.mxu0 0.0
      %2348 = vmatprep.subr.mxu0 0.0
      %2349 = vmatpush1.msra.mxu0 0.0
      %2350 = vmatprep.subr.mxu0 0.0
      %2351 = vmatpush1.msra.mxu0 0.0
      %2352 = vmatprep.subr.mxu0 0.0
      %2353 = vmatpush1.msra.mxu0 0.0
      %2354 = vmatprep.subr.mxu0 0.0
      %2355 = vmatpush1.msra.mxu0 0.0
      %2356 = vmatprep.subr.mxu0 0.0
      %2357 = vmatpush1.msra.mxu0 0.0
      %2358 = vmatprep.subr.mxu0 0.0
      %2359 = vmatpush1.msra.mxu0 0.0
      %2360 = vmatprep.subr.mxu0 0.0
      %2361 = vmatpush1.msra.mxu0 0.0
      %2362 = vmatprep.subr.mxu0 0.0
      %2363 = vmatpush1.msra.mxu0 0.0
      %2364 = vmatprep.subr.mxu0 0.0
      %2365 = vmatpush1.msra.mxu0 0.0
      %2366 = vmatprep.subr.mxu0 0.0
      %2367 = vmatpush1.msra.mxu0 0.0
      %2368 = vmatprep.subr.mxu0 0.0
      %2369 = vmatpush1.msra.mxu0 0.0
      %2370 = vmatprep.subr.mxu0 0.0
      %2371 = vmatpush1.msra.mxu0 0.0
      %2372 = vmatprep.subr.mxu0 0.0
      %2373 = vmatpush1.msra.mxu0 0.0
      %2374 = vmatprep.subr.mxu0 0.0
      %2375 = vmatpush1.msra.mxu0 0.0
      %2376 = vmatprep.subr.mxu0 0.0
      %2377 = vmatpush1.msra.mxu0 0.0
      %2378 = vmatprep.subr.mxu0 0.0
      %2379 = vmatpush1.msra.mxu0 0.0
      %2380 = vmatprep.subr.mxu0 0.0
      %2381 = vmatpush1.msra.mxu0 0.0
      %2382 = vmatprep.mubr.f32.mxu0 0.0
      %2383 = vmatmul.mubr.f32.gmra.mrb[0].mxu0 %v2239
      %v2384 = vpop.f32.mrb[0].mxu0
      %v2385 = vadd.f32 0.0, %v2384
      %v2386 = vpop.f32.mrb[0].mxu0
      %2387 = vdwg.mxu0
      %v2388 = vadd.f32 %v838, %v2385
      %v2389 = vxor.u32 %v2388, 2147483648
      %v2390 = vmul.f32 %v2389, 1.442695
      %v2391 = vpow.pop %v2390
      %v2392 = vadd.f32 %v2391, 1.0
      %v2393 = vrcp.pop %v2392
      %v2394 = vmul.f32 1.0, %v2393
      %2395 = vmatprep.subr.mxu0 0.0
      %2396 = vmatpush1.msra.mxu0 %v1281
      %2397 = vmatprep.subr.mxu0 0.0
      %2398 = vmatpush1.msra.mxu0 %v1282
      %2399 = vmatprep.subr.mxu0 0.0
      %2400 = vmatpush1.msra.mxu0 0.0
      %2401 = vmatprep.subr.mxu0 0.0
      %2402 = vmatpush1.msra.mxu0 0.0
      %2403 = vmatprep.subr.mxu0 0.0
      %2404 = vmatpush1.msra.mxu0 0.0
      %2405 = vmatprep.subr.mxu0 0.0
      %2406 = vmatpush1.msra.mxu0 0.0
      %2407 = vmatprep.subr.mxu0 0.0
      %2408 = vmatpush1.msra.mxu0 0.0
      %2409 = vmatprep.subr.mxu0 0.0
      %2410 = vmatpush1.msra.mxu0 0.0
      %2411 = vmatprep.subr.mxu0 0.0
      %2412 = vmatpush1.msra.mxu0 0.0
      %2413 = vmatprep.subr.mxu0 0.0
      %2414 = vmatpush1.msra.mxu0 0.0
      %2415 = vmatprep.subr.mxu0 0.0
      %2416 = vmatpush1.msra.mxu0 0.0
      %2417 = vmatprep.subr.mxu0 0.0
      %2418 = vmatpush1.msra.mxu0 0.0
      %2419 = vmatprep.subr.mxu0 0.0
      %2420 = vmatpush1.msra.mxu0 0.0
      %2421 = vmatprep.subr.mxu0 0.0
      %2422 = vmatpush1.msra.mxu0 0.0
      %2423 = vmatprep.subr.mxu0 0.0
      %2424 = vmatpush1.msra.mxu0 0.0
      %2425 = vmatprep.subr.mxu0 0.0
      %2426 = vmatpush1.msra.mxu0 0.0
      %2427 = vmatprep.subr.mxu0 0.0
      %2428 = vmatpush1.msra.mxu0 0.0
      %2429 = vmatprep.subr.mxu0 0.0
      %2430 = vmatpush1.msra.mxu0 0.0
      %2431 = vmatprep.subr.mxu0 0.0
      %2432 = vmatpush1.msra.mxu0 0.0
      %2433 = vmatprep.subr.mxu0 0.0
      %2434 = vmatpush1.msra.mxu0 0.0
      %2435 = vmatprep.subr.mxu0 0.0
      %2436 = vmatpush1.msra.mxu0 0.0
      %2437 = vmatprep.subr.mxu0 0.0
      %2438 = vmatpush1.msra.mxu0 0.0
      %2439 = vmatprep.subr.mxu0 0.0
      %2440 = vmatpush1.msra.mxu0 0.0
      %2441 = vmatprep.subr.mxu0 0.0
      %2442 = vmatpush1.msra.mxu0 0.0
      %2443 = vmatprep.subr.mxu0 0.0
      %2444 = vmatpush1.msra.mxu0 0.0
      %2445 = vmatprep.subr.mxu0 0.0
      %2446 = vmatpush1.msra.mxu0 0.0
      %2447 = vmatprep.subr.mxu0 0.0
      %2448 = vmatpush1.msra.mxu0 0.0
      %2449 = vmatprep.subr.mxu0 0.0
      %2450 = vmatpush1.msra.mxu0 0.0
      %2451 = vmatprep.subr.mxu0 0.0
      %2452 = vmatpush1.msra.mxu0 0.0
      %2453 = vmatprep.subr.mxu0 0.0
      %2454 = vmatpush1.msra.mxu0 0.0
      %2455 = vmatprep.subr.mxu0 0.0
      %2456 = vmatpush1.msra.mxu0 0.0
      %2457 = vmatprep.subr.mxu0 0.0
      %2458 = vmatpush1.msra.mxu0 0.0
      %2459 = vmatprep.mubr.f32.mxu0 0.0
      %2460 = vmatmul.mubr.f32.gmra.mrb[0].mxu0 %v2239
      %v2461 = vpop.f32.mrb[0].mxu0
      %v2462 = vadd.f32 %v1454, %v2461
      %v2463 = vpop.f32.mrb[0].mxu0
      %2464 = vdwg.mxu0
      %v2465 = vmul.f32 %v2317, %v2462
      %v2466 = vadd.f32 %v943, %v2465
      %v2467 = vtanh.pop %v2466
      %v2468 = vsub.f32 1.0, %v2394
      %v2469 = vmul.f32 %v2468, %v2467
      %v2470 = vmul.f32 %v2394, %v2003
      %v2471 = vadd.f32 %v2469, %v2470
      %v2473 = vsel %vm1293, %v2237, 0
      %2475 = vmatprep.subr.mxu0 0.0
      %2476 = vmatpush1.msra.mxu0 %v1283
      %2477 = vmatprep.subr.mxu0 0.0
      %2478 = vmatpush1.msra.mxu0 %v1284
      %2479 = vmatprep.subr.mxu0 0.0
      %2480 = vmatpush1.msra.mxu0 0.0
      %2481 = vmatprep.subr.mxu0 0.0
      %2482 = vmatpush1.msra.mxu0 0.0
      %2483 = vmatprep.subr.mxu0 0.0
      %2484 = vmatpush1.msra.mxu0 0.0
      %2485 = vmatprep.subr.mxu0 0.0
      %2486 = vmatpush1.msra.mxu0 0.0
      %2487 = vmatprep.subr.mxu0 0.0
      %2488 = vmatpush1.msra.mxu0 0.0
      %2489 = vmatprep.subr.mxu0 0.0
      %2490 = vmatpush1.msra.mxu0 0.0
      %2491 = vmatprep.subr.mxu0 0.0
      %2492 = vmatpush1.msra.mxu0 0.0
      %2493 = vmatprep.subr.mxu0 0.0
      %2494 = vmatpush1.msra.mxu0 0.0
      %2495 = vmatprep.subr.mxu0 0.0
      %2496 = vmatpush1.msra.mxu0 0.0
      %2497 = vmatprep.subr.mxu0 0.0
      %2498 = vmatpush1.msra.mxu0 0.0
      %2499 = vmatprep.subr.mxu0 0.0
      %2500 = vmatpush1.msra.mxu0 0.0
      %2501 = vmatprep.subr.mxu0 0.0
      %2502 = vmatpush1.msra.mxu0 0.0
      %2503 = vmatprep.subr.mxu0 0.0
      %2504 = vmatpush1.msra.mxu0 0.0
      %2505 = vmatprep.subr.mxu0 0.0
      %2506 = vmatpush1.msra.mxu0 0.0
      %2507 = vmatprep.subr.mxu0 0.0
      %2508 = vmatpush1.msra.mxu0 0.0
      %2509 = vmatprep.subr.mxu0 0.0
      %2510 = vmatpush1.msra.mxu0 0.0
      %2511 = vmatprep.subr.mxu0 0.0
      %2512 = vmatpush1.msra.mxu0 0.0
      %2513 = vmatprep.subr.mxu0 0.0
      %2514 = vmatpush1.msra.mxu0 0.0
      %2515 = vmatprep.subr.mxu0 0.0
      %2516 = vmatpush1.msra.mxu0 0.0
      %2517 = vmatprep.subr.mxu0 0.0
      %2518 = vmatpush1.msra.mxu0 0.0
      %2519 = vmatprep.subr.mxu0 0.0
      %2520 = vmatpush1.msra.mxu0 0.0
      %2521 = vmatprep.subr.mxu0 0.0
      %2522 = vmatpush1.msra.mxu0 0.0
      %2523 = vmatprep.subr.mxu0 0.0
      %2524 = vmatpush1.msra.mxu0 0.0
      %2525 = vmatprep.subr.mxu0 0.0
      %2526 = vmatpush1.msra.mxu0 0.0
      %2527 = vmatprep.subr.mxu0 0.0
      %2528 = vmatpush1.msra.mxu0 0.0
      %2529 = vmatprep.subr.mxu0 0.0
      %2530 = vmatpush1.msra.mxu0 0.0
      %2531 = vmatprep.subr.mxu0 0.0
      %2532 = vmatpush1.msra.mxu0 0.0
      %2533 = vmatprep.subr.mxu0 0.0
      %2534 = vmatpush1.msra.mxu0 0.0
      %2535 = vmatprep.subr.mxu0 0.0
      %2536 = vmatpush1.msra.mxu0 0.0
      %2537 = vmatprep.subr.mxu0 0.0
      %2538 = vmatpush1.msra.mxu0 0.0
      %2539 = vmatprep.mubr.f32.mxu0 0.0
      %2540 = vmatmul.mubr.f32.gmra.mrb[0].mxu0 %v2473
      %v2541 = vpop.f32.mrb[0].mxu0
      %v2542 = vadd.f32 0.0, %v2541
      %v2543 = vpop.f32.mrb[0].mxu0
      %2544 = vdwg.mxu0
      %v2545 = vadd.f32 %v1052, %v2542
      %v2546 = vxor.u32 %v2545, 2147483648
      %v2547 = vmul.f32 %v2546, 1.442695
      %v2548 = vpow.pop %v2547
      %v2549 = vadd.f32 %v2548, 1.0
      %v2550 = vrcp.pop %v2549
      %v2551 = vmul.f32 1.0, %v2550
      %2552 = vmatprep.subr.mxu0 0.0
      %2553 = vmatpush1.msra.mxu0 %v1286
      %2554 = vmatprep.subr.mxu0 0.0
      %2555 = vmatpush1.msra.mxu0 %v1287
      %2556 = vmatprep.subr.mxu0 0.0
      %2557 = vmatpush1.msra.mxu0 0.0
      %2558 = vmatprep.subr.mxu0 0.0
      %2559 = vmatpush1.msra.mxu0 0.0
      %2560 = vmatprep.subr.mxu0 0.0
      %2561 = vmatpush1.msra.mxu0 0.0
      %2562 = vmatprep.subr.mxu0 0.0
      %2563 = vmatpush1.msra.mxu0 0.0
      %2564 = vmatprep.subr.mxu0 0.0
      %2565 = vmatpush1.msra.mxu0 0.0
      %2566 = vmatprep.subr.mxu0 0.0
      %2567 = vmatpush1.msra.mxu0 0.0
      %2568 = vmatprep.subr.mxu0 0.0
      %2569 = vmatpush1.msra.mxu0 0.0
      %2570 = vmatprep.subr.mxu0 0.0
      %2571 = vmatpush1.msra.mxu0 0.0
      %2572 = vmatprep.subr.mxu0 0.0
      %2573 = vmatpush1.msra.mxu0 0.0
      %2574 = vmatprep.subr.mxu0 0.0
      %2575 = vmatpush1.msra.mxu0 0.0
      %2576 = vmatprep.subr.mxu0 0.0
      %2577 = vmatpush1.msra.mxu0 0.0
      %2578 = vmatprep.subr.mxu0 0.0
      %2579 = vmatpush1.msra.mxu0 0.0
      %2580 = vmatprep.subr.mxu0 0.0
      %2581 = vmatpush1.msra.mxu0 0.0
      %2582 = vmatprep.subr.mxu0 0.0
      %2583 = vmatpush1.msra.mxu0 0.0
      %2584 = vmatprep.subr.mxu0 0.0
      %2585 = vmatpush1.msra.mxu0 0.0
      %2586 = vmatprep.subr.mxu0 0.0
      %2587 = vmatpush1.msra.mxu0 0.0
      %2588 = vmatprep.subr.mxu0 0.0
      %2589 = vmatpush1.msra.mxu0 0.0
      %2590 = vmatprep.subr.mxu0 0.0
      %2591 = vmatpush1.msra.mxu0 0.0
      %2592 = vmatprep.subr.mxu0 0.0
      %2593 = vmatpush1.msra.mxu0 0.0
      %2594 = vmatprep.subr.mxu0 0.0
      %2595 = vmatpush1.msra.mxu0 0.0
      %2596 = vmatprep.subr.mxu0 0.0
      %2597 = vmatpush1.msra.mxu0 0.0
      %2598 = vmatprep.subr.mxu0 0.0
      %2599 = vmatpush1.msra.mxu0 0.0
      %2600 = vmatprep.subr.mxu0 0.0
      %2601 = vmatpush1.msra.mxu0 0.0
      %2602 = vmatprep.subr.mxu0 0.0
      %2603 = vmatpush1.msra.mxu0 0.0
      %2604 = vmatprep.subr.mxu0 0.0
      %2605 = vmatpush1.msra.mxu0 0.0
      %2606 = vmatprep.subr.mxu0 0.0
      %2607 = vmatpush1.msra.mxu0 0.0
      %2608 = vmatprep.subr.mxu0 0.0
      %2609 = vmatpush1.msra.mxu0 0.0
      %2610 = vmatprep.subr.mxu0 0.0
      %2611 = vmatpush1.msra.mxu0 0.0
      %2612 = vmatprep.subr.mxu0 0.0
      %2613 = vmatpush1.msra.mxu0 0.0
      %2614 = vmatprep.subr.mxu0 0.0
      %2615 = vmatpush1.msra.mxu0 0.0
      %2616 = vmatprep.mubr.f32.mxu0 0.0
      %2617 = vmatmul.mubr.f32.gmra.mrb[0].mxu0 %v2473
      %v2618 = vpop.f32.mrb[0].mxu0
      %v2619 = vadd.f32 0.0, %v2618
      %v2620 = vpop.f32.mrb[0].mxu0
      %2621 = vdwg.mxu0
      %v2622 = vadd.f32 %v1157, %v2619
      %v2623 = vxor.u32 %v2622, 2147483648
      %v2624 = vmul.f32 %v2623, 1.442695
      %v2625 = vpow.pop %v2624
      %v2626 = vadd.f32 %v2625, 1.0
      %v2627 = vrcp.pop %v2626
      %v2628 = vmul.f32 1.0, %v2627
      %2629 = vmatprep.subr.mxu0 0.0
      %2630 = vmatpush1.msra.mxu0 %v1289
      %2631 = vmatprep.subr.mxu0 0.0
      %2632 = vmatpush1.msra.mxu0 %v1290
      %2633 = vmatprep.subr.mxu0 0.0
      %2634 = vmatpush1.msra.mxu0 0.0
      %2635 = vmatprep.subr.mxu0 0.0
      %2636 = vmatpush1.msra.mxu0 0.0
      %2637 = vmatprep.subr.mxu0 0.0
      %2638 = vmatpush1.msra.mxu0 0.0
      %2639 = vmatprep.subr.mxu0 0.0
      %2640 = vmatpush1.msra.mxu0 0.0
      %2641 = vmatprep.subr.mxu0 0.0
      %2642 = vmatpush1.msra.mxu0 0.0
      %2643 = vmatprep.subr.mxu0 0.0
      %2644 = vmatpush1.msra.mxu0 0.0
      %2645 = vmatprep.subr.mxu0 0.0
      %2646 = vmatpush1.msra.mxu0 0.0
      %2647 = vmatprep.subr.mxu0 0.0
      %2648 = vmatpush1.msra.mxu0 0.0
      %2649 = vmatprep.subr.mxu0 0.0
      %2650 = vmatpush1.msra.mxu0 0.0
      %2651 = vmatprep.subr.mxu0 0.0
      %2652 = vmatpush1.msra.mxu0 0.0
      %2653 = vmatprep.subr.mxu0 0.0
      %2654 = vmatpush1.msra.mxu0 0.0
      %2655 = vmatprep.subr.mxu0 0.0
      %2656 = vmatpush1.msra.mxu0 0.0
      %2657 = vmatprep.subr.mxu0 0.0
      %2658 = vmatpush1.msra.mxu0 0.0
      %2659 = vmatprep.subr.mxu0 0.0
      %2660 = vmatpush1.msra.mxu0 0.0
      %2661 = vmatprep.subr.mxu0 0.0
      %2662 = vmatpush1.msra.mxu0 0.0
      %2663 = vmatprep.subr.mxu0 0.0
      %2664 = vmatpush1.msra.mxu0 0.0
      %2665 = vmatprep.subr.mxu0 0.0
      %2666 = vmatpush1.msra.mxu0 0.0
      %2667 = vmatprep.subr.mxu0 0.0
      %2668 = vmatpush1.msra.mxu0 0.0
      %2669 = vmatprep.subr.mxu0 0.0
      %2670 = vmatpush1.msra.mxu0 0.0
      %2671 = vmatprep.subr.mxu0 0.0
      %2672 = vmatpush1.msra.mxu0 0.0
      %2673 = vmatprep.subr.mxu0 0.0
      %2674 = vmatpush1.msra.mxu0 0.0
      %2675 = vmatprep.subr.mxu0 0.0
      %2676 = vmatpush1.msra.mxu0 0.0
      %2677 = vmatprep.subr.mxu0 0.0
      %2678 = vmatpush1.msra.mxu0 0.0
      %2679 = vmatprep.subr.mxu0 0.0
      %2680 = vmatpush1.msra.mxu0 0.0
      %2681 = vmatprep.subr.mxu0 0.0
      %2682 = vmatpush1.msra.mxu0 0.0
      %2683 = vmatprep.subr.mxu0 0.0
      %2684 = vmatpush1.msra.mxu0 0.0
      %2685 = vmatprep.subr.mxu0 0.0
      %2686 = vmatpush1.msra.mxu0 0.0
      %2687 = vmatprep.subr.mxu0 0.0
      %2688 = vmatpush1.msra.mxu0 0.0
      %2689 = vmatprep.subr.mxu0 0.0
      %2690 = vmatpush1.msra.mxu0 0.0
      %2691 = vmatprep.subr.mxu0 0.0
      %2692 = vmatpush1.msra.mxu0 0.0
      %2693 = vmatprep.mubr.f32.mxu0 0.0
      %2694 = vmatmul.mubr.f32.gmra.mrb[0].mxu0 %v2473
      %v2695 = vpop.f32.mrb[0].mxu0
      %v2696 = vadd.f32 %v1692, %v2695
      %v2697 = vpop.f32.mrb[0].mxu0
      %2698 = vdwg.mxu0
      %v2699 = vmul.f32 %v2551, %v2696
      %v2700 = vadd.f32 %v1262, %v2699
      %v2701 = vtanh.pop %v2700
      %v2702 = vsub.f32 1.0, %v2628
      %v2703 = vmul.f32 %v2702, %v2701
      %v2704 = vmul.f32 %v2628, %v2237
      %v2705 = vadd.f32 %v2703, %v2704
      %v2707 = vsel %vm1293, %v2471, 0
      %2709 = vmatprep.subr.mxu0 0.0
      %2710 = vmatpush1.msra.mxu0 %v1275
      %2711 = vmatprep.subr.mxu0 0.0
      %2712 = vmatpush1.msra.mxu0 %v1276
      %2713 = vmatprep.subr.mxu0 0.0
      %2714 = vmatpush1.msra.mxu0 0.0
      %2715 = vmatprep.subr.mxu0 0.0
      %2716 = vmatpush1.msra.mxu0 0.0
      %2717 = vmatprep.subr.mxu0 0.0
      %2718 = vmatpush1.msra.mxu0 0.0
      %2719 = vmatprep.subr.mxu0 0.0
      %2720 = vmatpush1.msra.mxu0 0.0
      %2721 = vmatprep.subr.mxu0 0.0
      %2722 = vmatpush1.msra.mxu0 0.0
      %2723 = vmatprep.subr.mxu0 0.0
      %2724 = vmatpush1.msra.mxu0 0.0
      %2725 = vmatprep.subr.mxu0 0.0
      %2726 = vmatpush1.msra.mxu0 0.0
      %2727 = vmatprep.subr.mxu0 0.0
      %2728 = vmatpush1.msra.mxu0 0.0
      %2729 = vmatprep.subr.mxu0 0.0
      %2730 = vmatpush1.msra.mxu0 0.0
      %2731 = vmatprep.subr.mxu0 0.0
      %2732 = vmatpush1.msra.mxu0 0.0
      %2733 = vmatprep.subr.mxu0 0.0
      %2734 = vmatpush1.msra.mxu0 0.0
      %2735 = vmatprep.subr.mxu0 0.0
      %2736 = vmatpush1.msra.mxu0 0.0
      %2737 = vmatprep.subr.mxu0 0.0
      %2738 = vmatpush1.msra.mxu0 0.0
      %2739 = vmatprep.subr.mxu0 0.0
      %2740 = vmatpush1.msra.mxu0 0.0
      %2741 = vmatprep.subr.mxu0 0.0
      %2742 = vmatpush1.msra.mxu0 0.0
      %2743 = vmatprep.subr.mxu0 0.0
      %2744 = vmatpush1.msra.mxu0 0.0
      %2745 = vmatprep.subr.mxu0 0.0
      %2746 = vmatpush1.msra.mxu0 0.0
      %2747 = vmatprep.subr.mxu0 0.0
      %2748 = vmatpush1.msra.mxu0 0.0
      %2749 = vmatprep.subr.mxu0 0.0
      %2750 = vmatpush1.msra.mxu0 0.0
      %2751 = vmatprep.subr.mxu0 0.0
      %2752 = vmatpush1.msra.mxu0 0.0
      %2753 = vmatprep.subr.mxu0 0.0
      %2754 = vmatpush1.msra.mxu0 0.0
      %2755 = vmatprep.subr.mxu0 0.0
      %2756 = vmatpush1.msra.mxu0 0.0
      %2757 = vmatprep.subr.mxu0 0.0
      %2758 = vmatpush1.msra.mxu0 0.0
      %2759 = vmatprep.subr.mxu0 0.0
      %2760 = vmatpush1.msra.mxu0 0.0
      %2761 = vmatprep.subr.mxu0 0.0
      %2762 = vmatpush1.msra.mxu0 0.0
      %2763 = vmatprep.subr.mxu0 0.0
      %2764 = vmatpush1.msra.mxu0 0.0
      %2765 = vmatprep.subr.mxu0 0.0
      %2766 = vmatpush1.msra.mxu0 0.0
      %2767 = vmatprep.subr.mxu0 0.0
      %2768 = vmatpush1.msra.mxu0 0.0
      %2769 = vmatprep.subr.mxu0 0.0
      %2770 = vmatpush1.msra.mxu0 0.0
      %2771 = vmatprep.subr.mxu0 0.0
      %2772 = vmatpush1.msra.mxu0 0.0
      %2773 = vmatprep.mubr.f32.mxu0 0.0
      %2774 = vmatmul.mubr.f32.gmra.mrb[0].mxu0 %v2707
      %v2775 = vpop.f32.mrb[0].mxu0
      %v2776 = vadd.f32 0.0, %v2775
      %v2777 = vpop.f32.mrb[0].mxu0
      %2778 = vdwg.mxu0
      %v2779 = vadd.f32 %v738, %v2776
      %v2780 = vxor.u32 %v2779, 2147483648
      %v2781 = vmul.f32 %v2780, 1.442695
      %v2782 = vpow.pop %v2781
      %v2783 = vadd.f32 %v2782, 1.0
      %v2784 = vrcp.pop %v2783
      %v2785 = vmul.f32 1.0, %v2784
      %2786 = vmatprep.subr.mxu0 0.0
      %2787 = vmatpush1.msra.mxu0 %v1278
      %2788 = vmatprep.subr.mxu0 0.0
      %2789 = vmatpush1.msra.mxu0 %v1279
      %2790 = vmatprep.subr.mxu0 0.0
      %2791 = vmatpush1.msra.mxu0 0.0
      %2792 = vmatprep.subr.mxu0 0.0
      %2793 = vmatpush1.msra.mxu0 0.0
      %2794 = vmatprep.subr.mxu0 0.0
      %2795 = vmatpush1.msra.mxu0 0.0
      %2796 = vmatprep.subr.mxu0 0.0
      %2797 = vmatpush1.msra.mxu0 0.0
      %2798 = vmatprep.subr.mxu0 0.0
      %2799 = vmatpush1.msra.mxu0 0.0
      %2800 = vmatprep.subr.mxu0 0.0
      %2801 = vmatpush1.msra.mxu0 0.0
      %2802 = vmatprep.subr.mxu0 0.0
      %2803 = vmatpush1.msra.mxu0 0.0
      %2804 = vmatprep.subr.mxu0 0.0
      %2805 = vmatpush1.msra.mxu0 0.0
      %2806 = vmatprep.subr.mxu0 0.0
      %2807 = vmatpush1.msra.mxu0 0.0
      %2808 = vmatprep.subr.mxu0 0.0
      %2809 = vmatpush1.msra.mxu0 0.0
      %2810 = vmatprep.subr.mxu0 0.0
      %2811 = vmatpush1.msra.mxu0 0.0
      %2812 = vmatprep.subr.mxu0 0.0
      %2813 = vmatpush1.msra.mxu0 0.0
      %2814 = vmatprep.subr.mxu0 0.0
      %2815 = vmatpush1.msra.mxu0 0.0
      %2816 = vmatprep.subr.mxu0 0.0
      %2817 = vmatpush1.msra.mxu0 0.0
      %2818 = vmatprep.subr.mxu0 0.0
      %2819 = vmatpush1.msra.mxu0 0.0
      %2820 = vmatprep.subr.mxu0 0.0
      %2821 = vmatpush1.msra.mxu0 0.0
      %2822 = vmatprep.subr.mxu0 0.0
      %2823 = vmatpush1.msra.mxu0 0.0
      %2824 = vmatprep.subr.mxu0 0.0
      %2825 = vmatpush1.msra.mxu0 0.0
      %2826 = vmatprep.subr.mxu0 0.0
      %2827 = vmatpush1.msra.mxu0 0.0
      %2828 = vmatprep.subr.mxu0 0.0
      %2829 = vmatpush1.msra.mxu0 0.0
      %2830 = vmatprep.subr.mxu0 0.0
      %2831 = vmatpush1.msra.mxu0 0.0
      %2832 = vmatprep.subr.mxu0 0.0
      %2833 = vmatpush1.msra.mxu0 0.0
      %2834 = vmatprep.subr.mxu0 0.0
      %2835 = vmatpush1.msra.mxu0 0.0
      %2836 = vmatprep.subr.mxu0 0.0
      %2837 = vmatpush1.msra.mxu0 0.0
      %2838 = vmatprep.subr.mxu0 0.0
      %2839 = vmatpush1.msra.mxu0 0.0
      %2840 = vmatprep.subr.mxu0 0.0
      %2841 = vmatpush1.msra.mxu0 0.0
      %2842 = vmatprep.subr.mxu0 0.0
      %2843 = vmatpush1.msra.mxu0 0.0
      %2844 = vmatprep.subr.mxu0 0.0
      %2845 = vmatpush1.msra.mxu0 0.0
      %2846 = vmatprep.subr.mxu0 0.0
      %2847 = vmatpush1.msra.mxu0 0.0
      %2848 = vmatprep.subr.mxu0 0.0
      %2849 = vmatpush1.msra.mxu0 0.0
      %2850 = vmatprep.mubr.f32.mxu0 0.0
      %2851 = vmatmul.mubr.f32.gmra.mrb[0].mxu0 %v2707
      %v2852 = vpop.f32.mrb[0].mxu0
      %v2853 = vadd.f32 0.0, %v2852
      %v2854 = vpop.f32.mrb[0].mxu0
      %2855 = vdwg.mxu0
      %v2856 = vadd.f32 %v843, %v2853
      %v2857 = vxor.u32 %v2856, 2147483648
      %v2858 = vmul.f32 %v2857, 1.442695
      %v2859 = vpow.pop %v2858
      %v2860 = vadd.f32 %v2859, 1.0
      %v2861 = vrcp.pop %v2860
      %v2862 = vmul.f32 1.0, %v2861
      %2863 = vmatprep.subr.mxu0 0.0
      %2864 = vmatpush1.msra.mxu0 %v1281
      %2865 = vmatprep.subr.mxu0 0.0
      %2866 = vmatpush1.msra.mxu0 %v1282
      %2867 = vmatprep.subr.mxu0 0.0
      %2868 = vmatpush1.msra.mxu0 0.0
      %2869 = vmatprep.subr.mxu0 0.0
      %2870 = vmatpush1.msra.mxu0 0.0
      %2871 = vmatprep.subr.mxu0 0.0
      %2872 = vmatpush1.msra.mxu0 0.0
      %2873 = vmatprep.subr.mxu0 0.0
      %2874 = vmatpush1.msra.mxu0 0.0
      %2875 = vmatprep.subr.mxu0 0.0
      %2876 = vmatpush1.msra.mxu0 0.0
      %2877 = vmatprep.subr.mxu0 0.0
      %2878 = vmatpush1.msra.mxu0 0.0
      %2879 = vmatprep.subr.mxu0 0.0
      %2880 = vmatpush1.msra.mxu0 0.0
      %2881 = vmatprep.subr.mxu0 0.0
      %2882 = vmatpush1.msra.mxu0 0.0
      %2883 = vmatprep.subr.mxu0 0.0
      %2884 = vmatpush1.msra.mxu0 0.0
      %2885 = vmatprep.subr.mxu0 0.0
      %2886 = vmatpush1.msra.mxu0 0.0
      %2887 = vmatprep.subr.mxu0 0.0
      %2888 = vmatpush1.msra.mxu0 0.0
      %2889 = vmatprep.subr.mxu0 0.0
      %2890 = vmatpush1.msra.mxu0 0.0
      %2891 = vmatprep.subr.mxu0 0.0
      %2892 = vmatpush1.msra.mxu0 0.0
      %2893 = vmatprep.subr.mxu0 0.0
      %2894 = vmatpush1.msra.mxu0 0.0
      %2895 = vmatprep.subr.mxu0 0.0
      %2896 = vmatpush1.msra.mxu0 0.0
      %2897 = vmatprep.subr.mxu0 0.0
      %2898 = vmatpush1.msra.mxu0 0.0
      %2899 = vmatprep.subr.mxu0 0.0
      %2900 = vmatpush1.msra.mxu0 0.0
      %2901 = vmatprep.subr.mxu0 0.0
      %2902 = vmatpush1.msra.mxu0 0.0
      %2903 = vmatprep.subr.mxu0 0.0
      %2904 = vmatpush1.msra.mxu0 0.0
      %2905 = vmatprep.subr.mxu0 0.0
      %2906 = vmatpush1.msra.mxu0 0.0
      %2907 = vmatprep.subr.mxu0 0.0
      %2908 = vmatpush1.msra.mxu0 0.0
      %2909 = vmatprep.subr.mxu0 0.0
      %2910 = vmatpush1.msra.mxu0 0.0
      %2911 = vmatprep.subr.mxu0 0.0
      %2912 = vmatpush1.msra.mxu0 0.0
      %2913 = vmatprep.subr.mxu0 0.0
      %2914 = vmatpush1.msra.mxu0 0.0
      %2915 = vmatprep.subr.mxu0 0.0
      %2916 = vmatpush1.msra.mxu0 0.0
      %2917 = vmatprep.subr.mxu0 0.0
      %2918 = vmatpush1.msra.mxu0 0.0
      %2919 = vmatprep.subr.mxu0 0.0
      %2920 = vmatpush1.msra.mxu0 0.0
      %2921 = vmatprep.subr.mxu0 0.0
      %2922 = vmatpush1.msra.mxu0 0.0
      %2923 = vmatprep.subr.mxu0 0.0
      %2924 = vmatpush1.msra.mxu0 0.0
      %2925 = vmatprep.subr.mxu0 0.0
      %2926 = vmatpush1.msra.mxu0 0.0
      %2927 = vmatprep.mubr.f32.mxu0 0.0
      %2928 = vmatmul.mubr.f32.gmra.mrb[0].mxu0 %v2707
      %v2929 = vpop.f32.mrb[0].mxu0
      %v2930 = vadd.f32 %v1454, %v2929
      %v2931 = vpop.f32.mrb[0].mxu0
      %2932 = vdwg.mxu0
      %v2933 = vmul.f32 %v2785, %v2930
      %v2934 = vadd.f32 %v948, %v2933
      %v2935 = vtanh.pop %v2934
      %v2936 = vsub.f32 1.0, %v2862
      %v2937 = vmul.f32 %v2936, %v2935
      %v2938 = vmul.f32 %v2862, %v2471
      %v2939 = vadd.f32 %v2937, %v2938
      %v2941 = vsel %vm1293, %v2705, 0
      %2943 = vmatprep.subr.mxu0 0.0
      %2944 = vmatpush1.msra.mxu0 %v1283
      %2945 = vmatprep.subr.mxu0 0.0
      %2946 = vmatpush1.msra.mxu0 %v1284
      %2947 = vmatprep.subr.mxu0 0.0
      %2948 = vmatpush1.msra.mxu0 0.0
      %2949 = vmatprep.subr.mxu0 0.0
      %2950 = vmatpush1.msra.mxu0 0.0
      %2951 = vmatprep.subr.mxu0 0.0
      %2952 = vmatpush1.msra.mxu0 0.0
      %2953 = vmatprep.subr.mxu0 0.0
      %2954 = vmatpush1.msra.mxu0 0.0
      %2955 = vmatprep.subr.mxu0 0.0
      %2956 = vmatpush1.msra.mxu0 0.0
      %2957 = vmatprep.subr.mxu0 0.0
      %2958 = vmatpush1.msra.mxu0 0.0
      %2959 = vmatprep.subr.mxu0 0.0
      %2960 = vmatpush1.msra.mxu0 0.0
      %2961 = vmatprep.subr.mxu0 0.0
      %2962 = vmatpush1.msra.mxu0 0.0
      %2963 = vmatprep.subr.mxu0 0.0
      %2964 = vmatpush1.msra.mxu0 0.0
      %2965 = vmatprep.subr.mxu0 0.0
      %2966 = vmatpush1.msra.mxu0 0.0
      %2967 = vmatprep.subr.mxu0 0.0
      %2968 = vmatpush1.msra.mxu0 0.0
      %2969 = vmatprep.subr.mxu0 0.0
      %2970 = vmatpush1.msra.mxu0 0.0
      %2971 = vmatprep.subr.mxu0 0.0
      %2972 = vmatpush1.msra.mxu0 0.0
      %2973 = vmatprep.subr.mxu0 0.0
      %2974 = vmatpush1.msra.mxu0 0.0
      %2975 = vmatprep.subr.mxu0 0.0
      %2976 = vmatpush1.msra.mxu0 0.0
      %2977 = vmatprep.subr.mxu0 0.0
      %2978 = vmatpush1.msra.mxu0 0.0
      %2979 = vmatprep.subr.mxu0 0.0
      %2980 = vmatpush1.msra.mxu0 0.0
      %2981 = vmatprep.subr.mxu0 0.0
      %2982 = vmatpush1.msra.mxu0 0.0
      %2983 = vmatprep.subr.mxu0 0.0
      %2984 = vmatpush1.msra.mxu0 0.0
      %2985 = vmatprep.subr.mxu0 0.0
      %2986 = vmatpush1.msra.mxu0 0.0
      %2987 = vmatprep.subr.mxu0 0.0
      %2988 = vmatpush1.msra.mxu0 0.0
      %2989 = vmatprep.subr.mxu0 0.0
      %2990 = vmatpush1.msra.mxu0 0.0
      %2991 = vmatprep.subr.mxu0 0.0
      %2992 = vmatpush1.msra.mxu0 0.0
      %2993 = vmatprep.subr.mxu0 0.0
      %2994 = vmatpush1.msra.mxu0 0.0
      %2995 = vmatprep.subr.mxu0 0.0
      %2996 = vmatpush1.msra.mxu0 0.0
      %2997 = vmatprep.subr.mxu0 0.0
      %2998 = vmatpush1.msra.mxu0 0.0
      %2999 = vmatprep.subr.mxu0 0.0
      %3000 = vmatpush1.msra.mxu0 0.0
      %3001 = vmatprep.subr.mxu0 0.0
      %3002 = vmatpush1.msra.mxu0 0.0
      %3003 = vmatprep.subr.mxu0 0.0
      %3004 = vmatpush1.msra.mxu0 0.0
      %3005 = vmatprep.subr.mxu0 0.0
      %3006 = vmatpush1.msra.mxu0 0.0
      %3007 = vmatprep.mubr.f32.mxu0 0.0
      %3008 = vmatmul.mubr.f32.gmra.mrb[0].mxu0 %v2941
      %v3009 = vpop.f32.mrb[0].mxu0
      %v3010 = vadd.f32 0.0, %v3009
      %v3011 = vpop.f32.mrb[0].mxu0
      %3012 = vdwg.mxu0
      %v3013 = vadd.f32 %v1047, %v3010
      %v3014 = vxor.u32 %v3013, 2147483648
      %v3015 = vmul.f32 %v3014, 1.442695
      %v3016 = vpow.pop %v3015
      %v3017 = vadd.f32 %v3016, 1.0
      %v3018 = vrcp.pop %v3017
      %v3019 = vmul.f32 1.0, %v3018
      %3020 = vmatprep.subr.mxu0 0.0
      %3021 = vmatpush1.msra.mxu0 %v1286
      %3022 = vmatprep.subr.mxu0 0.0
      %3023 = vmatpush1.msra.mxu0 %v1287
      %3024 = vmatprep.subr.mxu0 0.0
      %3025 = vmatpush1.msra.mxu0 0.0
      %3026 = vmatprep.subr.mxu0 0.0
      %3027 = vmatpush1.msra.mxu0 0.0
      %3028 = vmatprep.subr.mxu0 0.0
      %3029 = vmatpush1.msra.mxu0 0.0
      %3030 = vmatprep.subr.mxu0 0.0
      %3031 = vmatpush1.msra.mxu0 0.0
      %3032 = vmatprep.subr.mxu0 0.0
      %3033 = vmatpush1.msra.mxu0 0.0
      %3034 = vmatprep.subr.mxu0 0.0
      %3035 = vmatpush1.msra.mxu0 0.0
      %3036 = vmatprep.subr.mxu0 0.0
      %3037 = vmatpush1.msra.mxu0 0.0
      %3038 = vmatprep.subr.mxu0 0.0
      %3039 = vmatpush1.msra.mxu0 0.0
      %3040 = vmatprep.subr.mxu0 0.0
      %3041 = vmatpush1.msra.mxu0 0.0
      %3042 = vmatprep.subr.mxu0 0.0
      %3043 = vmatpush1.msra.mxu0 0.0
      %3044 = vmatprep.subr.mxu0 0.0
      %3045 = vmatpush1.msra.mxu0 0.0
      %3046 = vmatprep.subr.mxu0 0.0
      %3047 = vmatpush1.msra.mxu0 0.0
      %3048 = vmatprep.subr.mxu0 0.0
      %3049 = vmatpush1.msra.mxu0 0.0
      %3050 = vmatprep.subr.mxu0 0.0
      %3051 = vmatpush1.msra.mxu0 0.0
      %3052 = vmatprep.subr.mxu0 0.0
      %3053 = vmatpush1.msra.mxu0 0.0
      %3054 = vmatprep.subr.mxu0 0.0
      %3055 = vmatpush1.msra.mxu0 0.0
      %3056 = vmatprep.subr.mxu0 0.0
      %3057 = vmatpush1.msra.mxu0 0.0
      %3058 = vmatprep.subr.mxu0 0.0
      %3059 = vmatpush1.msra.mxu0 0.0
      %3060 = vmatprep.subr.mxu0 0.0
      %3061 = vmatpush1.msra.mxu0 0.0
      %3062 = vmatprep.subr.mxu0 0.0
      %3063 = vmatpush1.msra.mxu0 0.0
      %3064 = vmatprep.subr.mxu0 0.0
      %3065 = vmatpush1.msra.mxu0 0.0
      %3066 = vmatprep.subr.mxu0 0.0
      %3067 = vmatpush1.msra.mxu0 0.0
      %3068 = vmatprep.subr.mxu0 0.0
      %3069 = vmatpush1.msra.mxu0 0.0
      %3070 = vmatprep.subr.mxu0 0.0
      %3071 = vmatpush1.msra.mxu0 0.0
      %3072 = vmatprep.subr.mxu0 0.0
      %3073 = vmatpush1.msra.mxu0 0.0
      %3074 = vmatprep.subr.mxu0 0.0
      %3075 = vmatpush1.msra.mxu0 0.0
      %3076 = vmatprep.subr.mxu0 0.0
      %3077 = vmatpush1.msra.mxu0 0.0
      %3078 = vmatprep.subr.mxu0 0.0
      %3079 = vmatpush1.msra.mxu0 0.0
      %3080 = vmatprep.subr.mxu0 0.0
      %3081 = vmatpush1.msra.mxu0 0.0
      %3082 = vmatprep.subr.mxu0 0.0
      %3083 = vmatpush1.msra.mxu0 0.0
      %3084 = vmatprep.mubr.f32.mxu0 0.0
      %3085 = vmatmul.mubr.f32.gmra.mrb[0].mxu0 %v2941
      %v3086 = vpop.f32.mrb[0].mxu0
      %v3087 = vadd.f32 0.0, %v3086
      %v3088 = vpop.f32.mrb[0].mxu0
      %3089 = vdwg.mxu0
      %v3090 = vadd.f32 %v1152, %v3087
      %v3091 = vxor.u32 %v3090, 2147483648
      %v3092 = vmul.f32 %v3091, 1.442695
      %v3093 = vpow.pop %v3092
      %v3094 = vadd.f32 %v3093, 1.0
      %v3095 = vrcp.pop %v3094
      %v3096 = vmul.f32 1.0, %v3095
      %3097 = vmatprep.subr.mxu0 0.0
      %3098 = vmatpush1.msra.mxu0 %v1289
      %3099 = vmatprep.subr.mxu0 0.0
      %3100 = vmatpush1.msra.mxu0 %v1290
      %3101 = vmatprep.subr.mxu0 0.0
      %3102 = vmatpush1.msra.mxu0 0.0
      %3103 = vmatprep.subr.mxu0 0.0
      %3104 = vmatpush1.msra.mxu0 0.0
      %3105 = vmatprep.subr.mxu0 0.0
      %3106 = vmatpush1.msra.mxu0 0.0
      %3107 = vmatprep.subr.mxu0 0.0
      %3108 = vmatpush1.msra.mxu0 0.0
      %3109 = vmatprep.subr.mxu0 0.0
      %3110 = vmatpush1.msra.mxu0 0.0
      %3111 = vmatprep.subr.mxu0 0.0
      %3112 = vmatpush1.msra.mxu0 0.0
      %3113 = vmatprep.subr.mxu0 0.0
      %3114 = vmatpush1.msra.mxu0 0.0
      %3115 = vmatprep.subr.mxu0 0.0
      %3116 = vmatpush1.msra.mxu0 0.0
      %3117 = vmatprep.subr.mxu0 0.0
      %3118 = vmatpush1.msra.mxu0 0.0
      %3119 = vmatprep.subr.mxu0 0.0
      %3120 = vmatpush1.msra.mxu0 0.0
      %3121 = vmatprep.subr.mxu0 0.0
      %3122 = vmatpush1.msra.mxu0 0.0
      %3123 = vmatprep.subr.mxu0 0.0
      %3124 = vmatpush1.msra.mxu0 0.0
      %3125 = vmatprep.subr.mxu0 0.0
      %3126 = vmatpush1.msra.mxu0 0.0
      %3127 = vmatprep.subr.mxu0 0.0
      %3128 = vmatpush1.msra.mxu0 0.0
      %3129 = vmatprep.subr.mxu0 0.0
      %3130 = vmatpush1.msra.mxu0 0.0
      %3131 = vmatprep.subr.mxu0 0.0
      %3132 = vmatpush1.msra.mxu0 0.0
      %3133 = vmatprep.subr.mxu0 0.0
      %3134 = vmatpush1.msra.mxu0 0.0
      %3135 = vmatprep.subr.mxu0 0.0
      %3136 = vmatpush1.msra.mxu0 0.0
      %3137 = vmatprep.subr.mxu0 0.0
      %3138 = vmatpush1.msra.mxu0 0.0
      %3139 = vmatprep.subr.mxu0 0.0
      %3140 = vmatpush1.msra.mxu0 0.0
      %3141 = vmatprep.subr.mxu0 0.0
      %3142 = vmatpush1.msra.mxu0 0.0
      %3143 = vmatprep.subr.mxu0 0.0
      %3144 = vmatpush1.msra.mxu0 0.0
      %3145 = vmatprep.subr.mxu0 0.0
      %3146 = vmatpush1.msra.mxu0 0.0
      %3147 = vmatprep.subr.mxu0 0.0
      %3148 = vmatpush1.msra.mxu0 0.0
      %3149 = vmatprep.subr.mxu0 0.0
      %3150 = vmatpush1.msra.mxu0 0.0
      %3151 = vmatprep.subr.mxu0 0.0
      %3152 = vmatpush1.msra.mxu0 0.0
      %3153 = vmatprep.subr.mxu0 0.0
      %3154 = vmatpush1.msra.mxu0 0.0
      %3155 = vmatprep.subr.mxu0 0.0
      %3156 = vmatpush1.msra.mxu0 0.0
      %3157 = vmatprep.subr.mxu0 0.0
      %3158 = vmatpush1.msra.mxu0 0.0
      %3159 = vmatprep.subr.mxu0 0.0
      %3160 = vmatpush1.msra.mxu0 0.0
      %3161 = vmatprep.mubr.f32.mxu0 0.0
      %3162 = vmatmul.mubr.f32.gmra.mrb[0].mxu0 %v2941
      %v3163 = vpop.f32.mrb[0].mxu0
      %v3164 = vadd.f32 %v1692, %v3163
      %v3165 = vpop.f32.mrb[0].mxu0
      %3166 = vdwg.mxu0
      %v3167 = vmul.f32 %v3019, %v3164
      %v3168 = vadd.f32 %v1257, %v3167
      %v3169 = vtanh.pop %v3168
      %v3170 = vsub.f32 1.0, %v3096
      %v3171 = vmul.f32 %v3170, %v3169
      %v3172 = vmul.f32 %v3096, %v2705
      %v3173 = vadd.f32 %v3171, %v3172
      %v3175 = vsel %vm1293, %v2939, 0
      %3177 = vmatprep.subr.mxu0 0.0
      %3178 = vmatpush1.msra.mxu0 %v1275
      %3179 = vmatprep.subr.mxu0 0.0
      %3180 = vmatpush1.msra.mxu0 %v1276
      %3181 = vmatprep.subr.mxu0 0.0
      %3182 = vmatpush1.msra.mxu0 0.0
      %3183 = vmatprep.subr.mxu0 0.0
      %3184 = vmatpush1.msra.mxu0 0.0
      %3185 = vmatprep.subr.mxu0 0.0
      %3186 = vmatpush1.msra.mxu0 0.0
      %3187 = vmatprep.subr.mxu0 0.0
      %3188 = vmatpush1.msra.mxu0 0.0
      %3189 = vmatprep.subr.mxu0 0.0
      %3190 = vmatpush1.msra.mxu0 0.0
      %3191 = vmatprep.subr.mxu0 0.0
      %3192 = vmatpush1.msra.mxu0 0.0
      %3193 = vmatprep.subr.mxu0 0.0
      %3194 = vmatpush1.msra.mxu0 0.0
      %3195 = vmatprep.subr.mxu0 0.0
      %3196 = vmatpush1.msra.mxu0 0.0
      %3197 = vmatprep.subr.mxu0 0.0
      %3198 = vmatpush1.msra.mxu0 0.0
      %3199 = vmatprep.subr.mxu0 0.0
      %3200 = vmatpush1.msra.mxu0 0.0
      %3201 = vmatprep.subr.mxu0 0.0
      %3202 = vmatpush1.msra.mxu0 0.0
      %3203 = vmatprep.subr.mxu0 0.0
      %3204 = vmatpush1.msra.mxu0 0.0
      %3205 = vmatprep.subr.mxu0 0.0
      %3206 = vmatpush1.msra.mxu0 0.0
      %3207 = vmatprep.subr.mxu0 0.0
      %3208 = vmatpush1.msra.mxu0 0.0
      %3209 = vmatprep.subr.mxu0 0.0
      %3210 = vmatpush1.msra.mxu0 0.0
      %3211 = vmatprep.subr.mxu0 0.0
      %3212 = vmatpush1.msra.mxu0 0.0
      %3213 = vmatprep.subr.mxu0 0.0
      %3214 = vmatpush1.msra.mxu0 0.0
      %3215 = vmatprep.subr.mxu0 0.0
      %3216 = vmatpush1.msra.mxu0 0.0
      %3217 = vmatprep.subr.mxu0 0.0
      %3218 = vmatpush1.msra.mxu0 0.0
      %3219 = vmatprep.subr.mxu0 0.0
      %3220 = vmatpush1.msra.mxu0 0.0
      %3221 = vmatprep.subr.mxu0 0.0
      %3222 = vmatpush1.msra.mxu0 0.0
      %3223 = vmatprep.subr.mxu0 0.0
      %3224 = vmatpush1.msra.mxu0 0.0
      %3225 = vmatprep.subr.mxu0 0.0
      %3226 = vmatpush1.msra.mxu0 0.0
      %3227 = vmatprep.subr.mxu0 0.0
      %3228 = vmatpush1.msra.mxu0 0.0
      %3229 = vmatprep.subr.mxu0 0.0
      %3230 = vmatpush1.msra.mxu0 0.0
      %3231 = vmatprep.subr.mxu0 0.0
      %3232 = vmatpush1.msra.mxu0 0.0
      %3233 = vmatprep.subr.mxu0 0.0
      %3234 = vmatpush1.msra.mxu0 0.0
      %3235 = vmatprep.subr.mxu0 0.0
      %3236 = vmatpush1.msra.mxu0 0.0
      %3237 = vmatprep.subr.mxu0 0.0
      %3238 = vmatpush1.msra.mxu0 0.0
      %3239 = vmatprep.subr.mxu0 0.0
      %3240 = vmatpush1.msra.mxu0 0.0
      %3241 = vmatprep.mubr.f32.mxu0 0.0
      %3242 = vmatmul.mubr.f32.gmra.mrb[0].mxu0 %v3175
      %v3243 = vpop.f32.mrb[0].mxu0
      %v3244 = vadd.f32 0.0, %v3243
      %v3245 = vpop.f32.mrb[0].mxu0
      %3246 = vdwg.mxu0
      %v3247 = vadd.f32 %v743, %v3244
      %v3248 = vxor.u32 %v3247, 2147483648
      %v3249 = vmul.f32 %v3248, 1.442695
      %v3250 = vpow.pop %v3249
      %v3251 = vadd.f32 %v3250, 1.0
      %v3252 = vrcp.pop %v3251
      %v3253 = vmul.f32 1.0, %v3252
      %3254 = vmatprep.subr.mxu0 0.0
      %3255 = vmatpush1.msra.mxu0 %v1278
      %3256 = vmatprep.subr.mxu0 0.0
      %3257 = vmatpush1.msra.mxu0 %v1279
      %3258 = vmatprep.subr.mxu0 0.0
      %3259 = vmatpush1.msra.mxu0 0.0
      %3260 = vmatprep.subr.mxu0 0.0
      %3261 = vmatpush1.msra.mxu0 0.0
      %3262 = vmatprep.subr.mxu0 0.0
      %3263 = vmatpush1.msra.mxu0 0.0
      %3264 = vmatprep.subr.mxu0 0.0
      %3265 = vmatpush1.msra.mxu0 0.0
      %3266 = vmatprep.subr.mxu0 0.0
      %3267 = vmatpush1.msra.mxu0 0.0
      %3268 = vmatprep.subr.mxu0 0.0
      %3269 = vmatpush1.msra.mxu0 0.0
      %3270 = vmatprep.subr.mxu0 0.0
      %3271 = vmatpush1.msra.mxu0 0.0
      %3272 = vmatprep.subr.mxu0 0.0
      %3273 = vmatpush1.msra.mxu0 0.0
      %3274 = vmatprep.subr.mxu0 0.0
      %3275 = vmatpush1.msra.mxu0 0.0
      %3276 = vmatprep.subr.mxu0 0.0
      %3277 = vmatpush1.msra.mxu0 0.0
      %3278 = vmatprep.subr.mxu0 0.0
      %3279 = vmatpush1.msra.mxu0 0.0
      %3280 = vmatprep.subr.mxu0 0.0
      %3281 = vmatpush1.msra.mxu0 0.0
      %3282 = vmatprep.subr.mxu0 0.0
      %3283 = vmatpush1.msra.mxu0 0.0
      %3284 = vmatprep.subr.mxu0 0.0
      %3285 = vmatpush1.msra.mxu0 0.0
      %3286 = vmatprep.subr.mxu0 0.0
      %3287 = vmatpush1.msra.mxu0 0.0
      %3288 = vmatprep.subr.mxu0 0.0
      %3289 = vmatpush1.msra.mxu0 0.0
      %3290 = vmatprep.subr.mxu0 0.0
      %3291 = vmatpush1.msra.mxu0 0.0
      %3292 = vmatprep.subr.mxu0 0.0
      %3293 = vmatpush1.msra.mxu0 0.0
      %3294 = vmatprep.subr.mxu0 0.0
      %3295 = vmatpush1.msra.mxu0 0.0
      %3296 = vmatprep.subr.mxu0 0.0
      %3297 = vmatpush1.msra.mxu0 0.0
      %3298 = vmatprep.subr.mxu0 0.0
      %3299 = vmatpush1.msra.mxu0 0.0
      %3300 = vmatprep.subr.mxu0 0.0
      %3301 = vmatpush1.msra.mxu0 0.0
      %3302 = vmatprep.subr.mxu0 0.0
      %3303 = vmatpush1.msra.mxu0 0.0
      %3304 = vmatprep.subr.mxu0 0.0
      %3305 = vmatpush1.msra.mxu0 0.0
      %3306 = vmatprep.subr.mxu0 0.0
      %3307 = vmatpush1.msra.mxu0 0.0
      %3308 = vmatprep.subr.mxu0 0.0
      %3309 = vmatpush1.msra.mxu0 0.0
      %3310 = vmatprep.subr.mxu0 0.0
      %3311 = vmatpush1.msra.mxu0 0.0
      %3312 = vmatprep.subr.mxu0 0.0
      %3313 = vmatpush1.msra.mxu0 0.0
      %3314 = vmatprep.subr.mxu0 0.0
      %3315 = vmatpush1.msra.mxu0 0.0
      %3316 = vmatprep.subr.mxu0 0.0
      %3317 = vmatpush1.msra.mxu0 0.0
      %3318 = vmatprep.mubr.f32.mxu0 0.0
      %3319 = vmatmul.mubr.f32.gmra.mrb[0].mxu0 %v3175
      %v3320 = vpop.f32.mrb[0].mxu0
      %v3321 = vadd.f32 0.0, %v3320
      %v3322 = vpop.f32.mrb[0].mxu0
      %3323 = vdwg.mxu0
      %v3324 = vadd.f32 %v848, %v3321
      %v3325 = vxor.u32 %v3324, 2147483648
      %v3326 = vmul.f32 %v3325, 1.442695
      %v3327 = vpow.pop %v3326
      %v3328 = vadd.f32 %v3327, 1.0
      %v3329 = vrcp.pop %v3328
      %v3330 = vmul.f32 1.0, %v3329
      %3331 = vmatprep.subr.mxu0 0.0
      %3332 = vmatpush1.msra.mxu0 %v1281
      %3333 = vmatprep.subr.mxu0 0.0
      %3334 = vmatpush1.msra.mxu0 %v1282
      %3335 = vmatprep.subr.mxu0 0.0
      %3336 = vmatpush1.msra.mxu0 0.0
      %3337 = vmatprep.subr.mxu0 0.0
      %3338 = vmatpush1.msra.mxu0 0.0
      %3339 = vmatprep.subr.mxu0 0.0
      %3340 = vmatpush1.msra.mxu0 0.0
      %3341 = vmatprep.subr.mxu0 0.0
      %3342 = vmatpush1.msra.mxu0 0.0
      %3343 = vmatprep.subr.mxu0 0.0
      %3344 = vmatpush1.msra.mxu0 0.0
      %3345 = vmatprep.subr.mxu0 0.0
      %3346 = vmatpush1.msra.mxu0 0.0
      %3347 = vmatprep.subr.mxu0 0.0
      %3348 = vmatpush1.msra.mxu0 0.0
      %3349 = vmatprep.subr.mxu0 0.0
      %3350 = vmatpush1.msra.mxu0 0.0
      %3351 = vmatprep.subr.mxu0 0.0
      %3352 = vmatpush1.msra.mxu0 0.0
      %3353 = vmatprep.subr.mxu0 0.0
      %3354 = vmatpush1.msra.mxu0 0.0
      %3355 = vmatprep.subr.mxu0 0.0
      %3356 = vmatpush1.msra.mxu0 0.0
      %3357 = vmatprep.subr.mxu0 0.0
      %3358 = vmatpush1.msra.mxu0 0.0
      %3359 = vmatprep.subr.mxu0 0.0
      %3360 = vmatpush1.msra.mxu0 0.0
      %3361 = vmatprep.subr.mxu0 0.0
      %3362 = vmatpush1.msra.mxu0 0.0
      %3363 = vmatprep.subr.mxu0 0.0
      %3364 = vmatpush1.msra.mxu0 0.0
      %3365 = vmatprep.subr.mxu0 0.0
      %3366 = vmatpush1.msra.mxu0 0.0
      %3367 = vmatprep.subr.mxu0 0.0
      %3368 = vmatpush1.msra.mxu0 0.0
      %3369 = vmatprep.subr.mxu0 0.0
      %3370 = vmatpush1.msra.mxu0 0.0
      %3371 = vmatprep.subr.mxu0 0.0
      %3372 = vmatpush1.msra.mxu0 0.0
      %3373 = vmatprep.subr.mxu0 0.0
      %3374 = vmatpush1.msra.mxu0 0.0
      %3375 = vmatprep.subr.mxu0 0.0
      %3376 = vmatpush1.msra.mxu0 0.0
      %3377 = vmatprep.subr.mxu0 0.0
      %3378 = vmatpush1.msra.mxu0 0.0
      %3379 = vmatprep.subr.mxu0 0.0
      %3380 = vmatpush1.msra.mxu0 0.0
      %3381 = vmatprep.subr.mxu0 0.0
      %3382 = vmatpush1.msra.mxu0 0.0
      %3383 = vmatprep.subr.mxu0 0.0
      %3384 = vmatpush1.msra.mxu0 0.0
      %3385 = vmatprep.subr.mxu0 0.0
      %3386 = vmatpush1.msra.mxu0 0.0
      %3387 = vmatprep.subr.mxu0 0.0
      %3388 = vmatpush1.msra.mxu0 0.0
      %3389 = vmatprep.subr.mxu0 0.0
      %3390 = vmatpush1.msra.mxu0 0.0
      %3391 = vmatprep.subr.mxu0 0.0
      %3392 = vmatpush1.msra.mxu0 0.0
      %3393 = vmatprep.subr.mxu0 0.0
      %3394 = vmatpush1.msra.mxu0 0.0
      %3395 = vmatprep.mubr.f32.mxu0 0.0
      %3396 = vmatmul.mubr.f32.gmra.mrb[0].mxu0 %v3175
      %v3397 = vpop.f32.mrb[0].mxu0
      %v3398 = vadd.f32 %v1454, %v3397
      %v3399 = vpop.f32.mrb[0].mxu0
      %3400 = vdwg.mxu0
      %v3401 = vmul.f32 %v3253, %v3398
      %v3402 = vadd.f32 %v953, %v3401
      %v3403 = vtanh.pop %v3402
      %v3404 = vsub.f32 1.0, %v3330
      %v3405 = vmul.f32 %v3404, %v3403
      %v3406 = vmul.f32 %v3330, %v2939
      %v3407 = vadd.f32 %v3405, %v3406
      %v3409 = vsel %vm1293, %v3173, 0
      %3411 = vmatprep.subr.mxu0 0.0
      %3412 = vmatpush1.msra.mxu0 %v1283
      %3413 = vmatprep.subr.mxu0 0.0
      %3414 = vmatpush1.msra.mxu0 %v1284
      %3415 = vmatprep.subr.mxu0 0.0
      %3416 = vmatpush1.msra.mxu0 0.0
      %3417 = vmatprep.subr.mxu0 0.0
      %3418 = vmatpush1.msra.mxu0 0.0
      %3419 = vmatprep.subr.mxu0 0.0
      %3420 = vmatpush1.msra.mxu0 0.0
      %3421 = vmatprep.subr.mxu0 0.0
      %3422 = vmatpush1.msra.mxu0 0.0
      %3423 = vmatprep.subr.mxu0 0.0
      %3424 = vmatpush1.msra.mxu0 0.0
      %3425 = vmatprep.subr.mxu0 0.0
      %3426 = vmatpush1.msra.mxu0 0.0
      %3427 = vmatprep.subr.mxu0 0.0
      %3428 = vmatpush1.msra.mxu0 0.0
      %3429 = vmatprep.subr.mxu0 0.0
      %3430 = vmatpush1.msra.mxu0 0.0
      %3431 = vmatprep.subr.mxu0 0.0
      %3432 = vmatpush1.msra.mxu0 0.0
      %3433 = vmatprep.subr.mxu0 0.0
      %3434 = vmatpush1.msra.mxu0 0.0
      %3435 = vmatprep.subr.mxu0 0.0
      %3436 = vmatpush1.msra.mxu0 0.0
      %3437 = vmatprep.subr.mxu0 0.0
      %3438 = vmatpush1.msra.mxu0 0.0
      %3439 = vmatprep.subr.mxu0 0.0
      %3440 = vmatpush1.msra.mxu0 0.0
      %3441 = vmatprep.subr.mxu0 0.0
      %3442 = vmatpush1.msra.mxu0 0.0
      %3443 = vmatprep.subr.mxu0 0.0
      %3444 = vmatpush1.msra.mxu0 0.0
      %3445 = vmatprep.subr.mxu0 0.0
      %3446 = vmatpush1.msra.mxu0 0.0
      %3447 = vmatprep.subr.mxu0 0.0
      %3448 = vmatpush1.msra.mxu0 0.0
      %3449 = vmatprep.subr.mxu0 0.0
      %3450 = vmatpush1.msra.mxu0 0.0
      %3451 = vmatprep.subr.mxu0 0.0
      %3452 = vmatpush1.msra.mxu0 0.0
      %3453 = vmatprep.subr.mxu0 0.0
      %3454 = vmatpush1.msra.mxu0 0.0
      %3455 = vmatprep.subr.mxu0 0.0
      %3456 = vmatpush1.msra.mxu0 0.0
      %3457 = vmatprep.subr.mxu0 0.0
      %3458 = vmatpush1.msra.mxu0 0.0
      %3459 = vmatprep.subr.mxu0 0.0
      %3460 = vmatpush1.msra.mxu0 0.0
      %3461 = vmatprep.subr.mxu0 0.0
      %3462 = vmatpush1.msra.mxu0 0.0
      %3463 = vmatprep.subr.mxu0 0.0
      %3464 = vmatpush1.msra.mxu0 0.0
      %3465 = vmatprep.subr.mxu0 0.0
      %3466 = vmatpush1.msra.mxu0 0.0
      %3467 = vmatprep.subr.mxu0 0.0
      %3468 = vmatpush1.msra.mxu0 0.0
      %3469 = vmatprep.subr.mxu0 0.0
      %3470 = vmatpush1.msra.mxu0 0.0
      %3471 = vmatprep.subr.mxu0 0.0
      %3472 = vmatpush1.msra.mxu0 0.0
      %3473 = vmatprep.subr.mxu0 0.0
      %3474 = vmatpush1.msra.mxu0 0.0
      %3475 = vmatprep.mubr.f32.mxu0 0.0
      %3476 = vmatmul.mubr.f32.gmra.mrb[0].mxu0 %v3409
      %v3477 = vpop.f32.mrb[0].mxu0
      %v3478 = vadd.f32 0.0, %v3477
      %v3479 = vpop.f32.mrb[0].mxu0
      %3480 = vdwg.mxu0
      %v3481 = vadd.f32 %v1042, %v3478
      %v3482 = vxor.u32 %v3481, 2147483648
      %v3483 = vmul.f32 %v3482, 1.442695
      %v3484 = vpow.pop %v3483
      %v3485 = vadd.f32 %v3484, 1.0
      %v3486 = vrcp.pop %v3485
      %v3487 = vmul.f32 1.0, %v3486
      %3488 = vmatprep.subr.mxu0 0.0
      %3489 = vmatpush1.msra.mxu0 %v1286
      %3490 = vmatprep.subr.mxu0 0.0
      %3491 = vmatpush1.msra.mxu0 %v1287
      %3492 = vmatprep.subr.mxu0 0.0
      %3493 = vmatpush1.msra.mxu0 0.0
      %3494 = vmatprep.subr.mxu0 0.0
      %3495 = vmatpush1.msra.mxu0 0.0
      %3496 = vmatprep.subr.mxu0 0.0
      %3497 = vmatpush1.msra.mxu0 0.0
      %3498 = vmatprep.subr.mxu0 0.0
      %3499 = vmatpush1.msra.mxu0 0.0
      %3500 = vmatprep.subr.mxu0 0.0
      %3501 = vmatpush1.msra.mxu0 0.0
      %3502 = vmatprep.subr.mxu0 0.0
      %3503 = vmatpush1.msra.mxu0 0.0
      %3504 = vmatprep.subr.mxu0 0.0
      %3505 = vmatpush1.msra.mxu0 0.0
      %3506 = vmatprep.subr.mxu0 0.0
      %3507 = vmatpush1.msra.mxu0 0.0
      %3508 = vmatprep.subr.mxu0 0.0
      %3509 = vmatpush1.msra.mxu0 0.0
      %3510 = vmatprep.subr.mxu0 0.0
      %3511 = vmatpush1.msra.mxu0 0.0
      %3512 = vmatprep.subr.mxu0 0.0
      %3513 = vmatpush1.msra.mxu0 0.0
      %3514 = vmatprep.subr.mxu0 0.0
      %3515 = vmatpush1.msra.mxu0 0.0
      %3516 = vmatprep.subr.mxu0 0.0
      %3517 = vmatpush1.msra.mxu0 0.0
      %3518 = vmatprep.subr.mxu0 0.0
      %3519 = vmatpush1.msra.mxu0 0.0
      %3520 = vmatprep.subr.mxu0 0.0
      %3521 = vmatpush1.msra.mxu0 0.0
      %3522 = vmatprep.subr.mxu0 0.0
      %3523 = vmatpush1.msra.mxu0 0.0
      %3524 = vmatprep.subr.mxu0 0.0
      %3525 = vmatpush1.msra.mxu0 0.0
      %3526 = vmatprep.subr.mxu0 0.0
      %3527 = vmatpush1.msra.mxu0 0.0
      %3528 = vmatprep.subr.mxu0 0.0
      %3529 = vmatpush1.msra.mxu0 0.0
      %3530 = vmatprep.subr.mxu0 0.0
      %3531 = vmatpush1.msra.mxu0 0.0
      %3532 = vmatprep.subr.mxu0 0.0
      %3533 = vmatpush1.msra.mxu0 0.0
      %3534 = vmatprep.subr.mxu0 0.0
      %3535 = vmatpush1.msra.mxu0 0.0
      %3536 = vmatprep.subr.mxu0 0.0
      %3537 = vmatpush1.msra.mxu0 0.0
      %3538 = vmatprep.subr.mxu0 0.0
      %3539 = vmatpush1.msra.mxu0 0.0
      %3540 = vmatprep.subr.mxu0 0.0
      %3541 = vmatpush1.msra.mxu0 0.0
      %3542 = vmatprep.subr.mxu0 0.0
      %3543 = vmatpush1.msra.mxu0 0.0
      %3544 = vmatprep.subr.mxu0 0.0
      %3545 = vmatpush1.msra.mxu0 0.0
      %3546 = vmatprep.subr.mxu0 0.0
      %3547 = vmatpush1.msra.mxu0 0.0
      %3548 = vmatprep.subr.mxu0 0.0
      %3549 = vmatpush1.msra.mxu0 0.0
      %3550 = vmatprep.subr.mxu0 0.0
      %3551 = vmatpush1.msra.mxu0 0.0
      %3552 = vmatprep.mubr.f32.mxu0 0.0
      %3553 = vmatmul.mubr.f32.gmra.mrb[0].mxu0 %v3409
      %v3554 = vpop.f32.mrb[0].mxu0
      %v3555 = vadd.f32 0.0, %v3554
      %v3556 = vpop.f32.mrb[0].mxu0
      %3557 = vdwg.mxu0
      %v3558 = vadd.f32 %v1147, %v3555
      %v3559 = vxor.u32 %v3558, 2147483648
      %v3560 = vmul.f32 %v3559, 1.442695
      %v3561 = vpow.pop %v3560
      %v3562 = vadd.f32 %v3561, 1.0
      %v3563 = vrcp.pop %v3562
      %v3564 = vmul.f32 1.0, %v3563
      %3565 = vmatprep.subr.mxu0 0.0
      %3566 = vmatpush1.msra.mxu0 %v1289
      %3567 = vmatprep.subr.mxu0 0.0
      %3568 = vmatpush1.msra.mxu0 %v1290
      %3569 = vmatprep.subr.mxu0 0.0
      %3570 = vmatpush1.msra.mxu0 0.0
      %3571 = vmatprep.subr.mxu0 0.0
      %3572 = vmatpush1.msra.mxu0 0.0
      %3573 = vmatprep.subr.mxu0 0.0
      %3574 = vmatpush1.msra.mxu0 0.0
      %3575 = vmatprep.subr.mxu0 0.0
      %3576 = vmatpush1.msra.mxu0 0.0
      %3577 = vmatprep.subr.mxu0 0.0
      %3578 = vmatpush1.msra.mxu0 0.0
      %3579 = vmatprep.subr.mxu0 0.0
      %3580 = vmatpush1.msra.mxu0 0.0
      %3581 = vmatprep.subr.mxu0 0.0
      %3582 = vmatpush1.msra.mxu0 0.0
      %3583 = vmatprep.subr.mxu0 0.0
      %3584 = vmatpush1.msra.mxu0 0.0
      %3585 = vmatprep.subr.mxu0 0.0
      %3586 = vmatpush1.msra.mxu0 0.0
      %3587 = vmatprep.subr.mxu0 0.0
      %3588 = vmatpush1.msra.mxu0 0.0
      %3589 = vmatprep.subr.mxu0 0.0
      %3590 = vmatpush1.msra.mxu0 0.0
      %3591 = vmatprep.subr.mxu0 0.0
      %3592 = vmatpush1.msra.mxu0 0.0
      %3593 = vmatprep.subr.mxu0 0.0
      %3594 = vmatpush1.msra.mxu0 0.0
      %3595 = vmatprep.subr.mxu0 0.0
      %3596 = vmatpush1.msra.mxu0 0.0
      %3597 = vmatprep.subr.mxu0 0.0
      %3598 = vmatpush1.msra.mxu0 0.0
      %3599 = vmatprep.subr.mxu0 0.0
      %3600 = vmatpush1.msra.mxu0 0.0
      %3601 = vmatprep.subr.mxu0 0.0
      %3602 = vmatpush1.msra.mxu0 0.0
      %3603 = vmatprep.subr.mxu0 0.0
      %3604 = vmatpush1.msra.mxu0 0.0
      %3605 = vmatprep.subr.mxu0 0.0
      %3606 = vmatpush1.msra.mxu0 0.0
      %3607 = vmatprep.subr.mxu0 0.0
      %3608 = vmatpush1.msra.mxu0 0.0
      %3609 = vmatprep.subr.mxu0 0.0
      %3610 = vmatpush1.msra.mxu0 0.0
      %3611 = vmatprep.subr.mxu0 0.0
      %3612 = vmatpush1.msra.mxu0 0.0
      %3613 = vmatprep.subr.mxu0 0.0
      %3614 = vmatpush1.msra.mxu0 0.0
      %3615 = vmatprep.subr.mxu0 0.0
      %3616 = vmatpush1.msra.mxu0 0.0
      %3617 = vmatprep.subr.mxu0 0.0
      %3618 = vmatpush1.msra.mxu0 0.0
      %3619 = vmatprep.subr.mxu0 0.0
      %3620 = vmatpush1.msra.mxu0 0.0
      %3621 = vmatprep.subr.mxu0 0.0
      %3622 = vmatpush1.msra.mxu0 0.0
      %3623 = vmatprep.subr.mxu0 0.0
      %3624 = vmatpush1.msra.mxu0 0.0
      %3625 = vmatprep.subr.mxu0 0.0
      %3626 = vmatpush1.msra.mxu0 0.0
      %3627 = vmatprep.subr.mxu0 0.0
      %3628 = vmatpush1.msra.mxu0 0.0
      %3629 = vmatprep.mubr.f32.mxu0 0.0
      %3630 = vmatmul.mubr.f32.gmra.mrb[0].mxu0 %v3409
      %v3631 = vpop.f32.mrb[0].mxu0
      %v3632 = vadd.f32 %v1692, %v3631
      %v3633 = vpop.f32.mrb[0].mxu0
      %3634 = vdwg.mxu0
      %v3635 = vmul.f32 %v3487, %v3632
      %v3636 = vadd.f32 %v1252, %v3635
      %v3637 = vtanh.pop %v3636
      %v3638 = vsub.f32 1.0, %v3564
      %v3639 = vmul.f32 %v3638, %v3637
      %v3640 = vmul.f32 %v3564, %v3173
      %v3641 = vadd.f32 %v3639, %v3640
      %v3643 = vsel %vm1293, %v3407, 0
      %3645 = vmatprep.subr.mxu0 0.0
      %3646 = vmatpush1.msra.mxu0 %v1275
      %3647 = vmatprep.subr.mxu0 0.0
      %3648 = vmatpush1.msra.mxu0 %v1276
      %3649 = vmatprep.subr.mxu0 0.0
      %3650 = vmatpush1.msra.mxu0 0.0
      %3651 = vmatprep.subr.mxu0 0.0
      %3652 = vmatpush1.msra.mxu0 0.0
      %3653 = vmatprep.subr.mxu0 0.0
      %3654 = vmatpush1.msra.mxu0 0.0
      %3655 = vmatprep.subr.mxu0 0.0
      %3656 = vmatpush1.msra.mxu0 0.0
      %3657 = vmatprep.subr.mxu0 0.0
      %3658 = vmatpush1.msra.mxu0 0.0
      %3659 = vmatprep.subr.mxu0 0.0
      %3660 = vmatpush1.msra.mxu0 0.0
      %3661 = vmatprep.subr.mxu0 0.0
      %3662 = vmatpush1.msra.mxu0 0.0
      %3663 = vmatprep.subr.mxu0 0.0
      %3664 = vmatpush1.msra.mxu0 0.0
      %3665 = vmatprep.subr.mxu0 0.0
      %3666 = vmatpush1.msra.mxu0 0.0
      %3667 = vmatprep.subr.mxu0 0.0
      %3668 = vmatpush1.msra.mxu0 0.0
      %3669 = vmatprep.subr.mxu0 0.0
      %3670 = vmatpush1.msra.mxu0 0.0
      %3671 = vmatprep.subr.mxu0 0.0
      %3672 = vmatpush1.msra.mxu0 0.0
      %3673 = vmatprep.subr.mxu0 0.0
      %3674 = vmatpush1.msra.mxu0 0.0
      %3675 = vmatprep.subr.mxu0 0.0
      %3676 = vmatpush1.msra.mxu0 0.0
      %3677 = vmatprep.subr.mxu0 0.0
      %3678 = vmatpush1.msra.mxu0 0.0
      %3679 = vmatprep.subr.mxu0 0.0
      %3680 = vmatpush1.msra.mxu0 0.0
      %3681 = vmatprep.subr.mxu0 0.0
      %3682 = vmatpush1.msra.mxu0 0.0
      %3683 = vmatprep.subr.mxu0 0.0
      %3684 = vmatpush1.msra.mxu0 0.0
      %3685 = vmatprep.subr.mxu0 0.0
      %3686 = vmatpush1.msra.mxu0 0.0
      %3687 = vmatprep.subr.mxu0 0.0
      %3688 = vmatpush1.msra.mxu0 0.0
      %3689 = vmatprep.subr.mxu0 0.0
      %3690 = vmatpush1.msra.mxu0 0.0
      %3691 = vmatprep.subr.mxu0 0.0
      %3692 = vmatpush1.msra.mxu0 0.0
      %3693 = vmatprep.subr.mxu0 0.0
      %3694 = vmatpush1.msra.mxu0 0.0
      %3695 = vmatprep.subr.mxu0 0.0
      %3696 = vmatpush1.msra.mxu0 0.0
      %3697 = vmatprep.subr.mxu0 0.0
      %3698 = vmatpush1.msra.mxu0 0.0
      %3699 = vmatprep.subr.mxu0 0.0
      %3700 = vmatpush1.msra.mxu0 0.0
      %3701 = vmatprep.subr.mxu0 0.0
      %3702 = vmatpush1.msra.mxu0 0.0
      %3703 = vmatprep.subr.mxu0 0.0
      %3704 = vmatpush1.msra.mxu0 0.0
      %3705 = vmatprep.subr.mxu0 0.0
      %3706 = vmatpush1.msra.mxu0 0.0
      %3707 = vmatprep.subr.mxu0 0.0
      %3708 = vmatpush1.msra.mxu0 0.0
      %3709 = vmatprep.mubr.f32.mxu0 0.0
      %3710 = vmatmul.mubr.f32.gmra.mrb[0].mxu0 %v3643
      %v3711 = vpop.f32.mrb[0].mxu0
      %v3712 = vadd.f32 0.0, %v3711
      %v3713 = vpop.f32.mrb[0].mxu0
      %3714 = vdwg.mxu0
      %v3715 = vadd.f32 %v748, %v3712
      %v3716 = vxor.u32 %v3715, 2147483648
      %v3717 = vmul.f32 %v3716, 1.442695
      %v3718 = vpow.pop %v3717
      %v3719 = vadd.f32 %v3718, 1.0
      %v3720 = vrcp.pop %v3719
      %v3721 = vmul.f32 1.0, %v3720
      %3722 = vmatprep.subr.mxu0 0.0
      %3723 = vmatpush1.msra.mxu0 %v1278
      %3724 = vmatprep.subr.mxu0 0.0
      %3725 = vmatpush1.msra.mxu0 %v1279
      %3726 = vmatprep.subr.mxu0 0.0
      %3727 = vmatpush1.msra.mxu0 0.0
      %3728 = vmatprep.subr.mxu0 0.0
      %3729 = vmatpush1.msra.mxu0 0.0
      %3730 = vmatprep.subr.mxu0 0.0
      %3731 = vmatpush1.msra.mxu0 0.0
      %3732 = vmatprep.subr.mxu0 0.0
      %3733 = vmatpush1.msra.mxu0 0.0
      %3734 = vmatprep.subr.mxu0 0.0
      %3735 = vmatpush1.msra.mxu0 0.0
      %3736 = vmatprep.subr.mxu0 0.0
      %3737 = vmatpush1.msra.mxu0 0.0
      %3738 = vmatprep.subr.mxu0 0.0
      %3739 = vmatpush1.msra.mxu0 0.0
      %3740 = vmatprep.subr.mxu0 0.0
      %3741 = vmatpush1.msra.mxu0 0.0
      %3742 = vmatprep.subr.mxu0 0.0
      %3743 = vmatpush1.msra.mxu0 0.0
      %3744 = vmatprep.subr.mxu0 0.0
      %3745 = vmatpush1.msra.mxu0 0.0
      %3746 = vmatprep.subr.mxu0 0.0
      %3747 = vmatpush1.msra.mxu0 0.0
      %3748 = vmatprep.subr.mxu0 0.0
      %3749 = vmatpush1.msra.mxu0 0.0
      %3750 = vmatprep.subr.mxu0 0.0
      %3751 = vmatpush1.msra.mxu0 0.0
      %3752 = vmatprep.subr.mxu0 0.0
      %3753 = vmatpush1.msra.mxu0 0.0
      %3754 = vmatprep.subr.mxu0 0.0
      %3755 = vmatpush1.msra.mxu0 0.0
      %3756 = vmatprep.subr.mxu0 0.0
      %3757 = vmatpush1.msra.mxu0 0.0
      %3758 = vmatprep.subr.mxu0 0.0
      %3759 = vmatpush1.msra.mxu0 0.0
      %3760 = vmatprep.subr.mxu0 0.0
      %3761 = vmatpush1.msra.mxu0 0.0
      %3762 = vmatprep.subr.mxu0 0.0
      %3763 = vmatpush1.msra.mxu0 0.0
      %3764 = vmatprep.subr.mxu0 0.0
      %3765 = vmatpush1.msra.mxu0 0.0
      %3766 = vmatprep.subr.mxu0 0.0
      %3767 = vmatpush1.msra.mxu0 0.0
      %3768 = vmatprep.subr.mxu0 0.0
      %3769 = vmatpush1.msra.mxu0 0.0
      %3770 = vmatprep.subr.mxu0 0.0
      %3771 = vmatpush1.msra.mxu0 0.0
      %3772 = vmatprep.subr.mxu0 0.0
      %3773 = vmatpush1.msra.mxu0 0.0
      %3774 = vmatprep.subr.mxu0 0.0
      %3775 = vmatpush1.msra.mxu0 0.0
      %3776 = vmatprep.subr.mxu0 0.0
      %3777 = vmatpush1.msra.mxu0 0.0
      %3778 = vmatprep.subr.mxu0 0.0
      %3779 = vmatpush1.msra.mxu0 0.0
      %3780 = vmatprep.subr.mxu0 0.0
      %3781 = vmatpush1.msra.mxu0 0.0
      %3782 = vmatprep.subr.mxu0 0.0
      %3783 = vmatpush1.msra.mxu0 0.0
      %3784 = vmatprep.subr.mxu0 0.0
      %3785 = vmatpush1.msra.mxu0 0.0
      %3786 = vmatprep.mubr.f32.mxu0 0.0
      %3787 = vmatmul.mubr.f32.gmra.mrb[0].mxu0 %v3643
      %v3788 = vpop.f32.mrb[0].mxu0
      %v3789 = vadd.f32 0.0, %v3788
      %v3790 = vpop.f32.mrb[0].mxu0
      %3791 = vdwg.mxu0
      %v3792 = vadd.f32 %v853, %v3789
      %v3793 = vxor.u32 %v3792, 2147483648
      %v3794 = vmul.f32 %v3793, 1.442695
      %v3795 = vpow.pop %v3794
      %v3796 = vadd.f32 %v3795, 1.0
      %v3797 = vrcp.pop %v3796
      %v3798 = vmul.f32 1.0, %v3797
      %3799 = vmatprep.subr.mxu0 0.0
      %3800 = vmatpush1.msra.mxu0 %v1281
      %3801 = vmatprep.subr.mxu0 0.0
      %3802 = vmatpush1.msra.mxu0 %v1282
      %3803 = vmatprep.subr.mxu0 0.0
      %3804 = vmatpush1.msra.mxu0 0.0
      %3805 = vmatprep.subr.mxu0 0.0
      %3806 = vmatpush1.msra.mxu0 0.0
      %3807 = vmatprep.subr.mxu0 0.0
      %3808 = vmatpush1.msra.mxu0 0.0
      %3809 = vmatprep.subr.mxu0 0.0
      %3810 = vmatpush1.msra.mxu0 0.0
      %3811 = vmatprep.subr.mxu0 0.0
      %3812 = vmatpush1.msra.mxu0 0.0
      %3813 = vmatprep.subr.mxu0 0.0
      %3814 = vmatpush1.msra.mxu0 0.0
      %3815 = vmatprep.subr.mxu0 0.0
      %3816 = vmatpush1.msra.mxu0 0.0
      %3817 = vmatprep.subr.mxu0 0.0
      %3818 = vmatpush1.msra.mxu0 0.0
      %3819 = vmatprep.subr.mxu0 0.0
      %3820 = vmatpush1.msra.mxu0 0.0
      %3821 = vmatprep.subr.mxu0 0.0
      %3822 = vmatpush1.msra.mxu0 0.0
      %3823 = vmatprep.subr.mxu0 0.0
      %3824 = vmatpush1.msra.mxu0 0.0
      %3825 = vmatprep.subr.mxu0 0.0
      %3826 = vmatpush1.msra.mxu0 0.0
      %3827 = vmatprep.subr.mxu0 0.0
      %3828 = vmatpush1.msra.mxu0 0.0
      %3829 = vmatprep.subr.mxu0 0.0
      %3830 = vmatpush1.msra.mxu0 0.0
      %3831 = vmatprep.subr.mxu0 0.0
      %3832 = vmatpush1.msra.mxu0 0.0
      %3833 = vmatprep.subr.mxu0 0.0
      %3834 = vmatpush1.msra.mxu0 0.0
      %3835 = vmatprep.subr.mxu0 0.0
      %3836 = vmatpush1.msra.mxu0 0.0
      %3837 = vmatprep.subr.mxu0 0.0
      %3838 = vmatpush1.msra.mxu0 0.0
      %3839 = vmatprep.subr.mxu0 0.0
      %3840 = vmatpush1.msra.mxu0 0.0
      %3841 = vmatprep.subr.mxu0 0.0
      %3842 = vmatpush1.msra.mxu0 0.0
      %3843 = vmatprep.subr.mxu0 0.0
      %3844 = vmatpush1.msra.mxu0 0.0
      %3845 = vmatprep.subr.mxu0 0.0
      %3846 = vmatpush1.msra.mxu0 0.0
      %3847 = vmatprep.subr.mxu0 0.0
      %3848 = vmatpush1.msra.mxu0 0.0
      %3849 = vmatprep.subr.mxu0 0.0
      %3850 = vmatpush1.msra.mxu0 0.0
      %3851 = vmatprep.subr.mxu0 0.0
      %3852 = vmatpush1.msra.mxu0 0.0
      %3853 = vmatprep.subr.mxu0 0.0
      %3854 = vmatpush1.msra.mxu0 0.0
      %3855 = vmatprep.subr.mxu0 0.0
      %3856 = vmatpush1.msra.mxu0 0.0
      %3857 = vmatprep.subr.mxu0 0.0
      %3858 = vmatpush1.msra.mxu0 0.0
      %3859 = vmatprep.subr.mxu0 0.0
      %3860 = vmatpush1.msra.mxu0 0.0
      %3861 = vmatprep.subr.mxu0 0.0
      %3862 = vmatpush1.msra.mxu0 0.0
      %3863 = vmatprep.mubr.f32.mxu0 0.0
      %3864 = vmatmul.mubr.f32.gmra.mrb[0].mxu0 %v3643
      %v3865 = vpop.f32.mrb[0].mxu0
      %v3866 = vadd.f32 %v1454, %v3865
      %v3867 = vpop.f32.mrb[0].mxu0
      %3868 = vdwg.mxu0
      %v3869 = vmul.f32 %v3721, %v3866
      %v3870 = vadd.f32 %v958, %v3869
      %v3871 = vtanh.pop %v3870
      %v3872 = vsub.f32 1.0, %v3798
      %v3873 = vmul.f32 %v3872, %v3871
      %v3874 = vmul.f32 %v3798, %v3407
      %v3875 = vadd.f32 %v3873, %v3874
      %v3877 = vsel %vm1293, %v3641, 0
      %3879 = vmatprep.subr.mxu0 0.0
      %3880 = vmatpush1.msra.mxu0 %v1283
      %3881 = vmatprep.subr.mxu0 0.0
      %3882 = vmatpush1.msra.mxu0 %v1284
      %3883 = vmatprep.subr.mxu0 0.0
      %3884 = vmatpush1.msra.mxu0 0.0
      %3885 = vmatprep.subr.mxu0 0.0
      %3886 = vmatpush1.msra.mxu0 0.0
      %3887 = vmatprep.subr.mxu0 0.0
      %3888 = vmatpush1.msra.mxu0 0.0
      %3889 = vmatprep.subr.mxu0 0.0
      %3890 = vmatpush1.msra.mxu0 0.0
      %3891 = vmatprep.subr.mxu0 0.0
      %3892 = vmatpush1.msra.mxu0 0.0
      %3893 = vmatprep.subr.mxu0 0.0
      %3894 = vmatpush1.msra.mxu0 0.0
      %3895 = vmatprep.subr.mxu0 0.0
      %3896 = vmatpush1.msra.mxu0 0.0
      %3897 = vmatprep.subr.mxu0 0.0
      %3898 = vmatpush1.msra.mxu0 0.0
      %3899 = vmatprep.subr.mxu0 0.0
      %3900 = vmatpush1.msra.mxu0 0.0
      %3901 = vmatprep.subr.mxu0 0.0
      %3902 = vmatpush1.msra.mxu0 0.0
      %3903 = vmatprep.subr.mxu0 0.0
      %3904 = vmatpush1.msra.mxu0 0.0
      %3905 = vmatprep.subr.mxu0 0.0
      %3906 = vmatpush1.msra.mxu0 0.0
      %3907 = vmatprep.subr.mxu0 0.0
      %3908 = vmatpush1.msra.mxu0 0.0
      %3909 = vmatprep.subr.mxu0 0.0
      %3910 = vmatpush1.msra.mxu0 0.0
      %3911 = vmatprep.subr.mxu0 0.0
      %3912 = vmatpush1.msra.mxu0 0.0
      %3913 = vmatprep.subr.mxu0 0.0
      %3914 = vmatpush1.msra.mxu0 0.0
      %3915 = vmatprep.subr.mxu0 0.0
      %3916 = vmatpush1.msra.mxu0 0.0
      %3917 = vmatprep.subr.mxu0 0.0
      %3918 = vmatpush1.msra.mxu0 0.0
      %3919 = vmatprep.subr.mxu0 0.0
      %3920 = vmatpush1.msra.mxu0 0.0
      %3921 = vmatprep.subr.mxu0 0.0
      %3922 = vmatpush1.msra.mxu0 0.0
      %3923 = vmatprep.subr.mxu0 0.0
      %3924 = vmatpush1.msra.mxu0 0.0
      %3925 = vmatprep.subr.mxu0 0.0
      %3926 = vmatpush1.msra.mxu0 0.0
      %3927 = vmatprep.subr.mxu0 0.0
      %3928 = vmatpush1.msra.mxu0 0.0
      %3929 = vmatprep.subr.mxu0 0.0
      %3930 = vmatpush1.msra.mxu0 0.0
      %3931 = vmatprep.subr.mxu0 0.0
      %3932 = vmatpush1.msra.mxu0 0.0
      %3933 = vmatprep.subr.mxu0 0.0
      %3934 = vmatpush1.msra.mxu0 0.0
      %3935 = vmatprep.subr.mxu0 0.0
      %3936 = vmatpush1.msra.mxu0 0.0
      %3937 = vmatprep.subr.mxu0 0.0
      %3938 = vmatpush1.msra.mxu0 0.0
      %3939 = vmatprep.subr.mxu0 0.0
      %3940 = vmatpush1.msra.mxu0 0.0
      %3941 = vmatprep.subr.mxu0 0.0
      %3942 = vmatpush1.msra.mxu0 0.0
      %3943 = vmatprep.mubr.f32.mxu0 0.0
      %3944 = vmatmul.mubr.f32.gmra.mrb[0].mxu0 %v3877
      %v3945 = vpop.f32.mrb[0].mxu0
      %v3946 = vadd.f32 0.0, %v3945
      %v3947 = vpop.f32.mrb[0].mxu0
      %3948 = vdwg.mxu0
      %v3949 = vadd.f32 %v1037, %v3946
      %v3950 = vxor.u32 %v3949, 2147483648
      %v3951 = vmul.f32 %v3950, 1.442695
      %v3952 = vpow.pop %v3951
      %v3953 = vadd.f32 %v3952, 1.0
      %v3954 = vrcp.pop %v3953
      %v3955 = vmul.f32 1.0, %v3954
      %3956 = vmatprep.subr.mxu0 0.0
      %3957 = vmatpush1.msra.mxu0 %v1286
      %3958 = vmatprep.subr.mxu0 0.0
      %3959 = vmatpush1.msra.mxu0 %v1287
      %3960 = vmatprep.subr.mxu0 0.0
      %3961 = vmatpush1.msra.mxu0 0.0
      %3962 = vmatprep.subr.mxu0 0.0
      %3963 = vmatpush1.msra.mxu0 0.0
      %3964 = vmatprep.subr.mxu0 0.0
      %3965 = vmatpush1.msra.mxu0 0.0
      %3966 = vmatprep.subr.mxu0 0.0
      %3967 = vmatpush1.msra.mxu0 0.0
      %3968 = vmatprep.subr.mxu0 0.0
      %3969 = vmatpush1.msra.mxu0 0.0
      %3970 = vmatprep.subr.mxu0 0.0
      %3971 = vmatpush1.msra.mxu0 0.0
      %3972 = vmatprep.subr.mxu0 0.0
      %3973 = vmatpush1.msra.mxu0 0.0
      %3974 = vmatprep.subr.mxu0 0.0
      %3975 = vmatpush1.msra.mxu0 0.0
      %3976 = vmatprep.subr.mxu0 0.0
      %3977 = vmatpush1.msra.mxu0 0.0
      %3978 = vmatprep.subr.mxu0 0.0
      %3979 = vmatpush1.msra.mxu0 0.0
      %3980 = vmatprep.subr.mxu0 0.0
      %3981 = vmatpush1.msra.mxu0 0.0
      %3982 = vmatprep.subr.mxu0 0.0
      %3983 = vmatpush1.msra.mxu0 0.0
      %3984 = vmatprep.subr.mxu0 0.0
      %3985 = vmatpush1.msra.mxu0 0.0
      %3986 = vmatprep.subr.mxu0 0.0
      %3987 = vmatpush1.msra.mxu0 0.0
      %3988 = vmatprep.subr.mxu0 0.0
      %3989 = vmatpush1.msra.mxu0 0.0
      %3990 = vmatprep.subr.mxu0 0.0
      %3991 = vmatpush1.msra.mxu0 0.0
      %3992 = vmatprep.subr.mxu0 0.0
      %3993 = vmatpush1.msra.mxu0 0.0
      %3994 = vmatprep.subr.mxu0 0.0
      %3995 = vmatpush1.msra.mxu0 0.0
      %3996 = vmatprep.subr.mxu0 0.0
      %3997 = vmatpush1.msra.mxu0 0.0
      %3998 = vmatprep.subr.mxu0 0.0
      %3999 = vmatpush1.msra.mxu0 0.0
      %4000 = vmatprep.subr.mxu0 0.0
      %4001 = vmatpush1.msra.mxu0 0.0
      %4002 = vmatprep.subr.mxu0 0.0
      %4003 = vmatpush1.msra.mxu0 0.0
      %4004 = vmatprep.subr.mxu0 0.0
      %4005 = vmatpush1.msra.mxu0 0.0
      %4006 = vmatprep.subr.mxu0 0.0
      %4007 = vmatpush1.msra.mxu0 0.0
      %4008 = vmatprep.subr.mxu0 0.0
      %4009 = vmatpush1.msra.mxu0 0.0
      %4010 = vmatprep.subr.mxu0 0.0
      %4011 = vmatpush1.msra.mxu0 0.0
      %4012 = vmatprep.subr.mxu0 0.0
      %4013 = vmatpush1.msra.mxu0 0.0
      %4014 = vmatprep.subr.mxu0 0.0
      %4015 = vmatpush1.msra.mxu0 0.0
      %4016 = vmatprep.subr.mxu0 0.0
      %4017 = vmatpush1.msra.mxu0 0.0
      %4018 = vmatprep.subr.mxu0 0.0
      %4019 = vmatpush1.msra.mxu0 0.0
      %4020 = vmatprep.mubr.f32.mxu0 0.0
      %4021 = vmatmul.mubr.f32.gmra.mrb[0].mxu0 %v3877
      %v4022 = vpop.f32.mrb[0].mxu0
      %v4023 = vadd.f32 0.0, %v4022
      %v4024 = vpop.f32.mrb[0].mxu0
      %4025 = vdwg.mxu0
      %v4026 = vadd.f32 %v1142, %v4023
      %v4027 = vxor.u32 %v4026, 2147483648
      %v4028 = vmul.f32 %v4027, 1.442695
      %v4029 = vpow.pop %v4028
      %v4030 = vadd.f32 %v4029, 1.0
      %v4031 = vrcp.pop %v4030
      %v4032 = vmul.f32 1.0, %v4031
      %4033 = vmatprep.subr.mxu0 0.0
      %4034 = vmatpush1.msra.mxu0 %v1289
      %4035 = vmatprep.subr.mxu0 0.0
      %4036 = vmatpush1.msra.mxu0 %v1290
      %4037 = vmatprep.subr.mxu0 0.0
      %4038 = vmatpush1.msra.mxu0 0.0
      %4039 = vmatprep.subr.mxu0 0.0
      %4040 = vmatpush1.msra.mxu0 0.0
      %4041 = vmatprep.subr.mxu0 0.0
      %4042 = vmatpush1.msra.mxu0 0.0
      %4043 = vmatprep.subr.mxu0 0.0
      %4044 = vmatpush1.msra.mxu0 0.0
      %4045 = vmatprep.subr.mxu0 0.0
      %4046 = vmatpush1.msra.mxu0 0.0
      %4047 = vmatprep.subr.mxu0 0.0
      %4048 = vmatpush1.msra.mxu0 0.0
      %4049 = vmatprep.subr.mxu0 0.0
      %4050 = vmatpush1.msra.mxu0 0.0
      %4051 = vmatprep.subr.mxu0 0.0
      %4052 = vmatpush1.msra.mxu0 0.0
      %4053 = vmatprep.subr.mxu0 0.0
      %4054 = vmatpush1.msra.mxu0 0.0
      %4055 = vmatprep.subr.mxu0 0.0
      %4056 = vmatpush1.msra.mxu0 0.0
      %4057 = vmatprep.subr.mxu0 0.0
      %4058 = vmatpush1.msra.mxu0 0.0
      %4059 = vmatprep.subr.mxu0 0.0
      %4060 = vmatpush1.msra.mxu0 0.0
      %4061 = vmatprep.subr.mxu0 0.0
      %4062 = vmatpush1.msra.mxu0 0.0
      %4063 = vmatprep.subr.mxu0 0.0
      %4064 = vmatpush1.msra.mxu0 0.0
      %4065 = vmatprep.subr.mxu0 0.0
      %4066 = vmatpush1.msra.mxu0 0.0
      %4067 = vmatprep.subr.mxu0 0.0
      %4068 = vmatpush1.msra.mxu0 0.0
      %4069 = vmatprep.subr.mxu0 0.0
      %4070 = vmatpush1.msra.mxu0 0.0
      %4071 = vmatprep.subr.mxu0 0.0
      %4072 = vmatpush1.msra.mxu0 0.0
      %4073 = vmatprep.subr.mxu0 0.0
      %4074 = vmatpush1.msra.mxu0 0.0
      %4075 = vmatprep.subr.mxu0 0.0
      %4076 = vmatpush1.msra.mxu0 0.0
      %4077 = vmatprep.subr.mxu0 0.0
      %4078 = vmatpush1.msra.mxu0 0.0
      %4079 = vmatprep.subr.mxu0 0.0
      %4080 = vmatpush1.msra.mxu0 0.0
      %4081 = vmatprep.subr.mxu0 0.0
      %4082 = vmatpush1.msra.mxu0 0.0
      %4083 = vmatprep.subr.mxu0 0.0
      %4084 = vmatpush1.msra.mxu0 0.0
      %4085 = vmatprep.subr.mxu0 0.0
      %4086 = vmatpush1.msra.mxu0 0.0
      %4087 = vmatprep.subr.mxu0 0.0
      %4088 = vmatpush1.msra.mxu0 0.0
      %4089 = vmatprep.subr.mxu0 0.0
      %4090 = vmatpush1.msra.mxu0 0.0
      %4091 = vmatprep.subr.mxu0 0.0
      %4092 = vmatpush1.msra.mxu0 0.0
      %4093 = vmatprep.subr.mxu0 0.0
      %4094 = vmatpush1.msra.mxu0 0.0
      %4095 = vmatprep.subr.mxu0 0.0
      %4096 = vmatpush1.msra.mxu0 0.0
      %4097 = vmatprep.mubr.f32.mxu0 0.0
      %4098 = vmatmul.mubr.f32.gmra.mrb[0].mxu0 %v3877
      %v4099 = vpop.f32.mrb[0].mxu0
      %v4100 = vadd.f32 %v1692, %v4099
      %v4101 = vpop.f32.mrb[0].mxu0
      %4102 = vdwg.mxu0
      %v4103 = vmul.f32 %v3955, %v4100
      %v4104 = vadd.f32 %v1247, %v4103
      %v4105 = vtanh.pop %v4104
      %v4106 = vsub.f32 1.0, %v4032
      %v4107 = vmul.f32 %v4106, %v4105
      %v4108 = vmul.f32 %v4032, %v3641
      %v4109 = vadd.f32 %v4107, %v4108
      %4111 = vrot.lane.b32.xlu0 %v4109, 16
      %v4112 = vpop.permute.xlu0 %4111
      %v4114 = vsel %vm1293, %v1531, %v4112
      %4115 = vrot.lane.b32.xlu0 %v3641, 16
      %v4116 = vpop.permute.xlu0 %4115
      %v4118 = vsel %vm1293, %v2003, %v4116
      %4119 = vrot.lane.b32.xlu0 %v3173, 16
      %v4120 = vpop.permute.xlu0 %4119
      %v4122 = vsel %vm1293, %v2471, %v4120
      %4123 = vrot.lane.b32.xlu0 %v2705, 16
      %v4124 = vpop.permute.xlu0 %4123
      %v4126 = vsel %vm1293, %v2939, %v4124
      %4127 = vrot.lane.b32.xlu0 %v2237, 16
      %v4128 = vpop.permute.xlu0 %4127
      %v4130 = vsel %vm1293, %v3407, %v4128
      %4131 = vrot.lane.b32.xlu0 %v1769, 16
      %v4132 = vpop.permute.xlu0 %4131
      %v4134 = vsel %vm1293, %v3875, %v4132
      %v4135 = vld [vmem:[%s7] sm:$0xff]
      %v4136 = vld [vmem:[%s7 + $0x8] sm:$0xff]
      %v4137 = vld [vmem:[%s7 + $0x10] sm:$0xff]
      %v4138 = vld [vmem:[%s7 + $0x18] sm:$0xff]
      %v4139 = vld [vmem:[%s8] sm:$0x1]
      %v4141 = vlaneseq
      %v4142 = vshrl.u32 %v4141, 7
      %v4143 = vsub.s32 0, %v4142
      %v4144 = vrot.slane %v4139, %v4143
      %v4147 = vsel %vm637, %v4114, 0
      %v4150 = vsel %vm637, %v4118, 0
      %v4153 = vsel %vm637, %v4122, 0
      %v4156 = vsel %vm637, %v4126, 0
      %v4159 = vsel %vm637, %v4130, 0
      %v4162 = vsel %vm637, %v4134, 0
      %4164 = vmatprep.subr.mxu0 0.0
      %4165 = vmatpush1.msra.mxu0 %v4135
      %4166 = vmatprep.subr.mxu0 0.0
      %4167 = vmatpush1.msra.mxu0 %v4136
      %4168 = vmatprep.subr.mxu0 0.0
      %4169 = vmatpush1.msra.mxu0 %v4137
      %4170 = vmatprep.subr.mxu0 0.0
      %4171 = vmatpush1.msra.mxu0 %v4138
      %4172 = vmatprep.subr.mxu0 0.0
      %4173 = vmatpush1.msra.mxu0 0.0
      %4174 = vmatprep.subr.mxu0 0.0
      %4175 = vmatpush1.msra.mxu0 0.0
      %4176 = vmatprep.subr.mxu0 0.0
      %4177 = vmatpush1.msra.mxu0 0.0
      %4178 = vmatprep.subr.mxu0 0.0
      %4179 = vmatpush1.msra.mxu0 0.0
      %4180 = vmatprep.subr.mxu0 0.0
      %4181 = vmatpush1.msra.mxu0 0.0
      %4182 = vmatprep.subr.mxu0 0.0
      %4183 = vmatpush1.msra.mxu0 0.0
      %4184 = vmatprep.subr.mxu0 0.0
      %4185 = vmatpush1.msra.mxu0 0.0
      %4186 = vmatprep.subr.mxu0 0.0
      %4187 = vmatpush1.msra.mxu0 0.0
      %4188 = vmatprep.subr.mxu0 0.0
      %4189 = vmatpush1.msra.mxu0 0.0
      %4190 = vmatprep.subr.mxu0 0.0
      %4191 = vmatpush1.msra.mxu0 0.0
      %4192 = vmatprep.subr.mxu0 0.0
      %4193 = vmatpush1.msra.mxu0 0.0
      %4194 = vmatprep.subr.mxu0 0.0
      %4195 = vmatpush1.msra.mxu0 0.0
      %4196 = vmatprep.subr.mxu0 0.0
      %4197 = vmatpush1.msra.mxu0 0.0
      %4198 = vmatprep.subr.mxu0 0.0
      %4199 = vmatpush1.msra.mxu0 0.0
      %4200 = vmatprep.subr.mxu0 0.0
      %4201 = vmatpush1.msra.mxu0 0.0
      %4202 = vmatprep.subr.mxu0 0.0
      %4203 = vmatpush1.msra.mxu0 0.0
      %4204 = vmatprep.subr.mxu0 0.0
      %4205 = vmatpush1.msra.mxu0 0.0
      %4206 = vmatprep.subr.mxu0 0.0
      %4207 = vmatpush1.msra.mxu0 0.0
      %4208 = vmatprep.subr.mxu0 0.0
      %4209 = vmatpush1.msra.mxu0 0.0
      %4210 = vmatprep.subr.mxu0 0.0
      %4211 = vmatpush1.msra.mxu0 0.0
      %4212 = vmatprep.subr.mxu0 0.0
      %4213 = vmatpush1.msra.mxu0 0.0
      %4214 = vmatprep.subr.mxu0 0.0
      %4215 = vmatpush1.msra.mxu0 0.0
      %4216 = vmatprep.subr.mxu0 0.0
      %4217 = vmatpush1.msra.mxu0 0.0
      %4218 = vmatprep.subr.mxu0 0.0
      %4219 = vmatpush1.msra.mxu0 0.0
      %4220 = vmatprep.subr.mxu0 0.0
      %4221 = vmatpush1.msra.mxu0 0.0
      %4222 = vmatprep.subr.mxu0 0.0
      %4223 = vmatpush1.msra.mxu0 0.0
      %4224 = vmatprep.subr.mxu0 0.0
      %4225 = vmatpush1.msra.mxu0 0.0
      %4226 = vmatprep.subr.mxu0 0.0
      %4227 = vmatpush1.msra.mxu0 0.0
      %4228 = vmatprep.mubr.f32.mxu0 0.0
      %4229 = vmatmul.mubr.f32.gmra.mrb[0].mxu0 %v4147
      %v4230 = vpop.f32.mrb[0].mxu0
      %v4231 = vadd.f32 %v4144, %v4230
      %v4232 = vpop.f32.mrb[0].mxu0
      %4233 = vmatprep.mubr.f32.mxu0 0.0
      %4234 = vmatmul.mubr.f32.gmra.mrb[0].mxu0 %v4150
      %v4235 = vpop.f32.mrb[0].mxu0
      %v4236 = vadd.f32 %v4144, %v4235
      %v4237 = vpop.f32.mrb[0].mxu0
      %4238 = vmatprep.mubr.f32.mxu0 0.0
      %4239 = vmatmul.mubr.f32.gmra.mrb[0].mxu0 %v4153
      %v4240 = vpop.f32.mrb[0].mxu0
      %v4241 = vadd.f32 %v4144, %v4240
      %v4242 = vpop.f32.mrb[0].mxu0
      %4243 = vmatprep.mubr.f32.mxu0 0.0
      %4244 = vmatmul.mubr.f32.gmra.mrb[0].mxu0 %v4156
      %v4245 = vpop.f32.mrb[0].mxu0
      %v4246 = vadd.f32 %v4144, %v4245
      %v4247 = vpop.f32.mrb[0].mxu0
      %4248 = vmatprep.mubr.f32.mxu0 0.0
      %4249 = vmatmul.mubr.f32.gmra.mrb[0].mxu0 %v4159
      %v4250 = vpop.f32.mrb[0].mxu0
      %v4251 = vadd.f32 %v4144, %v4250
      %v4252 = vpop.f32.mrb[0].mxu0
      %4253 = vmatprep.mubr.f32.mxu0 0.0
      %4254 = vmatmul.mubr.f32.gmra.mrb[0].mxu0 %v4162
      %v4255 = vpop.f32.mrb[0].mxu0
      %v4256 = vadd.f32 %v4144, %v4255
      %v4257 = vpop.f32.mrb[0].mxu0
      %4258 = vdwg.mxu0
      %v4259 = vtanh.pop %v4231
      %v4260 = vtanh.pop %v4236
      %v4261 = vtanh.pop %v4241
      %v4262 = vtanh.pop %v4246
      %v4263 = vtanh.pop %v4251
      %v4264 = vtanh.pop %v4256
      %v4265 = vld [vmem:[%s9] sm:$0x1]
      %v4267 = vlaneseq
      %v4268 = vshrl.u32 %v4267, 7
      %v4269 = vsub.s32 0, %v4268
      %v4270 = vrot.slane %v4265, %v4269
      %v4272 = vmul.f32 %v4259, %v4270
      %v4273 = vmul.f32 %v4260, %v4270
      %v4274 = vmul.f32 %v4261, %v4270
      %v4275 = vmul.f32 %v4262, %v4270
      %v4276 = vmul.f32 %v4263, %v4270
      %v4277 = vmul.f32 %v4264, %v4270
      %v4278 = vsel %vm637, %v4272, 0.0
      %4279 = vadd.xlane.f32.xlu0 %v4278
      %v4280 = vpop.xlane.xlu0 %4279
      %v4281 = vsel %vm637, %v4273, 0.0
      %4282 = vadd.xlane.f32.xlu0 %v4281
      %v4283 = vpop.xlane.xlu0 %4282
      %v4284 = vsel %vm637, %v4274, 0.0
      %4285 = vadd.xlane.f32.xlu0 %v4284
      %v4286 = vpop.xlane.xlu0 %4285
      %v4287 = vsel %vm637, %v4275, 0.0
      %4288 = vadd.xlane.f32.xlu0 %v4287
      %v4289 = vpop.xlane.xlu0 %4288
      %v4290 = vsel %vm637, %v4276, 0.0
      %4291 = vadd.xlane.f32.xlu0 %v4290
      %v4292 = vpop.xlane.xlu0 %4291
      %v4293 = vsel %vm637, %v4277, 0.0
      %4294 = vadd.xlane.f32.xlu0 %v4293
      %v4295 = vpop.xlane.xlu0 %4294
      %v4296 = vtanh.pop %v4280
      %v4297 = vtanh.pop %v4283
      %v4298 = vtanh.pop %v4286
      %v4299 = vtanh.pop %v4289
      %v4300 = vtanh.pop %v4292
      %v4301 = vtanh.pop %v4295
      %vm4302 = vcmask 7168
      %v4303 = vsel %vm4302, %v4296, %v4297
      %vm4304 = vcmask 15360
      %v4305 = vsel %vm4304, %v4303, %v4298
      %vm4306 = vcmask 23552
      %v4307 = vsel %vm4306, %v4305, %v4299
      %vm4308 = vcmask 31744
      %v4309 = vsel %vm4308, %v4307, %v4300
      %vm4310 = vcmask 39936
      %v4311 = vsel %vm4310, %v4309, %v4301
      %vm4312 = vcmask 48128
      %v4313 = vsel %vm4312, %v4311, -inf
      %4314 = vmax.xlane.f32.xlu0 %v4313
      %v4315 = vpop.xlane.xlu0 %4314
      %v4316 = vsub.f32 %v4311, %v4315
      %v4317 = vmul.f32 %v4316, 1.442695
      %v4318 = vpow.pop %v4317
      %v4319 = vsel %vm4312, %v4318, 0.0
      %4320 = vadd.xlane.f32.xlu0 %v4319
      %v4321 = vpop.xlane.xlu0 %4320
      %v4322 = vrcp.pop %v4321
      %v4323 = vmul.f32 %v4318, %v4322
      %4325 = vset.pattern.permute.xlu0 0
      %4326 = vperm.xlu0 %4325, %v4323
      %v4327 = vpop.permute.xlu0 %4326
      %v4329 = vmul.f32 %v4114, %v4327
      %4330 = vset.pattern.permute.xlu0 1
      %4331 = vperm.xlu0 %4330, %v4323
      %v4332 = vpop.permute.xlu0 %4331
      %v4334 = vmul.f32 %v4118, %v4332
      %v4335 = vadd.f32 %v4329, %v4334
      %4336 = vset.pattern.permute.xlu0 2
      %4337 = vperm.xlu0 %4336, %v4323
      %v4338 = vpop.permute.xlu0 %4337
      %v4340 = vmul.f32 %v4122, %v4338
      %v4341 = vadd.f32 %v4335, %v4340
      %4342 = vset.pattern.permute.xlu0 3
      %4343 = vperm.xlu0 %4342, %v4323
      %v4344 = vpop.permute.xlu0 %4343
      %v4346 = vmul.f32 %v4126, %v4344
      %v4347 = vadd.f32 %v4341, %v4346
      %4348 = vset.pattern.permute.xlu0 4
      %4349 = vperm.xlu0 %4348, %v4323
      %v4350 = vpop.permute.xlu0 %4349
      %v4352 = vmul.f32 %v4130, %v4350
      %v4353 = vadd.f32 %v4347, %v4352
      %4354 = vset.pattern.permute.xlu0 5
      %4355 = vperm.xlu0 %4354, %v4323
      %v4356 = vpop.permute.xlu0 %4355
      %v4358 = vmul.f32 %v4134, %v4356
      %v4359 = vadd.f32 %v4353, %v4358
      %4360 = vst.msk [vmem:[#allocation2] sm:$0xff] %vm1293, %v3875
      %4361 = vst.msk [vmem:[#allocation3] sm:$0xff] %vm1293, %v4109
      %s4362 = smul.u32 %s32, 8
      %s4363 = scalar_lea.vmem [#allocation4], %s4362
      %4364 = vst.msk [vmem:[%s4363] sm:$0xff] %vm637, %v4359
      %p4365 = scmp.eq.s32.totalorder %s32, 2
      // Predicated region
      $region101: #{postenc_forward_pallas.1} parent=95 // pred_check
        %p4366 = pneg %p4365
      $region102: #{postenc_forward_pallas.1} parent=95 // pred_check_branch
        %4368 = sbr.rel (%p4366) target = $region104
      $region103: #{postenc_forward_pallas.1} parent=95 // pred_region
        %v4369 = vld [vmem:[#allocation4] sm:$0xff]
        %v4370 = vld [vmem:[#allocation4 + $0x8] sm:$0xff]
        %v4371 = vld [vmem:[#allocation4 + $0x10] sm:$0xff]
        %v4372 = vld [vmem:[%s10] sm:$0xff]
        %v4373 = vld [vmem:[%s10 + $0x8] sm:$0xff]
        %v4374 = vld [vmem:[%s10 + $0x10] sm:$0xff]
        %v4375 = vld [vmem:[%s10 + $0x18] sm:$0xff]
        %v4376 = vld [vmem:[%s12] sm:$0x1]
        %v4377 = vlaneseq
        %v4378 = vshrl.u32 %v4377, 7
        %v4379 = vsub.s32 0, %v4378
        %v4380 = vrot.slane %v4376, %v4379
        %v4382 = vsel %vm637, %v4369, 0
        %v4385 = vsel %vm637, %v4370, 0
        %v4388 = vsel %vm637, %v4371, 0
        %4390 = vmatprep.subr.mxu0 0.0
        %4391 = vmatpush1.msra.mxu0 %v4372
        %4392 = vmatprep.subr.mxu0 0.0
        %4393 = vmatpush1.msra.mxu0 %v4373
        %4394 = vmatprep.subr.mxu0 0.0
        %4395 = vmatpush1.msra.mxu0 %v4374
        %4396 = vmatprep.subr.mxu0 0.0
        %4397 = vmatpush1.msra.mxu0 %v4375
        %4398 = vmatprep.subr.mxu0 0.0
        %4399 = vmatpush1.msra.mxu0 0.0
        %4400 = vmatprep.subr.mxu0 0.0
        %4401 = vmatpush1.msra.mxu0 0.0
        %4402 = vmatprep.subr.mxu0 0.0
        %4403 = vmatpush1.msra.mxu0 0.0
        %4404 = vmatprep.subr.mxu0 0.0
        %4405 = vmatpush1.msra.mxu0 0.0
        %4406 = vmatprep.subr.mxu0 0.0
        %4407 = vmatpush1.msra.mxu0 0.0
        %4408 = vmatprep.subr.mxu0 0.0
        %4409 = vmatpush1.msra.mxu0 0.0
        %4410 = vmatprep.subr.mxu0 0.0
        %4411 = vmatpush1.msra.mxu0 0.0
        %4412 = vmatprep.subr.mxu0 0.0
        %4413 = vmatpush1.msra.mxu0 0.0
        %4414 = vmatprep.subr.mxu0 0.0
        %4415 = vmatpush1.msra.mxu0 0.0
        %4416 = vmatprep.subr.mxu0 0.0
        %4417 = vmatpush1.msra.mxu0 0.0
        %4418 = vmatprep.subr.mxu0 0.0
        %4419 = vmatpush1.msra.mxu0 0.0
        %4420 = vmatprep.subr.mxu0 0.0
        %4421 = vmatpush1.msra.mxu0 0.0
        %4422 = vmatprep.subr.mxu0 0.0
        %4423 = vmatpush1.msra.mxu0 0.0
        %4424 = vmatprep.subr.mxu0 0.0
        %4425 = vmatpush1.msra.mxu0 0.0
        %4426 = vmatprep.subr.mxu0 0.0
        %4427 = vmatpush1.msra.mxu0 0.0
        %4428 = vmatprep.subr.mxu0 0.0
        %4429 = vmatpush1.msra.mxu0 0.0
        %4430 = vmatprep.subr.mxu0 0.0
        %4431 = vmatpush1.msra.mxu0 0.0
        %4432 = vmatprep.subr.mxu0 0.0
        %4433 = vmatpush1.msra.mxu0 0.0
        %4434 = vmatprep.subr.mxu0 0.0
        %4435 = vmatpush1.msra.mxu0 0.0
        %4436 = vmatprep.subr.mxu0 0.0
        %4437 = vmatpush1.msra.mxu0 0.0
        %4438 = vmatprep.subr.mxu0 0.0
        %4439 = vmatpush1.msra.mxu0 0.0
        %4440 = vmatprep.subr.mxu0 0.0
        %4441 = vmatpush1.msra.mxu0 0.0
        %4442 = vmatprep.subr.mxu0 0.0
        %4443 = vmatpush1.msra.mxu0 0.0
        %4444 = vmatprep.subr.mxu0 0.0
        %4445 = vmatpush1.msra.mxu0 0.0
        %4446 = vmatprep.subr.mxu0 0.0
        %4447 = vmatpush1.msra.mxu0 0.0
        %4448 = vmatprep.subr.mxu0 0.0
        %4449 = vmatpush1.msra.mxu0 0.0
        %4450 = vmatprep.subr.mxu0 0.0
        %4451 = vmatpush1.msra.mxu0 0.0
        %4452 = vmatprep.subr.mxu0 0.0
        %4453 = vmatpush1.msra.mxu0 0.0
        %4454 = vmatprep.mubr.f32.mxu0 0.0
        %4455 = vmatmul.mubr.f32.gmra.mrb[0].mxu0 %v4382
        %v4456 = vpop.f32.mrb[0].mxu0
        %v4457 = vadd.f32 %v4380, %v4456
        %v4458 = vpop.f32.mrb[0].mxu0
        %4459 = vmatprep.mubr.f32.mxu0 0.0
        %4460 = vmatmul.mubr.f32.gmra.mrb[0].mxu0 %v4385
        %v4461 = vpop.f32.mrb[0].mxu0
        %v4462 = vadd.f32 %v4380, %v4461
        %v4463 = vpop.f32.mrb[0].mxu0
        %4464 = vmatprep.mubr.f32.mxu0 0.0
        %4465 = vmatmul.mubr.f32.gmra.mrb[0].mxu0 %v4388
        %v4466 = vpop.f32.mrb[0].mxu0
        %v4467 = vadd.f32 %v4380, %v4466
        %v4468 = vpop.f32.mrb[0].mxu0
        %4469 = vdwg.mxu0
        %s4470 = scalar_lea.vmem %s10, 32
        %v4471 = vld [vmem:[%s4470] sm:$0xff]
        %v4472 = vld [vmem:[%s4470 + $0x8] sm:$0xff]
        %v4473 = vld [vmem:[%s4470 + $0x10] sm:$0xff]
        %v4474 = vld [vmem:[%s4470 + $0x18] sm:$0xff]
        %v4475 = vld [vmem:[%s12 + $0x1] sm:$0x1]
        %v4476 = vlaneseq
        %v4477 = vshrl.u32 %v4476, 7
        %v4478 = vsub.s32 0, %v4477
        %v4479 = vrot.slane %v4475, %v4478
        %4480 = vmatprep.subr.mxu0 0.0
        %4481 = vmatpush1.msra.mxu0 %v4471
        %4482 = vmatprep.subr.mxu0 0.0
        %4483 = vmatpush1.msra.mxu0 %v4472
        %4484 = vmatprep.subr.mxu0 0.0
        %4485 = vmatpush1.msra.mxu0 %v4473
        %4486 = vmatprep.subr.mxu0 0.0
        %4487 = vmatpush1.msra.mxu0 %v4474
        %4488 = vmatprep.subr.mxu0 0.0
        %4489 = vmatpush1.msra.mxu0 0.0
        %4490 = vmatprep.subr.mxu0 0.0
        %4491 = vmatpush1.msra.mxu0 0.0
        %4492 = vmatprep.subr.mxu0 0.0
        %4493 = vmatpush1.msra.mxu0 0.0
        %4494 = vmatprep.subr.mxu0 0.0
        %4495 = vmatpush1.msra.mxu0 0.0
        %4496 = vmatprep.subr.mxu0 0.0
        %4497 = vmatpush1.msra.mxu0 0.0
        %4498 = vmatprep.subr.mxu0 0.0
        %4499 = vmatpush1.msra.mxu0 0.0
        %4500 = vmatprep.subr.mxu0 0.0
        %4501 = vmatpush1.msra.mxu0 0.0
        %4502 = vmatprep.subr.mxu0 0.0
        %4503 = vmatpush1.msra.mxu0 0.0
        %4504 = vmatprep.subr.mxu0 0.0
        %4505 = vmatpush1.msra.mxu0 0.0
        %4506 = vmatprep.subr.mxu0 0.0
        %4507 = vmatpush1.msra.mxu0 0.0
        %4508 = vmatprep.subr.mxu0 0.0
        %4509 = vmatpush1.msra.mxu0 0.0
        %4510 = vmatprep.subr.mxu0 0.0
        %4511 = vmatpush1.msra.mxu0 0.0
        %4512 = vmatprep.subr.mxu0 0.0
        %4513 = vmatpush1.msra.mxu0 0.0
        %4514 = vmatprep.subr.mxu0 0.0
        %4515 = vmatpush1.msra.mxu0 0.0
        %4516 = vmatprep.subr.mxu0 0.0
        %4517 = vmatpush1.msra.mxu0 0.0
        %4518 = vmatprep.subr.mxu0 0.0
        %4519 = vmatpush1.msra.mxu0 0.0
        %4520 = vmatprep.subr.mxu0 0.0
        %4521 = vmatpush1.msra.mxu0 0.0
        %4522 = vmatprep.subr.mxu0 0.0
        %4523 = vmatpush1.msra.mxu0 0.0
        %4524 = vmatprep.subr.mxu0 0.0
        %4525 = vmatpush1.msra.mxu0 0.0
        %4526 = vmatprep.subr.mxu0 0.0
        %4527 = vmatpush1.msra.mxu0 0.0
        %4528 = vmatprep.subr.mxu0 0.0
        %4529 = vmatpush1.msra.mxu0 0.0
        %4530 = vmatprep.subr.mxu0 0.0
        %4531 = vmatpush1.msra.mxu0 0.0
        %4532 = vmatprep.subr.mxu0 0.0
        %4533 = vmatpush1.msra.mxu0 0.0
        %4534 = vmatprep.subr.mxu0 0.0
        %4535 = vmatpush1.msra.mxu0 0.0
        %4536 = vmatprep.subr.mxu0 0.0
        %4537 = vmatpush1.msra.mxu0 0.0
        %4538 = vmatprep.subr.mxu0 0.0
        %4539 = vmatpush1.msra.mxu0 0.0
        %4540 = vmatprep.subr.mxu0 0.0
        %4541 = vmatpush1.msra.mxu0 0.0
        %4542 = vmatprep.subr.mxu0 0.0
        %4543 = vmatpush1.msra.mxu0 0.0
        %4544 = vmatprep.mubr.f32.mxu0 0.0
        %4545 = vmatmul.mubr.f32.gmra.mrb[0].mxu0 %v4382
        %v4546 = vpop.f32.mrb[0].mxu0
        %v4547 = vadd.f32 %v4479, %v4546
        %v4548 = vpop.f32.mrb[0].mxu0
        %4549 = vmatprep.mubr.f32.mxu0 0.0
        %4550 = vmatmul.mubr.f32.gmra.mrb[0].mxu0 %v4385
        %v4551 = vpop.f32.mrb[0].mxu0
        %v4552 = vadd.f32 %v4479, %v4551
        %v4553 = vpop.f32.mrb[0].mxu0
        %4554 = vmatprep.mubr.f32.mxu0 0.0
        %4555 = vmatmul.mubr.f32.gmra.mrb[0].mxu0 %v4388
        %v4556 = vpop.f32.mrb[0].mxu0
        %v4557 = vadd.f32 %v4479, %v4556
        %v4558 = vpop.f32.mrb[0].mxu0
        %4559 = vdwg.mxu0
        %s4560 = scalar_lea.vmem %s10, 64
        %v4561 = vld [vmem:[%s4560] sm:$0xff]
        %v4562 = vld [vmem:[%s4560 + $0x8] sm:$0xff]
        %v4563 = vld [vmem:[%s4560 + $0x10] sm:$0xff]
        %v4564 = vld [vmem:[%s4560 + $0x18] sm:$0xff]
        %v4565 = vld [vmem:[%s12 + $0x2] sm:$0x1]
        %v4566 = vlaneseq
        %v4567 = vshrl.u32 %v4566, 7
        %v4568 = vsub.s32 0, %v4567
        %v4569 = vrot.slane %v4565, %v4568
        %4570 = vmatprep.subr.mxu0 0.0
        %4571 = vmatpush1.msra.mxu0 %v4561
        %4572 = vmatprep.subr.mxu0 0.0
        %4573 = vmatpush1.msra.mxu0 %v4562
        %4574 = vmatprep.subr.mxu0 0.0
        %4575 = vmatpush1.msra.mxu0 %v4563
        %4576 = vmatprep.subr.mxu0 0.0
        %4577 = vmatpush1.msra.mxu0 %v4564
        %4578 = vmatprep.subr.mxu0 0.0
        %4579 = vmatpush1.msra.mxu0 0.0
        %4580 = vmatprep.subr.mxu0 0.0
        %4581 = vmatpush1.msra.mxu0 0.0
        %4582 = vmatprep.subr.mxu0 0.0
        %4583 = vmatpush1.msra.mxu0 0.0
        %4584 = vmatprep.subr.mxu0 0.0
        %4585 = vmatpush1.msra.mxu0 0.0
        %4586 = vmatprep.subr.mxu0 0.0
        %4587 = vmatpush1.msra.mxu0 0.0
        %4588 = vmatprep.subr.mxu0 0.0
        %4589 = vmatpush1.msra.mxu0 0.0
        %4590 = vmatprep.subr.mxu0 0.0
        %4591 = vmatpush1.msra.mxu0 0.0
        %4592 = vmatprep.subr.mxu0 0.0
        %4593 = vmatpush1.msra.mxu0 0.0
        %4594 = vmatprep.subr.mxu0 0.0
        %4595 = vmatpush1.msra.mxu0 0.0
        %4596 = vmatprep.subr.mxu0 0.0
        %4597 = vmatpush1.msra.mxu0 0.0
        %4598 = vmatprep.subr.mxu0 0.0
        %4599 = vmatpush1.msra.mxu0 0.0
        %4600 = vmatprep.subr.mxu0 0.0
        %4601 = vmatpush1.msra.mxu0 0.0
        %4602 = vmatprep.subr.mxu0 0.0
        %4603 = vmatpush1.msra.mxu0 0.0
        %4604 = vmatprep.subr.mxu0 0.0
        %4605 = vmatpush1.msra.mxu0 0.0
        %4606 = vmatprep.subr.mxu0 0.0
        %4607 = vmatpush1.msra.mxu0 0.0
        %4608 = vmatprep.subr.mxu0 0.0
        %4609 = vmatpush1.msra.mxu0 0.0
        %4610 = vmatprep.subr.mxu0 0.0
        %4611 = vmatpush1.msra.mxu0 0.0
        %4612 = vmatprep.subr.mxu0 0.0
        %4613 = vmatpush1.msra.mxu0 0.0
        %4614 = vmatprep.subr.mxu0 0.0
        %4615 = vmatpush1.msra.mxu0 0.0
        %4616 = vmatprep.subr.mxu0 0.0
        %4617 = vmatpush1.msra.mxu0 0.0
        %4618 = vmatprep.subr.mxu0 0.0
        %4619 = vmatpush1.msra.mxu0 0.0
        %4620 = vmatprep.subr.mxu0 0.0
        %4621 = vmatpush1.msra.mxu0 0.0
        %4622 = vmatprep.subr.mxu0 0.0
        %4623 = vmatpush1.msra.mxu0 0.0
        %4624 = vmatprep.subr.mxu0 0.0
        %4625 = vmatpush1.msra.mxu0 0.0
        %4626 = vmatprep.subr.mxu0 0.0
        %4627 = vmatpush1.msra.mxu0 0.0
        %4628 = vmatprep.subr.mxu0 0.0
        %4629 = vmatpush1.msra.mxu0 0.0
        %4630 = vmatprep.subr.mxu0 0.0
        %4631 = vmatpush1.msra.mxu0 0.0
        %4632 = vmatprep.subr.mxu0 0.0
        %4633 = vmatpush1.msra.mxu0 0.0
        %4634 = vmatprep.mubr.f32.mxu0 0.0
        %4635 = vmatmul.mubr.f32.gmra.mrb[0].mxu0 %v4382
        %v4636 = vpop.f32.mrb[0].mxu0
        %v4637 = vadd.f32 %v4569, %v4636
        %v4638 = vpop.f32.mrb[0].mxu0
        %4639 = vmatprep.mubr.f32.mxu0 0.0
        %4640 = vmatmul.mubr.f32.gmra.mrb[0].mxu0 %v4385
        %v4641 = vpop.f32.mrb[0].mxu0
        %v4642 = vadd.f32 %v4569, %v4641
        %v4643 = vpop.f32.mrb[0].mxu0
        %4644 = vmatprep.mubr.f32.mxu0 0.0
        %4645 = vmatmul.mubr.f32.gmra.mrb[0].mxu0 %v4388
        %v4646 = vpop.f32.mrb[0].mxu0
        %v4647 = vadd.f32 %v4569, %v4646
        %v4648 = vpop.f32.mrb[0].mxu0
        %4649 = vdwg.mxu0
        %v4650 = vld [vmem:[%s13] sm:$0xff]
        %v4651 = vld [vmem:[%s13 + $0x8] sm:$0xff]
        %v4652 = vld [vmem:[%s13 + $0x10] sm:$0xff]
        %v4653 = vld [vmem:[%s13 + $0x18] sm:$0xff]
        %v4654 = vld [vmem:[%s15] sm:$0x1]
        %v4655 = vlaneseq
        %v4656 = vshrl.u32 %v4655, 7
        %v4657 = vsub.s32 0, %v4656
        %v4658 = vrot.slane %v4654, %v4657
        %4659 = vmatprep.subr.mxu0 0.0
        %4660 = vmatpush1.msra.mxu0 %v4650
        %4661 = vmatprep.subr.mxu0 0.0
        %4662 = vmatpush1.msra.mxu0 %v4651
        %4663 = vmatprep.subr.mxu0 0.0
        %4664 = vmatpush1.msra.mxu0 %v4652
        %4665 = vmatprep.subr.mxu0 0.0
        %4666 = vmatpush1.msra.mxu0 %v4653
        %4667 = vmatprep.subr.mxu0 0.0
        %4668 = vmatpush1.msra.mxu0 0.0
        %4669 = vmatprep.subr.mxu0 0.0
        %4670 = vmatpush1.msra.mxu0 0.0
        %4671 = vmatprep.subr.mxu0 0.0
        %4672 = vmatpush1.msra.mxu0 0.0
        %4673 = vmatprep.subr.mxu0 0.0
        %4674 = vmatpush1.msra.mxu0 0.0
        %4675 = vmatprep.subr.mxu0 0.0
        %4676 = vmatpush1.msra.mxu0 0.0
        %4677 = vmatprep.subr.mxu0 0.0
        %4678 = vmatpush1.msra.mxu0 0.0
        %4679 = vmatprep.subr.mxu0 0.0
        %4680 = vmatpush1.msra.mxu0 0.0
        %4681 = vmatprep.subr.mxu0 0.0
        %4682 = vmatpush1.msra.mxu0 0.0
        %4683 = vmatprep.subr.mxu0 0.0
        %4684 = vmatpush1.msra.mxu0 0.0
        %4685 = vmatprep.subr.mxu0 0.0
        %4686 = vmatpush1.msra.mxu0 0.0
        %4687 = vmatprep.subr.mxu0 0.0
        %4688 = vmatpush1.msra.mxu0 0.0
        %4689 = vmatprep.subr.mxu0 0.0
        %4690 = vmatpush1.msra.mxu0 0.0
        %4691 = vmatprep.subr.mxu0 0.0
        %4692 = vmatpush1.msra.mxu0 0.0
        %4693 = vmatprep.subr.mxu0 0.0
        %4694 = vmatpush1.msra.mxu0 0.0
        %4695 = vmatprep.subr.mxu0 0.0
        %4696 = vmatpush1.msra.mxu0 0.0
        %4697 = vmatprep.subr.mxu0 0.0
        %4698 = vmatpush1.msra.mxu0 0.0
        %4699 = vmatprep.subr.mxu0 0.0
        %4700 = vmatpush1.msra.mxu0 0.0
        %4701 = vmatprep.subr.mxu0 0.0
        %4702 = vmatpush1.msra.mxu0 0.0
        %4703 = vmatprep.subr.mxu0 0.0
        %4704 = vmatpush1.msra.mxu0 0.0
        %4705 = vmatprep.subr.mxu0 0.0
        %4706 = vmatpush1.msra.mxu0 0.0
        %4707 = vmatprep.subr.mxu0 0.0
        %4708 = vmatpush1.msra.mxu0 0.0
        %4709 = vmatprep.subr.mxu0 0.0
        %4710 = vmatpush1.msra.mxu0 0.0
        %4711 = vmatprep.subr.mxu0 0.0
        %4712 = vmatpush1.msra.mxu0 0.0
        %4713 = vmatprep.subr.mxu0 0.0
        %4714 = vmatpush1.msra.mxu0 0.0
        %4715 = vmatprep.subr.mxu0 0.0
        %4716 = vmatpush1.msra.mxu0 0.0
        %4717 = vmatprep.subr.mxu0 0.0
        %4718 = vmatpush1.msra.mxu0 0.0
        %4719 = vmatprep.subr.mxu0 0.0
        %4720 = vmatpush1.msra.mxu0 0.0
        %4721 = vmatprep.subr.mxu0 0.0
        %4722 = vmatpush1.msra.mxu0 0.0
        %4723 = vmatprep.mubr.f32.mxu0 0.0
        %4724 = vmatmul.mubr.f32.gmra.mrb[0].mxu0 %v4382
        %v4725 = vpop.f32.mrb[0].mxu0
        %v4726 = vadd.f32 %v4658, %v4725
        %v4727 = vpop.f32.mrb[0].mxu0
        %4728 = vmatprep.mubr.f32.mxu0 0.0
        %4729 = vmatmul.mubr.f32.gmra.mrb[0].mxu0 %v4385
        %v4730 = vpop.f32.mrb[0].mxu0
        %v4731 = vadd.f32 %v4658, %v4730
        %v4732 = vpop.f32.mrb[0].mxu0
        %4733 = vmatprep.mubr.f32.mxu0 0.0
        %4734 = vmatmul.mubr.f32.gmra.mrb[0].mxu0 %v4388
        %v4735 = vpop.f32.mrb[0].mxu0
        %v4736 = vadd.f32 %v4658, %v4735
        %v4737 = vpop.f32.mrb[0].mxu0
        %4738 = vdwg.mxu0
        %s4739 = scalar_lea.vmem %s13, 32
        %v4740 = vld [vmem:[%s4739] sm:$0xff]
        %v4741 = vld [vmem:[%s4739 + $0x8] sm:$0xff]
        %v4742 = vld [vmem:[%s4739 + $0x10] sm:$0xff]
        %v4743 = vld [vmem:[%s4739 + $0x18] sm:$0xff]
        %v4744 = vld [vmem:[%s15 + $0x1] sm:$0x1]
        %v4745 = vlaneseq
        %v4746 = vshrl.u32 %v4745, 7
        %v4747 = vsub.s32 0, %v4746
        %v4748 = vrot.slane %v4744, %v4747
        %4749 = vmatprep.subr.mxu0 0.0
        %4750 = vmatpush1.msra.mxu0 %v4740
        %4751 = vmatprep.subr.mxu0 0.0
        %4752 = vmatpush1.msra.mxu0 %v4741
        %4753 = vmatprep.subr.mxu0 0.0
        %4754 = vmatpush1.msra.mxu0 %v4742
        %4755 = vmatprep.subr.mxu0 0.0
        %4756 = vmatpush1.msra.mxu0 %v4743
        %4757 = vmatprep.subr.mxu0 0.0
        %4758 = vmatpush1.msra.mxu0 0.0
        %4759 = vmatprep.subr.mxu0 0.0
        %4760 = vmatpush1.msra.mxu0 0.0
        %4761 = vmatprep.subr.mxu0 0.0
        %4762 = vmatpush1.msra.mxu0 0.0
        %4763 = vmatprep.subr.mxu0 0.0
        %4764 = vmatpush1.msra.mxu0 0.0
        %4765 = vmatprep.subr.mxu0 0.0
        %4766 = vmatpush1.msra.mxu0 0.0
        %4767 = vmatprep.subr.mxu0 0.0
        %4768 = vmatpush1.msra.mxu0 0.0
        %4769 = vmatprep.subr.mxu0 0.0
        %4770 = vmatpush1.msra.mxu0 0.0
        %4771 = vmatprep.subr.mxu0 0.0
        %4772 = vmatpush1.msra.mxu0 0.0
        %4773 = vmatprep.subr.mxu0 0.0
        %4774 = vmatpush1.msra.mxu0 0.0
        %4775 = vmatprep.subr.mxu0 0.0
        %4776 = vmatpush1.msra.mxu0 0.0
        %4777 = vmatprep.subr.mxu0 0.0
        %4778 = vmatpush1.msra.mxu0 0.0
        %4779 = vmatprep.subr.mxu0 0.0
        %4780 = vmatpush1.msra.mxu0 0.0
        %4781 = vmatprep.subr.mxu0 0.0
        %4782 = vmatpush1.msra.mxu0 0.0
        %4783 = vmatprep.subr.mxu0 0.0
        %4784 = vmatpush1.msra.mxu0 0.0
        %4785 = vmatprep.subr.mxu0 0.0
        %4786 = vmatpush1.msra.mxu0 0.0
        %4787 = vmatprep.subr.mxu0 0.0
        %4788 = vmatpush1.msra.mxu0 0.0
        %4789 = vmatprep.subr.mxu0 0.0
        %4790 = vmatpush1.msra.mxu0 0.0
        %4791 = vmatprep.subr.mxu0 0.0
        %4792 = vmatpush1.msra.mxu0 0.0
        %4793 = vmatprep.subr.mxu0 0.0
        %4794 = vmatpush1.msra.mxu0 0.0
        %4795 = vmatprep.subr.mxu0 0.0
        %4796 = vmatpush1.msra.mxu0 0.0
        %4797 = vmatprep.subr.mxu0 0.0
        %4798 = vmatpush1.msra.mxu0 0.0
        %4799 = vmatprep.subr.mxu0 0.0
        %4800 = vmatpush1.msra.mxu0 0.0
        %4801 = vmatprep.subr.mxu0 0.0
        %4802 = vmatpush1.msra.mxu0 0.0
        %4803 = vmatprep.subr.mxu0 0.0
        %4804 = vmatpush1.msra.mxu0 0.0
        %4805 = vmatprep.subr.mxu0 0.0
        %4806 = vmatpush1.msra.mxu0 0.0
        %4807 = vmatprep.subr.mxu0 0.0
        %4808 = vmatpush1.msra.mxu0 0.0
        %4809 = vmatprep.subr.mxu0 0.0
        %4810 = vmatpush1.msra.mxu0 0.0
        %4811 = vmatprep.subr.mxu0 0.0
        %4812 = vmatpush1.msra.mxu0 0.0
        %4813 = vmatprep.mubr.f32.mxu0 0.0
        %4814 = vmatmul.mubr.f32.gmra.mrb[0].mxu0 %v4382
        %v4815 = vpop.f32.mrb[0].mxu0
        %v4816 = vadd.f32 %v4748, %v4815
        %v4817 = vpop.f32.mrb[0].mxu0
        %4818 = vmatprep.mubr.f32.mxu0 0.0
        %4819 = vmatmul.mubr.f32.gmra.mrb[0].mxu0 %v4385
        %v4820 = vpop.f32.mrb[0].mxu0
        %v4821 = vadd.f32 %v4748, %v4820
        %v4822 = vpop.f32.mrb[0].mxu0
        %4823 = vmatprep.mubr.f32.mxu0 0.0
        %4824 = vmatmul.mubr.f32.gmra.mrb[0].mxu0 %v4388
        %v4825 = vpop.f32.mrb[0].mxu0
        %v4826 = vadd.f32 %v4748, %v4825
        %v4827 = vpop.f32.mrb[0].mxu0
        %4828 = vdwg.mxu0
        %s4829 = scalar_lea.vmem %s13, 64
        %v4830 = vld [vmem:[%s4829] sm:$0xff]
        %v4831 = vld [vmem:[%s4829 + $0x8] sm:$0xff]
        %v4832 = vld [vmem:[%s4829 + $0x10] sm:$0xff]
        %v4833 = vld [vmem:[%s4829 + $0x18] sm:$0xff]
        %v4834 = vld [vmem:[%s15 + $0x2] sm:$0x1]
        %v4835 = vlaneseq
        %v4836 = vshrl.u32 %v4835, 7
        %v4837 = vsub.s32 0, %v4836
        %v4838 = vrot.slane %v4834, %v4837
        %4839 = vmatprep.subr.mxu0 0.0
        %4840 = vmatpush1.msra.mxu0 %v4830
        %4841 = vmatprep.subr.mxu0 0.0
        %4842 = vmatpush1.msra.mxu0 %v4831
        %4843 = vmatprep.subr.mxu0 0.0
        %4844 = vmatpush1.msra.mxu0 %v4832
        %4845 = vmatprep.subr.mxu0 0.0
        %4846 = vmatpush1.msra.mxu0 %v4833
        %4847 = vmatprep.subr.mxu0 0.0
        %4848 = vmatpush1.msra.mxu0 0.0
        %4849 = vmatprep.subr.mxu0 0.0
        %4850 = vmatpush1.msra.mxu0 0.0
        %4851 = vmatprep.subr.mxu0 0.0
        %4852 = vmatpush1.msra.mxu0 0.0
        %4853 = vmatprep.subr.mxu0 0.0
        %4854 = vmatpush1.msra.mxu0 0.0
        %4855 = vmatprep.subr.mxu0 0.0
        %4856 = vmatpush1.msra.mxu0 0.0
        %4857 = vmatprep.subr.mxu0 0.0
        %4858 = vmatpush1.msra.mxu0 0.0
        %4859 = vmatprep.subr.mxu0 0.0
        %4860 = vmatpush1.msra.mxu0 0.0
        %4861 = vmatprep.subr.mxu0 0.0
        %4862 = vmatpush1.msra.mxu0 0.0
        %4863 = vmatprep.subr.mxu0 0.0
        %4864 = vmatpush1.msra.mxu0 0.0
        %4865 = vmatprep.subr.mxu0 0.0
        %4866 = vmatpush1.msra.mxu0 0.0
        %4867 = vmatprep.subr.mxu0 0.0
        %4868 = vmatpush1.msra.mxu0 0.0
        %4869 = vmatprep.subr.mxu0 0.0
        %4870 = vmatpush1.msra.mxu0 0.0
        %4871 = vmatprep.subr.mxu0 0.0
        %4872 = vmatpush1.msra.mxu0 0.0
        %4873 = vmatprep.subr.mxu0 0.0
        %4874 = vmatpush1.msra.mxu0 0.0
        %4875 = vmatprep.subr.mxu0 0.0
        %4876 = vmatpush1.msra.mxu0 0.0
        %4877 = vmatprep.subr.mxu0 0.0
        %4878 = vmatpush1.msra.mxu0 0.0
        %4879 = vmatprep.subr.mxu0 0.0
        %4880 = vmatpush1.msra.mxu0 0.0
        %4881 = vmatprep.subr.mxu0 0.0
        %4882 = vmatpush1.msra.mxu0 0.0
        %4883 = vmatprep.subr.mxu0 0.0
        %4884 = vmatpush1.msra.mxu0 0.0
        %4885 = vmatprep.subr.mxu0 0.0
        %4886 = vmatpush1.msra.mxu0 0.0
        %4887 = vmatprep.subr.mxu0 0.0
        %4888 = vmatpush1.msra.mxu0 0.0
        %4889 = vmatprep.subr.mxu0 0.0
        %4890 = vmatpush1.msra.mxu0 0.0
        %4891 = vmatprep.subr.mxu0 0.0
        %4892 = vmatpush1.msra.mxu0 0.0
        %4893 = vmatprep.subr.mxu0 0.0
        %4894 = vmatpush1.msra.mxu0 0.0
        %4895 = vmatprep.subr.mxu0 0.0
        %4896 = vmatpush1.msra.mxu0 0.0
        %4897 = vmatprep.subr.mxu0 0.0
        %4898 = vmatpush1.msra.mxu0 0.0
        %4899 = vmatprep.subr.mxu0 0.0
        %4900 = vmatpush1.msra.mxu0 0.0
        %4901 = vmatprep.subr.mxu0 0.0
        %4902 = vmatpush1.msra.mxu0 0.0
        %4903 = vmatprep.mubr.f32.mxu0 0.0
        %4904 = vmatmul.mubr.f32.gmra.mrb[0].mxu0 %v4382
        %v4905 = vpop.f32.mrb[0].mxu0
        %v4906 = vadd.f32 %v4838, %v4905
        %v4907 = vpop.f32.mrb[0].mxu0
        %4908 = vmatprep.mubr.f32.mxu0 0.0
        %4909 = vmatmul.mubr.f32.gmra.mrb[0].mxu0 %v4385
        %v4910 = vpop.f32.mrb[0].mxu0
        %v4911 = vadd.f32 %v4838, %v4910
        %v4912 = vpop.f32.mrb[0].mxu0
        %4913 = vmatprep.mubr.f32.mxu0 0.0
        %4914 = vmatmul.mubr.f32.gmra.mrb[0].mxu0 %v4388
        %v4915 = vpop.f32.mrb[0].mxu0
        %v4916 = vadd.f32 %v4838, %v4915
        %v4917 = vpop.f32.mrb[0].mxu0
        %4918 = vdwg.mxu0
        %v4919 = vld [vmem:[%s11] sm:$0xff]
        %v4920 = vld [vmem:[%s11 + $0x8] sm:$0xff]
        %s4921 = scalar_lea.vmem %s11, 16
        %v4922 = vld [vmem:[%s4921] sm:$0xff]
        %v4923 = vld [vmem:[%s4921 + $0x8] sm:$0xff]
        %s4924 = scalar_lea.vmem %s11, 32
        %v4925 = vld [vmem:[%s4924] sm:$0xff]
        %v4926 = vld [vmem:[%s4924 + $0x8] sm:$0xff]
        %v4927 = vld [vmem:[%s14] sm:$0xff]
        %v4928 = vld [vmem:[%s14 + $0x8] sm:$0xff]
        %s4929 = scalar_lea.vmem %s14, 16
        %v4930 = vld [vmem:[%s4929] sm:$0xff]
        %v4931 = vld [vmem:[%s4929 + $0x8] sm:$0xff]
        %s4932 = scalar_lea.vmem %s14, 32
        %v4933 = vld [vmem:[%s4932] sm:$0xff]
        %v4934 = vld [vmem:[%s4932 + $0x8] sm:$0xff]
        %v4935 = vld [vmem:[%s12 + $0x3] sm:$0x1]
        %v4936 = vld [vmem:[%s15 + $0x3] sm:$0x1]
        %v4938 = vsel %vm1293, 0.0, 0
        %4940 = vmatprep.subr.mxu0 0.0
        %4941 = vmatpush1.msra.mxu0 %v4919
        %4942 = vmatprep.subr.mxu0 0.0
        %4943 = vmatpush1.msra.mxu0 %v4920
        %4944 = vmatprep.subr.mxu0 0.0
        %4945 = vmatpush1.msra.mxu0 0.0
        %4946 = vmatprep.subr.mxu0 0.0
        %4947 = vmatpush1.msra.mxu0 0.0
        %4948 = vmatprep.subr.mxu0 0.0
        %4949 = vmatpush1.msra.mxu0 0.0
        %4950 = vmatprep.subr.mxu0 0.0
        %4951 = vmatpush1.msra.mxu0 0.0
        %4952 = vmatprep.subr.mxu0 0.0
        %4953 = vmatpush1.msra.mxu0 0.0
        %4954 = vmatprep.subr.mxu0 0.0
        %4955 = vmatpush1.msra.mxu0 0.0
        %4956 = vmatprep.subr.mxu0 0.0
        %4957 = vmatpush1.msra.mxu0 0.0
        %4958 = vmatprep.subr.mxu0 0.0
        %4959 = vmatpush1.msra.mxu0 0.0
        %4960 = vmatprep.subr.mxu0 0.0
        %4961 = vmatpush1.msra.mxu0 0.0
        %4962 = vmatprep.subr.mxu0 0.0
        %4963 = vmatpush1.msra.mxu0 0.0
        %4964 = vmatprep.subr.mxu0 0.0
        %4965 = vmatpush1.msra.mxu0 0.0
        %4966 = vmatprep.subr.mxu0 0.0
        %4967 = vmatpush1.msra.mxu0 0.0
        %4968 = vmatprep.subr.mxu0 0.0
        %4969 = vmatpush1.msra.mxu0 0.0
        %4970 = vmatprep.subr.mxu0 0.0
        %4971 = vmatpush1.msra.mxu0 0.0
        %4972 = vmatprep.subr.mxu0 0.0
        %4973 = vmatpush1.msra.mxu0 0.0
        %4974 = vmatprep.subr.mxu0 0.0
        %4975 = vmatpush1.msra.mxu0 0.0
        %4976 = vmatprep.subr.mxu0 0.0
        %4977 = vmatpush1.msra.mxu0 0.0
        %4978 = vmatprep.subr.mxu0 0.0
        %4979 = vmatpush1.msra.mxu0 0.0
        %4980 = vmatprep.subr.mxu0 0.0
        %4981 = vmatpush1.msra.mxu0 0.0
        %4982 = vmatprep.subr.mxu0 0.0
        %4983 = vmatpush1.msra.mxu0 0.0
        %4984 = vmatprep.subr.mxu0 0.0
        %4985 = vmatpush1.msra.mxu0 0.0
        %4986 = vmatprep.subr.mxu0 0.0
        %4987 = vmatpush1.msra.mxu0 0.0
        %4988 = vmatprep.subr.mxu0 0.0
        %4989 = vmatpush1.msra.mxu0 0.0
        %4990 = vmatprep.subr.mxu0 0.0
        %4991 = vmatpush1.msra.mxu0 0.0
        %4992 = vmatprep.subr.mxu0 0.0
        %4993 = vmatpush1.msra.mxu0 0.0
        %4994 = vmatprep.subr.mxu0 0.0
        %4995 = vmatpush1.msra.mxu0 0.0
        %4996 = vmatprep.subr.mxu0 0.0
        %4997 = vmatpush1.msra.mxu0 0.0
        %4998 = vmatprep.subr.mxu0 0.0
        %4999 = vmatpush1.msra.mxu0 0.0
        %5000 = vmatprep.subr.mxu0 0.0
        %5001 = vmatpush1.msra.mxu0 0.0
        %5002 = vmatprep.subr.mxu0 0.0
        %5003 = vmatpush1.msra.mxu0 0.0
        %5004 = vmatprep.mubr.f32.mxu0 0.0
        %5005 = vmatmul.mubr.f32.gmra.mrb[0].mxu0 %v4938
        %v5006 = vpop.f32.mrb[0].mxu0
        %v5007 = vadd.f32 0.0, %v5006
        %v5008 = vpop.f32.mrb[0].mxu0
        %5009 = vdwg.mxu0
        %v5010 = vadd.f32 %v4457, %v5007
        %v5011 = vxor.u32 %v5010, 2147483648
        %v5012 = vmul.f32 %v5011, 1.442695
        %v5013 = vpow.pop %v5012
        %v5014 = vadd.f32 %v5013, 1.0
        %v5015 = vrcp.pop %v5014
        %v5016 = vmul.f32 1.0, %v5015
        %5017 = vmatprep.subr.mxu0 0.0
        %5018 = vmatpush1.msra.mxu0 %v4922
        %5019 = vmatprep.subr.mxu0 0.0
        %5020 = vmatpush1.msra.mxu0 %v4923
        %5021 = vmatprep.subr.mxu0 0.0
        %5022 = vmatpush1.msra.mxu0 0.0
        %5023 = vmatprep.subr.mxu0 0.0
        %5024 = vmatpush1.msra.mxu0 0.0
        %5025 = vmatprep.subr.mxu0 0.0
        %5026 = vmatpush1.msra.mxu0 0.0
        %5027 = vmatprep.subr.mxu0 0.0
        %5028 = vmatpush1.msra.mxu0 0.0
        %5029 = vmatprep.subr.mxu0 0.0
        %5030 = vmatpush1.msra.mxu0 0.0
        %5031 = vmatprep.subr.mxu0 0.0
        %5032 = vmatpush1.msra.mxu0 0.0
        %5033 = vmatprep.subr.mxu0 0.0
        %5034 = vmatpush1.msra.mxu0 0.0
        %5035 = vmatprep.subr.mxu0 0.0
        %5036 = vmatpush1.msra.mxu0 0.0
        %5037 = vmatprep.subr.mxu0 0.0
        %5038 = vmatpush1.msra.mxu0 0.0
        %5039 = vmatprep.subr.mxu0 0.0
        %5040 = vmatpush1.msra.mxu0 0.0
        %5041 = vmatprep.subr.mxu0 0.0
        %5042 = vmatpush1.msra.mxu0 0.0
        %5043 = vmatprep.subr.mxu0 0.0
        %5044 = vmatpush1.msra.mxu0 0.0
        %5045 = vmatprep.subr.mxu0 0.0
        %5046 = vmatpush1.msra.mxu0 0.0
        %5047 = vmatprep.subr.mxu0 0.0
        %5048 = vmatpush1.msra.mxu0 0.0
        %5049 = vmatprep.subr.mxu0 0.0
        %5050 = vmatpush1.msra.mxu0 0.0
        %5051 = vmatprep.subr.mxu0 0.0
        %5052 = vmatpush1.msra.mxu0 0.0
        %5053 = vmatprep.subr.mxu0 0.0
        %5054 = vmatpush1.msra.mxu0 0.0
        %5055 = vmatprep.subr.mxu0 0.0
        %5056 = vmatpush1.msra.mxu0 0.0
        %5057 = vmatprep.subr.mxu0 0.0
        %5058 = vmatpush1.msra.mxu0 0.0
        %5059 = vmatprep.subr.mxu0 0.0
        %5060 = vmatpush1.msra.mxu0 0.0
        %5061 = vmatprep.subr.mxu0 0.0
        %5062 = vmatpush1.msra.mxu0 0.0
        %5063 = vmatprep.subr.mxu0 0.0
        %5064 = vmatpush1.msra.mxu0 0.0
        %5065 = vmatprep.subr.mxu0 0.0
        %5066 = vmatpush1.msra.mxu0 0.0
        %5067 = vmatprep.subr.mxu0 0.0
        %5068 = vmatpush1.msra.mxu0 0.0
        %5069 = vmatprep.subr.mxu0 0.0
        %5070 = vmatpush1.msra.mxu0 0.0
        %5071 = vmatprep.subr.mxu0 0.0
        %5072 = vmatpush1.msra.mxu0 0.0
        %5073 = vmatprep.subr.mxu0 0.0
        %5074 = vmatpush1.msra.mxu0 0.0
        %5075 = vmatprep.subr.mxu0 0.0
        %5076 = vmatpush1.msra.mxu0 0.0
        %5077 = vmatprep.subr.mxu0 0.0
        %5078 = vmatpush1.msra.mxu0 0.0
        %5079 = vmatprep.subr.mxu0 0.0
        %5080 = vmatpush1.msra.mxu0 0.0
        %5081 = vmatprep.mubr.f32.mxu0 0.0
        %5082 = vmatmul.mubr.f32.gmra.mrb[0].mxu0 %v4938
        %v5083 = vpop.f32.mrb[0].mxu0
        %v5084 = vadd.f32 0.0, %v5083
        %v5085 = vpop.f32.mrb[0].mxu0
        %5086 = vdwg.mxu0
        %v5087 = vadd.f32 %v4547, %v5084
        %v5088 = vxor.u32 %v5087, 2147483648
        %v5089 = vmul.f32 %v5088, 1.442695
        %v5090 = vpow.pop %v5089
        %v5091 = vadd.f32 %v5090, 1.0
        %v5092 = vrcp.pop %v5091
        %v5093 = vmul.f32 1.0, %v5092
        %v5094 = vlaneseq
        %v5095 = vshrl.u32 %v5094, 7
        %v5096 = vsub.s32 0, %v5095
        %v5097 = vrot.slane %v4935, %v5096
        %5098 = vmatprep.subr.mxu0 0.0
        %5099 = vmatpush1.msra.mxu0 %v4925
        %5100 = vmatprep.subr.mxu0 0.0
        %5101 = vmatpush1.msra.mxu0 %v4926
        %5102 = vmatprep.subr.mxu0 0.0
        %5103 = vmatpush1.msra.mxu0 0.0
        %5104 = vmatprep.subr.mxu0 0.0
        %5105 = vmatpush1.msra.mxu0 0.0
        %5106 = vmatprep.subr.mxu0 0.0
        %5107 = vmatpush1.msra.mxu0 0.0
        %5108 = vmatprep.subr.mxu0 0.0
        %5109 = vmatpush1.msra.mxu0 0.0
        %5110 = vmatprep.subr.mxu0 0.0
        %5111 = vmatpush1.msra.mxu0 0.0
        %5112 = vmatprep.subr.mxu0 0.0
        %5113 = vmatpush1.msra.mxu0 0.0
        %5114 = vmatprep.subr.mxu0 0.0
        %5115 = vmatpush1.msra.mxu0 0.0
        %5116 = vmatprep.subr.mxu0 0.0
        %5117 = vmatpush1.msra.mxu0 0.0
        %5118 = vmatprep.subr.mxu0 0.0
        %5119 = vmatpush1.msra.mxu0 0.0
        %5120 = vmatprep.subr.mxu0 0.0
        %5121 = vmatpush1.msra.mxu0 0.0
        %5122 = vmatprep.subr.mxu0 0.0
        %5123 = vmatpush1.msra.mxu0 0.0
        %5124 = vmatprep.subr.mxu0 0.0
        %5125 = vmatpush1.msra.mxu0 0.0
        %5126 = vmatprep.subr.mxu0 0.0
        %5127 = vmatpush1.msra.mxu0 0.0
        %5128 = vmatprep.subr.mxu0 0.0
        %5129 = vmatpush1.msra.mxu0 0.0
        %5130 = vmatprep.subr.mxu0 0.0
        %5131 = vmatpush1.msra.mxu0 0.0
        %5132 = vmatprep.subr.mxu0 0.0
        %5133 = vmatpush1.msra.mxu0 0.0
        %5134 = vmatprep.subr.mxu0 0.0
        %5135 = vmatpush1.msra.mxu0 0.0
        %5136 = vmatprep.subr.mxu0 0.0
        %5137 = vmatpush1.msra.mxu0 0.0
        %5138 = vmatprep.subr.mxu0 0.0
        %5139 = vmatpush1.msra.mxu0 0.0
        %5140 = vmatprep.subr.mxu0 0.0
        %5141 = vmatpush1.msra.mxu0 0.0
        %5142 = vmatprep.subr.mxu0 0.0
        %5143 = vmatpush1.msra.mxu0 0.0
        %5144 = vmatprep.subr.mxu0 0.0
        %5145 = vmatpush1.msra.mxu0 0.0
        %5146 = vmatprep.subr.mxu0 0.0
        %5147 = vmatpush1.msra.mxu0 0.0
        %5148 = vmatprep.subr.mxu0 0.0
        %5149 = vmatpush1.msra.mxu0 0.0
        %5150 = vmatprep.subr.mxu0 0.0
        %5151 = vmatpush1.msra.mxu0 0.0
        %5152 = vmatprep.subr.mxu0 0.0
        %5153 = vmatpush1.msra.mxu0 0.0
        %5154 = vmatprep.subr.mxu0 0.0
        %5155 = vmatpush1.msra.mxu0 0.0
        %5156 = vmatprep.subr.mxu0 0.0
        %5157 = vmatpush1.msra.mxu0 0.0
        %5158 = vmatprep.subr.mxu0 0.0
        %5159 = vmatpush1.msra.mxu0 0.0
        %5160 = vmatprep.subr.mxu0 0.0
        %5161 = vmatpush1.msra.mxu0 0.0
        %5162 = vmatprep.mubr.f32.mxu0 0.0
        %5163 = vmatmul.mubr.f32.gmra.mrb[0].mxu0 %v4938
        %v5164 = vpop.f32.mrb[0].mxu0
        %v5165 = vadd.f32 %v5097, %v5164
        %v5166 = vpop.f32.mrb[0].mxu0
        %5167 = vdwg.mxu0
        %v5168 = vmul.f32 %v5016, %v5165
        %v5169 = vadd.f32 %v4637, %v5168
        %v5170 = vtanh.pop %v5169
        %v5171 = vsub.f32 1.0, %v5093
        %v5172 = vmul.f32 %v5171, %v5170
        %v5173 = vmul.f32 %v5093, 0.0
        %v5174 = vadd.f32 %v5172, %v5173
        %5175 = vmatprep.subr.mxu0 0.0
        %5176 = vmatpush1.msra.mxu0 %v4927
        %5177 = vmatprep.subr.mxu0 0.0
        %5178 = vmatpush1.msra.mxu0 %v4928
        %5179 = vmatprep.subr.mxu0 0.0
        %5180 = vmatpush1.msra.mxu0 0.0
        %5181 = vmatprep.subr.mxu0 0.0
        %5182 = vmatpush1.msra.mxu0 0.0
        %5183 = vmatprep.subr.mxu0 0.0
        %5184 = vmatpush1.msra.mxu0 0.0
        %5185 = vmatprep.subr.mxu0 0.0
        %5186 = vmatpush1.msra.mxu0 0.0
        %5187 = vmatprep.subr.mxu0 0.0
        %5188 = vmatpush1.msra.mxu0 0.0
        %5189 = vmatprep.subr.mxu0 0.0
        %5190 = vmatpush1.msra.mxu0 0.0
        %5191 = vmatprep.subr.mxu0 0.0
        %5192 = vmatpush1.msra.mxu0 0.0
        %5193 = vmatprep.subr.mxu0 0.0
        %5194 = vmatpush1.msra.mxu0 0.0
        %5195 = vmatprep.subr.mxu0 0.0
        %5196 = vmatpush1.msra.mxu0 0.0
        %5197 = vmatprep.subr.mxu0 0.0
        %5198 = vmatpush1.msra.mxu0 0.0
        %5199 = vmatprep.subr.mxu0 0.0
        %5200 = vmatpush1.msra.mxu0 0.0
        %5201 = vmatprep.subr.mxu0 0.0
        %5202 = vmatpush1.msra.mxu0 0.0
        %5203 = vmatprep.subr.mxu0 0.0
        %5204 = vmatpush1.msra.mxu0 0.0
        %5205 = vmatprep.subr.mxu0 0.0
        %5206 = vmatpush1.msra.mxu0 0.0
        %5207 = vmatprep.subr.mxu0 0.0
        %5208 = vmatpush1.msra.mxu0 0.0
        %5209 = vmatprep.subr.mxu0 0.0
        %5210 = vmatpush1.msra.mxu0 0.0
        %5211 = vmatprep.subr.mxu0 0.0
        %5212 = vmatpush1.msra.mxu0 0.0
        %5213 = vmatprep.subr.mxu0 0.0
        %5214 = vmatpush1.msra.mxu0 0.0
        %5215 = vmatprep.subr.mxu0 0.0
        %5216 = vmatpush1.msra.mxu0 0.0
        %5217 = vmatprep.subr.mxu0 0.0
        %5218 = vmatpush1.msra.mxu0 0.0
        %5219 = vmatprep.subr.mxu0 0.0
        %5220 = vmatpush1.msra.mxu0 0.0
        %5221 = vmatprep.subr.mxu0 0.0
        %5222 = vmatpush1.msra.mxu0 0.0
        %5223 = vmatprep.subr.mxu0 0.0
        %5224 = vmatpush1.msra.mxu0 0.0
        %5225 = vmatprep.subr.mxu0 0.0
        %5226 = vmatpush1.msra.mxu0 0.0
        %5227 = vmatprep.subr.mxu0 0.0
        %5228 = vmatpush1.msra.mxu0 0.0
        %5229 = vmatprep.subr.mxu0 0.0
        %5230 = vmatpush1.msra.mxu0 0.0
        %5231 = vmatprep.subr.mxu0 0.0
        %5232 = vmatpush1.msra.mxu0 0.0
        %5233 = vmatprep.subr.mxu0 0.0
        %5234 = vmatpush1.msra.mxu0 0.0
        %5235 = vmatprep.subr.mxu0 0.0
        %5236 = vmatpush1.msra.mxu0 0.0
        %5237 = vmatprep.subr.mxu0 0.0
        %5238 = vmatpush1.msra.mxu0 0.0
        %5239 = vmatprep.mubr.f32.mxu0 0.0
        %5240 = vmatmul.mubr.f32.gmra.mrb[0].mxu0 %v4938
        %v5241 = vpop.f32.mrb[0].mxu0
        %v5242 = vadd.f32 0.0, %v5241
        %v5243 = vpop.f32.mrb[0].mxu0
        %5244 = vdwg.mxu0
        %v5245 = vadd.f32 %v4736, %v5242
        %v5246 = vxor.u32 %v5245, 2147483648
        %v5247 = vmul.f32 %v5246, 1.442695
        %v5248 = vpow.pop %v5247
        %v5249 = vadd.f32 %v5248, 1.0
        %v5250 = vrcp.pop %v5249
        %v5251 = vmul.f32 1.0, %v5250
        %5252 = vmatprep.subr.mxu0 0.0
        %5253 = vmatpush1.msra.mxu0 %v4930
        %5254 = vmatprep.subr.mxu0 0.0
        %5255 = vmatpush1.msra.mxu0 %v4931
        %5256 = vmatprep.subr.mxu0 0.0
        %5257 = vmatpush1.msra.mxu0 0.0
        %5258 = vmatprep.subr.mxu0 0.0
        %5259 = vmatpush1.msra.mxu0 0.0
        %5260 = vmatprep.subr.mxu0 0.0
        %5261 = vmatpush1.msra.mxu0 0.0
        %5262 = vmatprep.subr.mxu0 0.0
        %5263 = vmatpush1.msra.mxu0 0.0
        %5264 = vmatprep.subr.mxu0 0.0
        %5265 = vmatpush1.msra.mxu0 0.0
        %5266 = vmatprep.subr.mxu0 0.0
        %5267 = vmatpush1.msra.mxu0 0.0
        %5268 = vmatprep.subr.mxu0 0.0
        %5269 = vmatpush1.msra.mxu0 0.0
        %5270 = vmatprep.subr.mxu0 0.0
        %5271 = vmatpush1.msra.mxu0 0.0
        %5272 = vmatprep.subr.mxu0 0.0
        %5273 = vmatpush1.msra.mxu0 0.0
        %5274 = vmatprep.subr.mxu0 0.0
        %5275 = vmatpush1.msra.mxu0 0.0
        %5276 = vmatprep.subr.mxu0 0.0
        %5277 = vmatpush1.msra.mxu0 0.0
        %5278 = vmatprep.subr.mxu0 0.0
        %5279 = vmatpush1.msra.mxu0 0.0
        %5280 = vmatprep.subr.mxu0 0.0
        %5281 = vmatpush1.msra.mxu0 0.0
        %5282 = vmatprep.subr.mxu0 0.0
        %5283 = vmatpush1.msra.mxu0 0.0
        %5284 = vmatprep.subr.mxu0 0.0
        %5285 = vmatpush1.msra.mxu0 0.0
        %5286 = vmatprep.subr.mxu0 0.0
        %5287 = vmatpush1.msra.mxu0 0.0
        %5288 = vmatprep.subr.mxu0 0.0
        %5289 = vmatpush1.msra.mxu0 0.0
        %5290 = vmatprep.subr.mxu0 0.0
        %5291 = vmatpush1.msra.mxu0 0.0
        %5292 = vmatprep.subr.mxu0 0.0
        %5293 = vmatpush1.msra.mxu0 0.0
        %5294 = vmatprep.subr.mxu0 0.0
        %5295 = vmatpush1.msra.mxu0 0.0
        %5296 = vmatprep.subr.mxu0 0.0
        %5297 = vmatpush1.msra.mxu0 0.0
        %5298 = vmatprep.subr.mxu0 0.0
        %5299 = vmatpush1.msra.mxu0 0.0
        %5300 = vmatprep.subr.mxu0 0.0
        %5301 = vmatpush1.msra.mxu0 0.0
        %5302 = vmatprep.subr.mxu0 0.0
        %5303 = vmatpush1.msra.mxu0 0.0
        %5304 = vmatprep.subr.mxu0 0.0
        %5305 = vmatpush1.msra.mxu0 0.0
        %5306 = vmatprep.subr.mxu0 0.0
        %5307 = vmatpush1.msra.mxu0 0.0
        %5308 = vmatprep.subr.mxu0 0.0
        %5309 = vmatpush1.msra.mxu0 0.0
        %5310 = vmatprep.subr.mxu0 0.0
        %5311 = vmatpush1.msra.mxu0 0.0
        %5312 = vmatprep.subr.mxu0 0.0
        %5313 = vmatpush1.msra.mxu0 0.0
        %5314 = vmatprep.subr.mxu0 0.0
        %5315 = vmatpush1.msra.mxu0 0.0
        %5316 = vmatprep.mubr.f32.mxu0 0.0
        %5317 = vmatmul.mubr.f32.gmra.mrb[0].mxu0 %v4938
        %v5318 = vpop.f32.mrb[0].mxu0
        %v5319 = vadd.f32 0.0, %v5318
        %v5320 = vpop.f32.mrb[0].mxu0
        %5321 = vdwg.mxu0
        %v5322 = vadd.f32 %v4826, %v5319
        %v5323 = vxor.u32 %v5322, 2147483648
        %v5324 = vmul.f32 %v5323, 1.442695
        %v5325 = vpow.pop %v5324
        %v5326 = vadd.f32 %v5325, 1.0
        %v5327 = vrcp.pop %v5326
        %v5328 = vmul.f32 1.0, %v5327
        %v5329 = vlaneseq
        %v5330 = vshrl.u32 %v5329, 7
        %v5331 = vsub.s32 0, %v5330
        %v5332 = vrot.slane %v4936, %v5331
        %5333 = vmatprep.subr.mxu0 0.0
        %5334 = vmatpush1.msra.mxu0 %v4933
        %5335 = vmatprep.subr.mxu0 0.0
        %5336 = vmatpush1.msra.mxu0 %v4934
        %5337 = vmatprep.subr.mxu0 0.0
        %5338 = vmatpush1.msra.mxu0 0.0
        %5339 = vmatprep.subr.mxu0 0.0
        %5340 = vmatpush1.msra.mxu0 0.0
        %5341 = vmatprep.subr.mxu0 0.0
        %5342 = vmatpush1.msra.mxu0 0.0
        %5343 = vmatprep.subr.mxu0 0.0
        %5344 = vmatpush1.msra.mxu0 0.0
        %5345 = vmatprep.subr.mxu0 0.0
        %5346 = vmatpush1.msra.mxu0 0.0
        %5347 = vmatprep.subr.mxu0 0.0
        %5348 = vmatpush1.msra.mxu0 0.0
        %5349 = vmatprep.subr.mxu0 0.0
        %5350 = vmatpush1.msra.mxu0 0.0
        %5351 = vmatprep.subr.mxu0 0.0
        %5352 = vmatpush1.msra.mxu0 0.0
        %5353 = vmatprep.subr.mxu0 0.0
        %5354 = vmatpush1.msra.mxu0 0.0
        %5355 = vmatprep.subr.mxu0 0.0
        %5356 = vmatpush1.msra.mxu0 0.0
        %5357 = vmatprep.subr.mxu0 0.0
        %5358 = vmatpush1.msra.mxu0 0.0
        %5359 = vmatprep.subr.mxu0 0.0
        %5360 = vmatpush1.msra.mxu0 0.0
        %5361 = vmatprep.subr.mxu0 0.0
        %5362 = vmatpush1.msra.mxu0 0.0
        %5363 = vmatprep.subr.mxu0 0.0
        %5364 = vmatpush1.msra.mxu0 0.0
        %5365 = vmatprep.subr.mxu0 0.0
        %5366 = vmatpush1.msra.mxu0 0.0
        %5367 = vmatprep.subr.mxu0 0.0
        %5368 = vmatpush1.msra.mxu0 0.0
        %5369 = vmatprep.subr.mxu0 0.0
        %5370 = vmatpush1.msra.mxu0 0.0
        %5371 = vmatprep.subr.mxu0 0.0
        %5372 = vmatpush1.msra.mxu0 0.0
        %5373 = vmatprep.subr.mxu0 0.0
        %5374 = vmatpush1.msra.mxu0 0.0
        %5375 = vmatprep.subr.mxu0 0.0
        %5376 = vmatpush1.msra.mxu0 0.0
        %5377 = vmatprep.subr.mxu0 0.0
        %5378 = vmatpush1.msra.mxu0 0.0
        %5379 = vmatprep.subr.mxu0 0.0
        %5380 = vmatpush1.msra.mxu0 0.0
        %5381 = vmatprep.subr.mxu0 0.0
        %5382 = vmatpush1.msra.mxu0 0.0
        %5383 = vmatprep.subr.mxu0 0.0
        %5384 = vmatpush1.msra.mxu0 0.0
        %5385 = vmatprep.subr.mxu0 0.0
        %5386 = vmatpush1.msra.mxu0 0.0
        %5387 = vmatprep.subr.mxu0 0.0
        %5388 = vmatpush1.msra.mxu0 0.0
        %5389 = vmatprep.subr.mxu0 0.0
        %5390 = vmatpush1.msra.mxu0 0.0
        %5391 = vmatprep.subr.mxu0 0.0
        %5392 = vmatpush1.msra.mxu0 0.0
        %5393 = vmatprep.subr.mxu0 0.0
        %5394 = vmatpush1.msra.mxu0 0.0
        %5395 = vmatprep.subr.mxu0 0.0
        %5396 = vmatpush1.msra.mxu0 0.0
        %5397 = vmatprep.mubr.f32.mxu0 0.0
        %5398 = vmatmul.mubr.f32.gmra.mrb[0].mxu0 %v4938
        %v5399 = vpop.f32.mrb[0].mxu0
        %v5400 = vadd.f32 %v5332, %v5399
        %v5401 = vpop.f32.mrb[0].mxu0
        %5402 = vdwg.mxu0
        %v5403 = vmul.f32 %v5251, %v5400
        %v5404 = vadd.f32 %v4916, %v5403
        %v5405 = vtanh.pop %v5404
        %v5406 = vsub.f32 1.0, %v5328
        %v5407 = vmul.f32 %v5406, %v5405
        %v5408 = vmul.f32 %v5328, 0.0
        %v5409 = vadd.f32 %v5407, %v5408
        %v5411 = vsel %vm1293, %v5174, 0
        %5413 = vmatprep.subr.mxu0 0.0
        %5414 = vmatpush1.msra.mxu0 %v4919
        %5415 = vmatprep.subr.mxu0 0.0
        %5416 = vmatpush1.msra.mxu0 %v4920
        %5417 = vmatprep.subr.mxu0 0.0
        %5418 = vmatpush1.msra.mxu0 0.0
        %5419 = vmatprep.subr.mxu0 0.0
        %5420 = vmatpush1.msra.mxu0 0.0
        %5421 = vmatprep.subr.mxu0 0.0
        %5422 = vmatpush1.msra.mxu0 0.0
        %5423 = vmatprep.subr.mxu0 0.0
        %5424 = vmatpush1.msra.mxu0 0.0
        %5425 = vmatprep.subr.mxu0 0.0
        %5426 = vmatpush1.msra.mxu0 0.0
        %5427 = vmatprep.subr.mxu0 0.0
        %5428 = vmatpush1.msra.mxu0 0.0
        %5429 = vmatprep.subr.mxu0 0.0
        %5430 = vmatpush1.msra.mxu0 0.0
        %5431 = vmatprep.subr.mxu0 0.0
        %5432 = vmatpush1.msra.mxu0 0.0
        %5433 = vmatprep.subr.mxu0 0.0
        %5434 = vmatpush1.msra.mxu0 0.0
        %5435 = vmatprep.subr.mxu0 0.0
        %5436 = vmatpush1.msra.mxu0 0.0
        %5437 = vmatprep.subr.mxu0 0.0
        %5438 = vmatpush1.msra.mxu0 0.0
        %5439 = vmatprep.subr.mxu0 0.0
        %5440 = vmatpush1.msra.mxu0 0.0
        %5441 = vmatprep.subr.mxu0 0.0
        %5442 = vmatpush1.msra.mxu0 0.0
        %5443 = vmatprep.subr.mxu0 0.0
        %5444 = vmatpush1.msra.mxu0 0.0
        %5445 = vmatprep.subr.mxu0 0.0
        %5446 = vmatpush1.msra.mxu0 0.0
        %5447 = vmatprep.subr.mxu0 0.0
        %5448 = vmatpush1.msra.mxu0 0.0
        %5449 = vmatprep.subr.mxu0 0.0
        %5450 = vmatpush1.msra.mxu0 0.0
        %5451 = vmatprep.subr.mxu0 0.0
        %5452 = vmatpush1.msra.mxu0 0.0
        %5453 = vmatprep.subr.mxu0 0.0
        %5454 = vmatpush1.msra.mxu0 0.0
        %5455 = vmatprep.subr.mxu0 0.0
        %5456 = vmatpush1.msra.mxu0 0.0
        %5457 = vmatprep.subr.mxu0 0.0
        %5458 = vmatpush1.msra.mxu0 0.0
        %5459 = vmatprep.subr.mxu0 0.0
        %5460 = vmatpush1.msra.mxu0 0.0
        %5461 = vmatprep.subr.mxu0 0.0
        %5462 = vmatpush1.msra.mxu0 0.0
        %5463 = vmatprep.subr.mxu0 0.0
        %5464 = vmatpush1.msra.mxu0 0.0
        %5465 = vmatprep.subr.mxu0 0.0
        %5466 = vmatpush1.msra.mxu0 0.0
        %5467 = vmatprep.subr.mxu0 0.0
        %5468 = vmatpush1.msra.mxu0 0.0
        %5469 = vmatprep.subr.mxu0 0.0
        %5470 = vmatpush1.msra.mxu0 0.0
        %5471 = vmatprep.subr.mxu0 0.0
        %5472 = vmatpush1.msra.mxu0 0.0
        %5473 = vmatprep.subr.mxu0 0.0
        %5474 = vmatpush1.msra.mxu0 0.0
        %5475 = vmatprep.subr.mxu0 0.0
        %5476 = vmatpush1.msra.mxu0 0.0
        %5477 = vmatprep.mubr.f32.mxu0 0.0
        %5478 = vmatmul.mubr.f32.gmra.mrb[0].mxu0 %v5411
        %v5479 = vpop.f32.mrb[0].mxu0
        %v5480 = vadd.f32 0.0, %v5479
        %v5481 = vpop.f32.mrb[0].mxu0
        %5482 = vdwg.mxu0
        %v5483 = vadd.f32 %v4462, %v5480
        %v5484 = vxor.u32 %v5483, 2147483648
        %v5485 = vmul.f32 %v5484, 1.442695
        %v5486 = vpow.pop %v5485
        %v5487 = vadd.f32 %v5486, 1.0
        %v5488 = vrcp.pop %v5487
        %v5489 = vmul.f32 1.0, %v5488
        %5490 = vmatprep.subr.mxu0 0.0
        %5491 = vmatpush1.msra.mxu0 %v4922
        %5492 = vmatprep.subr.mxu0 0.0
        %5493 = vmatpush1.msra.mxu0 %v4923
        %5494 = vmatprep.subr.mxu0 0.0
        %5495 = vmatpush1.msra.mxu0 0.0
        %5496 = vmatprep.subr.mxu0 0.0
        %5497 = vmatpush1.msra.mxu0 0.0
        %5498 = vmatprep.subr.mxu0 0.0
        %5499 = vmatpush1.msra.mxu0 0.0
        %5500 = vmatprep.subr.mxu0 0.0
        %5501 = vmatpush1.msra.mxu0 0.0
        %5502 = vmatprep.subr.mxu0 0.0
        %5503 = vmatpush1.msra.mxu0 0.0
        %5504 = vmatprep.subr.mxu0 0.0
        %5505 = vmatpush1.msra.mxu0 0.0
        %5506 = vmatprep.subr.mxu0 0.0
        %5507 = vmatpush1.msra.mxu0 0.0
        %5508 = vmatprep.subr.mxu0 0.0
        %5509 = vmatpush1.msra.mxu0 0.0
        %5510 = vmatprep.subr.mxu0 0.0
        %5511 = vmatpush1.msra.mxu0 0.0
        %5512 = vmatprep.subr.mxu0 0.0
        %5513 = vmatpush1.msra.mxu0 0.0
        %5514 = vmatprep.subr.mxu0 0.0
        %5515 = vmatpush1.msra.mxu0 0.0
        %5516 = vmatprep.subr.mxu0 0.0
        %5517 = vmatpush1.msra.mxu0 0.0
        %5518 = vmatprep.subr.mxu0 0.0
        %5519 = vmatpush1.msra.mxu0 0.0
        %5520 = vmatprep.subr.mxu0 0.0
        %5521 = vmatpush1.msra.mxu0 0.0
        %5522 = vmatprep.subr.mxu0 0.0
        %5523 = vmatpush1.msra.mxu0 0.0
        %5524 = vmatprep.subr.mxu0 0.0
        %5525 = vmatpush1.msra.mxu0 0.0
        %5526 = vmatprep.subr.mxu0 0.0
        %5527 = vmatpush1.msra.mxu0 0.0
        %5528 = vmatprep.subr.mxu0 0.0
        %5529 = vmatpush1.msra.mxu0 0.0
        %5530 = vmatprep.subr.mxu0 0.0
        %5531 = vmatpush1.msra.mxu0 0.0
        %5532 = vmatprep.subr.mxu0 0.0
        %5533 = vmatpush1.msra.mxu0 0.0
        %5534 = vmatprep.subr.mxu0 0.0
        %5535 = vmatpush1.msra.mxu0 0.0
        %5536 = vmatprep.subr.mxu0 0.0
        %5537 = vmatpush1.msra.mxu0 0.0
        %5538 = vmatprep.subr.mxu0 0.0
        %5539 = vmatpush1.msra.mxu0 0.0
        %5540 = vmatprep.subr.mxu0 0.0
        %5541 = vmatpush1.msra.mxu0 0.0
        %5542 = vmatprep.subr.mxu0 0.0
        %5543 = vmatpush1.msra.mxu0 0.0
        %5544 = vmatprep.subr.mxu0 0.0
        %5545 = vmatpush1.msra.mxu0 0.0
        %5546 = vmatprep.subr.mxu0 0.0
        %5547 = vmatpush1.msra.mxu0 0.0
        %5548 = vmatprep.subr.mxu0 0.0
        %5549 = vmatpush1.msra.mxu0 0.0
        %5550 = vmatprep.subr.mxu0 0.0
        %5551 = vmatpush1.msra.mxu0 0.0
        %5552 = vmatprep.subr.mxu0 0.0
        %5553 = vmatpush1.msra.mxu0 0.0
        %5554 = vmatprep.mubr.f32.mxu0 0.0
        %5555 = vmatmul.mubr.f32.gmra.mrb[0].mxu0 %v5411
        %v5556 = vpop.f32.mrb[0].mxu0
        %v5557 = vadd.f32 0.0, %v5556
        %v5558 = vpop.f32.mrb[0].mxu0
        %5559 = vdwg.mxu0
        %v5560 = vadd.f32 %v4552, %v5557
        %v5561 = vxor.u32 %v5560, 2147483648
        %v5562 = vmul.f32 %v5561, 1.442695
        %v5563 = vpow.pop %v5562
        %v5564 = vadd.f32 %v5563, 1.0
        %v5565 = vrcp.pop %v5564
        %v5566 = vmul.f32 1.0, %v5565
        %5567 = vmatprep.subr.mxu0 0.0
        %5568 = vmatpush1.msra.mxu0 %v4925
        %5569 = vmatprep.subr.mxu0 0.0
        %5570 = vmatpush1.msra.mxu0 %v4926
        %5571 = vmatprep.subr.mxu0 0.0
        %5572 = vmatpush1.msra.mxu0 0.0
        %5573 = vmatprep.subr.mxu0 0.0
        %5574 = vmatpush1.msra.mxu0 0.0
        %5575 = vmatprep.subr.mxu0 0.0
        %5576 = vmatpush1.msra.mxu0 0.0
        %5577 = vmatprep.subr.mxu0 0.0
        %5578 = vmatpush1.msra.mxu0 0.0
        %5579 = vmatprep.subr.mxu0 0.0
        %5580 = vmatpush1.msra.mxu0 0.0
        %5581 = vmatprep.subr.mxu0 0.0
        %5582 = vmatpush1.msra.mxu0 0.0
        %5583 = vmatprep.subr.mxu0 0.0
        %5584 = vmatpush1.msra.mxu0 0.0
        %5585 = vmatprep.subr.mxu0 0.0
        %5586 = vmatpush1.msra.mxu0 0.0
        %5587 = vmatprep.subr.mxu0 0.0
        %5588 = vmatpush1.msra.mxu0 0.0
        %5589 = vmatprep.subr.mxu0 0.0
        %5590 = vmatpush1.msra.mxu0 0.0
        %5591 = vmatprep.subr.mxu0 0.0
        %5592 = vmatpush1.msra.mxu0 0.0
        %5593 = vmatprep.subr.mxu0 0.0
        %5594 = vmatpush1.msra.mxu0 0.0
        %5595 = vmatprep.subr.mxu0 0.0
        %5596 = vmatpush1.msra.mxu0 0.0
        %5597 = vmatprep.subr.mxu0 0.0
        %5598 = vmatpush1.msra.mxu0 0.0
        %5599 = vmatprep.subr.mxu0 0.0
        %5600 = vmatpush1.msra.mxu0 0.0
        %5601 = vmatprep.subr.mxu0 0.0
        %5602 = vmatpush1.msra.mxu0 0.0
        %5603 = vmatprep.subr.mxu0 0.0
        %5604 = vmatpush1.msra.mxu0 0.0
        %5605 = vmatprep.subr.mxu0 0.0
        %5606 = vmatpush1.msra.mxu0 0.0
        %5607 = vmatprep.subr.mxu0 0.0
        %5608 = vmatpush1.msra.mxu0 0.0
        %5609 = vmatprep.subr.mxu0 0.0
        %5610 = vmatpush1.msra.mxu0 0.0
        %5611 = vmatprep.subr.mxu0 0.0
        %5612 = vmatpush1.msra.mxu0 0.0
        %5613 = vmatprep.subr.mxu0 0.0
        %5614 = vmatpush1.msra.mxu0 0.0
        %5615 = vmatprep.subr.mxu0 0.0
        %5616 = vmatpush1.msra.mxu0 0.0
        %5617 = vmatprep.subr.mxu0 0.0
        %5618 = vmatpush1.msra.mxu0 0.0
        %5619 = vmatprep.subr.mxu0 0.0
        %5620 = vmatpush1.msra.mxu0 0.0
        %5621 = vmatprep.subr.mxu0 0.0
        %5622 = vmatpush1.msra.mxu0 0.0
        %5623 = vmatprep.subr.mxu0 0.0
        %5624 = vmatpush1.msra.mxu0 0.0
        %5625 = vmatprep.subr.mxu0 0.0
        %5626 = vmatpush1.msra.mxu0 0.0
        %5627 = vmatprep.subr.mxu0 0.0
        %5628 = vmatpush1.msra.mxu0 0.0
        %5629 = vmatprep.subr.mxu0 0.0
        %5630 = vmatpush1.msra.mxu0 0.0
        %5631 = vmatprep.mubr.f32.mxu0 0.0
        %5632 = vmatmul.mubr.f32.gmra.mrb[0].mxu0 %v5411
        %v5633 = vpop.f32.mrb[0].mxu0
        %v5634 = vadd.f32 %v5097, %v5633
        %v5635 = vpop.f32.mrb[0].mxu0
        %5636 = vdwg.mxu0
        %v5637 = vmul.f32 %v5489, %v5634
        %v5638 = vadd.f32 %v4642, %v5637
        %v5639 = vtanh.pop %v5638
        %v5640 = vsub.f32 1.0, %v5566
        %v5641 = vmul.f32 %v5640, %v5639
        %v5642 = vmul.f32 %v5566, %v5174
        %v5643 = vadd.f32 %v5641, %v5642
        %v5645 = vsel %vm1293, %v5409, 0
        %5647 = vmatprep.subr.mxu0 0.0
        %5648 = vmatpush1.msra.mxu0 %v4927
        %5649 = vmatprep.subr.mxu0 0.0
        %5650 = vmatpush1.msra.mxu0 %v4928
        %5651 = vmatprep.subr.mxu0 0.0
        %5652 = vmatpush1.msra.mxu0 0.0
        %5653 = vmatprep.subr.mxu0 0.0
        %5654 = vmatpush1.msra.mxu0 0.0
        %5655 = vmatprep.subr.mxu0 0.0
        %5656 = vmatpush1.msra.mxu0 0.0
        %5657 = vmatprep.subr.mxu0 0.0
        %5658 = vmatpush1.msra.mxu0 0.0
        %5659 = vmatprep.subr.mxu0 0.0
        %5660 = vmatpush1.msra.mxu0 0.0
        %5661 = vmatprep.subr.mxu0 0.0
        %5662 = vmatpush1.msra.mxu0 0.0
        %5663 = vmatprep.subr.mxu0 0.0
        %5664 = vmatpush1.msra.mxu0 0.0
        %5665 = vmatprep.subr.mxu0 0.0
        %5666 = vmatpush1.msra.mxu0 0.0
        %5667 = vmatprep.subr.mxu0 0.0
        %5668 = vmatpush1.msra.mxu0 0.0
        %5669 = vmatprep.subr.mxu0 0.0
        %5670 = vmatpush1.msra.mxu0 0.0
        %5671 = vmatprep.subr.mxu0 0.0
        %5672 = vmatpush1.msra.mxu0 0.0
        %5673 = vmatprep.subr.mxu0 0.0
        %5674 = vmatpush1.msra.mxu0 0.0
        %5675 = vmatprep.subr.mxu0 0.0
        %5676 = vmatpush1.msra.mxu0 0.0
        %5677 = vmatprep.subr.mxu0 0.0
        %5678 = vmatpush1.msra.mxu0 0.0
        %5679 = vmatprep.subr.mxu0 0.0
        %5680 = vmatpush1.msra.mxu0 0.0
        %5681 = vmatprep.subr.mxu0 0.0
        %5682 = vmatpush1.msra.mxu0 0.0
        %5683 = vmatprep.subr.mxu0 0.0
        %5684 = vmatpush1.msra.mxu0 0.0
        %5685 = vmatprep.subr.mxu0 0.0
        %5686 = vmatpush1.msra.mxu0 0.0
        %5687 = vmatprep.subr.mxu0 0.0
        %5688 = vmatpush1.msra.mxu0 0.0
        %5689 = vmatprep.subr.mxu0 0.0
        %5690 = vmatpush1.msra.mxu0 0.0
        %5691 = vmatprep.subr.mxu0 0.0
        %5692 = vmatpush1.msra.mxu0 0.0
        %5693 = vmatprep.subr.mxu0 0.0
        %5694 = vmatpush1.msra.mxu0 0.0
        %5695 = vmatprep.subr.mxu0 0.0
        %5696 = vmatpush1.msra.mxu0 0.0
        %5697 = vmatprep.subr.mxu0 0.0
        %5698 = vmatpush1.msra.mxu0 0.0
        %5699 = vmatprep.subr.mxu0 0.0
        %5700 = vmatpush1.msra.mxu0 0.0
        %5701 = vmatprep.subr.mxu0 0.0
        %5702 = vmatpush1.msra.mxu0 0.0
        %5703 = vmatprep.subr.mxu0 0.0
        %5704 = vmatpush1.msra.mxu0 0.0
        %5705 = vmatprep.subr.mxu0 0.0
        %5706 = vmatpush1.msra.mxu0 0.0
        %5707 = vmatprep.subr.mxu0 0.0
        %5708 = vmatpush1.msra.mxu0 0.0
        %5709 = vmatprep.subr.mxu0 0.0
        %5710 = vmatpush1.msra.mxu0 0.0
        %5711 = vmatprep.mubr.f32.mxu0 0.0
        %5712 = vmatmul.mubr.f32.gmra.mrb[0].mxu0 %v5645
        %v5713 = vpop.f32.mrb[0].mxu0
        %v5714 = vadd.f32 0.0, %v5713
        %v5715 = vpop.f32.mrb[0].mxu0
        %5716 = vdwg.mxu0
        %v5717 = vadd.f32 %v4731, %v5714
        %v5718 = vxor.u32 %v5717, 2147483648
        %v5719 = vmul.f32 %v5718, 1.442695
        %v5720 = vpow.pop %v5719
        %v5721 = vadd.f32 %v5720, 1.0
        %v5722 = vrcp.pop %v5721
        %v5723 = vmul.f32 1.0, %v5722
        %5724 = vmatprep.subr.mxu0 0.0
        %5725 = vmatpush1.msra.mxu0 %v4930
        %5726 = vmatprep.subr.mxu0 0.0
        %5727 = vmatpush1.msra.mxu0 %v4931
        %5728 = vmatprep.subr.mxu0 0.0
        %5729 = vmatpush1.msra.mxu0 0.0
        %5730 = vmatprep.subr.mxu0 0.0
        %5731 = vmatpush1.msra.mxu0 0.0
        %5732 = vmatprep.subr.mxu0 0.0
        %5733 = vmatpush1.msra.mxu0 0.0
        %5734 = vmatprep.subr.mxu0 0.0
        %5735 = vmatpush1.msra.mxu0 0.0
        %5736 = vmatprep.subr.mxu0 0.0
        %5737 = vmatpush1.msra.mxu0 0.0
        %5738 = vmatprep.subr.mxu0 0.0
        %5739 = vmatpush1.msra.mxu0 0.0
        %5740 = vmatprep.subr.mxu0 0.0
        %5741 = vmatpush1.msra.mxu0 0.0
        %5742 = vmatprep.subr.mxu0 0.0
        %5743 = vmatpush1.msra.mxu0 0.0
        %5744 = vmatprep.subr.mxu0 0.0
        %5745 = vmatpush1.msra.mxu0 0.0
        %5746 = vmatprep.subr.mxu0 0.0
        %5747 = vmatpush1.msra.mxu0 0.0
        %5748 = vmatprep.subr.mxu0 0.0
        %5749 = vmatpush1.msra.mxu0 0.0
        %5750 = vmatprep.subr.mxu0 0.0
        %5751 = vmatpush1.msra.mxu0 0.0
        %5752 = vmatprep.subr.mxu0 0.0
        %5753 = vmatpush1.msra.mxu0 0.0
        %5754 = vmatprep.subr.mxu0 0.0
        %5755 = vmatpush1.msra.mxu0 0.0
        %5756 = vmatprep.subr.mxu0 0.0
        %5757 = vmatpush1.msra.mxu0 0.0
        %5758 = vmatprep.subr.mxu0 0.0
        %5759 = vmatpush1.msra.mxu0 0.0
        %5760 = vmatprep.subr.mxu0 0.0
        %5761 = vmatpush1.msra.mxu0 0.0
        %5762 = vmatprep.subr.mxu0 0.0
        %5763 = vmatpush1.msra.mxu0 0.0
        %5764 = vmatprep.subr.mxu0 0.0
        %5765 = vmatpush1.msra.mxu0 0.0
        %5766 = vmatprep.subr.mxu0 0.0
        %5767 = vmatpush1.msra.mxu0 0.0
        %5768 = vmatprep.subr.mxu0 0.0
        %5769 = vmatpush1.msra.mxu0 0.0
        %5770 = vmatprep.subr.mxu0 0.0
        %5771 = vmatpush1.msra.mxu0 0.0
        %5772 = vmatprep.subr.mxu0 0.0
        %5773 = vmatpush1.msra.mxu0 0.0
        %5774 = vmatprep.subr.mxu0 0.0
        %5775 = vmatpush1.msra.mxu0 0.0
        %5776 = vmatprep.subr.mxu0 0.0
        %5777 = vmatpush1.msra.mxu0 0.0
        %5778 = vmatprep.subr.mxu0 0.0
        %5779 = vmatpush1.msra.mxu0 0.0
        %5780 = vmatprep.subr.mxu0 0.0
        %5781 = vmatpush1.msra.mxu0 0.0
        %5782 = vmatprep.subr.mxu0 0.0
        %5783 = vmatpush1.msra.mxu0 0.0
        %5784 = vmatprep.subr.mxu0 0.0
        %5785 = vmatpush1.msra.mxu0 0.0
        %5786 = vmatprep.subr.mxu0 0.0
        %5787 = vmatpush1.msra.mxu0 0.0
        %5788 = vmatprep.mubr.f32.mxu0 0.0
        %5789 = vmatmul.mubr.f32.gmra.mrb[0].mxu0 %v5645
        %v5790 = vpop.f32.mrb[0].mxu0
        %v5791 = vadd.f32 0.0, %v5790
        %v5792 = vpop.f32.mrb[0].mxu0
        %5793 = vdwg.mxu0
        %v5794 = vadd.f32 %v4821, %v5791
        %v5795 = vxor.u32 %v5794, 2147483648
        %v5796 = vmul.f32 %v5795, 1.442695
        %v5797 = vpow.pop %v5796
        %v5798 = vadd.f32 %v5797, 1.0
        %v5799 = vrcp.pop %v5798
        %v5800 = vmul.f32 1.0, %v5799
        %5801 = vmatprep.subr.mxu0 0.0
        %5802 = vmatpush1.msra.mxu0 %v4933
        %5803 = vmatprep.subr.mxu0 0.0
        %5804 = vmatpush1.msra.mxu0 %v4934
        %5805 = vmatprep.subr.mxu0 0.0
        %5806 = vmatpush1.msra.mxu0 0.0
        %5807 = vmatprep.subr.mxu0 0.0
        %5808 = vmatpush1.msra.mxu0 0.0
        %5809 = vmatprep.subr.mxu0 0.0
        %5810 = vmatpush1.msra.mxu0 0.0
        %5811 = vmatprep.subr.mxu0 0.0
        %5812 = vmatpush1.msra.mxu0 0.0
        %5813 = vmatprep.subr.mxu0 0.0
        %5814 = vmatpush1.msra.mxu0 0.0
        %5815 = vmatprep.subr.mxu0 0.0
        %5816 = vmatpush1.msra.mxu0 0.0
        %5817 = vmatprep.subr.mxu0 0.0
        %5818 = vmatpush1.msra.mxu0 0.0
        %5819 = vmatprep.subr.mxu0 0.0
        %5820 = vmatpush1.msra.mxu0 0.0
        %5821 = vmatprep.subr.mxu0 0.0
        %5822 = vmatpush1.msra.mxu0 0.0
        %5823 = vmatprep.subr.mxu0 0.0
        %5824 = vmatpush1.msra.mxu0 0.0
        %5825 = vmatprep.subr.mxu0 0.0
        %5826 = vmatpush1.msra.mxu0 0.0
        %5827 = vmatprep.subr.mxu0 0.0
        %5828 = vmatpush1.msra.mxu0 0.0
        %5829 = vmatprep.subr.mxu0 0.0
        %5830 = vmatpush1.msra.mxu0 0.0
        %5831 = vmatprep.subr.mxu0 0.0
        %5832 = vmatpush1.msra.mxu0 0.0
        %5833 = vmatprep.subr.mxu0 0.0
        %5834 = vmatpush1.msra.mxu0 0.0
        %5835 = vmatprep.subr.mxu0 0.0
        %5836 = vmatpush1.msra.mxu0 0.0
        %5837 = vmatprep.subr.mxu0 0.0
        %5838 = vmatpush1.msra.mxu0 0.0
        %5839 = vmatprep.subr.mxu0 0.0
        %5840 = vmatpush1.msra.mxu0 0.0
        %5841 = vmatprep.subr.mxu0 0.0
        %5842 = vmatpush1.msra.mxu0 0.0
        %5843 = vmatprep.subr.mxu0 0.0
        %5844 = vmatpush1.msra.mxu0 0.0
        %5845 = vmatprep.subr.mxu0 0.0
        %5846 = vmatpush1.msra.mxu0 0.0
        %5847 = vmatprep.subr.mxu0 0.0
        %5848 = vmatpush1.msra.mxu0 0.0
        %5849 = vmatprep.subr.mxu0 0.0
        %5850 = vmatpush1.msra.mxu0 0.0
        %5851 = vmatprep.subr.mxu0 0.0
        %5852 = vmatpush1.msra.mxu0 0.0
        %5853 = vmatprep.subr.mxu0 0.0
        %5854 = vmatpush1.msra.mxu0 0.0
        %5855 = vmatprep.subr.mxu0 0.0
        %5856 = vmatpush1.msra.mxu0 0.0
        %5857 = vmatprep.subr.mxu0 0.0
        %5858 = vmatpush1.msra.mxu0 0.0
        %5859 = vmatprep.subr.mxu0 0.0
        %5860 = vmatpush1.msra.mxu0 0.0
        %5861 = vmatprep.subr.mxu0 0.0
        %5862 = vmatpush1.msra.mxu0 0.0
        %5863 = vmatprep.subr.mxu0 0.0
        %5864 = vmatpush1.msra.mxu0 0.0
        %5865 = vmatprep.mubr.f32.mxu0 0.0
        %5866 = vmatmul.mubr.f32.gmra.mrb[0].mxu0 %v5645
        %v5867 = vpop.f32.mrb[0].mxu0
        %v5868 = vadd.f32 %v5332, %v5867
        %v5869 = vpop.f32.mrb[0].mxu0
        %5870 = vdwg.mxu0
        %v5871 = vmul.f32 %v5723, %v5868
        %v5872 = vadd.f32 %v4911, %v5871
        %v5873 = vtanh.pop %v5872
        %v5874 = vsub.f32 1.0, %v5800
        %v5875 = vmul.f32 %v5874, %v5873
        %v5876 = vmul.f32 %v5800, %v5409
        %v5877 = vadd.f32 %v5875, %v5876
        %v5879 = vsel %vm1293, %v5643, 0
        %5881 = vmatprep.subr.mxu0 0.0
        %5882 = vmatpush1.msra.mxu0 %v4919
        %5883 = vmatprep.subr.mxu0 0.0
        %5884 = vmatpush1.msra.mxu0 %v4920
        %5885 = vmatprep.subr.mxu0 0.0
        %5886 = vmatpush1.msra.mxu0 0.0
        %5887 = vmatprep.subr.mxu0 0.0
        %5888 = vmatpush1.msra.mxu0 0.0
        %5889 = vmatprep.subr.mxu0 0.0
        %5890 = vmatpush1.msra.mxu0 0.0
        %5891 = vmatprep.subr.mxu0 0.0
        %5892 = vmatpush1.msra.mxu0 0.0
        %5893 = vmatprep.subr.mxu0 0.0
        %5894 = vmatpush1.msra.mxu0 0.0
        %5895 = vmatprep.subr.mxu0 0.0
        %5896 = vmatpush1.msra.mxu0 0.0
        %5897 = vmatprep.subr.mxu0 0.0
        %5898 = vmatpush1.msra.mxu0 0.0
        %5899 = vmatprep.subr.mxu0 0.0
        %5900 = vmatpush1.msra.mxu0 0.0
        %5901 = vmatprep.subr.mxu0 0.0
        %5902 = vmatpush1.msra.mxu0 0.0
        %5903 = vmatprep.subr.mxu0 0.0
        %5904 = vmatpush1.msra.mxu0 0.0
        %5905 = vmatprep.subr.mxu0 0.0
        %5906 = vmatpush1.msra.mxu0 0.0
        %5907 = vmatprep.subr.mxu0 0.0
        %5908 = vmatpush1.msra.mxu0 0.0
        %5909 = vmatprep.subr.mxu0 0.0
        %5910 = vmatpush1.msra.mxu0 0.0
        %5911 = vmatprep.subr.mxu0 0.0
        %5912 = vmatpush1.msra.mxu0 0.0
        %5913 = vmatprep.subr.mxu0 0.0
        %5914 = vmatpush1.msra.mxu0 0.0
        %5915 = vmatprep.subr.mxu0 0.0
        %5916 = vmatpush1.msra.mxu0 0.0
        %5917 = vmatprep.subr.mxu0 0.0
        %5918 = vmatpush1.msra.mxu0 0.0
        %5919 = vmatprep.subr.mxu0 0.0
        %5920 = vmatpush1.msra.mxu0 0.0
        %5921 = vmatprep.subr.mxu0 0.0
        %5922 = vmatpush1.msra.mxu0 0.0
        %5923 = vmatprep.subr.mxu0 0.0
        %5924 = vmatpush1.msra.mxu0 0.0
        %5925 = vmatprep.subr.mxu0 0.0
        %5926 = vmatpush1.msra.mxu0 0.0
        %5927 = vmatprep.subr.mxu0 0.0
        %5928 = vmatpush1.msra.mxu0 0.0
        %5929 = vmatprep.subr.mxu0 0.0
        %5930 = vmatpush1.msra.mxu0 0.0
        %5931 = vmatprep.subr.mxu0 0.0
        %5932 = vmatpush1.msra.mxu0 0.0
        %5933 = vmatprep.subr.mxu0 0.0
        %5934 = vmatpush1.msra.mxu0 0.0
        %5935 = vmatprep.subr.mxu0 0.0
        %5936 = vmatpush1.msra.mxu0 0.0
        %5937 = vmatprep.subr.mxu0 0.0
        %5938 = vmatpush1.msra.mxu0 0.0
        %5939 = vmatprep.subr.mxu0 0.0
        %5940 = vmatpush1.msra.mxu0 0.0
        %5941 = vmatprep.subr.mxu0 0.0
        %5942 = vmatpush1.msra.mxu0 0.0
        %5943 = vmatprep.subr.mxu0 0.0
        %5944 = vmatpush1.msra.mxu0 0.0
        %5945 = vmatprep.mubr.f32.mxu0 0.0
        %5946 = vmatmul.mubr.f32.gmra.mrb[0].mxu0 %v5879
        %v5947 = vpop.f32.mrb[0].mxu0
        %v5948 = vadd.f32 0.0, %v5947
        %v5949 = vpop.f32.mrb[0].mxu0
        %5950 = vdwg.mxu0
        %v5951 = vadd.f32 %v4467, %v5948
        %v5952 = vxor.u32 %v5951, 2147483648
        %v5953 = vmul.f32 %v5952, 1.442695
        %v5954 = vpow.pop %v5953
        %v5955 = vadd.f32 %v5954, 1.0
        %v5956 = vrcp.pop %v5955
        %v5957 = vmul.f32 1.0, %v5956
        %5958 = vmatprep.subr.mxu0 0.0
        %5959 = vmatpush1.msra.mxu0 %v4922
        %5960 = vmatprep.subr.mxu0 0.0
        %5961 = vmatpush1.msra.mxu0 %v4923
        %5962 = vmatprep.subr.mxu0 0.0
        %5963 = vmatpush1.msra.mxu0 0.0
        %5964 = vmatprep.subr.mxu0 0.0
        %5965 = vmatpush1.msra.mxu0 0.0
        %5966 = vmatprep.subr.mxu0 0.0
        %5967 = vmatpush1.msra.mxu0 0.0
        %5968 = vmatprep.subr.mxu0 0.0
        %5969 = vmatpush1.msra.mxu0 0.0
        %5970 = vmatprep.subr.mxu0 0.0
        %5971 = vmatpush1.msra.mxu0 0.0
        %5972 = vmatprep.subr.mxu0 0.0
        %5973 = vmatpush1.msra.mxu0 0.0
        %5974 = vmatprep.subr.mxu0 0.0
        %5975 = vmatpush1.msra.mxu0 0.0
        %5976 = vmatprep.subr.mxu0 0.0
        %5977 = vmatpush1.msra.mxu0 0.0
        %5978 = vmatprep.subr.mxu0 0.0
        %5979 = vmatpush1.msra.mxu0 0.0
        %5980 = vmatprep.subr.mxu0 0.0
        %5981 = vmatpush1.msra.mxu0 0.0
        %5982 = vmatprep.subr.mxu0 0.0
        %5983 = vmatpush1.msra.mxu0 0.0
        %5984 = vmatprep.subr.mxu0 0.0
        %5985 = vmatpush1.msra.mxu0 0.0
        %5986 = vmatprep.subr.mxu0 0.0
        %5987 = vmatpush1.msra.mxu0 0.0
        %5988 = vmatprep.subr.mxu0 0.0
        %5989 = vmatpush1.msra.mxu0 0.0
        %5990 = vmatprep.subr.mxu0 0.0
        %5991 = vmatpush1.msra.mxu0 0.0
        %5992 = vmatprep.subr.mxu0 0.0
        %5993 = vmatpush1.msra.mxu0 0.0
        %5994 = vmatprep.subr.mxu0 0.0
        %5995 = vmatpush1.msra.mxu0 0.0
        %5996 = vmatprep.subr.mxu0 0.0
        %5997 = vmatpush1.msra.mxu0 0.0
        %5998 = vmatprep.subr.mxu0 0.0
        %5999 = vmatpush1.msra.mxu0 0.0
        %6000 = vmatprep.subr.mxu0 0.0
        %6001 = vmatpush1.msra.mxu0 0.0
        %6002 = vmatprep.subr.mxu0 0.0
        %6003 = vmatpush1.msra.mxu0 0.0
        %6004 = vmatprep.subr.mxu0 0.0
        %6005 = vmatpush1.msra.mxu0 0.0
        %6006 = vmatprep.subr.mxu0 0.0
        %6007 = vmatpush1.msra.mxu0 0.0
        %6008 = vmatprep.subr.mxu0 0.0
        %6009 = vmatpush1.msra.mxu0 0.0
        %6010 = vmatprep.subr.mxu0 0.0
        %6011 = vmatpush1.msra.mxu0 0.0
        %6012 = vmatprep.subr.mxu0 0.0
        %6013 = vmatpush1.msra.mxu0 0.0
        %6014 = vmatprep.subr.mxu0 0.0
        %6015 = vmatpush1.msra.mxu0 0.0
        %6016 = vmatprep.subr.mxu0 0.0
        %6017 = vmatpush1.msra.mxu0 0.0
        %6018 = vmatprep.subr.mxu0 0.0
        %6019 = vmatpush1.msra.mxu0 0.0
        %6020 = vmatprep.subr.mxu0 0.0
        %6021 = vmatpush1.msra.mxu0 0.0
        %6022 = vmatprep.mubr.f32.mxu0 0.0
        %6023 = vmatmul.mubr.f32.gmra.mrb[0].mxu0 %v5879
        %v6024 = vpop.f32.mrb[0].mxu0
        %v6025 = vadd.f32 0.0, %v6024
        %v6026 = vpop.f32.mrb[0].mxu0
        %6027 = vdwg.mxu0
        %v6028 = vadd.f32 %v4557, %v6025
        %v6029 = vxor.u32 %v6028, 2147483648
        %v6030 = vmul.f32 %v6029, 1.442695
        %v6031 = vpow.pop %v6030
        %v6032 = vadd.f32 %v6031, 1.0
        %v6033 = vrcp.pop %v6032
        %v6034 = vmul.f32 1.0, %v6033
        %6035 = vmatprep.subr.mxu0 0.0
        %6036 = vmatpush1.msra.mxu0 %v4925
        %6037 = vmatprep.subr.mxu0 0.0
        %6038 = vmatpush1.msra.mxu0 %v4926
        %6039 = vmatprep.subr.mxu0 0.0
        %6040 = vmatpush1.msra.mxu0 0.0
        %6041 = vmatprep.subr.mxu0 0.0
        %6042 = vmatpush1.msra.mxu0 0.0
        %6043 = vmatprep.subr.mxu0 0.0
        %6044 = vmatpush1.msra.mxu0 0.0
        %6045 = vmatprep.subr.mxu0 0.0
        %6046 = vmatpush1.msra.mxu0 0.0
        %6047 = vmatprep.subr.mxu0 0.0
        %6048 = vmatpush1.msra.mxu0 0.0
        %6049 = vmatprep.subr.mxu0 0.0
        %6050 = vmatpush1.msra.mxu0 0.0
        %6051 = vmatprep.subr.mxu0 0.0
        %6052 = vmatpush1.msra.mxu0 0.0
        %6053 = vmatprep.subr.mxu0 0.0
        %6054 = vmatpush1.msra.mxu0 0.0
        %6055 = vmatprep.subr.mxu0 0.0
        %6056 = vmatpush1.msra.mxu0 0.0
        %6057 = vmatprep.subr.mxu0 0.0
        %6058 = vmatpush1.msra.mxu0 0.0
        %6059 = vmatprep.subr.mxu0 0.0
        %6060 = vmatpush1.msra.mxu0 0.0
        %6061 = vmatprep.subr.mxu0 0.0
        %6062 = vmatpush1.msra.mxu0 0.0
        %6063 = vmatprep.subr.mxu0 0.0
        %6064 = vmatpush1.msra.mxu0 0.0
        %6065 = vmatprep.subr.mxu0 0.0
        %6066 = vmatpush1.msra.mxu0 0.0
        %6067 = vmatprep.subr.mxu0 0.0
        %6068 = vmatpush1.msra.mxu0 0.0
        %6069 = vmatprep.subr.mxu0 0.0
        %6070 = vmatpush1.msra.mxu0 0.0
        %6071 = vmatprep.subr.mxu0 0.0
        %6072 = vmatpush1.msra.mxu0 0.0
        %6073 = vmatprep.subr.mxu0 0.0
        %6074 = vmatpush1.msra.mxu0 0.0
        %6075 = vmatprep.subr.mxu0 0.0
        %6076 = vmatpush1.msra.mxu0 0.0
        %6077 = vmatprep.subr.mxu0 0.0
        %6078 = vmatpush1.msra.mxu0 0.0
        %6079 = vmatprep.subr.mxu0 0.0
        %6080 = vmatpush1.msra.mxu0 0.0
        %6081 = vmatprep.subr.mxu0 0.0
        %6082 = vmatpush1.msra.mxu0 0.0
        %6083 = vmatprep.subr.mxu0 0.0
        %6084 = vmatpush1.msra.mxu0 0.0
        %6085 = vmatprep.subr.mxu0 0.0
        %6086 = vmatpush1.msra.mxu0 0.0
        %6087 = vmatprep.subr.mxu0 0.0
        %6088 = vmatpush1.msra.mxu0 0.0
        %6089 = vmatprep.subr.mxu0 0.0
        %6090 = vmatpush1.msra.mxu0 0.0
        %6091 = vmatprep.subr.mxu0 0.0
        %6092 = vmatpush1.msra.mxu0 0.0
        %6093 = vmatprep.subr.mxu0 0.0
        %6094 = vmatpush1.msra.mxu0 0.0
        %6095 = vmatprep.subr.mxu0 0.0
        %6096 = vmatpush1.msra.mxu0 0.0
        %6097 = vmatprep.subr.mxu0 0.0
        %6098 = vmatpush1.msra.mxu0 0.0
        %6099 = vmatprep.mubr.f32.mxu0 0.0
        %6100 = vmatmul.mubr.f32.gmra.mrb[0].mxu0 %v5879
        %v6101 = vpop.f32.mrb[0].mxu0
        %v6102 = vadd.f32 %v5097, %v6101
        %v6103 = vpop.f32.mrb[0].mxu0
        %6104 = vdwg.mxu0
        %v6105 = vmul.f32 %v5957, %v6102
        %v6106 = vadd.f32 %v4647, %v6105
        %v6107 = vtanh.pop %v6106
        %v6108 = vsub.f32 1.0, %v6034
        %v6109 = vmul.f32 %v6108, %v6107
        %v6110 = vmul.f32 %v6034, %v5643
        %v6111 = vadd.f32 %v6109, %v6110
        %v6113 = vsel %vm1293, %v5877, 0
        %6115 = vmatprep.subr.mxu0 0.0
        %6116 = vmatpush1.msra.mxu0 %v4927
        %6117 = vmatprep.subr.mxu0 0.0
        %6118 = vmatpush1.msra.mxu0 %v4928
        %6119 = vmatprep.subr.mxu0 0.0
        %6120 = vmatpush1.msra.mxu0 0.0
        %6121 = vmatprep.subr.mxu0 0.0
        %6122 = vmatpush1.msra.mxu0 0.0
        %6123 = vmatprep.subr.mxu0 0.0
        %6124 = vmatpush1.msra.mxu0 0.0
        %6125 = vmatprep.subr.mxu0 0.0
        %6126 = vmatpush1.msra.mxu0 0.0
        %6127 = vmatprep.subr.mxu0 0.0
        %6128 = vmatpush1.msra.mxu0 0.0
        %6129 = vmatprep.subr.mxu0 0.0
        %6130 = vmatpush1.msra.mxu0 0.0
        %6131 = vmatprep.subr.mxu0 0.0
        %6132 = vmatpush1.msra.mxu0 0.0
        %6133 = vmatprep.subr.mxu0 0.0
        %6134 = vmatpush1.msra.mxu0 0.0
        %6135 = vmatprep.subr.mxu0 0.0
        %6136 = vmatpush1.msra.mxu0 0.0
        %6137 = vmatprep.subr.mxu0 0.0
        %6138 = vmatpush1.msra.mxu0 0.0
        %6139 = vmatprep.subr.mxu0 0.0
        %6140 = vmatpush1.msra.mxu0 0.0
        %6141 = vmatprep.subr.mxu0 0.0
        %6142 = vmatpush1.msra.mxu0 0.0
        %6143 = vmatprep.subr.mxu0 0.0
        %6144 = vmatpush1.msra.mxu0 0.0
        %6145 = vmatprep.subr.mxu0 0.0
        %6146 = vmatpush1.msra.mxu0 0.0
        %6147 = vmatprep.subr.mxu0 0.0
        %6148 = vmatpush1.msra.mxu0 0.0
        %6149 = vmatprep.subr.mxu0 0.0
        %6150 = vmatpush1.msra.mxu0 0.0
        %6151 = vmatprep.subr.mxu0 0.0
        %6152 = vmatpush1.msra.mxu0 0.0
        %6153 = vmatprep.subr.mxu0 0.0
        %6154 = vmatpush1.msra.mxu0 0.0
        %6155 = vmatprep.subr.mxu0 0.0
        %6156 = vmatpush1.msra.mxu0 0.0
        %6157 = vmatprep.subr.mxu0 0.0
        %6158 = vmatpush1.msra.mxu0 0.0
        %6159 = vmatprep.subr.mxu0 0.0
        %6160 = vmatpush1.msra.mxu0 0.0
        %6161 = vmatprep.subr.mxu0 0.0
        %6162 = vmatpush1.msra.mxu0 0.0
        %6163 = vmatprep.subr.mxu0 0.0
        %6164 = vmatpush1.msra.mxu0 0.0
        %6165 = vmatprep.subr.mxu0 0.0
        %6166 = vmatpush1.msra.mxu0 0.0
        %6167 = vmatprep.subr.mxu0 0.0
        %6168 = vmatpush1.msra.mxu0 0.0
        %6169 = vmatprep.subr.mxu0 0.0
        %6170 = vmatpush1.msra.mxu0 0.0
        %6171 = vmatprep.subr.mxu0 0.0
        %6172 = vmatpush1.msra.mxu0 0.0
        %6173 = vmatprep.subr.mxu0 0.0
        %6174 = vmatpush1.msra.mxu0 0.0
        %6175 = vmatprep.subr.mxu0 0.0
        %6176 = vmatpush1.msra.mxu0 0.0
        %6177 = vmatprep.subr.mxu0 0.0
        %6178 = vmatpush1.msra.mxu0 0.0
        %6179 = vmatprep.mubr.f32.mxu0 0.0
        %6180 = vmatmul.mubr.f32.gmra.mrb[0].mxu0 %v6113
        %v6181 = vpop.f32.mrb[0].mxu0
        %v6182 = vadd.f32 0.0, %v6181
        %v6183 = vpop.f32.mrb[0].mxu0
        %6184 = vdwg.mxu0
        %v6185 = vadd.f32 %v4726, %v6182
        %v6186 = vxor.u32 %v6185, 2147483648
        %v6187 = vmul.f32 %v6186, 1.442695
        %v6188 = vpow.pop %v6187
        %v6189 = vadd.f32 %v6188, 1.0
        %v6190 = vrcp.pop %v6189
        %v6191 = vmul.f32 1.0, %v6190
        %6192 = vmatprep.subr.mxu0 0.0
        %6193 = vmatpush1.msra.mxu0 %v4930
        %6194 = vmatprep.subr.mxu0 0.0
        %6195 = vmatpush1.msra.mxu0 %v4931
        %6196 = vmatprep.subr.mxu0 0.0
        %6197 = vmatpush1.msra.mxu0 0.0
        %6198 = vmatprep.subr.mxu0 0.0
        %6199 = vmatpush1.msra.mxu0 0.0
        %6200 = vmatprep.subr.mxu0 0.0
        %6201 = vmatpush1.msra.mxu0 0.0
        %6202 = vmatprep.subr.mxu0 0.0
        %6203 = vmatpush1.msra.mxu0 0.0
        %6204 = vmatprep.subr.mxu0 0.0
        %6205 = vmatpush1.msra.mxu0 0.0
        %6206 = vmatprep.subr.mxu0 0.0
        %6207 = vmatpush1.msra.mxu0 0.0
        %6208 = vmatprep.subr.mxu0 0.0
        %6209 = vmatpush1.msra.mxu0 0.0
        %6210 = vmatprep.subr.mxu0 0.0
        %6211 = vmatpush1.msra.mxu0 0.0
        %6212 = vmatprep.subr.mxu0 0.0
        %6213 = vmatpush1.msra.mxu0 0.0
        %6214 = vmatprep.subr.mxu0 0.0
        %6215 = vmatpush1.msra.mxu0 0.0
        %6216 = vmatprep.subr.mxu0 0.0
        %6217 = vmatpush1.msra.mxu0 0.0
        %6218 = vmatprep.subr.mxu0 0.0
        %6219 = vmatpush1.msra.mxu0 0.0
        %6220 = vmatprep.subr.mxu0 0.0
        %6221 = vmatpush1.msra.mxu0 0.0
        %6222 = vmatprep.subr.mxu0 0.0
        %6223 = vmatpush1.msra.mxu0 0.0
        %6224 = vmatprep.subr.mxu0 0.0
        %6225 = vmatpush1.msra.mxu0 0.0
        %6226 = vmatprep.subr.mxu0 0.0
        %6227 = vmatpush1.msra.mxu0 0.0
        %6228 = vmatprep.subr.mxu0 0.0
        %6229 = vmatpush1.msra.mxu0 0.0
        %6230 = vmatprep.subr.mxu0 0.0
        %6231 = vmatpush1.msra.mxu0 0.0
        %6232 = vmatprep.subr.mxu0 0.0
        %6233 = vmatpush1.msra.mxu0 0.0
        %6234 = vmatprep.subr.mxu0 0.0
        %6235 = vmatpush1.msra.mxu0 0.0
        %6236 = vmatprep.subr.mxu0 0.0
        %6237 = vmatpush1.msra.mxu0 0.0
        %6238 = vmatprep.subr.mxu0 0.0
        %6239 = vmatpush1.msra.mxu0 0.0
        %6240 = vmatprep.subr.mxu0 0.0
        %6241 = vmatpush1.msra.mxu0 0.0
        %6242 = vmatprep.subr.mxu0 0.0
        %6243 = vmatpush1.msra.mxu0 0.0
        %6244 = vmatprep.subr.mxu0 0.0
        %6245 = vmatpush1.msra.mxu0 0.0
        %6246 = vmatprep.subr.mxu0 0.0
        %6247 = vmatpush1.msra.mxu0 0.0
        %6248 = vmatprep.subr.mxu0 0.0
        %6249 = vmatpush1.msra.mxu0 0.0
        %6250 = vmatprep.subr.mxu0 0.0
        %6251 = vmatpush1.msra.mxu0 0.0
        %6252 = vmatprep.subr.mxu0 0.0
        %6253 = vmatpush1.msra.mxu0 0.0
        %6254 = vmatprep.subr.mxu0 0.0
        %6255 = vmatpush1.msra.mxu0 0.0
        %6256 = vmatprep.mubr.f32.mxu0 0.0
        %6257 = vmatmul.mubr.f32.gmra.mrb[0].mxu0 %v6113
        %v6258 = vpop.f32.mrb[0].mxu0
        %v6259 = vadd.f32 0.0, %v6258
        %v6260 = vpop.f32.mrb[0].mxu0
        %6261 = vdwg.mxu0
        %v6262 = vadd.f32 %v4816, %v6259
        %v6263 = vxor.u32 %v6262, 2147483648
        %v6264 = vmul.f32 %v6263, 1.442695
        %v6265 = vpow.pop %v6264
        %v6266 = vadd.f32 %v6265, 1.0
        %v6267 = vrcp.pop %v6266
        %v6268 = vmul.f32 1.0, %v6267
        %6269 = vmatprep.subr.mxu0 0.0
        %6270 = vmatpush1.msra.mxu0 %v4933
        %6271 = vmatprep.subr.mxu0 0.0
        %6272 = vmatpush1.msra.mxu0 %v4934
        %6273 = vmatprep.subr.mxu0 0.0
        %6274 = vmatpush1.msra.mxu0 0.0
        %6275 = vmatprep.subr.mxu0 0.0
        %6276 = vmatpush1.msra.mxu0 0.0
        %6277 = vmatprep.subr.mxu0 0.0
        %6278 = vmatpush1.msra.mxu0 0.0
        %6279 = vmatprep.subr.mxu0 0.0
        %6280 = vmatpush1.msra.mxu0 0.0
        %6281 = vmatprep.subr.mxu0 0.0
        %6282 = vmatpush1.msra.mxu0 0.0
        %6283 = vmatprep.subr.mxu0 0.0
        %6284 = vmatpush1.msra.mxu0 0.0
        %6285 = vmatprep.subr.mxu0 0.0
        %6286 = vmatpush1.msra.mxu0 0.0
        %6287 = vmatprep.subr.mxu0 0.0
        %6288 = vmatpush1.msra.mxu0 0.0
        %6289 = vmatprep.subr.mxu0 0.0
        %6290 = vmatpush1.msra.mxu0 0.0
        %6291 = vmatprep.subr.mxu0 0.0
        %6292 = vmatpush1.msra.mxu0 0.0
        %6293 = vmatprep.subr.mxu0 0.0
        %6294 = vmatpush1.msra.mxu0 0.0
        %6295 = vmatprep.subr.mxu0 0.0
        %6296 = vmatpush1.msra.mxu0 0.0
        %6297 = vmatprep.subr.mxu0 0.0
        %6298 = vmatpush1.msra.mxu0 0.0
        %6299 = vmatprep.subr.mxu0 0.0
        %6300 = vmatpush1.msra.mxu0 0.0
        %6301 = vmatprep.subr.mxu0 0.0
        %6302 = vmatpush1.msra.mxu0 0.0
        %6303 = vmatprep.subr.mxu0 0.0
        %6304 = vmatpush1.msra.mxu0 0.0
        %6305 = vmatprep.subr.mxu0 0.0
        %6306 = vmatpush1.msra.mxu0 0.0
        %6307 = vmatprep.subr.mxu0 0.0
        %6308 = vmatpush1.msra.mxu0 0.0
        %6309 = vmatprep.subr.mxu0 0.0
        %6310 = vmatpush1.msra.mxu0 0.0
        %6311 = vmatprep.subr.mxu0 0.0
        %6312 = vmatpush1.msra.mxu0 0.0
        %6313 = vmatprep.subr.mxu0 0.0
        %6314 = vmatpush1.msra.mxu0 0.0
        %6315 = vmatprep.subr.mxu0 0.0
        %6316 = vmatpush1.msra.mxu0 0.0
        %6317 = vmatprep.subr.mxu0 0.0
        %6318 = vmatpush1.msra.mxu0 0.0
        %6319 = vmatprep.subr.mxu0 0.0
        %6320 = vmatpush1.msra.mxu0 0.0
        %6321 = vmatprep.subr.mxu0 0.0
        %6322 = vmatpush1.msra.mxu0 0.0
        %6323 = vmatprep.subr.mxu0 0.0
        %6324 = vmatpush1.msra.mxu0 0.0
        %6325 = vmatprep.subr.mxu0 0.0
        %6326 = vmatpush1.msra.mxu0 0.0
        %6327 = vmatprep.subr.mxu0 0.0
        %6328 = vmatpush1.msra.mxu0 0.0
        %6329 = vmatprep.subr.mxu0 0.0
        %6330 = vmatpush1.msra.mxu0 0.0
        %6331 = vmatprep.subr.mxu0 0.0
        %6332 = vmatpush1.msra.mxu0 0.0
        %6333 = vmatprep.mubr.f32.mxu0 0.0
        %6334 = vmatmul.mubr.f32.gmra.mrb[0].mxu0 %v6113
        %v6335 = vpop.f32.mrb[0].mxu0
        %v6336 = vadd.f32 %v5332, %v6335
        %v6337 = vpop.f32.mrb[0].mxu0
        %6338 = vdwg.mxu0
        %v6339 = vmul.f32 %v6191, %v6336
        %v6340 = vadd.f32 %v4906, %v6339
        %v6341 = vtanh.pop %v6340
        %v6342 = vsub.f32 1.0, %v6268
        %v6343 = vmul.f32 %v6342, %v6341
        %v6344 = vmul.f32 %v6268, %v5877
        %v6345 = vadd.f32 %v6343, %v6344
        %6347 = vrot.lane.b32.xlu0 %v6345, 16
        %v6348 = vpop.permute.xlu0 %6347
        %v6350 = vsel %vm1293, %v5174, %v6348
        %6351 = vrot.lane.b32.xlu0 %v5877, 16
        %v6352 = vpop.permute.xlu0 %6351
        %v6354 = vsel %vm1293, %v5643, %v6352
        %6355 = vrot.lane.b32.xlu0 %v5409, 16
        %v6356 = vpop.permute.xlu0 %6355
        %v6358 = vsel %vm1293, %v6111, %v6356
        %v6359 = vld [vmem:[%s16] sm:$0xff]
        %v6360 = vld [vmem:[%s16 + $0x8] sm:$0xff]
        %v6361 = vld [vmem:[%s16 + $0x10] sm:$0xff]
        %v6362 = vld [vmem:[%s16 + $0x18] sm:$0xff]
        %v6363 = vld [vmem:[%s17] sm:$0x1]
        %v6365 = vlaneseq
        %v6366 = vshrl.u32 %v6365, 7
        %v6367 = vsub.s32 0, %v6366
        %v6368 = vrot.slane %v6363, %v6367
        %v6371 = vsel %vm637, %v6350, 0
        %v6374 = vsel %vm637, %v6354, 0
        %v6377 = vsel %vm637, %v6358, 0
        %6379 = vmatprep.subr.mxu0 0.0
        %6380 = vmatpush1.msra.mxu0 %v6359
        %6381 = vmatprep.subr.mxu0 0.0
        %6382 = vmatpush1.msra.mxu0 %v6360
        %6383 = vmatprep.subr.mxu0 0.0
        %6384 = vmatpush1.msra.mxu0 %v6361
        %6385 = vmatprep.subr.mxu0 0.0
        %6386 = vmatpush1.msra.mxu0 %v6362
        %6387 = vmatprep.subr.mxu0 0.0
        %6388 = vmatpush1.msra.mxu0 0.0
        %6389 = vmatprep.subr.mxu0 0.0
        %6390 = vmatpush1.msra.mxu0 0.0
        %6391 = vmatprep.subr.mxu0 0.0
        %6392 = vmatpush1.msra.mxu0 0.0
        %6393 = vmatprep.subr.mxu0 0.0
        %6394 = vmatpush1.msra.mxu0 0.0
        %6395 = vmatprep.subr.mxu0 0.0
        %6396 = vmatpush1.msra.mxu0 0.0
        %6397 = vmatprep.subr.mxu0 0.0
        %6398 = vmatpush1.msra.mxu0 0.0
        %6399 = vmatprep.subr.mxu0 0.0
        %6400 = vmatpush1.msra.mxu0 0.0
        %6401 = vmatprep.subr.mxu0 0.0
        %6402 = vmatpush1.msra.mxu0 0.0
        %6403 = vmatprep.subr.mxu0 0.0
        %6404 = vmatpush1.msra.mxu0 0.0
        %6405 = vmatprep.subr.mxu0 0.0
        %6406 = vmatpush1.msra.mxu0 0.0
        %6407 = vmatprep.subr.mxu0 0.0
        %6408 = vmatpush1.msra.mxu0 0.0
        %6409 = vmatprep.subr.mxu0 0.0
        %6410 = vmatpush1.msra.mxu0 0.0
        %6411 = vmatprep.subr.mxu0 0.0
        %6412 = vmatpush1.msra.mxu0 0.0
        %6413 = vmatprep.subr.mxu0 0.0
        %6414 = vmatpush1.msra.mxu0 0.0
        %6415 = vmatprep.subr.mxu0 0.0
        %6416 = vmatpush1.msra.mxu0 0.0
        %6417 = vmatprep.subr.mxu0 0.0
        %6418 = vmatpush1.msra.mxu0 0.0
        %6419 = vmatprep.subr.mxu0 0.0
        %6420 = vmatpush1.msra.mxu0 0.0
        %6421 = vmatprep.subr.mxu0 0.0
        %6422 = vmatpush1.msra.mxu0 0.0
        %6423 = vmatprep.subr.mxu0 0.0
        %6424 = vmatpush1.msra.mxu0 0.0
        %6425 = vmatprep.subr.mxu0 0.0
        %6426 = vmatpush1.msra.mxu0 0.0
        %6427 = vmatprep.subr.mxu0 0.0
        %6428 = vmatpush1.msra.mxu0 0.0
        %6429 = vmatprep.subr.mxu0 0.0
        %6430 = vmatpush1.msra.mxu0 0.0
        %6431 = vmatprep.subr.mxu0 0.0
        %6432 = vmatpush1.msra.mxu0 0.0
        %6433 = vmatprep.subr.mxu0 0.0
        %6434 = vmatpush1.msra.mxu0 0.0
        %6435 = vmatprep.subr.mxu0 0.0
        %6436 = vmatpush1.msra.mxu0 0.0
        %6437 = vmatprep.subr.mxu0 0.0
        %6438 = vmatpush1.msra.mxu0 0.0
        %6439 = vmatprep.subr.mxu0 0.0
        %6440 = vmatpush1.msra.mxu0 0.0
        %6441 = vmatprep.subr.mxu0 0.0
        %6442 = vmatpush1.msra.mxu0 0.0
        %6443 = vmatprep.mubr.f32.mxu0 0.0
        %6444 = vmatmul.mubr.f32.gmra.mrb[0].mxu0 %v6371
        %v6445 = vpop.f32.mrb[0].mxu0
        %v6446 = vadd.f32 %v6368, %v6445
        %v6447 = vpop.f32.mrb[0].mxu0
        %6448 = vmatprep.mubr.f32.mxu0 0.0
        %6449 = vmatmul.mubr.f32.gmra.mrb[0].mxu0 %v6374
        %v6450 = vpop.f32.mrb[0].mxu0
        %v6451 = vadd.f32 %v6368, %v6450
        %v6452 = vpop.f32.mrb[0].mxu0
        %6453 = vmatprep.mubr.f32.mxu0 0.0
        %6454 = vmatmul.mubr.f32.gmra.mrb[0].mxu0 %v6377
        %v6455 = vpop.f32.mrb[0].mxu0
        %v6456 = vadd.f32 %v6368, %v6455
        %v6457 = vpop.f32.mrb[0].mxu0
        %6458 = vdwg.mxu0
        %v6459 = vtanh.pop %v6446
        %v6460 = vtanh.pop %v6451
        %v6461 = vtanh.pop %v6456
        %v6462 = vld [vmem:[%s18] sm:$0x1]
        %v6464 = vlaneseq
        %v6465 = vshrl.u32 %v6464, 7
        %v6466 = vsub.s32 0, %v6465
        %v6467 = vrot.slane %v6462, %v6466
        %v6469 = vmul.f32 %v6459, %v6467
        %v6470 = vmul.f32 %v6460, %v6467
        %v6471 = vmul.f32 %v6461, %v6467
        %v6472 = vsel %vm637, %v6469, 0.0
        %6473 = vadd.xlane.f32.xlu0 %v6472
        %v6474 = vpop.xlane.xlu0 %6473
        %v6475 = vsel %vm637, %v6470, 0.0
        %6476 = vadd.xlane.f32.xlu0 %v6475
        %v6477 = vpop.xlane.xlu0 %6476
        %v6478 = vsel %vm637, %v6471, 0.0
        %6479 = vadd.xlane.f32.xlu0 %v6478
        %v6480 = vpop.xlane.xlu0 %6479
        %v6481 = vtanh.pop %v6474
        %v6482 = vtanh.pop %v6477
        %v6483 = vtanh.pop %v6480
        %v6484 = vsel %vm4302, %v6481, %v6482
        %v6485 = vsel %vm4304, %v6484, %v6483
        %v6486 = vsel %vm4306, %v6485, -inf
        %6487 = vmax.xlane.f32.xlu0 %v6486
        %v6488 = vpop.xlane.xlu0 %6487
        %v6489 = vsub.f32 %v6485, %v6488
        %v6490 = vmul.f32 %v6489, 1.442695
        %v6491 = vpow.pop %v6490
        %v6492 = vsel %vm4306, %v6491, 0.0
        %6493 = vadd.xlane.f32.xlu0 %v6492
        %v6494 = vpop.xlane.xlu0 %6493
        %v6495 = vrcp.pop %v6494
        %v6496 = vmul.f32 %v6491, %v6495
        %6498 = vset.pattern.permute.xlu0 0
        %6499 = vperm.xlu0 %6498, %v6496
        %v6500 = vpop.permute.xlu0 %6499
        %v6502 = vmul.f32 %v6350, %v6500
        %6503 = vset.pattern.permute.xlu0 1
        %6504 = vperm.xlu0 %6503, %v6496
        %v6505 = vpop.permute.xlu0 %6504
        %v6507 = vmul.f32 %v6354, %v6505
        %v6508 = vadd.f32 %v6502, %v6507
        %6509 = vset.pattern.permute.xlu0 2
        %6510 = vperm.xlu0 %6509, %v6496
        %v6511 = vpop.permute.xlu0 %6510
        %v6513 = vmul.f32 %v6358, %v6511
        %v6514 = vadd.f32 %v6508, %v6513
        %6515 = vst.msk [vmem:[%s19] sm:$0xff] %vm637, %v6514
        %6516 = vst.msk [vmem:[%s20] sm:$0xff] %vm637, %v6350
        %6517 = vst.msk [vmem:[%s20 + $0x8] sm:$0xff] %vm637, %v6354
        %6518 = vst.msk [vmem:[%s20 + $0x10] sm:$0xff] %vm637, %v6358
      $region104: #{postenc_forward_pallas.1} parent=95 // pred_fallthru
        _
      // Predicated region
      $region105: #{postenc_forward_pallas.1} parent=95 // pred_check
        %p6519 = pneg %p449
      $region106: #{postenc_forward_pallas.1} parent=95 // pred_check_branch
        %6521 = sbr.rel (%p6519) target = $region108
      $region107: #{postenc_forward_pallas.1} parent=95 // pred_region
        _
      $region108: #{postenc_forward_pallas.1} parent=95 // pred_fallthru
        _
      // Predicated region
      $region109: #{postenc_forward_pallas.1} parent=95 // pred_check
        %p6522 = pneg %p470
      $region110: #{postenc_forward_pallas.1} parent=95 // pred_check_branch
        %6524 = sbr.rel (%p6522) target = $region112
      $region111: #{postenc_forward_pallas.1} parent=95 // pred_region
        _
      $region112: #{postenc_forward_pallas.1} parent=95 // pred_fallthru
        _
      // Predicated region
      $region113: #{postenc_forward_pallas.1} parent=95 // pred_check
        %p6525 = pneg %p449
      $region114: #{postenc_forward_pallas.1} parent=95 // pred_check_branch
        %6527 = sbr.rel (%p6525) target = $region116
      $region115: #{postenc_forward_pallas.1} parent=95 // pred_region
        _
      $region116: #{postenc_forward_pallas.1} parent=95 // pred_fallthru
        _
      // Predicated region
      $region117: #{postenc_forward_pallas.1} parent=95 // pred_check
        %p6528 = pneg %p470
      $region118: #{postenc_forward_pallas.1} parent=95 // pred_check_branch
        %6530 = sbr.rel (%p6528) target = $region120
      $region119: #{postenc_forward_pallas.1} parent=95 // pred_region
        _
      $region120: #{postenc_forward_pallas.1} parent=95 // pred_fallthru
        _
    $region96: #{postenc_forward_pallas.1} parent=5 // pred_fallthru
      _
    %p6531 = scmp.le.s32.totalorder 2, %s27
    // Predicated region
    $region121: #{postenc_forward_pallas.1} parent=5 // pred_check
      %p6532 = pneg %p6531
    $region122: #{postenc_forward_pallas.1} parent=5 // pred_check_branch
      %6534 = sbr.rel (%p6532) target = $region124
    $region123: #{postenc_forward_pallas.1} parent=5 // pred_region
      %s6535 = ssub.s32 %s27, 2
    $region124: #{postenc_forward_pallas.1} parent=5 // pred_fallthru
      _
  $region6: #{postenc_forward_pallas.1} parent=0 // loop_footer
    %s31 = sadd.s32 1, %s27
  $region7: #{postenc_forward_pallas.1} parent=0 // loop_footer_branch
    %26 = sbr.rel target = $region3
  $region8: #{postenc_forward_pallas.1} parent=0 // loop_exit
    _

</llo_original>
